<compile_context>
chip_gen: v6e
topology: v6e:2x2x1
jax: 0.10.0
libtpu: 0.0.40
codegen_flags: <defaults>
</compile_context>

<pallas_src>
import functools

import jax
import jax.numpy as jnp
from jax.experimental import pallas as pl
from jax.experimental.pallas import tpu as pltpu

LEAK = 0.1
BN_EPS = 1e-5
VMEM_LIMIT = 32 * 1024 * 1024  # safe ceiling on v5e / v6e / v7x


# ------------------------------ small helpers -------------------------------

def _round_up(x, m):
    return ((x + m - 1) // m) * m


def _plan_m(m, max_tile):
    """Choose an M tile (multiple of 16) and the zero-padded M for an even grid."""
    nt = -(-m // max_tile)
    tm = _round_up(-(-m // nt), 16)
    return tm, tm * nt, nt


def _lrelu(x):
    return jnp.where(x > 0, x, LEAK * x)


def _compiler_params():
    return pltpu.CompilerParams(dimension_semantics=("parallel",),
                                vmem_limit_bytes=VMEM_LIMIT)


# ------------------------------ Pallas kernels -------------------------------

def _conv_gemm_bias_lrelu_kernel(x_ref, w_ref, b_ref, o_ref):
    # o = lrelu(x @ w + b); bf16 operands, f32 accumulation, bf16 output.
    z = jnp.dot(x_ref[...], w_ref[...], preferred_element_type=jnp.float32)
    z = _lrelu(z + b_ref[...])
    o_ref[...] = z.astype(o_ref.dtype)


def _gemm_stats_kernel(x_ref, w_ref, y_ref, stats_ref, *, valid_rows, tile_m):
    # y = x @ w (no bias: cancelled by the following BatchNorm); also emit this
    # tile's per-column sum / sum-of-squares for the BN batch statistics.
    z = jnp.dot(x_ref[...], w_ref[...], preferred_element_type=jnp.float32)
    y_ref[...] = z.astype(y_ref.dtype)
    row = pl.program_id(0) * tile_m + jax.lax.broadcasted_iota(
        jnp.int32, z.shape, 0)
    zm = jnp.where(row < valid_rows, z, 0.0)
    stats_ref[0, 0:1, :] = jnp.sum(zm, axis=0, keepdims=True)
    stats_ref[0, 1:2, :] = jnp.sum(zm * zm, axis=0, keepdims=True)


def _affine_lrelu_gemm_stats_kernel(x_ref, a_ref, c_ref, w_ref, y_ref,
                                    stats_ref, *, valid_rows, tile_m):
    # Fused: previous layer's BatchNorm affine + LeakyReLU (f32 epilogue math)
    # followed by the next GEMM (bf16 operands, f32 acc) + BN partial stats.
    h = _lrelu(x_ref[...] * a_ref[...] + c_ref[...])
    z = jnp.dot(h.astype(jnp.bfloat16), w_ref[...],
                preferred_element_type=jnp.float32)
    y_ref[...] = z
    row = pl.program_id(0) * tile_m + jax.lax.broadcasted_iota(
        jnp.int32, z.shape, 0)
    zm = jnp.where(row < valid_rows, z, 0.0)
    stats_ref[0, 0:1, :] = jnp.sum(zm, axis=0, keepdims=True)
    stats_ref[0, 1:2, :] = jnp.sum(zm * zm, axis=0, keepdims=True)


def _affine_lrelu_kernel(x_ref, a_ref, c_ref, o_ref):
    o_ref[...] = _lrelu(x_ref[...] * a_ref[...] + c_ref[...])


# ------------------------------ kernel wrappers ------------------------------

def conv_gemm_bias_lrelu(x, w, b, *, max_tile=1024):
    """lrelu(x @ w + b). x:(M,K) bf16, w:(K,N) bf16, b:(N,) f32 -> (M,N) bf16."""
    M, K = x.shape
    N = w.shape[1]
    tm, m_pad, nt = _plan_m(M, max_tile)
    x = jnp.pad(x, ((0, m_pad - M), (0, 0)))
    out = pl.pallas_call(
        _conv_gemm_bias_lrelu_kernel,
        out_shape=jax.ShapeDtypeStruct((m_pad, N), jnp.bfloat16),
        grid=(nt,),
        in_specs=[
            pl.BlockSpec((tm, K), lambda i: (i, 0)),
            pl.BlockSpec((K, N), lambda i: (0, 0)),
            pl.BlockSpec((1, N), lambda i: (0, 0)),
        ],
        out_specs=pl.BlockSpec((tm, N), lambda i: (i, 0)),
        compiler_params=_compiler_params(),
    )(x, w, b.reshape(1, N).astype(jnp.float32))
    return out[:M]


def gemm_with_bn_stats(x, w, *, max_tile=512, out_dtype=jnp.bfloat16):
    """y = x @ w (bias-free) plus exact per-column (sum, sumsq) over real rows."""
    M, K = x.shape
    N = w.shape[1]
    tm, m_pad, nt = _plan_m(M, max_tile)
    x = jnp.pad(x, ((0, m_pad - M), (0, 0)))
    kern = functools.partial(_gemm_stats_kernel, valid_rows=M, tile_m=tm)
    y, stats = pl.pallas_call(
        kern,
        out_shape=(jax.ShapeDtypeStruct((m_pad, N), out_dtype),
                   jax.ShapeDtypeStruct((nt, 2, N), jnp.float32)),
        grid=(nt,),
        in_specs=[
            pl.BlockSpec((tm, K), lambda i: (i, 0)),
            pl.BlockSpec((K, N), lambda i: (0, 0)),
        ],
        out_specs=(pl.BlockSpec((tm, N), lambda i: (i, 0)),
                   pl.BlockSpec((1, 2, N), lambda i: (i, 0, 0))),
        compiler_params=_compiler_params(),
    )(x, w)
    return y[:M], stats[:, 0, :].sum(0), stats[:, 1, :].sum(0)


def affine_lrelu_gemm_with_bn_stats(x, a, c, w, *, max_tile=128):
    """y = lrelu(x*a + c) @ w (bias-free) plus exact per-column (sum, sumsq)."""
    M, K = x.shape
    N = w.shape[1]
    tm, m_pad, nt = _plan_m(M, max_tile)
    x = jnp.pad(x, ((0, m_pad - M), (0, 0)))
    kern = functools.partial(_affine_lrelu_gemm_stats_kernel,
                             valid_rows=M, tile_m=tm)
    y, stats = pl.pallas_call(
        kern,
        out_shape=(jax.ShapeDtypeStruct((m_pad, N), jnp.float32),
                   jax.ShapeDtypeStruct((nt, 2, N), jnp.float32)),
        grid=(nt,),
        in_specs=[
            pl.BlockSpec((tm, K), lambda i: (i, 0)),
            pl.BlockSpec((1, K), lambda i: (0, 0)),
            pl.BlockSpec((1, K), lambda i: (0, 0)),
            pl.BlockSpec((K, N), lambda i: (0, 0)),
        ],
        out_specs=(pl.BlockSpec((tm, N), lambda i: (i, 0)),
                   pl.BlockSpec((1, 2, N), lambda i: (i, 0, 0))),
        compiler_params=_compiler_params(),
    )(x, a.reshape(1, K).astype(jnp.float32),
      c.reshape(1, K).astype(jnp.float32), w)
    return y[:M], stats[:, 0, :].sum(0), stats[:, 1, :].sum(0)


def affine_lrelu(x, a, c, *, max_tile=512):
    """lrelu(x * a + c), M-tiled, lane-dense f32 output."""
    M, N = x.shape
    tm, m_pad, nt = _plan_m(M, max_tile)
    x = jnp.pad(x, ((0, m_pad - M), (0, 0)))
    out = pl.pallas_call(
        _affine_lrelu_kernel,
        out_shape=jax.ShapeDtypeStruct((m_pad, N), jnp.float32),
        grid=(nt,),
        in_specs=[
            pl.BlockSpec((tm, N), lambda i: (i, 0)),
            pl.BlockSpec((1, N), lambda i: (0, 0)),
            pl.BlockSpec((1, N), lambda i: (0, 0)),
        ],
        out_specs=pl.BlockSpec((tm, N), lambda i: (i, 0)),
        compiler_params=_compiler_params(),
    )(x, a.reshape(1, N).astype(jnp.float32),
      c.reshape(1, N).astype(jnp.float32))
    return out[:M]


# -------------------------------- glue (JAX) ---------------------------------

def im2col(x_nhwc, k=4, s=2, p=1):
    """Extract kxk stride-s patches. Returns (B, oh, ow, k*k*C), inner order
    (kh, kw, C)."""
    x = jnp.pad(x_nhwc, ((0, 0), (p, p), (p, p), (0, 0)))
    B, H, W, C = x.shape
    oh = (H - k) // s + 1
    ow = (W - k) // s + 1
    cols = []
    for i in range(k):
        for j in range(k):
            cols.append(x[:, i:i + s * (oh - 1) + 1:s, j:j + s * (ow - 1) + 1:s, :])
    patches = jnp.stack(cols, axis=3)            # (B, oh, ow, k*k, C)
    return patches.reshape(B, oh, ow, k * k * C), oh, ow


def conv_weight_to_gemm(w_oikk):
    """PyTorch (O, I, kh, kw) -> (kh*kw*I, O) matching im2col inner order."""
    O, I, kh, kw = w_oikk.shape
    return jnp.transpose(w_oikk, (2, 3, 1, 0)).reshape(kh * kw * I, O)


def _bn_affine(col_sum, col_sumsq, n_rows, gamma, beta):
    """Training-mode BatchNorm affine (scale, shift) from exact batch stats."""
    mean = col_sum / n_rows
    var = jnp.maximum(col_sumsq / n_rows - mean * mean, 0.0)   # biased var
    scale = gamma * jax.lax.rsqrt(var + BN_EPS)
    shift = beta - mean * scale
    return scale, shift


def init_params(key, hidden_dim):
    """Parameters in PyTorch layout (as the nn.Module would hold them)."""
    ks = jax.random.split(key, 6)
    return {
        "conv1_w": 0.05 * jax.random.normal(ks[0], (64, 1, 4, 4), jnp.float32),
        "conv1_b": 0.01 * jax.random.normal(ks[1], (64,), jnp.float32),
        "conv2_w": 0.05 * jax.random.normal(ks[2], (128, 64, 4, 4), jnp.float32),
        "conv2_b": 0.01 * jax.random.normal(ks[3], (128,), jnp.float32),
        "bn2_g": jnp.ones((128,), jnp.float32),
        "bn2_b": jnp.zeros((128,), jnp.float32),
        "fc_w": 0.02 * jax.random.normal(ks[4], (hidden_dim, 7 * 7 * 128), jnp.float32),
        "fc_b": 0.01 * jax.random.normal(ks[5], (hidden_dim,), jnp.float32),
        "bn3_g": jnp.ones((hidden_dim,), jnp.float32),
        "bn3_b": jnp.zeros((hidden_dim,), jnp.float32),
    }


def prepare_params(params):
    """One-time re-layout: GEMM-ordered bf16 weights, NHWC-ordered fc weight,
    lane-dense (128-padded) fc output channels.  conv2_b / fc_b are omitted:
    they are exactly cancelled by the training-mode BatchNorm that follows."""
    hidden = params["fc_w"].shape[0]
    n_pad = _round_up(hidden, 128)
    w1 = conv_weight_to_gemm(params["conv1_w"]).astype(jnp.bfloat16)   # (16, 64)
    w2 = conv_weight_to_gemm(params["conv2_w"]).astype(jnp.bfloat16)   # (1024, 128)
    # fc weight: PyTorch flattens NCHW -> (c, h, w); re-order once to the
    # (h, w, c) order the conv2 GEMM output naturally has, then pad N to 128.
    w3 = params["fc_w"].reshape(hidden, 128, 7, 7)
    w3 = jnp.transpose(w3, (0, 2, 3, 1)).reshape(hidden, 7 * 7 * 128).T
    w3 = jnp.pad(w3, ((0, 0), (0, n_pad - hidden))).astype(jnp.bfloat16)
    g3 = jnp.pad(params["bn3_g"], (0, n_pad - hidden), constant_values=1.0)
    b3 = jnp.pad(params["bn3_b"], (0, n_pad - hidden))
    return {
        "w1": w1, "b1": params["conv1_b"].astype(jnp.float32),
        "w2": w2, "g2": params["bn2_g"], "beta2": params["bn2_b"],
        "w3": w3, "g3": g3, "beta3": b3,
    }


def encoder_forward(x_nchw, p, hidden_dim):
    B = x_nchw.shape[0]
    x = jnp.transpose(x_nchw, (0, 2, 3, 1)).astype(jnp.bfloat16)     # NHWC, bf16

    # conv1: Conv2d(1, 64, 4, 2, 1) + LeakyReLU(0.1)        28x28 -> 14x14
    p1, oh1, ow1 = im2col(x)                                         # (B,14,14,16)
    h1 = conv_gemm_bias_lrelu(p1.reshape(B * oh1 * ow1, 16), p["w1"], p["b1"])
    h1 = h1.reshape(B, oh1, ow1, 64)                                 # bf16

    # conv2: Conv2d(64, 128, 4, 2, 1) (+ BN2d + LeakyReLU)  14x14 -> 7x7
    # TODO(synk): extract the 4x4 patches inside the Pallas kernel (sum of
    # shifted GEMMs on an h1 tile held in VMEM) to avoid materializing the 4x
    # im2col expansion in HBM; it is done in bf16 JAX glue here.
    p2, oh2, ow2 = im2col(h1)                                        # bf16
    y2, s2, q2 = gemm_with_bn_stats(p2.reshape(B * oh2 * ow2, 16 * 64), p["w2"])
    scale2, shift2 = _bn_affine(s2, q2, B * oh2 * ow2, p["g2"], p["beta2"])

    # conv2's BN + LeakyReLU are fused into the fc GEMM kernel below; the
    # (h, w, c)-ordered flatten matches the re-laid-out fc weight, so no NCHW
    # transpose of the activation is needed.
    y2_flat = y2.reshape(B, oh2 * ow2 * 128)                         # bf16
    a2 = jnp.tile(scale2, oh2 * ow2)
    c2 = jnp.tile(shift2, oh2 * ow2)

    # fc: Linear(6272, hidden) + BN1d + LeakyReLU(0.1)
    y3, s3, q3 = affine_lrelu_gemm_with_bn_stats(y2_flat, a2, c2, p["w3"])
    scale3, shift3 = _bn_affine(s3, q3, B, p["g3"], p["beta3"])
    out = affine_lrelu(y3, scale3, shift3)
    return out[:, :hidden_dim]


if __name__ == "__main__":
    hidden_dim = 32
    key = jax.random.PRNGKey(0)
    k_x, k_p = jax.random.split(key)
    # MNIST-shaped input (the fc layer hard-requires 28x28 spatial input).
    x = jax.random.normal(k_x, (2, 1, 28, 28), jnp.float32)
    params = init_params(k_p, hidden_dim)
    prepared = prepare_params(params)

    fwd = jax.jit(encoder_forward, static_argnames=("hidden_dim",))
    out = fwd(x, prepared, hidden_dim=hidden_dim)
    out = jax.block_until_ready(out)
    assert out.shape == (2, hidden_dim)
    assert bool(jnp.all(jnp.isfinite(out)))
    print("KERNEL_OK")
</pallas_src>

<mosaic_0001>
module attributes {stable_mosaic.version = 11 : i64} {
  func.func @_conv_gemm_bias_lrelu_kernel(%arg0: i32, %arg1: memref<400x16xbf16, #tpu.memory_space<vmem>>, %arg2: memref<16x64xbf16, #tpu.memory_space<vmem>>, %arg3: memref<1x64xf32, #tpu.memory_space<vmem>>, %arg4: memref<400x64xbf16, #tpu.memory_space<vmem>>) attributes {dimension_semantics = [#tpu.dimension_semantics<parallel>], iteration_bounds = array<i64: 1>, scalar_prefetch = 0 : i64, scratch_operands = 0 : i64, tpu.core_type = #tpu.core_type<tc>, window_params = [{transform_indices = @transform_0, window_bounds = array<i64: 400, 16>}, {pipeline_mode = #tpu.pipeline_mode<synchronous>, transform_indices = @transform_1, window_bounds = array<i64: 16, 64>}, {pipeline_mode = #tpu.pipeline_mode<synchronous>, transform_indices = @transform_2, window_bounds = array<i64: 1, 64>}, {transform_indices = @transform_3, window_bounds = array<i64: 400, 64>}]} {
    %c0 = arith.constant 0 : index
    %c0_0 = arith.constant 0 : index
    %0 = vector.load %arg1[%c0, %c0_0] : memref<400x16xbf16, #tpu.memory_space<vmem>>, vector<400x16xbf16>
    %c0_1 = arith.constant 0 : index
    %c0_2 = arith.constant 0 : index
    %1 = vector.load %arg2[%c0_1, %c0_2] : memref<16x64xbf16, #tpu.memory_space<vmem>>, vector<16x64xbf16>
    %cst = arith.constant dense<0.000000e+00> : vector<400x64xf32>
    %2 = tpu.matmul %0, %1, %cst {dimension_numbers = #tpu.dot_dimension_numbers<[1], [0], [0], [1], [0, 0, 1, 1], [], []>} : vector<400x16xbf16>, vector<16x64xbf16>, vector<400x64xf32> -> vector<400x64xf32>
    %c0_3 = arith.constant 0 : index
    %c0_4 = arith.constant 0 : index
    %3 = vector.load %arg3[%c0_3, %c0_4] : memref<1x64xf32, #tpu.memory_space<vmem>>, vector<1x64xf32>
    %4 = vector.broadcast %3 : vector<1x64xf32> to vector<400x64xf32>
    %5 = arith.addf %2, %4 : vector<400x64xf32>
    %cst_5 = arith.constant 0.000000e+00 : f32
    %6 = vector.broadcast %cst_5 : f32 to vector<400x64xf32>
    %7 = arith.cmpf ogt, %5, %6 : vector<400x64xf32>
    %cst_6 = arith.constant 1.000000e-01 : f32
    %8 = vector.broadcast %cst_6 : f32 to vector<400x64xf32>
    %9 = arith.mulf %8, %5 : vector<400x64xf32>
    %10 = arith.select %7, %5, %9 : vector<400x64xi1>, vector<400x64xf32>
    %11 = arith.truncf %10 : vector<400x64xf32> to vector<400x64xbf16>
    %c0_7 = arith.constant 0 : index
    %c0_8 = arith.constant 0 : index
    %12 = vector.load %arg4[%c0_7, %c0_8] : memref<400x64xbf16, #tpu.memory_space<vmem>>, vector<400x64xbf16>
    tpu.vector_store %arg4[%c0_7, %c0_8], %11 {strides = array<i32>} : memref<400x64xbf16, #tpu.memory_space<vmem>>, vector<400x64xbf16>,
    return
  }
  func.func @transform_0(%arg0: i32) -> (i32, i32) {
    %c0_i32 = arith.constant 0 : i32
    %c0_i32_0 = arith.constant 0 : i32
    return %arg0, %c0_i32 : i32, i32
  }
  func.func @transform_1(%arg0: i32) -> (i32, i32) {
    %c0_i32 = arith.constant 0 : i32
    %c0_i32_0 = arith.constant 0 : i32
    %c0_i32_1 = arith.constant 0 : i32
    return %c0_i32, %c0_i32_0 : i32, i32
  }
  func.func @transform_2(%arg0: i32) -> (i32, i32) {
    %c0_i32 = arith.constant 0 : i32
    %c0_i32_0 = arith.constant 0 : i32
    %c0_i32_1 = arith.constant 0 : i32
    return %c0_i32, %c0_i32_0 : i32, i32
  }
  func.func @transform_3(%arg0: i32) -> (i32, i32) {
    %c0_i32 = arith.constant 0 : i32
    %c0_i32_0 = arith.constant 0 : i32
    return %arg0, %c0_i32 : i32, i32
  }
}

module attributes {stable_mosaic.version = 11 : i64} {
  func.func @_gemm_stats_kernel(%arg0: i32, %arg1: memref<112x1024xbf16, #tpu.memory_space<vmem>>, %arg2: memref<1024x128xbf16, #tpu.memory_space<vmem>>, %arg3: memref<112x128xbf16, #tpu.memory_space<vmem>>, %arg4: memref<1x2x128xf32, #tpu.memory_space<vmem>>) attributes {dimension_semantics = [#tpu.dimension_semantics<parallel>], iteration_bounds = array<i64: 1>, scalar_prefetch = 0 : i64, scratch_operands = 0 : i64, tpu.core_type = #tpu.core_type<tc>, window_params = [{transform_indices = @transform_0, window_bounds = array<i64: 112, 1024>}, {pipeline_mode = #tpu.pipeline_mode<synchronous>, transform_indices = @transform_1, window_bounds = array<i64: 1024, 128>}, {transform_indices = @transform_2, window_bounds = array<i64: 112, 128>}, {transform_indices = @transform_3, window_bounds = array<i64: 1, 2, 128>}]} {
    %c0 = arith.constant 0 : index
    %c0_0 = arith.constant 0 : index
    %0 = vector.load %arg1[%c0, %c0_0] : memref<112x1024xbf16, #tpu.memory_space<vmem>>, vector<112x1024xbf16>
    %c0_1 = arith.constant 0 : index
    %c0_2 = arith.constant 0 : index
    %1 = vector.load %arg2[%c0_1, %c0_2] : memref<1024x128xbf16, #tpu.memory_space<vmem>>, vector<1024x128xbf16>
    %cst = arith.constant dense<0.000000e+00> : vector<112x128xf32>
    %2 = tpu.matmul %0, %1, %cst {dimension_numbers = #tpu.dot_dimension_numbers<[1], [0], [0], [1], [0, 0, 1, 1], [], []>} : vector<112x1024xbf16>, vector<1024x128xbf16>, vector<112x128xf32> -> vector<112x128xf32>
    %3 = arith.truncf %2 : vector<112x128xf32> to vector<112x128xbf16>
    %c0_3 = arith.constant 0 : index
    %c0_4 = arith.constant 0 : index
    %4 = vector.load %arg3[%c0_3, %c0_4] : memref<112x128xbf16, #tpu.memory_space<vmem>>, vector<112x128xbf16>
    tpu.vector_store %arg3[%c0_3, %c0_4], %3 {strides = array<i32>} : memref<112x128xbf16, #tpu.memory_space<vmem>>, vector<112x128xbf16>,
    %c112_i32 = arith.constant 112 : i32
    %5 = arith.muli %arg0, %c112_i32 : i32
    %6 = tpu.iota {dimensions = array<i32: 0>} : vector<112x128xi32>
    %7 = vector.broadcast %5 : i32 to vector<112x128xi32>
    %8 = arith.addi %7, %6 : vector<112x128xi32>
    %c98_i32 = arith.constant 98 : i32
    %9 = vector.broadcast %c98_i32 : i32 to vector<112x128xi32>
    %10 = arith.cmpi slt, %8, %9 : vector<112x128xi32>
    %cst_5 = arith.constant 0.000000e+00 : f32
    %11 = vector.broadcast %cst_5 : f32 to vector<112x128xf32>
    %12 = arith.select %10, %2, %11 : vector<112x128xi1>, vector<112x128xf32>
    %cst_6 = arith.constant dense<0.000000e+00> : vector<128xf32>
    %13 = vector.multi_reduction <add>, %12, %cst_6 [0] : vector<112x128xf32> to vector<128xf32>
    %14 = vector.shape_cast %13 : vector<128xf32> to vector<1x128xf32>
    %c0_7 = arith.constant 0 : index
    %c0_8 = arith.constant 0 : index
    %c0_9 = arith.constant 0 : index
    %15 = vector.load %arg4[%c0_7, %c0_8, %c0_9] : memref<1x2x128xf32, #tpu.memory_space<vmem>>, vector<1x1x128xf32>
    %16 = vector.shape_cast %15 : vector<1x1x128xf32> to vector<1x128xf32>
    %17 = vector.shape_cast %14 : vector<1x128xf32> to vector<1x1x128xf32>
    tpu.vector_store %arg4[%c0_7, %c0_8, %c0_9], %17 {strides = array<i32>} : memref<1x2x128xf32, #tpu.memory_space<vmem>>, vector<1x1x128xf32>,
    %18 = arith.mulf %12, %12 : vector<112x128xf32>
    %cst_10 = arith.constant dense<0.000000e+00> : vector<128xf32>
    %19 = vector.multi_reduction <add>, %18, %cst_10 [0] : vector<112x128xf32> to vector<128xf32>
    %20 = vector.shape_cast %19 : vector<128xf32> to vector<1x128xf32>
    %c0_11 = arith.constant 0 : index
    %c1 = arith.constant 1 : index
    %c0_12 = arith.constant 0 : index
    %21 = vector.load %arg4[%c0_11, %c1, %c0_12] : memref<1x2x128xf32, #tpu.memory_space<vmem>>, vector<1x1x128xf32>
    %22 = vector.shape_cast %21 : vector<1x1x128xf32> to vector<1x128xf32>
    %23 = vector.shape_cast %20 : vector<1x128xf32> to vector<1x1x128xf32>
    tpu.vector_store %arg4[%c0_11, %c1, %c0_12], %23 {strides = array<i32>} : memref<1x2x128xf32, #tpu.memory_space<vmem>>, vector<1x1x128xf32>,
    return
  }
  func.func @transform_0(%arg0: i32) -> (i32, i32) {
    %c0_i32 = arith.constant 0 : i32
    %c0_i32_0 = arith.constant 0 : i32
    return %arg0, %c0_i32 : i32, i32
  }
  func.func @transform_1(%arg0: i32) -> (i32, i32) {
    %c0_i32 = arith.constant 0 : i32
    %c0_i32_0 = arith.constant 0 : i32
    %c0_i32_1 = arith.constant 0 : i32
    return %c0_i32, %c0_i32_0 : i32, i32
  }
  func.func @transform_2(%arg0: i32) -> (i32, i32) {
    %c0_i32 = arith.constant 0 : i32
    %c0_i32_0 = arith.constant 0 : i32
    return %arg0, %c0_i32 : i32, i32
  }
  func.func @transform_3(%arg0: i32) -> (i32, i32, i32) {
    %c0_i32 = arith.constant 0 : i32
    %c0_i32_0 = arith.constant 0 : i32
    %c0_i32_1 = arith.constant 0 : i32
    return %arg0, %c0_i32, %c0_i32_0 : i32, i32, i32
  }
}

module attributes {stable_mosaic.version = 11 : i64} {
  func.func @_affine_lrelu_gemm_stats_kernel(%arg0: i32, %arg1: memref<16x6272xbf16, #tpu.memory_space<vmem>>, %arg2: memref<1x6272xf32, #tpu.memory_space<vmem>>, %arg3: memref<1x6272xf32, #tpu.memory_space<vmem>>, %arg4: memref<6272x128xbf16, #tpu.memory_space<vmem>>, %arg5: memref<16x128xf32, #tpu.memory_space<vmem>>, %arg6: memref<1x2x128xf32, #tpu.memory_space<vmem>>) attributes {dimension_semantics = [#tpu.dimension_semantics<parallel>], iteration_bounds = array<i64: 1>, scalar_prefetch = 0 : i64, scratch_operands = 0 : i64, tpu.core_type = #tpu.core_type<tc>, window_params = [{transform_indices = @transform_0, window_bounds = array<i64: 16, 6272>}, {pipeline_mode = #tpu.pipeline_mode<synchronous>, transform_indices = @transform_1, window_bounds = array<i64: 1, 6272>}, {pipeline_mode = #tpu.pipeline_mode<synchronous>, transform_indices = @transform_2, window_bounds = array<i64: 1, 6272>}, {pipeline_mode = #tpu.pipeline_mode<synchronous>, transform_indices = @transform_3, window_bounds = array<i64: 6272, 128>}, {transform_indices = @transform_4, window_bounds = array<i64: 16, 128>}, {transform_indices = @transform_5, window_bounds = array<i64: 1, 2, 128>}]} {
    %c0 = arith.constant 0 : index
    %c0_0 = arith.constant 0 : index
    %0 = vector.load %arg1[%c0, %c0_0] : memref<16x6272xbf16, #tpu.memory_space<vmem>>, vector<16x6272xbf16>
    %c0_1 = arith.constant 0 : index
    %c0_2 = arith.constant 0 : index
    %1 = vector.load %arg2[%c0_1, %c0_2] : memref<1x6272xf32, #tpu.memory_space<vmem>>, vector<1x6272xf32>
    %2 = arith.extf %0 : vector<16x6272xbf16> to vector<16x6272xf32>
    %3 = vector.broadcast %1 : vector<1x6272xf32> to vector<16x6272xf32>
    %4 = arith.mulf %2, %3 : vector<16x6272xf32>
    %c0_3 = arith.constant 0 : index
    %c0_4 = arith.constant 0 : index
    %5 = vector.load %arg3[%c0_3, %c0_4] : memref<1x6272xf32, #tpu.memory_space<vmem>>, vector<1x6272xf32>
    %6 = vector.broadcast %5 : vector<1x6272xf32> to vector<16x6272xf32>
    %7 = arith.addf %4, %6 : vector<16x6272xf32>
    %cst = arith.constant 0.000000e+00 : f32
    %8 = vector.broadcast %cst : f32 to vector<16x6272xf32>
    %9 = arith.cmpf ogt, %7, %8 : vector<16x6272xf32>
    %cst_5 = arith.constant 1.000000e-01 : f32
    %10 = vector.broadcast %cst_5 : f32 to vector<16x6272xf32>
    %11 = arith.mulf %10, %7 : vector<16x6272xf32>
    %12 = arith.select %9, %7, %11 : vector<16x6272xi1>, vector<16x6272xf32>
    %13 = arith.truncf %12 : vector<16x6272xf32> to vector<16x6272xbf16>
    %c0_6 = arith.constant 0 : index
    %c0_7 = arith.constant 0 : index
    %14 = vector.load %arg4[%c0_6, %c0_7] : memref<6272x128xbf16, #tpu.memory_space<vmem>>, vector<6272x128xbf16>
    %cst_8 = arith.constant dense<0.000000e+00> : vector<16x128xf32>
    %15 = tpu.matmul %13, %14, %cst_8 {dimension_numbers = #tpu.dot_dimension_numbers<[1], [0], [0], [1], [0, 0, 1, 1], [], []>} : vector<16x6272xbf16>, vector<6272x128xbf16>, vector<16x128xf32> -> vector<16x128xf32>
    %c0_9 = arith.constant 0 : index
    %c0_10 = arith.constant 0 : index
    %16 = vector.load %arg5[%c0_9, %c0_10] : memref<16x128xf32, #tpu.memory_space<vmem>>, vector<16x128xf32>
    tpu.vector_store %arg5[%c0_9, %c0_10], %15 {strides = array<i32>} : memref<16x128xf32, #tpu.memory_space<vmem>>, vector<16x128xf32>,
    %c16_i32 = arith.constant 16 : i32
    %17 = arith.muli %arg0, %c16_i32 : i32
    %18 = tpu.iota {dimensions = array<i32: 0>} : vector<16x128xi32>
    %19 = vector.broadcast %17 : i32 to vector<16x128xi32>
    %20 = arith.addi %19, %18 : vector<16x128xi32>
    %c2_i32 = arith.constant 2 : i32
    %21 = vector.broadcast %c2_i32 : i32 to vector<16x128xi32>
    %22 = arith.cmpi slt, %20, %21 : vector<16x128xi32>
    %cst_11 = arith.constant 0.000000e+00 : f32
    %23 = vector.broadcast %cst_11 : f32 to vector<16x128xf32>
    %24 = arith.select %22, %15, %23 : vector<16x128xi1>, vector<16x128xf32>
    %cst_12 = arith.constant dense<0.000000e+00> : vector<128xf32>
    %25 = vector.multi_reduction <add>, %24, %cst_12 [0] : vector<16x128xf32> to vector<128xf32>
    %26 = vector.shape_cast %25 : vector<128xf32> to vector<1x128xf32>
    %c0_13 = arith.constant 0 : index
    %c0_14 = arith.constant 0 : index
    %c0_15 = arith.constant 0 : index
    %27 = vector.load %arg6[%c0_13, %c0_14, %c0_15] : memref<1x2x128xf32, #tpu.memory_space<vmem>>, vector<1x1x128xf32>
    %28 = vector.shape_cast %27 : vector<1x1x128xf32> to vector<1x128xf32>
    %29 = vector.shape_cast %26 : vector<1x128xf32> to vector<1x1x128xf32>
    tpu.vector_store %arg6[%c0_13, %c0_14, %c0_15], %29 {strides = array<i32>} : memref<1x2x128xf32, #tpu.memory_space<vmem>>, vector<1x1x128xf32>,
    %30 = arith.mulf %24, %24 : vector<16x128xf32>
    %cst_16 = arith.constant dense<0.000000e+00> : vector<128xf32>
    %31 = vector.multi_reduction <add>, %30, %cst_16 [0] : vector<16x128xf32> to vector<128xf32>
    %32 = vector.shape_cast %31 : vector<128xf32> to vector<1x128xf32>
    %c0_17 = arith.constant 0 : index
    %c1 = arith.constant 1 : index
    %c0_18 = arith.constant 0 : index
    %33 = vector.load %arg6[%c0_17, %c1, %c0_18] : memref<1x2x128xf32, #tpu.memory_space<vmem>>, vector<1x1x128xf32>
    %34 = vector.shape_cast %33 : vector<1x1x128xf32> to vector<1x128xf32>
    %35 = vector.shape_cast %32 : vector<1x128xf32> to vector<1x1x128xf32>
    tpu.vector_store %arg6[%c0_17, %c1, %c0_18], %35 {strides = array<i32>} : memref<1x2x128xf32, #tpu.memory_space<vmem>>, vector<1x1x128xf32>,
    return
  }
  func.func @transform_0(%arg0: i32) -> (i32, i32) {
    %c0_i32 = arith.constant 0 : i32
    %c0_i32_0 = arith.constant 0 : i32
    return %arg0, %c0_i32 : i32, i32
  }
  func.func @transform_1(%arg0: i32) -> (i32, i32) {
    %c0_i32 = arith.constant 0 : i32
    %c0_i32_0 = arith.constant 0 : i32
    %c0_i32_1 = arith.constant 0 : i32
    return %c0_i32, %c0_i32_0 : i32, i32
  }
  func.func @transform_2(%arg0: i32) -> (i32, i32) {
    %c0_i32 = arith.constant 0 : i32
    %c0_i32_0 = arith.constant 0 : i32
    %c0_i32_1 = arith.constant 0 : i32
    return %c0_i32, %c0_i32_0 : i32, i32
  }
  func.func @transform_3(%arg0: i32) -> (i32, i32) {
    %c0_i32 = arith.constant 0 : i32
    %c0_i32_0 = arith.constant 0 : i32
    %c0_i32_1 = arith.constant 0 : i32
    return %c0_i32, %c0_i32_0 : i32, i32
  }
  func.func @transform_4(%arg0: i32) -> (i32, i32) {
    %c0_i32 = arith.constant 0 : i32
    %c0_i32_0 = arith.constant 0 : i32
    return %arg0, %c0_i32 : i32, i32
  }
  func.func @transform_5(%arg0: i32) -> (i32, i32, i32) {
    %c0_i32 = arith.constant 0 : i32
    %c0_i32_0 = arith.constant 0 : i32
    %c0_i32_1 = arith.constant 0 : i32
    return %arg0, %c0_i32, %c0_i32_0 : i32, i32, i32
  }
}

module attributes {stable_mosaic.version = 11 : i64} {
  func.func @_affine_lrelu_kernel(%arg0: i32, %arg1: memref<16x128xf32, #tpu.memory_space<vmem>>, %arg2: memref<1x128xf32, #tpu.memory_space<vmem>>, %arg3: memref<1x128xf32, #tpu.memory_space<vmem>>, %arg4: memref<16x128xf32, #tpu.memory_space<vmem>>) attributes {dimension_semantics = [#tpu.dimension_semantics<parallel>], iteration_bounds = array<i64: 1>, scalar_prefetch = 0 : i64, scratch_operands = 0 : i64, tpu.core_type = #tpu.core_type<tc>, window_params = [{transform_indices = @transform_0, window_bounds = array<i64: 16, 128>}, {pipeline_mode = #tpu.pipeline_mode<synchronous>, transform_indices = @transform_1, window_bounds = array<i64: 1, 128>}, {pipeline_mode = #tpu.pipeline_mode<synchronous>, transform_indices = @transform_2, window_bounds = array<i64: 1, 128>}, {transform_indices = @transform_3, window_bounds = array<i64: 16, 128>}]} {
    %c0 = arith.constant 0 : index
    %c0_0 = arith.constant 0 : index
    %0 = vector.load %arg1[%c0, %c0_0] : memref<16x128xf32, #tpu.memory_space<vmem>>, vector<16x128xf32>
    %c0_1 = arith.constant 0 : index
    %c0_2 = arith.constant 0 : index
    %1 = vector.load %arg2[%c0_1, %c0_2] : memref<1x128xf32, #tpu.memory_space<vmem>>, vector<1x128xf32>
    %2 = vector.broadcast %1 : vector<1x128xf32> to vector<16x128xf32>
    %3 = arith.mulf %0, %2 : vector<16x128xf32>
    %c0_3 = arith.constant 0 : index
    %c0_4 = arith.constant 0 : index
    %4 = vector.load %arg3[%c0_3, %c0_4] : memref<1x128xf32, #tpu.memory_space<vmem>>, vector<1x128xf32>
    %5 = vector.broadcast %4 : vector<1x128xf32> to vector<16x128xf32>
    %6 = arith.addf %3, %5 : vector<16x128xf32>
    %cst = arith.constant 0.000000e+00 : f32
    %7 = vector.broadcast %cst : f32 to vector<16x128xf32>
    %8 = arith.cmpf ogt, %6, %7 : vector<16x128xf32>
    %cst_5 = arith.constant 1.000000e-01 : f32
    %9 = vector.broadcast %cst_5 : f32 to vector<16x128xf32>
    %10 = arith.mulf %9, %6 : vector<16x128xf32>
    %11 = arith.select %8, %6, %10 : vector<16x128xi1>, vector<16x128xf32>
    %c0_6 = arith.constant 0 : index
    %c0_7 = arith.constant 0 : index
    %12 = vector.load %arg4[%c0_6, %c0_7] : memref<16x128xf32, #tpu.memory_space<vmem>>, vector<16x128xf32>
    tpu.vector_store %arg4[%c0_6, %c0_7], %11 {strides = array<i32>} : memref<16x128xf32, #tpu.memory_space<vmem>>, vector<16x128xf32>,
    return
  }
  func.func @transform_0(%arg0: i32) -> (i32, i32) {
    %c0_i32 = arith.constant 0 : i32
    %c0_i32_0 = arith.constant 0 : i32
    return %arg0, %c0_i32 : i32, i32
  }
  func.func @transform_1(%arg0: i32) -> (i32, i32) {
    %c0_i32 = arith.constant 0 : i32
    %c0_i32_0 = arith.constant 0 : i32
    %c0_i32_1 = arith.constant 0 : i32
    return %c0_i32, %c0_i32_0 : i32, i32
  }
  func.func @transform_2(%arg0: i32) -> (i32, i32) {
    %c0_i32 = arith.constant 0 : i32
    %c0_i32_0 = arith.constant 0 : i32
    %c0_i32_1 = arith.constant 0 : i32
    return %c0_i32, %c0_i32_0 : i32, i32
  }
  func.func @transform_3(%arg0: i32) -> (i32, i32) {
    %c0_i32 = arith.constant 0 : i32
    %c0_i32_0 = arith.constant 0 : i32
    return %arg0, %c0_i32 : i32, i32
  }
}

</mosaic_0001>

<llo_original>
// kernel: encoder_forward.4
$region0: #{encoder_forward.4}
  #allocation0 [shape = 'u32[]', space=smem, size = 0x4, offset = 0x4, fixed_abs, tag = 'smem constant byte address 0x4 - core index']
  #allocation1 [shape = 'u32[144,128]{1,0:T(1,128)}', space=vmem, size = 0x12000, scoped, tag = 'internal scratch']
  %s0 = inlined_call_operand.vmem [shape: bf16[400,16], index: 0, kind: input, shape index: {}]
  %s1 = inlined_call_operand.hbm [shape: bf16[16,64], index: 1, kind: input, shape index: {}]
  %s2 = inlined_call_operand.hbm [shape: f32[1,64], index: 2, kind: input, shape index: {}]
  %s3 = inlined_call_operand.vmem [shape: bf16[400,64], index: 3, kind: output, shape index: {}]
  %s4 = sld [smem:[#allocation0]]
  $region30: #{encoder_forward.4} parent=0
    _
  %s6 = ssub.s32 1, %s4
  %s7 = scalar_select 0, %s6, %s4
  $region1: #{encoder_forward.4} parent=0
    #allocation2 [shape = 'u8[4096]{0}', space=vmem, size = 0x1000, scoped, tag = 'input window, operand 1, single buffered']
    #allocation3 [shape = 's32[1]{0}', space=sflag, size = 0x4, scoped, tag = 'scoped memory for encoder_forward.4']
    #allocation4 [shape = 'u8[512]{0}', space=vmem, size = 0x400, scoped, tag = 'input window, operand 2, single buffered']
    #allocation5 [shape = 's32[1]{0}', space=sflag, size = 0x4, scoped, tag = 'scoped memory for encoder_forward.4']
    %8 = vsyncpa [#allocation3], 0
    %9 = vsyncpa [#allocation5], 0
    // Predicated region
    $region2: #{encoder_forward.4} parent=1 // pred_check
      _
    $region3: #{encoder_forward.4} parent=1 // pred_check_branch
      %11 = sbr.rel (0) target = $region5
    $region4: #{encoder_forward.4} parent=1 // pred_region
      _
    $region5: #{encoder_forward.4} parent=1 // pred_fallthru
      _
    // Predicated region
    $region6: #{encoder_forward.4} parent=1 // pred_check
      _
    $region7: #{encoder_forward.4} parent=1 // pred_check_branch
      %13 = sbr.rel (0) target = $region9
    $region8: #{encoder_forward.4} parent=1 // pred_region
      %s15 = ssub.s32 128, 128
      %16 = vsyncadd [#allocation3], %s15
      %s17 = sshll.u32 [#allocation2], 4
      %s18 = int_to_ptr.vmem [resolvable:$true] %s17
      %23 = dma.hbm_to_vmem [thread:$0]  %s1, 128, %s18, [#allocation3], 64, 64, 4
    $region9: #{encoder_forward.4} parent=1 // pred_fallthru
      _
    // Predicated region
    $region10: #{encoder_forward.4} parent=1 // pred_check
      _
    $region11: #{encoder_forward.4} parent=1 // pred_check_branch
      %25 = sbr.rel (0) target = $region13
    $region12: #{encoder_forward.4} parent=1 // pred_region
      %s27 = ssub.s32 16, 16
      %28 = vsyncadd [#allocation5], %s27
      %s30 = sshll.u32 [#allocation4], 4
      %s31 = int_to_ptr.vmem [resolvable:$true] %s30
      %33 = dma.hbm_to_vmem [thread:$0]  %s2, 16, %s31, [#allocation5]
    $region13: #{encoder_forward.4} parent=1 // pred_fallthru
      _
    // Predicated region
    $region14: #{encoder_forward.4} parent=1 // pred_check
      _
    $region15: #{encoder_forward.4} parent=1 // pred_check_branch
      %35 = sbr.rel (0) target = $region17
    $region16: #{encoder_forward.4} parent=1 // pred_region
      %36 = dma.done [#allocation3], 128
    $region17: #{encoder_forward.4} parent=1 // pred_fallthru
      _
    // Predicated region
    $region18: #{encoder_forward.4} parent=1 // pred_check
      _
    $region19: #{encoder_forward.4} parent=1 // pred_check_branch
      %38 = sbr.rel (0) target = $region21
    $region20: #{encoder_forward.4} parent=1 // pred_region
      %39 = dma.done [#allocation5], 16
    $region21: #{encoder_forward.4} parent=1 // pred_fallthru
      _
    %v41 = vld [vmem:[%s0] sm:$0xf]
    %v42 = vld [vmem:[%s0 + $0x4] sm:$0xf]
    %v43 = vld [vmem:[%s0 + $0x8] sm:$0xf]
    %v44 = vld [vmem:[%s0 + $0xc] sm:$0xf]
    %v45 = vld [vmem:[%s0 + $0x10] sm:$0xf]
    %v46 = vld [vmem:[%s0 + $0x14] sm:$0xf]
    %v47 = vld [vmem:[%s0 + $0x18] sm:$0xf]
    %v48 = vld [vmem:[%s0 + $0x1c] sm:$0xf]
    %v49 = vld [vmem:[%s0 + $0x20] sm:$0xf]
    %v50 = vld [vmem:[%s0 + $0x24] sm:$0xf]
    %v51 = vld [vmem:[%s0 + $0x28] sm:$0xf]
    %v52 = vld [vmem:[%s0 + $0x2c] sm:$0xf]
    %v53 = vld [vmem:[%s0 + $0x30] sm:$0xf]
    %v54 = vld [vmem:[%s0 + $0x34] sm:$0xf]
    %v55 = vld [vmem:[%s0 + $0x38] sm:$0xf]
    %v56 = vld [vmem:[%s0 + $0x3c] sm:$0xf]
    %v57 = vld [vmem:[%s0 + $0x40] sm:$0xf]
    %v58 = vld [vmem:[%s0 + $0x44] sm:$0xf]
    %v59 = vld [vmem:[%s0 + $0x48] sm:$0xf]
    %v60 = vld [vmem:[%s0 + $0x4c] sm:$0xf]
    %v61 = vld [vmem:[%s0 + $0x50] sm:$0xf]
    %v62 = vld [vmem:[%s0 + $0x54] sm:$0xf]
    %v63 = vld [vmem:[%s0 + $0x58] sm:$0xf]
    %v64 = vld [vmem:[%s0 + $0x5c] sm:$0xf]
    %v65 = vld [vmem:[%s0 + $0x60] sm:$0xf]
    %v66 = vld [vmem:[%s0 + $0x64] sm:$0xf]
    %v67 = vld [vmem:[%s0 + $0x68] sm:$0xf]
    %v68 = vld [vmem:[%s0 + $0x6c] sm:$0xf]
    %v69 = vld [vmem:[%s0 + $0x70] sm:$0xf]
    %v70 = vld [vmem:[%s0 + $0x74] sm:$0xf]
    %v71 = vld [vmem:[%s0 + $0x78] sm:$0xf]
    %v72 = vld [vmem:[%s0 + $0x7c] sm:$0xf]
    %v73 = vld [vmem:[%s0 + $0x80] sm:$0xf]
    %v74 = vld [vmem:[%s0 + $0x84] sm:$0xf]
    %v75 = vld [vmem:[%s0 + $0x88] sm:$0xf]
    %v76 = vld [vmem:[%s0 + $0x8c] sm:$0xf]
    %v77 = vld [vmem:[%s0 + $0x90] sm:$0xf]
    %v78 = vld [vmem:[%s0 + $0x94] sm:$0xf]
    %v79 = vld [vmem:[%s0 + $0x98] sm:$0xf]
    %v80 = vld [vmem:[%s0 + $0x9c] sm:$0xf]
    %v81 = vld [vmem:[%s0 + $0xa0] sm:$0xf]
    %v82 = vld [vmem:[%s0 + $0xa4] sm:$0xf]
    %v83 = vld [vmem:[%s0 + $0xa8] sm:$0xf]
    %v84 = vld [vmem:[%s0 + $0xac] sm:$0xf]
    %v85 = vld [vmem:[%s0 + $0xb0] sm:$0xf]
    %v86 = vld [vmem:[%s0 + $0xb4] sm:$0xf]
    %v87 = vld [vmem:[%s0 + $0xb8] sm:$0xf]
    %v88 = vld [vmem:[%s0 + $0xbc] sm:$0xf]
    %v89 = vld [vmem:[%s0 + $0xc0] sm:$0xf]
    %v90 = vld [vmem:[%s0 + $0xc4] sm:$0xf]
    %v91 = vld [vmem:[#allocation2] sm:$0xf]
    %v92 = vld [vmem:[#allocation2 + $0x4] sm:$0xf]
    %v93 = vld [vmem:[#allocation4] sm:$0x1]
    %v95 = vlaneseq
    %v96 = vshrl.u32 %v95, 7
    %v97 = vsub.s32 0, %v96
    %v98 = vrot.slane %v93, %v97
    %v150 = vunpack.c.l.b16 %v41
    %v151 = vunpack.c.l.b16 %v42
    %v152 = vunpack.c.l.b16 %v43
    %v153 = vunpack.c.l.b16 %v44
    %v154 = vunpack.c.l.b16 %v45
    %v155 = vunpack.c.l.b16 %v46
    %v156 = vunpack.c.l.b16 %v47
    %v157 = vunpack.c.l.b16 %v48
    %v158 = vunpack.c.l.b16 %v49
    %v159 = vunpack.c.l.b16 %v50
    %v160 = vunpack.c.l.b16 %v51
    %v161 = vunpack.c.l.b16 %v52
    %v162 = vunpack.c.l.b16 %v53
    %v163 = vunpack.c.l.b16 %v54
    %v164 = vunpack.c.l.b16 %v55
    %v165 = vunpack.c.l.b16 %v56
    %v166 = vunpack.c.l.b16 %v57
    %v167 = vunpack.c.l.b16 %v58
    %v168 = vunpack.c.l.b16 %v59
    %v169 = vunpack.c.l.b16 %v60
    %v170 = vunpack.c.l.b16 %v61
    %v171 = vunpack.c.l.b16 %v62
    %v172 = vunpack.c.l.b16 %v63
    %v173 = vunpack.c.l.b16 %v64
    %v174 = vunpack.c.l.b16 %v65
    %v175 = vunpack.c.l.b16 %v66
    %v176 = vunpack.c.l.b16 %v67
    %v177 = vunpack.c.l.b16 %v68
    %v178 = vunpack.c.l.b16 %v69
    %v179 = vunpack.c.l.b16 %v70
    %v180 = vunpack.c.l.b16 %v71
    %v181 = vunpack.c.l.b16 %v72
    %v182 = vunpack.c.l.b16 %v73
    %v183 = vunpack.c.l.b16 %v74
    %v184 = vunpack.c.l.b16 %v75
    %v185 = vunpack.c.l.b16 %v76
    %v186 = vunpack.c.l.b16 %v77
    %v187 = vunpack.c.l.b16 %v78
    %v188 = vunpack.c.l.b16 %v79
    %v189 = vunpack.c.l.b16 %v80
    %v190 = vunpack.c.l.b16 %v81
    %v191 = vunpack.c.l.b16 %v82
    %v192 = vunpack.c.l.b16 %v83
    %v193 = vunpack.c.l.b16 %v84
    %v194 = vunpack.c.l.b16 %v85
    %v195 = vunpack.c.l.b16 %v86
    %v196 = vunpack.c.l.b16 %v87
    %v197 = vunpack.c.l.b16 %v88
    %v198 = vunpack.c.l.b16 %v89
    %v199 = vunpack.c.l.b16 %v90
    %v200 = vpack.c.b16 %v151, %v150
    %v201 = vpack.c.b16 %v153, %v152
    %v202 = vpack.c.b16 %v155, %v154
    %v203 = vpack.c.b16 %v157, %v156
    %v204 = vpack.c.b16 %v159, %v158
    %v205 = vpack.c.b16 %v161, %v160
    %v206 = vpack.c.b16 %v163, %v162
    %v207 = vpack.c.b16 %v165, %v164
    %v208 = vpack.c.b16 %v167, %v166
    %v209 = vpack.c.b16 %v169, %v168
    %v210 = vpack.c.b16 %v171, %v170
    %v211 = vpack.c.b16 %v173, %v172
    %v212 = vpack.c.b16 %v175, %v174
    %v213 = vpack.c.b16 %v177, %v176
    %v214 = vpack.c.b16 %v179, %v178
    %v215 = vpack.c.b16 %v181, %v180
    %v216 = vpack.c.b16 %v183, %v182
    %v217 = vpack.c.b16 %v185, %v184
    %v218 = vpack.c.b16 %v187, %v186
    %v219 = vpack.c.b16 %v189, %v188
    %v220 = vpack.c.b16 %v191, %v190
    %v221 = vpack.c.b16 %v193, %v192
    %v222 = vpack.c.b16 %v195, %v194
    %v223 = vpack.c.b16 %v197, %v196
    %v224 = vpack.c.b16 %v199, %v198
    %v227 = vunpack.c.l.b16 %v91
    %v228 = vunpack.c.l.b16 %v92
    %v229 = vpack.c.b16 %v228, %v227
    %vm231 = vcmask 130048
    %v233 = vsel %vm231, %v200, 0
    %v236 = vsel %vm231, %v201, 0
    %v239 = vsel %vm231, %v202, 0
    %v242 = vsel %vm231, %v203, 0
    %v245 = vsel %vm231, %v204, 0
    %v248 = vsel %vm231, %v205, 0
    %v251 = vsel %vm231, %v206, 0
    %v254 = vsel %vm231, %v207, 0
    %v257 = vsel %vm231, %v208, 0
    %v260 = vsel %vm231, %v209, 0
    %v263 = vsel %vm231, %v210, 0
    %v266 = vsel %vm231, %v211, 0
    %v269 = vsel %vm231, %v212, 0
    %v272 = vsel %vm231, %v213, 0
    %v275 = vsel %vm231, %v214, 0
    %v278 = vsel %vm231, %v215, 0
    %v281 = vsel %vm231, %v216, 0
    %v284 = vsel %vm231, %v217, 0
    %v287 = vsel %vm231, %v218, 0
    %v290 = vsel %vm231, %v219, 0
    %v293 = vsel %vm231, %v220, 0
    %v296 = vsel %vm231, %v221, 0
    %v299 = vsel %vm231, %v222, 0
    %v302 = vsel %vm231, %v223, 0
    %v305 = vsel %vm231, %v224, 0
    %307 = vmatprep.subr.bf16.mxu0 0
    %308 = vmatpush1.bf16.msra.mxu0 0
    %309 = vmatprep.subr.bf16.mxu0 0
    %310 = vmatpush1.bf16.msra.mxu0 0
    %311 = vmatprep.subr.bf16.mxu0 0
    %312 = vmatpush1.bf16.msra.mxu0 0
    %313 = vmatprep.subr.bf16.mxu0 0
    %314 = vmatpush1.bf16.msra.mxu0 0
    %315 = vmatprep.subr.bf16.mxu0 0
    %316 = vmatpush1.bf16.msra.mxu0 0
    %317 = vmatprep.subr.bf16.mxu0 0
    %318 = vmatpush1.bf16.msra.mxu0 0
    %319 = vmatprep.subr.bf16.mxu0 0
    %320 = vmatpush1.bf16.msra.mxu0 0
    %321 = vmatprep.subr.bf16.mxu0 0
    %322 = vmatpush1.bf16.msra.mxu0 %v229
    %323 = vmatprep.subr.bf16.mxu0 0
    %324 = vmatpush2.bf16.msra.mxu0 0
    %325 = vmatprep.subr.bf16.mxu0 0
    %326 = vmatpush2.bf16.msra.mxu0 0
    %327 = vmatprep.subr.bf16.mxu0 0
    %328 = vmatpush2.bf16.msra.mxu0 0
    %329 = vmatprep.subr.bf16.mxu0 0
    %330 = vmatpush2.bf16.msra.mxu0 0
    %331 = vmatprep.subr.bf16.mxu0 0
    %332 = vmatpush2.bf16.msra.mxu0 0
    %333 = vmatprep.subr.bf16.mxu0 0
    %334 = vmatpush2.bf16.msra.mxu0 0
    %335 = vmatprep.subr.bf16.mxu0 0
    %336 = vmatpush2.bf16.msra.mxu0 0
    %337 = vmatprep.subr.bf16.mxu0 0
    %338 = vmatpush2.bf16.msra.mxu0 0
    %339 = vmatprep.mubr.bf16.mxu0 0
    %340 = vmatmul.mubr.bf16.gmra.mxu0 %v233
    %v341 = vpop.f32.mrf.mxu0
    %v342 = vadd.f32 %v98, %v341
    %v343 = vpop.f32.mrf.mxu0
    %v344 = vpop.f32.mrf.mxu0
    %v345 = vadd.f32 %v98, %v344
    %v346 = vpop.f32.mrf.mxu0
    %347 = vmatprep.mubr.bf16.mxu0 0
    %348 = vmatmul.mubr.bf16.gmra.mxu0 %v236
    %v349 = vpop.f32.mrf.mxu0
    %v350 = vadd.f32 %v98, %v349
    %v351 = vpop.f32.mrf.mxu0
    %v352 = vpop.f32.mrf.mxu0
    %v353 = vadd.f32 %v98, %v352
    %v354 = vpop.f32.mrf.mxu0
    %355 = vmatprep.mubr.bf16.mxu0 0
    %356 = vmatmul.mubr.bf16.gmra.mxu0 %v239
    %v357 = vpop.f32.mrf.mxu0
    %v358 = vadd.f32 %v98, %v357
    %v359 = vpop.f32.mrf.mxu0
    %v360 = vpop.f32.mrf.mxu0
    %v361 = vadd.f32 %v98, %v360
    %v362 = vpop.f32.mrf.mxu0
    %363 = vmatprep.mubr.bf16.mxu0 0
    %364 = vmatmul.mubr.bf16.gmra.mxu0 %v242
    %v365 = vpop.f32.mrf.mxu0
    %v366 = vadd.f32 %v98, %v365
    %v367 = vpop.f32.mrf.mxu0
    %v368 = vpop.f32.mrf.mxu0
    %v369 = vadd.f32 %v98, %v368
    %v370 = vpop.f32.mrf.mxu0
    %371 = vmatprep.mubr.bf16.mxu0 0
    %372 = vmatmul.mubr.bf16.gmra.mxu0 %v245
    %v373 = vpop.f32.mrf.mxu0
    %v374 = vadd.f32 %v98, %v373
    %v375 = vpop.f32.mrf.mxu0
    %v376 = vpop.f32.mrf.mxu0
    %v377 = vadd.f32 %v98, %v376
    %v378 = vpop.f32.mrf.mxu0
    %379 = vmatprep.mubr.bf16.mxu0 0
    %380 = vmatmul.mubr.bf16.gmra.mxu0 %v248
    %v381 = vpop.f32.mrf.mxu0
    %v382 = vadd.f32 %v98, %v381
    %v383 = vpop.f32.mrf.mxu0
    %v384 = vpop.f32.mrf.mxu0
    %v385 = vadd.f32 %v98, %v384
    %v386 = vpop.f32.mrf.mxu0
    %387 = vmatprep.mubr.bf16.mxu0 0
    %388 = vmatmul.mubr.bf16.gmra.mxu0 %v251
    %v389 = vpop.f32.mrf.mxu0
    %v390 = vadd.f32 %v98, %v389
    %v391 = vpop.f32.mrf.mxu0
    %v392 = vpop.f32.mrf.mxu0
    %v393 = vadd.f32 %v98, %v392
    %v394 = vpop.f32.mrf.mxu0
    %395 = vmatprep.mubr.bf16.mxu0 0
    %396 = vmatmul.mubr.bf16.gmra.mxu0 %v254
    %v397 = vpop.f32.mrf.mxu0
    %v398 = vadd.f32 %v98, %v397
    %v399 = vpop.f32.mrf.mxu0
    %v400 = vpop.f32.mrf.mxu0
    %v401 = vadd.f32 %v98, %v400
    %v402 = vpop.f32.mrf.mxu0
    %403 = vmatprep.mubr.bf16.mxu0 0
    %404 = vmatmul.mubr.bf16.gmra.mxu0 %v257
    %v405 = vpop.f32.mrf.mxu0
    %v406 = vadd.f32 %v98, %v405
    %v407 = vpop.f32.mrf.mxu0
    %v408 = vpop.f32.mrf.mxu0
    %v409 = vadd.f32 %v98, %v408
    %v410 = vpop.f32.mrf.mxu0
    %411 = vmatprep.mubr.bf16.mxu0 0
    %412 = vmatmul.mubr.bf16.gmra.mxu0 %v260
    %v413 = vpop.f32.mrf.mxu0
    %v414 = vadd.f32 %v98, %v413
    %v415 = vpop.f32.mrf.mxu0
    %v416 = vpop.f32.mrf.mxu0
    %v417 = vadd.f32 %v98, %v416
    %v418 = vpop.f32.mrf.mxu0
    %419 = vmatprep.mubr.bf16.mxu0 0
    %420 = vmatmul.mubr.bf16.gmra.mxu0 %v263
    %v421 = vpop.f32.mrf.mxu0
    %v422 = vadd.f32 %v98, %v421
    %v423 = vpop.f32.mrf.mxu0
    %v424 = vpop.f32.mrf.mxu0
    %v425 = vadd.f32 %v98, %v424
    %v426 = vpop.f32.mrf.mxu0
    %427 = vmatprep.mubr.bf16.mxu0 0
    %428 = vmatmul.mubr.bf16.gmra.mxu0 %v266
    %v429 = vpop.f32.mrf.mxu0
    %v430 = vadd.f32 %v98, %v429
    %v431 = vpop.f32.mrf.mxu0
    %v432 = vpop.f32.mrf.mxu0
    %v433 = vadd.f32 %v98, %v432
    %v434 = vpop.f32.mrf.mxu0
    %435 = vmatprep.mubr.bf16.mxu0 0
    %436 = vmatmul.mubr.bf16.gmra.mxu0 %v269
    %v437 = vpop.f32.mrf.mxu0
    %v438 = vadd.f32 %v98, %v437
    %v439 = vpop.f32.mrf.mxu0
    %v440 = vpop.f32.mrf.mxu0
    %v441 = vadd.f32 %v98, %v440
    %v442 = vpop.f32.mrf.mxu0
    %443 = vmatprep.mubr.bf16.mxu0 0
    %444 = vmatmul.mubr.bf16.gmra.mxu0 %v272
    %v445 = vpop.f32.mrf.mxu0
    %v446 = vadd.f32 %v98, %v445
    %v447 = vpop.f32.mrf.mxu0
    %v448 = vpop.f32.mrf.mxu0
    %v449 = vadd.f32 %v98, %v448
    %v450 = vpop.f32.mrf.mxu0
    %451 = vmatprep.mubr.bf16.mxu0 0
    %452 = vmatmul.mubr.bf16.gmra.mxu0 %v275
    %v453 = vpop.f32.mrf.mxu0
    %v454 = vadd.f32 %v98, %v453
    %v455 = vpop.f32.mrf.mxu0
    %v456 = vpop.f32.mrf.mxu0
    %v457 = vadd.f32 %v98, %v456
    %v458 = vpop.f32.mrf.mxu0
    %459 = vmatprep.mubr.bf16.mxu0 0
    %460 = vmatmul.mubr.bf16.gmra.mxu0 %v278
    %v461 = vpop.f32.mrf.mxu0
    %v462 = vadd.f32 %v98, %v461
    %v463 = vpop.f32.mrf.mxu0
    %v464 = vpop.f32.mrf.mxu0
    %v465 = vadd.f32 %v98, %v464
    %v466 = vpop.f32.mrf.mxu0
    %467 = vmatprep.mubr.bf16.mxu0 0
    %468 = vmatmul.mubr.bf16.gmra.mxu0 %v281
    %v469 = vpop.f32.mrf.mxu0
    %v470 = vadd.f32 %v98, %v469
    %v471 = vpop.f32.mrf.mxu0
    %v472 = vpop.f32.mrf.mxu0
    %v473 = vadd.f32 %v98, %v472
    %v474 = vpop.f32.mrf.mxu0
    %475 = vmatprep.mubr.bf16.mxu0 0
    %476 = vmatmul.mubr.bf16.gmra.mxu0 %v284
    %v477 = vpop.f32.mrf.mxu0
    %v478 = vadd.f32 %v98, %v477
    %v479 = vpop.f32.mrf.mxu0
    %v480 = vpop.f32.mrf.mxu0
    %v481 = vadd.f32 %v98, %v480
    %v482 = vpop.f32.mrf.mxu0
    %483 = vmatprep.mubr.bf16.mxu0 0
    %484 = vmatmul.mubr.bf16.gmra.mxu0 %v287
    %v485 = vpop.f32.mrf.mxu0
    %v486 = vadd.f32 %v98, %v485
    %v487 = vpop.f32.mrf.mxu0
    %v488 = vpop.f32.mrf.mxu0
    %v489 = vadd.f32 %v98, %v488
    %v490 = vpop.f32.mrf.mxu0
    %491 = vmatprep.mubr.bf16.mxu0 0
    %492 = vmatmul.mubr.bf16.gmra.mxu0 %v290
    %v493 = vpop.f32.mrf.mxu0
    %v494 = vadd.f32 %v98, %v493
    %v495 = vpop.f32.mrf.mxu0
    %v496 = vpop.f32.mrf.mxu0
    %v497 = vadd.f32 %v98, %v496
    %v498 = vpop.f32.mrf.mxu0
    %499 = vmatprep.mubr.bf16.mxu0 0
    %500 = vmatmul.mubr.bf16.gmra.mxu0 %v293
    %v501 = vpop.f32.mrf.mxu0
    %v502 = vadd.f32 %v98, %v501
    %v503 = vpop.f32.mrf.mxu0
    %v504 = vpop.f32.mrf.mxu0
    %v505 = vadd.f32 %v98, %v504
    %v506 = vpop.f32.mrf.mxu0
    %507 = vmatprep.mubr.bf16.mxu0 0
    %508 = vmatmul.mubr.bf16.gmra.mxu0 %v296
    %v509 = vpop.f32.mrf.mxu0
    %v510 = vadd.f32 %v98, %v509
    %v511 = vpop.f32.mrf.mxu0
    %v512 = vpop.f32.mrf.mxu0
    %v513 = vadd.f32 %v98, %v512
    %v514 = vpop.f32.mrf.mxu0
    %515 = vmatprep.mubr.bf16.mxu0 0
    %516 = vmatmul.mubr.bf16.gmra.mxu0 %v299
    %v517 = vpop.f32.mrf.mxu0
    %v518 = vadd.f32 %v98, %v517
    %v519 = vpop.f32.mrf.mxu0
    %v520 = vpop.f32.mrf.mxu0
    %v521 = vadd.f32 %v98, %v520
    %v522 = vpop.f32.mrf.mxu0
    %523 = vmatprep.mubr.bf16.mxu0 0
    %524 = vmatmul.mubr.bf16.gmra.mxu0 %v302
    %v525 = vpop.f32.mrf.mxu0
    %v526 = vadd.f32 %v98, %v525
    %v527 = vpop.f32.mrf.mxu0
    %v528 = vpop.f32.mrf.mxu0
    %v529 = vadd.f32 %v98, %v528
    %v530 = vpop.f32.mrf.mxu0
    %531 = vmatprep.mubr.bf16.mxu0 0
    %532 = vmatmul.mubr.bf16.gmra.mxu0 %v305
    %v533 = vpop.f32.mrf.mxu0
    %v534 = vadd.f32 %v98, %v533
    %v535 = vpop.f32.mrf.mxu0
    %v536 = vpop.f32.mrf.mxu0
    %v537 = vadd.f32 %v98, %v536
    %v538 = vpop.f32.mrf.mxu0
    %539 = vdwg.mxu0
    %vm540 = vcmp.gt.f32.partialorder %v342, 0.0
    %vm541 = vcmp.gt.f32.partialorder %v345, 0.0
    %vm542 = vcmp.gt.f32.partialorder %v350, 0.0
    %vm543 = vcmp.gt.f32.partialorder %v353, 0.0
    %vm544 = vcmp.gt.f32.partialorder %v358, 0.0
    %vm545 = vcmp.gt.f32.partialorder %v361, 0.0
    %vm546 = vcmp.gt.f32.partialorder %v366, 0.0
    %vm547 = vcmp.gt.f32.partialorder %v369, 0.0
    %vm548 = vcmp.gt.f32.partialorder %v374, 0.0
    %vm549 = vcmp.gt.f32.partialorder %v377, 0.0
    %vm550 = vcmp.gt.f32.partialorder %v382, 0.0
    %vm551 = vcmp.gt.f32.partialorder %v385, 0.0
    %vm552 = vcmp.gt.f32.partialorder %v390, 0.0
    %vm553 = vcmp.gt.f32.partialorder %v393, 0.0
    %vm554 = vcmp.gt.f32.partialorder %v398, 0.0
    %vm555 = vcmp.gt.f32.partialorder %v401, 0.0
    %vm556 = vcmp.gt.f32.partialorder %v406, 0.0
    %vm557 = vcmp.gt.f32.partialorder %v409, 0.0
    %vm558 = vcmp.gt.f32.partialorder %v414, 0.0
    %vm559 = vcmp.gt.f32.partialorder %v417, 0.0
    %vm560 = vcmp.gt.f32.partialorder %v422, 0.0
    %vm561 = vcmp.gt.f32.partialorder %v425, 0.0
    %vm562 = vcmp.gt.f32.partialorder %v430, 0.0
    %vm563 = vcmp.gt.f32.partialorder %v433, 0.0
    %vm564 = vcmp.gt.f32.partialorder %v438, 0.0
    %vm565 = vcmp.gt.f32.partialorder %v441, 0.0
    %vm566 = vcmp.gt.f32.partialorder %v446, 0.0
    %vm567 = vcmp.gt.f32.partialorder %v449, 0.0
    %vm568 = vcmp.gt.f32.partialorder %v454, 0.0
    %vm569 = vcmp.gt.f32.partialorder %v457, 0.0
    %vm570 = vcmp.gt.f32.partialorder %v462, 0.0
    %vm571 = vcmp.gt.f32.partialorder %v465, 0.0
    %vm572 = vcmp.gt.f32.partialorder %v470, 0.0
    %vm573 = vcmp.gt.f32.partialorder %v473, 0.0
    %vm574 = vcmp.gt.f32.partialorder %v478, 0.0
    %vm575 = vcmp.gt.f32.partialorder %v481, 0.0
    %vm576 = vcmp.gt.f32.partialorder %v486, 0.0
    %vm577 = vcmp.gt.f32.partialorder %v489, 0.0
    %vm578 = vcmp.gt.f32.partialorder %v494, 0.0
    %vm579 = vcmp.gt.f32.partialorder %v497, 0.0
    %vm580 = vcmp.gt.f32.partialorder %v502, 0.0
    %vm581 = vcmp.gt.f32.partialorder %v505, 0.0
    %vm582 = vcmp.gt.f32.partialorder %v510, 0.0
    %vm583 = vcmp.gt.f32.partialorder %v513, 0.0
    %vm584 = vcmp.gt.f32.partialorder %v518, 0.0
    %vm585 = vcmp.gt.f32.partialorder %v521, 0.0
    %vm586 = vcmp.gt.f32.partialorder %v526, 0.0
    %vm587 = vcmp.gt.f32.partialorder %v529, 0.0
    %vm588 = vcmp.gt.f32.partialorder %v534, 0.0
    %vm589 = vcmp.gt.f32.partialorder %v537, 0.0
    %v590 = vmul.f32 %v342, 0.1
    %v591 = vmul.f32 %v345, 0.1
    %v592 = vmul.f32 %v350, 0.1
    %v593 = vmul.f32 %v353, 0.1
    %v594 = vmul.f32 %v358, 0.1
    %v595 = vmul.f32 %v361, 0.1
    %v596 = vmul.f32 %v366, 0.1
    %v597 = vmul.f32 %v369, 0.1
    %v598 = vmul.f32 %v374, 0.1
    %v599 = vmul.f32 %v377, 0.1
    %v600 = vmul.f32 %v382, 0.1
    %v601 = vmul.f32 %v385, 0.1
    %v602 = vmul.f32 %v390, 0.1
    %v603 = vmul.f32 %v393, 0.1
    %v604 = vmul.f32 %v398, 0.1
    %v605 = vmul.f32 %v401, 0.1
    %v606 = vmul.f32 %v406, 0.1
    %v607 = vmul.f32 %v409, 0.1
    %v608 = vmul.f32 %v414, 0.1
    %v609 = vmul.f32 %v417, 0.1
    %v610 = vmul.f32 %v422, 0.1
    %v611 = vmul.f32 %v425, 0.1
    %v612 = vmul.f32 %v430, 0.1
    %v613 = vmul.f32 %v433, 0.1
    %v614 = vmul.f32 %v438, 0.1
    %v615 = vmul.f32 %v441, 0.1
    %v616 = vmul.f32 %v446, 0.1
    %v617 = vmul.f32 %v449, 0.1
    %v618 = vmul.f32 %v454, 0.1
    %v619 = vmul.f32 %v457, 0.1
    %v620 = vmul.f32 %v462, 0.1
    %v621 = vmul.f32 %v465, 0.1
    %v622 = vmul.f32 %v470, 0.1
    %v623 = vmul.f32 %v473, 0.1
    %v624 = vmul.f32 %v478, 0.1
    %v625 = vmul.f32 %v481, 0.1
    %v626 = vmul.f32 %v486, 0.1
    %v627 = vmul.f32 %v489, 0.1
    %v628 = vmul.f32 %v494, 0.1
    %v629 = vmul.f32 %v497, 0.1
    %v630 = vmul.f32 %v502, 0.1
    %v631 = vmul.f32 %v505, 0.1
    %v632 = vmul.f32 %v510, 0.1
    %v633 = vmul.f32 %v513, 0.1
    %v634 = vmul.f32 %v518, 0.1
    %v635 = vmul.f32 %v521, 0.1
    %v636 = vmul.f32 %v526, 0.1
    %v637 = vmul.f32 %v529, 0.1
    %v638 = vmul.f32 %v534, 0.1
    %v639 = vmul.f32 %v537, 0.1
    %v640 = vsel %vm540, %v342, %v590
    %v641 = vsel %vm541, %v345, %v591
    %v642 = vsel %vm542, %v350, %v592
    %v643 = vsel %vm543, %v353, %v593
    %v644 = vsel %vm544, %v358, %v594
    %v645 = vsel %vm545, %v361, %v595
    %v646 = vsel %vm546, %v366, %v596
    %v647 = vsel %vm547, %v369, %v597
    %v648 = vsel %vm548, %v374, %v598
    %v649 = vsel %vm549, %v377, %v599
    %v650 = vsel %vm550, %v382, %v600
    %v651 = vsel %vm551, %v385, %v601
    %v652 = vsel %vm552, %v390, %v602
    %v653 = vsel %vm553, %v393, %v603
    %v654 = vsel %vm554, %v398, %v604
    %v655 = vsel %vm555, %v401, %v605
    %v656 = vsel %vm556, %v406, %v606
    %v657 = vsel %vm557, %v409, %v607
    %v658 = vsel %vm558, %v414, %v608
    %v659 = vsel %vm559, %v417, %v609
    %v660 = vsel %vm560, %v422, %v610
    %v661 = vsel %vm561, %v425, %v611
    %v662 = vsel %vm562, %v430, %v612
    %v663 = vsel %vm563, %v433, %v613
    %v664 = vsel %vm564, %v438, %v614
    %v665 = vsel %vm565, %v441, %v615
    %v666 = vsel %vm566, %v446, %v616
    %v667 = vsel %vm567, %v449, %v617
    %v668 = vsel %vm568, %v454, %v618
    %v669 = vsel %vm569, %v457, %v619
    %v670 = vsel %vm570, %v462, %v620
    %v671 = vsel %vm571, %v465, %v621
    %v672 = vsel %vm572, %v470, %v622
    %v673 = vsel %vm573, %v473, %v623
    %v674 = vsel %vm574, %v478, %v624
    %v675 = vsel %vm575, %v481, %v625
    %v676 = vsel %vm576, %v486, %v626
    %v677 = vsel %vm577, %v489, %v627
    %v678 = vsel %vm578, %v494, %v628
    %v679 = vsel %vm579, %v497, %v629
    %v680 = vsel %vm580, %v502, %v630
    %v681 = vsel %vm581, %v505, %v631
    %v682 = vsel %vm582, %v510, %v632
    %v683 = vsel %vm583, %v513, %v633
    %v684 = vsel %vm584, %v518, %v634
    %v685 = vsel %vm585, %v521, %v635
    %v686 = vsel %vm586, %v526, %v636
    %v687 = vsel %vm587, %v529, %v637
    %v688 = vsel %vm588, %v534, %v638
    %v689 = vsel %vm589, %v537, %v639
    %v690 = vpack.c.bf16 %v641, %v640
    %v691 = vpack.c.bf16 %v643, %v642
    %v692 = vpack.c.bf16 %v645, %v644
    %v693 = vpack.c.bf16 %v647, %v646
    %v694 = vpack.c.bf16 %v649, %v648
    %v695 = vpack.c.bf16 %v651, %v650
    %v696 = vpack.c.bf16 %v653, %v652
    %v697 = vpack.c.bf16 %v655, %v654
    %v698 = vpack.c.bf16 %v657, %v656
    %v699 = vpack.c.bf16 %v659, %v658
    %v700 = vpack.c.bf16 %v661, %v660
    %v701 = vpack.c.bf16 %v663, %v662
    %v702 = vpack.c.bf16 %v665, %v664
    %v703 = vpack.c.bf16 %v667, %v666
    %v704 = vpack.c.bf16 %v669, %v668
    %v705 = vpack.c.bf16 %v671, %v670
    %v706 = vpack.c.bf16 %v673, %v672
    %v707 = vpack.c.bf16 %v675, %v674
    %v708 = vpack.c.bf16 %v677, %v676
    %v709 = vpack.c.bf16 %v679, %v678
    %v710 = vpack.c.bf16 %v681, %v680
    %v711 = vpack.c.bf16 %v683, %v682
    %v712 = vpack.c.bf16 %v685, %v684
    %v713 = vpack.c.bf16 %v687, %v686
    %v714 = vpack.c.bf16 %v689, %v688
    %v740 = vunpack.c.l.b16 %v690
    %v741 = vunpack.c.h.b16 %v690
    %v742 = vunpack.c.l.b16 %v691
    %v743 = vunpack.c.h.b16 %v691
    %v744 = vunpack.c.l.b16 %v692
    %v745 = vunpack.c.h.b16 %v692
    %v746 = vunpack.c.l.b16 %v693
    %v747 = vunpack.c.h.b16 %v693
    %v748 = vunpack.c.l.b16 %v694
    %v749 = vunpack.c.h.b16 %v694
    %v750 = vunpack.c.l.b16 %v695
    %v751 = vunpack.c.h.b16 %v695
    %v752 = vunpack.c.l.b16 %v696
    %v753 = vunpack.c.h.b16 %v696
    %v754 = vunpack.c.l.b16 %v697
    %v755 = vunpack.c.h.b16 %v697
    %v756 = vunpack.c.l.b16 %v698
    %v757 = vunpack.c.h.b16 %v698
    %v758 = vunpack.c.l.b16 %v699
    %v759 = vunpack.c.h.b16 %v699
    %v760 = vunpack.c.l.b16 %v700
    %v761 = vunpack.c.h.b16 %v700
    %v762 = vunpack.c.l.b16 %v701
    %v763 = vunpack.c.h.b16 %v701
    %v764 = vunpack.c.l.b16 %v702
    %v765 = vunpack.c.h.b16 %v702
    %v766 = vunpack.c.l.b16 %v703
    %v767 = vunpack.c.h.b16 %v703
    %v768 = vunpack.c.l.b16 %v704
    %v769 = vunpack.c.h.b16 %v704
    %v770 = vunpack.c.l.b16 %v705
    %v771 = vunpack.c.h.b16 %v705
    %v772 = vunpack.c.l.b16 %v706
    %v773 = vunpack.c.h.b16 %v706
    %v774 = vunpack.c.l.b16 %v707
    %v775 = vunpack.c.h.b16 %v707
    %v776 = vunpack.c.l.b16 %v708
    %v777 = vunpack.c.h.b16 %v708
    %v778 = vunpack.c.l.b16 %v709
    %v779 = vunpack.c.h.b16 %v709
    %v780 = vunpack.c.l.b16 %v710
    %v781 = vunpack.c.h.b16 %v710
    %v782 = vunpack.c.l.b16 %v711
    %v783 = vunpack.c.h.b16 %v711
    %v784 = vunpack.c.l.b16 %v712
    %v785 = vunpack.c.h.b16 %v712
    %v786 = vunpack.c.l.b16 %v713
    %v787 = vunpack.c.h.b16 %v713
    %v788 = vunpack.c.l.b16 %v714
    %v789 = vunpack.c.h.b16 %v714
    %v790 = vpack.c.b16 %v740, %v740
    %v791 = vpack.c.b16 %v741, %v741
    %v792 = vpack.c.b16 %v742, %v742
    %v793 = vpack.c.b16 %v743, %v743
    %v794 = vpack.c.b16 %v744, %v744
    %v795 = vpack.c.b16 %v745, %v745
    %v796 = vpack.c.b16 %v746, %v746
    %v797 = vpack.c.b16 %v747, %v747
    %v798 = vpack.c.b16 %v748, %v748
    %v799 = vpack.c.b16 %v749, %v749
    %v800 = vpack.c.b16 %v750, %v750
    %v801 = vpack.c.b16 %v751, %v751
    %v802 = vpack.c.b16 %v752, %v752
    %v803 = vpack.c.b16 %v753, %v753
    %v804 = vpack.c.b16 %v754, %v754
    %v805 = vpack.c.b16 %v755, %v755
    %v806 = vpack.c.b16 %v756, %v756
    %v807 = vpack.c.b16 %v757, %v757
    %v808 = vpack.c.b16 %v758, %v758
    %v809 = vpack.c.b16 %v759, %v759
    %v810 = vpack.c.b16 %v760, %v760
    %v811 = vpack.c.b16 %v761, %v761
    %v812 = vpack.c.b16 %v762, %v762
    %v813 = vpack.c.b16 %v763, %v763
    %v814 = vpack.c.b16 %v764, %v764
    %v815 = vpack.c.b16 %v765, %v765
    %v816 = vpack.c.b16 %v766, %v766
    %v817 = vpack.c.b16 %v767, %v767
    %v818 = vpack.c.b16 %v768, %v768
    %v819 = vpack.c.b16 %v769, %v769
    %v820 = vpack.c.b16 %v770, %v770
    %v821 = vpack.c.b16 %v771, %v771
    %v822 = vpack.c.b16 %v772, %v772
    %v823 = vpack.c.b16 %v773, %v773
    %v824 = vpack.c.b16 %v774, %v774
    %v825 = vpack.c.b16 %v775, %v775
    %v826 = vpack.c.b16 %v776, %v776
    %v827 = vpack.c.b16 %v777, %v777
    %v828 = vpack.c.b16 %v778, %v778
    %v829 = vpack.c.b16 %v779, %v779
    %v830 = vpack.c.b16 %v780, %v780
    %v831 = vpack.c.b16 %v781, %v781
    %v832 = vpack.c.b16 %v782, %v782
    %v833 = vpack.c.b16 %v783, %v783
    %v834 = vpack.c.b16 %v784, %v784
    %v835 = vpack.c.b16 %v785, %v785
    %v836 = vpack.c.b16 %v786, %v786
    %v837 = vpack.c.b16 %v787, %v787
    %v838 = vpack.c.b16 %v788, %v788
    %v839 = vpack.c.b16 %v789, %v789
    %vm890 = vcmask 519168
    %891 = vst.msk [vmem:[%s3] sm:$0xf] %vm890, %v790
    %892 = vst.msk [vmem:[%s3 + $0x4] sm:$0xf] %vm890, %v791
    %893 = vst.msk [vmem:[%s3 + $0x8] sm:$0xf] %vm890, %v792
    %894 = vst.msk [vmem:[%s3 + $0xc] sm:$0xf] %vm890, %v793
    %895 = vst.msk [vmem:[%s3 + $0x10] sm:$0xf] %vm890, %v794
    %896 = vst.msk [vmem:[%s3 + $0x14] sm:$0xf] %vm890, %v795
    %897 = vst.msk [vmem:[%s3 + $0x18] sm:$0xf] %vm890, %v796
    %898 = vst.msk [vmem:[%s3 + $0x1c] sm:$0xf] %vm890, %v797
    %899 = vst.msk [vmem:[%s3 + $0x20] sm:$0xf] %vm890, %v798
    %900 = vst.msk [vmem:[%s3 + $0x24] sm:$0xf] %vm890, %v799
    %901 = vst.msk [vmem:[%s3 + $0x28] sm:$0xf] %vm890, %v800
    %902 = vst.msk [vmem:[%s3 + $0x2c] sm:$0xf] %vm890, %v801
    %903 = vst.msk [vmem:[%s3 + $0x30] sm:$0xf] %vm890, %v802
    %904 = vst.msk [vmem:[%s3 + $0x34] sm:$0xf] %vm890, %v803
    %905 = vst.msk [vmem:[%s3 + $0x38] sm:$0xf] %vm890, %v804
    %906 = vst.msk [vmem:[%s3 + $0x3c] sm:$0xf] %vm890, %v805
    %907 = vst.msk [vmem:[%s3 + $0x40] sm:$0xf] %vm890, %v806
    %908 = vst.msk [vmem:[%s3 + $0x44] sm:$0xf] %vm890, %v807
    %909 = vst.msk [vmem:[%s3 + $0x48] sm:$0xf] %vm890, %v808
    %910 = vst.msk [vmem:[%s3 + $0x4c] sm:$0xf] %vm890, %v809
    %911 = vst.msk [vmem:[%s3 + $0x50] sm:$0xf] %vm890, %v810
    %912 = vst.msk [vmem:[%s3 + $0x54] sm:$0xf] %vm890, %v811
    %913 = vst.msk [vmem:[%s3 + $0x58] sm:$0xf] %vm890, %v812
    %914 = vst.msk [vmem:[%s3 + $0x5c] sm:$0xf] %vm890, %v813
    %915 = vst.msk [vmem:[%s3 + $0x60] sm:$0xf] %vm890, %v814
    %916 = vst.msk [vmem:[%s3 + $0x64] sm:$0xf] %vm890, %v815
    %917 = vst.msk [vmem:[%s3 + $0x68] sm:$0xf] %vm890, %v816
    %918 = vst.msk [vmem:[%s3 + $0x6c] sm:$0xf] %vm890, %v817
    %919 = vst.msk [vmem:[%s3 + $0x70] sm:$0xf] %vm890, %v818
    %920 = vst.msk [vmem:[%s3 + $0x74] sm:$0xf] %vm890, %v819
    %921 = vst.msk [vmem:[%s3 + $0x78] sm:$0xf] %vm890, %v820
    %922 = vst.msk [vmem:[%s3 + $0x7c] sm:$0xf] %vm890, %v821
    %923 = vst.msk [vmem:[%s3 + $0x80] sm:$0xf] %vm890, %v822
    %924 = vst.msk [vmem:[%s3 + $0x84] sm:$0xf] %vm890, %v823
    %925 = vst.msk [vmem:[%s3 + $0x88] sm:$0xf] %vm890, %v824
    %926 = vst.msk [vmem:[%s3 + $0x8c] sm:$0xf] %vm890, %v825
    %927 = vst.msk [vmem:[%s3 + $0x90] sm:$0xf] %vm890, %v826
    %928 = vst.msk [vmem:[%s3 + $0x94] sm:$0xf] %vm890, %v827
    %929 = vst.msk [vmem:[%s3 + $0x98] sm:$0xf] %vm890, %v828
    %930 = vst.msk [vmem:[%s3 + $0x9c] sm:$0xf] %vm890, %v829
    %931 = vst.msk [vmem:[%s3 + $0xa0] sm:$0xf] %vm890, %v830
    %932 = vst.msk [vmem:[%s3 + $0xa4] sm:$0xf] %vm890, %v831
    %933 = vst.msk [vmem:[%s3 + $0xa8] sm:$0xf] %vm890, %v832
    %934 = vst.msk [vmem:[%s3 + $0xac] sm:$0xf] %vm890, %v833
    %935 = vst.msk [vmem:[%s3 + $0xb0] sm:$0xf] %vm890, %v834
    %936 = vst.msk [vmem:[%s3 + $0xb4] sm:$0xf] %vm890, %v835
    %937 = vst.msk [vmem:[%s3 + $0xb8] sm:$0xf] %vm890, %v836
    %938 = vst.msk [vmem:[%s3 + $0xbc] sm:$0xf] %vm890, %v837
    %939 = vst.msk [vmem:[%s3 + $0xc0] sm:$0xf] %vm890, %v838
    %940 = vst.msk [vmem:[%s3 + $0xc4] sm:$0xf] %vm890, %v839
    // Predicated region
    $region22: #{encoder_forward.4} parent=1 // pred_check
      _
    $region23: #{encoder_forward.4} parent=1 // pred_check_branch
      %942 = sbr.rel (0) target = $region25
    $region24: #{encoder_forward.4} parent=1 // pred_region
      _
    $region25: #{encoder_forward.4} parent=1 // pred_fallthru
      _
    // Predicated region
    $region26: #{encoder_forward.4} parent=1 // pred_check
      _
    $region27: #{encoder_forward.4} parent=1 // pred_check_branch
      %944 = sbr.rel (0) target = $region29
    $region28: #{encoder_forward.4} parent=1 // pred_region
      _
    $region29: #{encoder_forward.4} parent=1 // pred_fallthru
      _
    %945 = vsyncpa [#allocation3], 1
    %946 = vsyncpa [#allocation5], 1

// kernel: encoder_forward.5
$region0: #{encoder_forward.5}
  #allocation0 [shape = 'u32[]', space=smem, size = 0x4, offset = 0x4, fixed_abs, tag = 'smem constant byte address 0x4 - core index']
  #allocation1 [shape = 'u32[144,128]{1,0:T(1,128)}', space=vmem, size = 0x12000, scoped, tag = 'internal scratch']
  %s0 = inlined_call_operand.vmem [shape: bf16[112,1024], index: 0, kind: input, shape index: {}]
  %s1 = inlined_call_operand.vmem [shape: bf16[1024,128], index: 1, kind: input, shape index: {}]
  %s2 = inlined_call_operand.vmem [shape: bf16[112,128], index: 2, kind: output, shape index: {0}]
  %s3 = inlined_call_operand.vmem [shape: f32[1,2,128], index: 3, kind: output, shape index: {1}]
  %4 = xla_tuple %s2, %s3
  %s5 = sld [smem:[#allocation0]]
  $region26: #{encoder_forward.5} parent=0
    _
  %s7 = ssub.s32 1, %s5
  %s8 = scalar_select 0, %s7, %s5
  // Predicated region
  $region2: #{encoder_forward.5} parent=0 // pred_check
    _
  $region3: #{encoder_forward.5} parent=0 // pred_check_branch
    %10 = sbr.rel (0) target = $region5
  $region4: #{encoder_forward.5} parent=0 // pred_region
    _
  $region5: #{encoder_forward.5} parent=0 // pred_fallthru
    _
  // Predicated region
  $region6: #{encoder_forward.5} parent=0 // pred_check
    _
  $region7: #{encoder_forward.5} parent=0 // pred_check_branch
    %12 = sbr.rel (0) target = $region9
  $region8: #{encoder_forward.5} parent=0 // pred_region
    _
  $region9: #{encoder_forward.5} parent=0 // pred_fallthru
    _
  %v14 = vld [vmem:[%s0] sm:$0xff]
  %v15 = vld [vmem:[%s0 + $0x8] sm:$0xff]
  %v16 = vld [vmem:[%s0 + $0x10] sm:$0xff]
  %v17 = vld [vmem:[%s0 + $0x18] sm:$0xff]
  %v18 = vld [vmem:[%s0 + $0x20] sm:$0xff]
  %v19 = vld [vmem:[%s0 + $0x28] sm:$0xff]
  %v20 = vld [vmem:[%s0 + $0x30] sm:$0xff]
  %v21 = vld [vmem:[%s0 + $0x38] sm:$0xff]
  %v22 = vld [vmem:[%s0 + $0x40] sm:$0xff]
  %v23 = vld [vmem:[%s0 + $0x48] sm:$0xff]
  %v24 = vld [vmem:[%s0 + $0x50] sm:$0xff]
  %v25 = vld [vmem:[%s0 + $0x58] sm:$0xff]
  %v26 = vld [vmem:[%s0 + $0x60] sm:$0xff]
  %v27 = vld [vmem:[%s0 + $0x68] sm:$0xff]
  %v28 = vld [vmem:[%s0 + $0x70] sm:$0xff]
  %v29 = vld [vmem:[%s0 + $0x78] sm:$0xff]
  %v30 = vld [vmem:[%s0 + $0x80] sm:$0xff]
  %v31 = vld [vmem:[%s0 + $0x88] sm:$0xff]
  %v32 = vld [vmem:[%s0 + $0x90] sm:$0xff]
  %v33 = vld [vmem:[%s0 + $0x98] sm:$0xff]
  %v34 = vld [vmem:[%s0 + $0xa0] sm:$0xff]
  %v35 = vld [vmem:[%s0 + $0xa8] sm:$0xff]
  %v36 = vld [vmem:[%s0 + $0xb0] sm:$0xff]
  %v37 = vld [vmem:[%s0 + $0xb8] sm:$0xff]
  %v38 = vld [vmem:[%s0 + $0xc0] sm:$0xff]
  %v39 = vld [vmem:[%s0 + $0xc8] sm:$0xff]
  %v40 = vld [vmem:[%s0 + $0xd0] sm:$0xff]
  %v41 = vld [vmem:[%s0 + $0xd8] sm:$0xff]
  %v42 = vld [vmem:[%s0 + $0xe0] sm:$0xff]
  %v43 = vld [vmem:[%s0 + $0xe8] sm:$0xff]
  %v44 = vld [vmem:[%s0 + $0xf0] sm:$0xff]
  %v45 = vld [vmem:[%s0 + $0xf8] sm:$0xff]
  %v46 = vld [vmem:[%s0 + $0x100] sm:$0xff]
  %v47 = vld [vmem:[%s0 + $0x108] sm:$0xff]
  %v48 = vld [vmem:[%s0 + $0x110] sm:$0xff]
  %v49 = vld [vmem:[%s0 + $0x118] sm:$0xff]
  %v50 = vld [vmem:[%s0 + $0x120] sm:$0xff]
  %v51 = vld [vmem:[%s0 + $0x128] sm:$0xff]
  %v52 = vld [vmem:[%s0 + $0x130] sm:$0xff]
  %v53 = vld [vmem:[%s0 + $0x138] sm:$0xff]
  %v54 = vld [vmem:[%s0 + $0x140] sm:$0xff]
  %v55 = vld [vmem:[%s0 + $0x148] sm:$0xff]
  %v56 = vld [vmem:[%s0 + $0x150] sm:$0xff]
  %v57 = vld [vmem:[%s0 + $0x158] sm:$0xff]
  %v58 = vld [vmem:[%s0 + $0x160] sm:$0xff]
  %v59 = vld [vmem:[%s0 + $0x168] sm:$0xff]
  %v60 = vld [vmem:[%s0 + $0x170] sm:$0xff]
  %v61 = vld [vmem:[%s0 + $0x178] sm:$0xff]
  %v62 = vld [vmem:[%s0 + $0x180] sm:$0xff]
  %v63 = vld [vmem:[%s0 + $0x188] sm:$0xff]
  %v64 = vld [vmem:[%s0 + $0x190] sm:$0xff]
  %v65 = vld [vmem:[%s0 + $0x198] sm:$0xff]
  %v66 = vld [vmem:[%s0 + $0x1a0] sm:$0xff]
  %v67 = vld [vmem:[%s0 + $0x1a8] sm:$0xff]
  %v68 = vld [vmem:[%s0 + $0x1b0] sm:$0xff]
  %v69 = vld [vmem:[%s0 + $0x1b8] sm:$0xff]
  %v70 = vld [vmem:[%s1] sm:$0xf]
  %v71 = vld [vmem:[%s1 + $0x4] sm:$0xf]
  %v72 = vld [vmem:[%s1 + $0x8] sm:$0xf]
  %v73 = vld [vmem:[%s1 + $0xc] sm:$0xf]
  %v74 = vld [vmem:[%s1 + $0x10] sm:$0xf]
  %v75 = vld [vmem:[%s1 + $0x14] sm:$0xf]
  %v76 = vld [vmem:[%s1 + $0x18] sm:$0xf]
  %v77 = vld [vmem:[%s1 + $0x1c] sm:$0xf]
  %v78 = vld [vmem:[%s1 + $0x20] sm:$0xf]
  %v79 = vld [vmem:[%s1 + $0x24] sm:$0xf]
  %v80 = vld [vmem:[%s1 + $0x28] sm:$0xf]
  %v81 = vld [vmem:[%s1 + $0x2c] sm:$0xf]
  %v82 = vld [vmem:[%s1 + $0x30] sm:$0xf]
  %v83 = vld [vmem:[%s1 + $0x34] sm:$0xf]
  %v84 = vld [vmem:[%s1 + $0x38] sm:$0xf]
  %v85 = vld [vmem:[%s1 + $0x3c] sm:$0xf]
  %v86 = vld [vmem:[%s1 + $0x40] sm:$0xf]
  %v87 = vld [vmem:[%s1 + $0x44] sm:$0xf]
  %v88 = vld [vmem:[%s1 + $0x48] sm:$0xf]
  %v89 = vld [vmem:[%s1 + $0x4c] sm:$0xf]
  %v90 = vld [vmem:[%s1 + $0x50] sm:$0xf]
  %v91 = vld [vmem:[%s1 + $0x54] sm:$0xf]
  %v92 = vld [vmem:[%s1 + $0x58] sm:$0xf]
  %v93 = vld [vmem:[%s1 + $0x5c] sm:$0xf]
  %v94 = vld [vmem:[%s1 + $0x60] sm:$0xf]
  %v95 = vld [vmem:[%s1 + $0x64] sm:$0xf]
  %v96 = vld [vmem:[%s1 + $0x68] sm:$0xf]
  %v97 = vld [vmem:[%s1 + $0x6c] sm:$0xf]
  %v98 = vld [vmem:[%s1 + $0x70] sm:$0xf]
  %v99 = vld [vmem:[%s1 + $0x74] sm:$0xf]
  %v100 = vld [vmem:[%s1 + $0x78] sm:$0xf]
  %v101 = vld [vmem:[%s1 + $0x7c] sm:$0xf]
  %v102 = vld [vmem:[%s1 + $0x80] sm:$0xf]
  %v103 = vld [vmem:[%s1 + $0x84] sm:$0xf]
  %v104 = vld [vmem:[%s1 + $0x88] sm:$0xf]
  %v105 = vld [vmem:[%s1 + $0x8c] sm:$0xf]
  %v106 = vld [vmem:[%s1 + $0x90] sm:$0xf]
  %v107 = vld [vmem:[%s1 + $0x94] sm:$0xf]
  %v108 = vld [vmem:[%s1 + $0x98] sm:$0xf]
  %v109 = vld [vmem:[%s1 + $0x9c] sm:$0xf]
  %v110 = vld [vmem:[%s1 + $0xa0] sm:$0xf]
  %v111 = vld [vmem:[%s1 + $0xa4] sm:$0xf]
  %v112 = vld [vmem:[%s1 + $0xa8] sm:$0xf]
  %v113 = vld [vmem:[%s1 + $0xac] sm:$0xf]
  %v114 = vld [vmem:[%s1 + $0xb0] sm:$0xf]
  %v115 = vld [vmem:[%s1 + $0xb4] sm:$0xf]
  %v116 = vld [vmem:[%s1 + $0xb8] sm:$0xf]
  %v117 = vld [vmem:[%s1 + $0xbc] sm:$0xf]
  %v118 = vld [vmem:[%s1 + $0xc0] sm:$0xf]
  %v119 = vld [vmem:[%s1 + $0xc4] sm:$0xf]
  %v120 = vld [vmem:[%s1 + $0xc8] sm:$0xf]
  %v121 = vld [vmem:[%s1 + $0xcc] sm:$0xf]
  %v122 = vld [vmem:[%s1 + $0xd0] sm:$0xf]
  %v123 = vld [vmem:[%s1 + $0xd4] sm:$0xf]
  %v124 = vld [vmem:[%s1 + $0xd8] sm:$0xf]
  %v125 = vld [vmem:[%s1 + $0xdc] sm:$0xf]
  %v126 = vld [vmem:[%s1 + $0xe0] sm:$0xf]
  %v127 = vld [vmem:[%s1 + $0xe4] sm:$0xf]
  %v128 = vld [vmem:[%s1 + $0xe8] sm:$0xf]
  %v129 = vld [vmem:[%s1 + $0xec] sm:$0xf]
  %v130 = vld [vmem:[%s1 + $0xf0] sm:$0xf]
  %v131 = vld [vmem:[%s1 + $0xf4] sm:$0xf]
  %v132 = vld [vmem:[%s1 + $0xf8] sm:$0xf]
  %v133 = vld [vmem:[%s1 + $0xfc] sm:$0xf]
  %v134 = vld [vmem:[%s1 + $0x100] sm:$0xf]
  %v135 = vld [vmem:[%s1 + $0x104] sm:$0xf]
  %v136 = vld [vmem:[%s1 + $0x108] sm:$0xf]
  %v137 = vld [vmem:[%s1 + $0x10c] sm:$0xf]
  %v138 = vld [vmem:[%s1 + $0x110] sm:$0xf]
  %v139 = vld [vmem:[%s1 + $0x114] sm:$0xf]
  %v140 = vld [vmem:[%s1 + $0x118] sm:$0xf]
  %v141 = vld [vmem:[%s1 + $0x11c] sm:$0xf]
  %v142 = vld [vmem:[%s1 + $0x120] sm:$0xf]
  %v143 = vld [vmem:[%s1 + $0x124] sm:$0xf]
  %v144 = vld [vmem:[%s1 + $0x128] sm:$0xf]
  %v145 = vld [vmem:[%s1 + $0x12c] sm:$0xf]
  %v146 = vld [vmem:[%s1 + $0x130] sm:$0xf]
  %v147 = vld [vmem:[%s1 + $0x134] sm:$0xf]
  %v148 = vld [vmem:[%s1 + $0x138] sm:$0xf]
  %v149 = vld [vmem:[%s1 + $0x13c] sm:$0xf]
  %v150 = vld [vmem:[%s1 + $0x140] sm:$0xf]
  %v151 = vld [vmem:[%s1 + $0x144] sm:$0xf]
  %v152 = vld [vmem:[%s1 + $0x148] sm:$0xf]
  %v153 = vld [vmem:[%s1 + $0x14c] sm:$0xf]
  %v154 = vld [vmem:[%s1 + $0x150] sm:$0xf]
  %v155 = vld [vmem:[%s1 + $0x154] sm:$0xf]
  %v156 = vld [vmem:[%s1 + $0x158] sm:$0xf]
  %v157 = vld [vmem:[%s1 + $0x15c] sm:$0xf]
  %v158 = vld [vmem:[%s1 + $0x160] sm:$0xf]
  %v159 = vld [vmem:[%s1 + $0x164] sm:$0xf]
  %v160 = vld [vmem:[%s1 + $0x168] sm:$0xf]
  %v161 = vld [vmem:[%s1 + $0x16c] sm:$0xf]
  %v162 = vld [vmem:[%s1 + $0x170] sm:$0xf]
  %v163 = vld [vmem:[%s1 + $0x174] sm:$0xf]
  %v164 = vld [vmem:[%s1 + $0x178] sm:$0xf]
  %v165 = vld [vmem:[%s1 + $0x17c] sm:$0xf]
  %v166 = vld [vmem:[%s1 + $0x180] sm:$0xf]
  %v167 = vld [vmem:[%s1 + $0x184] sm:$0xf]
  %v168 = vld [vmem:[%s1 + $0x188] sm:$0xf]
  %v169 = vld [vmem:[%s1 + $0x18c] sm:$0xf]
  %v170 = vld [vmem:[%s1 + $0x190] sm:$0xf]
  %v171 = vld [vmem:[%s1 + $0x194] sm:$0xf]
  %v172 = vld [vmem:[%s1 + $0x198] sm:$0xf]
  %v173 = vld [vmem:[%s1 + $0x19c] sm:$0xf]
  %v174 = vld [vmem:[%s1 + $0x1a0] sm:$0xf]
  %v175 = vld [vmem:[%s1 + $0x1a4] sm:$0xf]
  %v176 = vld [vmem:[%s1 + $0x1a8] sm:$0xf]
  %v177 = vld [vmem:[%s1 + $0x1ac] sm:$0xf]
  %v178 = vld [vmem:[%s1 + $0x1b0] sm:$0xf]
  %v179 = vld [vmem:[%s1 + $0x1b4] sm:$0xf]
  %v180 = vld [vmem:[%s1 + $0x1b8] sm:$0xf]
  %v181 = vld [vmem:[%s1 + $0x1bc] sm:$0xf]
  %v182 = vld [vmem:[%s1 + $0x1c0] sm:$0xf]
  %v183 = vld [vmem:[%s1 + $0x1c4] sm:$0xf]
  %v184 = vld [vmem:[%s1 + $0x1c8] sm:$0xf]
  %v185 = vld [vmem:[%s1 + $0x1cc] sm:$0xf]
  %v186 = vld [vmem:[%s1 + $0x1d0] sm:$0xf]
  %v187 = vld [vmem:[%s1 + $0x1d4] sm:$0xf]
  %v188 = vld [vmem:[%s1 + $0x1d8] sm:$0xf]
  %v189 = vld [vmem:[%s1 + $0x1dc] sm:$0xf]
  %v190 = vld [vmem:[%s1 + $0x1e0] sm:$0xf]
  %v191 = vld [vmem:[%s1 + $0x1e4] sm:$0xf]
  %v192 = vld [vmem:[%s1 + $0x1e8] sm:$0xf]
  %v193 = vld [vmem:[%s1 + $0x1ec] sm:$0xf]
  %v194 = vld [vmem:[%s1 + $0x1f0] sm:$0xf]
  %v195 = vld [vmem:[%s1 + $0x1f4] sm:$0xf]
  %v196 = vld [vmem:[%s1 + $0x1f8] sm:$0xf]
  %v197 = vld [vmem:[%s1 + $0x1fc] sm:$0xf]
  %v254 = vunpack.c.l.b16 %v14
  %v255 = vunpack.c.h.b16 %v14
  %v256 = vunpack.c.l.b16 %v15
  %v257 = vunpack.c.h.b16 %v15
  %v258 = vunpack.c.l.b16 %v16
  %v259 = vunpack.c.h.b16 %v16
  %v260 = vunpack.c.l.b16 %v17
  %v261 = vunpack.c.h.b16 %v17
  %v262 = vunpack.c.l.b16 %v18
  %v263 = vunpack.c.h.b16 %v18
  %v264 = vunpack.c.l.b16 %v19
  %v265 = vunpack.c.h.b16 %v19
  %v266 = vunpack.c.l.b16 %v20
  %v267 = vunpack.c.h.b16 %v20
  %v268 = vunpack.c.l.b16 %v21
  %v269 = vunpack.c.h.b16 %v21
  %v270 = vunpack.c.l.b16 %v22
  %v271 = vunpack.c.h.b16 %v22
  %v272 = vunpack.c.l.b16 %v23
  %v273 = vunpack.c.h.b16 %v23
  %v274 = vunpack.c.l.b16 %v24
  %v275 = vunpack.c.h.b16 %v24
  %v276 = vunpack.c.l.b16 %v25
  %v277 = vunpack.c.h.b16 %v25
  %v278 = vunpack.c.l.b16 %v26
  %v279 = vunpack.c.h.b16 %v26
  %v280 = vunpack.c.l.b16 %v27
  %v281 = vunpack.c.h.b16 %v27
  %v282 = vunpack.c.l.b16 %v28
  %v283 = vunpack.c.h.b16 %v28
  %v284 = vunpack.c.l.b16 %v29
  %v285 = vunpack.c.h.b16 %v29
  %v286 = vunpack.c.l.b16 %v30
  %v287 = vunpack.c.h.b16 %v30
  %v288 = vunpack.c.l.b16 %v31
  %v289 = vunpack.c.h.b16 %v31
  %v290 = vunpack.c.l.b16 %v32
  %v291 = vunpack.c.h.b16 %v32
  %v292 = vunpack.c.l.b16 %v33
  %v293 = vunpack.c.h.b16 %v33
  %v294 = vunpack.c.l.b16 %v34
  %v295 = vunpack.c.h.b16 %v34
  %v296 = vunpack.c.l.b16 %v35
  %v297 = vunpack.c.h.b16 %v35
  %v298 = vunpack.c.l.b16 %v36
  %v299 = vunpack.c.h.b16 %v36
  %v300 = vunpack.c.l.b16 %v37
  %v301 = vunpack.c.h.b16 %v37
  %v302 = vunpack.c.l.b16 %v38
  %v303 = vunpack.c.h.b16 %v38
  %v304 = vunpack.c.l.b16 %v39
  %v305 = vunpack.c.h.b16 %v39
  %v306 = vunpack.c.l.b16 %v40
  %v307 = vunpack.c.h.b16 %v40
  %v308 = vunpack.c.l.b16 %v41
  %v309 = vunpack.c.h.b16 %v41
  %v310 = vunpack.c.l.b16 %v42
  %v311 = vunpack.c.h.b16 %v42
  %v312 = vunpack.c.l.b16 %v43
  %v313 = vunpack.c.h.b16 %v43
  %v314 = vunpack.c.l.b16 %v44
  %v315 = vunpack.c.h.b16 %v44
  %v316 = vunpack.c.l.b16 %v45
  %v317 = vunpack.c.h.b16 %v45
  %v318 = vunpack.c.l.b16 %v46
  %v319 = vunpack.c.h.b16 %v46
  %v320 = vunpack.c.l.b16 %v47
  %v321 = vunpack.c.h.b16 %v47
  %v322 = vunpack.c.l.b16 %v48
  %v323 = vunpack.c.h.b16 %v48
  %v324 = vunpack.c.l.b16 %v49
  %v325 = vunpack.c.h.b16 %v49
  %v326 = vunpack.c.l.b16 %v50
  %v327 = vunpack.c.h.b16 %v50
  %v328 = vunpack.c.l.b16 %v51
  %v329 = vunpack.c.h.b16 %v51
  %v330 = vunpack.c.l.b16 %v52
  %v331 = vunpack.c.h.b16 %v52
  %v332 = vunpack.c.l.b16 %v53
  %v333 = vunpack.c.h.b16 %v53
  %v334 = vunpack.c.l.b16 %v54
  %v335 = vunpack.c.h.b16 %v54
  %v336 = vunpack.c.l.b16 %v55
  %v337 = vunpack.c.h.b16 %v55
  %v338 = vunpack.c.l.b16 %v56
  %v339 = vunpack.c.h.b16 %v56
  %v340 = vunpack.c.l.b16 %v57
  %v341 = vunpack.c.h.b16 %v57
  %v342 = vunpack.c.l.b16 %v58
  %v343 = vunpack.c.h.b16 %v58
  %v344 = vunpack.c.l.b16 %v59
  %v345 = vunpack.c.h.b16 %v59
  %v346 = vunpack.c.l.b16 %v60
  %v347 = vunpack.c.h.b16 %v60
  %v348 = vunpack.c.l.b16 %v61
  %v349 = vunpack.c.h.b16 %v61
  %v350 = vunpack.c.l.b16 %v62
  %v351 = vunpack.c.h.b16 %v62
  %v352 = vunpack.c.l.b16 %v63
  %v353 = vunpack.c.h.b16 %v63
  %v354 = vunpack.c.l.b16 %v64
  %v355 = vunpack.c.h.b16 %v64
  %v356 = vunpack.c.l.b16 %v65
  %v357 = vunpack.c.h.b16 %v65
  %v358 = vunpack.c.l.b16 %v66
  %v359 = vunpack.c.h.b16 %v66
  %v360 = vunpack.c.l.b16 %v67
  %v361 = vunpack.c.h.b16 %v67
  %v362 = vunpack.c.l.b16 %v68
  %v363 = vunpack.c.h.b16 %v68
  %v364 = vunpack.c.l.b16 %v69
  %v365 = vunpack.c.h.b16 %v69
  %v366 = vpack.c.b16 %v262, %v254
  %v367 = vpack.c.b16 %v263, %v255
  %v368 = vpack.c.b16 %v264, %v256
  %v369 = vpack.c.b16 %v265, %v257
  %v370 = vpack.c.b16 %v266, %v258
  %v371 = vpack.c.b16 %v267, %v259
  %v372 = vpack.c.b16 %v268, %v260
  %v373 = vpack.c.b16 %v269, %v261
  %v374 = vpack.c.b16 %v278, %v270
  %v375 = vpack.c.b16 %v279, %v271
  %v376 = vpack.c.b16 %v280, %v272
  %v377 = vpack.c.b16 %v281, %v273
  %v378 = vpack.c.b16 %v282, %v274
  %v379 = vpack.c.b16 %v283, %v275
  %v380 = vpack.c.b16 %v284, %v276
  %v381 = vpack.c.b16 %v285, %v277
  %v382 = vpack.c.b16 %v294, %v286
  %v383 = vpack.c.b16 %v295, %v287
  %v384 = vpack.c.b16 %v296, %v288
  %v385 = vpack.c.b16 %v297, %v289
  %v386 = vpack.c.b16 %v298, %v290
  %v387 = vpack.c.b16 %v299, %v291
  %v388 = vpack.c.b16 %v300, %v292
  %v389 = vpack.c.b16 %v301, %v293
  %v390 = vpack.c.b16 %v310, %v302
  %v391 = vpack.c.b16 %v311, %v303
  %v392 = vpack.c.b16 %v312, %v304
  %v393 = vpack.c.b16 %v313, %v305
  %v394 = vpack.c.b16 %v314, %v306
  %v395 = vpack.c.b16 %v315, %v307
  %v396 = vpack.c.b16 %v316, %v308
  %v397 = vpack.c.b16 %v317, %v309
  %v398 = vpack.c.b16 %v326, %v318
  %v399 = vpack.c.b16 %v327, %v319
  %v400 = vpack.c.b16 %v328, %v320
  %v401 = vpack.c.b16 %v329, %v321
  %v402 = vpack.c.b16 %v330, %v322
  %v403 = vpack.c.b16 %v331, %v323
  %v404 = vpack.c.b16 %v332, %v324
  %v405 = vpack.c.b16 %v333, %v325
  %v406 = vpack.c.b16 %v342, %v334
  %v407 = vpack.c.b16 %v343, %v335
  %v408 = vpack.c.b16 %v344, %v336
  %v409 = vpack.c.b16 %v345, %v337
  %v410 = vpack.c.b16 %v346, %v338
  %v411 = vpack.c.b16 %v347, %v339
  %v412 = vpack.c.b16 %v348, %v340
  %v413 = vpack.c.b16 %v349, %v341
  %v414 = vpack.c.b16 %v358, %v350
  %v415 = vpack.c.b16 %v359, %v351
  %v416 = vpack.c.b16 %v360, %v352
  %v417 = vpack.c.b16 %v361, %v353
  %v418 = vpack.c.b16 %v362, %v354
  %v419 = vpack.c.b16 %v363, %v355
  %v420 = vpack.c.b16 %v364, %v356
  %v421 = vpack.c.b16 %v365, %v357
  %v606 = vunpack.c.l.b16 %v70
  %v607 = vunpack.c.l.b16 %v71
  %v608 = vunpack.c.l.b16 %v72
  %v609 = vunpack.c.l.b16 %v73
  %v610 = vunpack.c.l.b16 %v74
  %v611 = vunpack.c.l.b16 %v75
  %v612 = vunpack.c.l.b16 %v76
  %v613 = vunpack.c.l.b16 %v77
  %v614 = vunpack.c.l.b16 %v78
  %v615 = vunpack.c.l.b16 %v79
  %v616 = vunpack.c.l.b16 %v80
  %v617 = vunpack.c.l.b16 %v81
  %v618 = vunpack.c.l.b16 %v82
  %v619 = vunpack.c.l.b16 %v83
  %v620 = vunpack.c.l.b16 %v84
  %v621 = vunpack.c.l.b16 %v85
  %v622 = vunpack.c.l.b16 %v86
  %v623 = vunpack.c.l.b16 %v87
  %v624 = vunpack.c.l.b16 %v88
  %v625 = vunpack.c.l.b16 %v89
  %v626 = vunpack.c.l.b16 %v90
  %v627 = vunpack.c.l.b16 %v91
  %v628 = vunpack.c.l.b16 %v92
  %v629 = vunpack.c.l.b16 %v93
  %v630 = vunpack.c.l.b16 %v94
  %v631 = vunpack.c.l.b16 %v95
  %v632 = vunpack.c.l.b16 %v96
  %v633 = vunpack.c.l.b16 %v97
  %v634 = vunpack.c.l.b16 %v98
  %v635 = vunpack.c.l.b16 %v99
  %v636 = vunpack.c.l.b16 %v100
  %v637 = vunpack.c.l.b16 %v101
  %v638 = vunpack.c.l.b16 %v102
  %v639 = vunpack.c.l.b16 %v103
  %v640 = vunpack.c.l.b16 %v104
  %v641 = vunpack.c.l.b16 %v105
  %v642 = vunpack.c.l.b16 %v106
  %v643 = vunpack.c.l.b16 %v107
  %v644 = vunpack.c.l.b16 %v108
  %v645 = vunpack.c.l.b16 %v109
  %v646 = vunpack.c.l.b16 %v110
  %v647 = vunpack.c.l.b16 %v111
  %v648 = vunpack.c.l.b16 %v112
  %v649 = vunpack.c.l.b16 %v113
  %v650 = vunpack.c.l.b16 %v114
  %v651 = vunpack.c.l.b16 %v115
  %v652 = vunpack.c.l.b16 %v116
  %v653 = vunpack.c.l.b16 %v117
  %v654 = vunpack.c.l.b16 %v118
  %v655 = vunpack.c.l.b16 %v119
  %v656 = vunpack.c.l.b16 %v120
  %v657 = vunpack.c.l.b16 %v121
  %v658 = vunpack.c.l.b16 %v122
  %v659 = vunpack.c.l.b16 %v123
  %v660 = vunpack.c.l.b16 %v124
  %v661 = vunpack.c.l.b16 %v125
  %v662 = vunpack.c.l.b16 %v126
  %v663 = vunpack.c.l.b16 %v127
  %v664 = vunpack.c.l.b16 %v128
  %v665 = vunpack.c.l.b16 %v129
  %v666 = vunpack.c.l.b16 %v130
  %v667 = vunpack.c.l.b16 %v131
  %v668 = vunpack.c.l.b16 %v132
  %v669 = vunpack.c.l.b16 %v133
  %v670 = vunpack.c.l.b16 %v134
  %v671 = vunpack.c.l.b16 %v135
  %v672 = vunpack.c.l.b16 %v136
  %v673 = vunpack.c.l.b16 %v137
  %v674 = vunpack.c.l.b16 %v138
  %v675 = vunpack.c.l.b16 %v139
  %v676 = vunpack.c.l.b16 %v140
  %v677 = vunpack.c.l.b16 %v141
  %v678 = vunpack.c.l.b16 %v142
  %v679 = vunpack.c.l.b16 %v143
  %v680 = vunpack.c.l.b16 %v144
  %v681 = vunpack.c.l.b16 %v145
  %v682 = vunpack.c.l.b16 %v146
  %v683 = vunpack.c.l.b16 %v147
  %v684 = vunpack.c.l.b16 %v148
  %v685 = vunpack.c.l.b16 %v149
  %v686 = vunpack.c.l.b16 %v150
  %v687 = vunpack.c.l.b16 %v151
  %v688 = vunpack.c.l.b16 %v152
  %v689 = vunpack.c.l.b16 %v153
  %v690 = vunpack.c.l.b16 %v154
  %v691 = vunpack.c.l.b16 %v155
  %v692 = vunpack.c.l.b16 %v156
  %v693 = vunpack.c.l.b16 %v157
  %v694 = vunpack.c.l.b16 %v158
  %v695 = vunpack.c.l.b16 %v159
  %v696 = vunpack.c.l.b16 %v160
  %v697 = vunpack.c.l.b16 %v161
  %v698 = vunpack.c.l.b16 %v162
  %v699 = vunpack.c.l.b16 %v163
  %v700 = vunpack.c.l.b16 %v164
  %v701 = vunpack.c.l.b16 %v165
  %v702 = vunpack.c.l.b16 %v166
  %v703 = vunpack.c.l.b16 %v167
  %v704 = vunpack.c.l.b16 %v168
  %v705 = vunpack.c.l.b16 %v169
  %v706 = vunpack.c.l.b16 %v170
  %v707 = vunpack.c.l.b16 %v171
  %v708 = vunpack.c.l.b16 %v172
  %v709 = vunpack.c.l.b16 %v173
  %v710 = vunpack.c.l.b16 %v174
  %v711 = vunpack.c.l.b16 %v175
  %v712 = vunpack.c.l.b16 %v176
  %v713 = vunpack.c.l.b16 %v177
  %v714 = vunpack.c.l.b16 %v178
  %v715 = vunpack.c.l.b16 %v179
  %v716 = vunpack.c.l.b16 %v180
  %v717 = vunpack.c.l.b16 %v181
  %v718 = vunpack.c.l.b16 %v182
  %v719 = vunpack.c.l.b16 %v183
  %v720 = vunpack.c.l.b16 %v184
  %v721 = vunpack.c.l.b16 %v185
  %v722 = vunpack.c.l.b16 %v186
  %v723 = vunpack.c.l.b16 %v187
  %v724 = vunpack.c.l.b16 %v188
  %v725 = vunpack.c.l.b16 %v189
  %v726 = vunpack.c.l.b16 %v190
  %v727 = vunpack.c.l.b16 %v191
  %v728 = vunpack.c.l.b16 %v192
  %v729 = vunpack.c.l.b16 %v193
  %v730 = vunpack.c.l.b16 %v194
  %v731 = vunpack.c.l.b16 %v195
  %v732 = vunpack.c.l.b16 %v196
  %v733 = vunpack.c.l.b16 %v197
  %v734 = vpack.c.b16 %v607, %v606
  %v735 = vpack.c.b16 %v609, %v608
  %v736 = vpack.c.b16 %v611, %v610
  %v737 = vpack.c.b16 %v613, %v612
  %v738 = vpack.c.b16 %v615, %v614
  %v739 = vpack.c.b16 %v617, %v616
  %v740 = vpack.c.b16 %v619, %v618
  %v741 = vpack.c.b16 %v621, %v620
  %v742 = vpack.c.b16 %v623, %v622
  %v743 = vpack.c.b16 %v625, %v624
  %v744 = vpack.c.b16 %v627, %v626
  %v745 = vpack.c.b16 %v629, %v628
  %v746 = vpack.c.b16 %v631, %v630
  %v747 = vpack.c.b16 %v633, %v632
  %v748 = vpack.c.b16 %v635, %v634
  %v749 = vpack.c.b16 %v637, %v636
  %v750 = vpack.c.b16 %v639, %v638
  %v751 = vpack.c.b16 %v641, %v640
  %v752 = vpack.c.b16 %v643, %v642
  %v753 = vpack.c.b16 %v645, %v644
  %v754 = vpack.c.b16 %v647, %v646
  %v755 = vpack.c.b16 %v649, %v648
  %v756 = vpack.c.b16 %v651, %v650
  %v757 = vpack.c.b16 %v653, %v652
  %v758 = vpack.c.b16 %v655, %v654
  %v759 = vpack.c.b16 %v657, %v656
  %v760 = vpack.c.b16 %v659, %v658
  %v761 = vpack.c.b16 %v661, %v660
  %v762 = vpack.c.b16 %v663, %v662
  %v763 = vpack.c.b16 %v665, %v664
  %v764 = vpack.c.b16 %v667, %v666
  %v765 = vpack.c.b16 %v669, %v668
  %v766 = vpack.c.b16 %v671, %v670
  %v767 = vpack.c.b16 %v673, %v672
  %v768 = vpack.c.b16 %v675, %v674
  %v769 = vpack.c.b16 %v677, %v676
  %v770 = vpack.c.b16 %v679, %v678
  %v771 = vpack.c.b16 %v681, %v680
  %v772 = vpack.c.b16 %v683, %v682
  %v773 = vpack.c.b16 %v685, %v684
  %v774 = vpack.c.b16 %v687, %v686
  %v775 = vpack.c.b16 %v689, %v688
  %v776 = vpack.c.b16 %v691, %v690
  %v777 = vpack.c.b16 %v693, %v692
  %v778 = vpack.c.b16 %v695, %v694
  %v779 = vpack.c.b16 %v697, %v696
  %v780 = vpack.c.b16 %v699, %v698
  %v781 = vpack.c.b16 %v701, %v700
  %v782 = vpack.c.b16 %v703, %v702
  %v783 = vpack.c.b16 %v705, %v704
  %v784 = vpack.c.b16 %v707, %v706
  %v785 = vpack.c.b16 %v709, %v708
  %v786 = vpack.c.b16 %v711, %v710
  %v787 = vpack.c.b16 %v713, %v712
  %v788 = vpack.c.b16 %v715, %v714
  %v789 = vpack.c.b16 %v717, %v716
  %v790 = vpack.c.b16 %v719, %v718
  %v791 = vpack.c.b16 %v721, %v720
  %v792 = vpack.c.b16 %v723, %v722
  %v793 = vpack.c.b16 %v725, %v724
  %v794 = vpack.c.b16 %v727, %v726
  %v795 = vpack.c.b16 %v729, %v728
  %v796 = vpack.c.b16 %v731, %v730
  %v797 = vpack.c.b16 %v733, %v732
  %862 = vmatprep.subr.bf16.mxu0 0
  %863 = vmatpush1.bf16.msra.mxu0 %v741
  %864 = vmatprep.subr.bf16.mxu0 0
  %865 = vmatpush1.bf16.msra.mxu0 %v740
  %866 = vmatprep.subr.bf16.mxu0 0
  %867 = vmatpush1.bf16.msra.mxu0 %v739
  %868 = vmatprep.subr.bf16.mxu0 0
  %869 = vmatpush1.bf16.msra.mxu0 %v738
  %870 = vmatprep.subr.bf16.mxu0 0
  %871 = vmatpush1.bf16.msra.mxu0 %v737
  %872 = vmatprep.subr.bf16.mxu0 0
  %873 = vmatpush1.bf16.msra.mxu0 %v736
  %874 = vmatprep.subr.bf16.mxu0 0
  %875 = vmatpush1.bf16.msra.mxu0 %v735
  %876 = vmatprep.subr.bf16.mxu0 0
  %877 = vmatpush1.bf16.msra.mxu0 %v734
  %878 = vmatprep.subr.bf16.mxu0 0
  %879 = vmatpush2.bf16.msra.mxu0 %v749
  %880 = vmatprep.subr.bf16.mxu0 0
  %881 = vmatpush2.bf16.msra.mxu0 %v748
  %882 = vmatprep.subr.bf16.mxu0 0
  %883 = vmatpush2.bf16.msra.mxu0 %v747
  %884 = vmatprep.subr.bf16.mxu0 0
  %885 = vmatpush2.bf16.msra.mxu0 %v746
  %886 = vmatprep.subr.bf16.mxu0 0
  %887 = vmatpush2.bf16.msra.mxu0 %v745
  %888 = vmatprep.subr.bf16.mxu0 0
  %889 = vmatpush2.bf16.msra.mxu0 %v744
  %890 = vmatprep.subr.bf16.mxu0 0
  %891 = vmatpush2.bf16.msra.mxu0 %v743
  %892 = vmatprep.subr.bf16.mxu0 0
  %893 = vmatpush2.bf16.msra.mxu0 %v742
  %894 = vmatprep.mubr.bf16.mxu0 %v367
  %895 = vmatmul.mubr.bf16.gmra.mxu0 %v366
  %v896 = vpop.f32.mrf.mxu0
  %v897 = vadd.f32 0.0, %v896
  %v898 = vpop.f32.mrf.mxu0
  %v899 = vpop.f32.mrf.mxu0
  %v900 = vadd.f32 0.0, %v899
  %v901 = vpop.f32.mrf.mxu0
  %902 = vmatprep.mubr.bf16.mxu0 %v375
  %903 = vmatmul.mubr.bf16.gmra.mxu0 %v374
  %v904 = vpop.f32.mrf.mxu0
  %v905 = vadd.f32 0.0, %v904
  %v906 = vpop.f32.mrf.mxu0
  %v907 = vpop.f32.mrf.mxu0
  %v908 = vadd.f32 0.0, %v907
  %v909 = vpop.f32.mrf.mxu0
  %910 = vmatprep.mubr.bf16.mxu0 %v383
  %911 = vmatmul.mubr.bf16.gmra.mxu0 %v382
  %v912 = vpop.f32.mrf.mxu0
  %v913 = vadd.f32 0.0, %v912
  %v914 = vpop.f32.mrf.mxu0
  %v915 = vpop.f32.mrf.mxu0
  %v916 = vadd.f32 0.0, %v915
  %v917 = vpop.f32.mrf.mxu0
  %918 = vmatprep.mubr.bf16.mxu0 %v391
  %919 = vmatmul.mubr.bf16.gmra.mxu0 %v390
  %v920 = vpop.f32.mrf.mxu0
  %v921 = vadd.f32 0.0, %v920
  %v922 = vpop.f32.mrf.mxu0
  %v923 = vpop.f32.mrf.mxu0
  %v924 = vadd.f32 0.0, %v923
  %v925 = vpop.f32.mrf.mxu0
  %926 = vmatprep.mubr.bf16.mxu0 %v399
  %927 = vmatmul.mubr.bf16.gmra.mxu0 %v398
  %v928 = vpop.f32.mrf.mxu0
  %v929 = vadd.f32 0.0, %v928
  %v930 = vpop.f32.mrf.mxu0
  %v931 = vpop.f32.mrf.mxu0
  %v932 = vadd.f32 0.0, %v931
  %v933 = vpop.f32.mrf.mxu0
  %934 = vmatprep.mubr.bf16.mxu0 %v407
  %935 = vmatmul.mubr.bf16.gmra.mxu0 %v406
  %v936 = vpop.f32.mrf.mxu0
  %v937 = vadd.f32 0.0, %v936
  %v938 = vpop.f32.mrf.mxu0
  %v939 = vpop.f32.mrf.mxu0
  %v940 = vadd.f32 0.0, %v939
  %v941 = vpop.f32.mrf.mxu0
  %942 = vmatprep.mubr.bf16.mxu0 %v415
  %943 = vmatmul.mubr.bf16.gmra.mxu0 %v414
  %v944 = vpop.f32.mrf.mxu0
  %v945 = vadd.f32 0.0, %v944
  %v946 = vpop.f32.mrf.mxu0
  %v947 = vpop.f32.mrf.mxu0
  %v948 = vadd.f32 0.0, %v947
  %v949 = vpop.f32.mrf.mxu0
  %950 = vdwg.mxu0
  %951 = vmatprep.subr.bf16.mxu0 0
  %952 = vmatpush1.bf16.msra.mxu0 %v757
  %953 = vmatprep.subr.bf16.mxu0 0
  %954 = vmatpush1.bf16.msra.mxu0 %v756
  %955 = vmatprep.subr.bf16.mxu0 0
  %956 = vmatpush1.bf16.msra.mxu0 %v755
  %957 = vmatprep.subr.bf16.mxu0 0
  %958 = vmatpush1.bf16.msra.mxu0 %v754
  %959 = vmatprep.subr.bf16.mxu0 0
  %960 = vmatpush1.bf16.msra.mxu0 %v753
  %961 = vmatprep.subr.bf16.mxu0 0
  %962 = vmatpush1.bf16.msra.mxu0 %v752
  %963 = vmatprep.subr.bf16.mxu0 0
  %964 = vmatpush1.bf16.msra.mxu0 %v751
  %965 = vmatprep.subr.bf16.mxu0 0
  %966 = vmatpush1.bf16.msra.mxu0 %v750
  %967 = vmatprep.subr.bf16.mxu0 0
  %968 = vmatpush2.bf16.msra.mxu0 %v765
  %969 = vmatprep.subr.bf16.mxu0 0
  %970 = vmatpush2.bf16.msra.mxu0 %v764
  %971 = vmatprep.subr.bf16.mxu0 0
  %972 = vmatpush2.bf16.msra.mxu0 %v763
  %973 = vmatprep.subr.bf16.mxu0 0
  %974 = vmatpush2.bf16.msra.mxu0 %v762
  %975 = vmatprep.subr.bf16.mxu0 0
  %976 = vmatpush2.bf16.msra.mxu0 %v761
  %977 = vmatprep.subr.bf16.mxu0 0
  %978 = vmatpush2.bf16.msra.mxu0 %v760
  %979 = vmatprep.subr.bf16.mxu0 0
  %980 = vmatpush2.bf16.msra.mxu0 %v759
  %981 = vmatprep.subr.bf16.mxu0 0
  %982 = vmatpush2.bf16.msra.mxu0 %v758
  %983 = vmatprep.mubr.bf16.mxu0 %v369
  %984 = vmatmul.mubr.bf16.gmra.mxu0 %v368
  %v985 = vpop.f32.mrf.mxu0
  %v986 = vadd.f32 %v897, %v985
  %v987 = vpop.f32.mrf.mxu0
  %v988 = vpop.f32.mrf.mxu0
  %v989 = vadd.f32 %v900, %v988
  %v990 = vpop.f32.mrf.mxu0
  %991 = vmatprep.mubr.bf16.mxu0 %v377
  %992 = vmatmul.mubr.bf16.gmra.mxu0 %v376
  %v993 = vpop.f32.mrf.mxu0
  %v994 = vadd.f32 %v905, %v993
  %v995 = vpop.f32.mrf.mxu0
  %v996 = vpop.f32.mrf.mxu0
  %v997 = vadd.f32 %v908, %v996
  %v998 = vpop.f32.mrf.mxu0
  %999 = vmatprep.mubr.bf16.mxu0 %v385
  %1000 = vmatmul.mubr.bf16.gmra.mxu0 %v384
  %v1001 = vpop.f32.mrf.mxu0
  %v1002 = vadd.f32 %v913, %v1001
  %v1003 = vpop.f32.mrf.mxu0
  %v1004 = vpop.f32.mrf.mxu0
  %v1005 = vadd.f32 %v916, %v1004
  %v1006 = vpop.f32.mrf.mxu0
  %1007 = vmatprep.mubr.bf16.mxu0 %v393
  %1008 = vmatmul.mubr.bf16.gmra.mxu0 %v392
  %v1009 = vpop.f32.mrf.mxu0
  %v1010 = vadd.f32 %v921, %v1009
  %v1011 = vpop.f32.mrf.mxu0
  %v1012 = vpop.f32.mrf.mxu0
  %v1013 = vadd.f32 %v924, %v1012
  %v1014 = vpop.f32.mrf.mxu0
  %1015 = vmatprep.mubr.bf16.mxu0 %v401
  %1016 = vmatmul.mubr.bf16.gmra.mxu0 %v400
  %v1017 = vpop.f32.mrf.mxu0
  %v1018 = vadd.f32 %v929, %v1017
  %v1019 = vpop.f32.mrf.mxu0
  %v1020 = vpop.f32.mrf.mxu0
  %v1021 = vadd.f32 %v932, %v1020
  %v1022 = vpop.f32.mrf.mxu0
  %1023 = vmatprep.mubr.bf16.mxu0 %v409
  %1024 = vmatmul.mubr.bf16.gmra.mxu0 %v408
  %v1025 = vpop.f32.mrf.mxu0
  %v1026 = vadd.f32 %v937, %v1025
  %v1027 = vpop.f32.mrf.mxu0
  %v1028 = vpop.f32.mrf.mxu0
  %v1029 = vadd.f32 %v940, %v1028
  %v1030 = vpop.f32.mrf.mxu0
  %1031 = vmatprep.mubr.bf16.mxu0 %v417
  %1032 = vmatmul.mubr.bf16.gmra.mxu0 %v416
  %v1033 = vpop.f32.mrf.mxu0
  %v1034 = vadd.f32 %v945, %v1033
  %v1035 = vpop.f32.mrf.mxu0
  %v1036 = vpop.f32.mrf.mxu0
  %v1037 = vadd.f32 %v948, %v1036
  %v1038 = vpop.f32.mrf.mxu0
  %1039 = vdwg.mxu0
  %1040 = vmatprep.subr.bf16.mxu0 0
  %1041 = vmatpush1.bf16.msra.mxu0 %v773
  %1042 = vmatprep.subr.bf16.mxu0 0
  %1043 = vmatpush1.bf16.msra.mxu0 %v772
  %1044 = vmatprep.subr.bf16.mxu0 0
  %1045 = vmatpush1.bf16.msra.mxu0 %v771
  %1046 = vmatprep.subr.bf16.mxu0 0
  %1047 = vmatpush1.bf16.msra.mxu0 %v770
  %1048 = vmatprep.subr.bf16.mxu0 0
  %1049 = vmatpush1.bf16.msra.mxu0 %v769
  %1050 = vmatprep.subr.bf16.mxu0 0
  %1051 = vmatpush1.bf16.msra.mxu0 %v768
  %1052 = vmatprep.subr.bf16.mxu0 0
  %1053 = vmatpush1.bf16.msra.mxu0 %v767
  %1054 = vmatprep.subr.bf16.mxu0 0
  %1055 = vmatpush1.bf16.msra.mxu0 %v766
  %1056 = vmatprep.subr.bf16.mxu0 0
  %1057 = vmatpush2.bf16.msra.mxu0 %v781
  %1058 = vmatprep.subr.bf16.mxu0 0
  %1059 = vmatpush2.bf16.msra.mxu0 %v780
  %1060 = vmatprep.subr.bf16.mxu0 0
  %1061 = vmatpush2.bf16.msra.mxu0 %v779
  %1062 = vmatprep.subr.bf16.mxu0 0
  %1063 = vmatpush2.bf16.msra.mxu0 %v778
  %1064 = vmatprep.subr.bf16.mxu0 0
  %1065 = vmatpush2.bf16.msra.mxu0 %v777
  %1066 = vmatprep.subr.bf16.mxu0 0
  %1067 = vmatpush2.bf16.msra.mxu0 %v776
  %1068 = vmatprep.subr.bf16.mxu0 0
  %1069 = vmatpush2.bf16.msra.mxu0 %v775
  %1070 = vmatprep.subr.bf16.mxu0 0
  %1071 = vmatpush2.bf16.msra.mxu0 %v774
  %1072 = vmatprep.mubr.bf16.mxu0 %v371
  %1073 = vmatmul.mubr.bf16.gmra.mxu0 %v370
  %v1074 = vpop.f32.mrf.mxu0
  %v1075 = vadd.f32 %v986, %v1074
  %v1076 = vpop.f32.mrf.mxu0
  %v1077 = vpop.f32.mrf.mxu0
  %v1078 = vadd.f32 %v989, %v1077
  %v1079 = vpop.f32.mrf.mxu0
  %1080 = vmatprep.mubr.bf16.mxu0 %v379
  %1081 = vmatmul.mubr.bf16.gmra.mxu0 %v378
  %v1082 = vpop.f32.mrf.mxu0
  %v1083 = vadd.f32 %v994, %v1082
  %v1084 = vpop.f32.mrf.mxu0
  %v1085 = vpop.f32.mrf.mxu0
  %v1086 = vadd.f32 %v997, %v1085
  %v1087 = vpop.f32.mrf.mxu0
  %1088 = vmatprep.mubr.bf16.mxu0 %v387
  %1089 = vmatmul.mubr.bf16.gmra.mxu0 %v386
  %v1090 = vpop.f32.mrf.mxu0
  %v1091 = vadd.f32 %v1002, %v1090
  %v1092 = vpop.f32.mrf.mxu0
  %v1093 = vpop.f32.mrf.mxu0
  %v1094 = vadd.f32 %v1005, %v1093
  %v1095 = vpop.f32.mrf.mxu0
  %1096 = vmatprep.mubr.bf16.mxu0 %v395
  %1097 = vmatmul.mubr.bf16.gmra.mxu0 %v394
  %v1098 = vpop.f32.mrf.mxu0
  %v1099 = vadd.f32 %v1010, %v1098
  %v1100 = vpop.f32.mrf.mxu0
  %v1101 = vpop.f32.mrf.mxu0
  %v1102 = vadd.f32 %v1013, %v1101
  %v1103 = vpop.f32.mrf.mxu0
  %1104 = vmatprep.mubr.bf16.mxu0 %v403
  %1105 = vmatmul.mubr.bf16.gmra.mxu0 %v402
  %v1106 = vpop.f32.mrf.mxu0
  %v1107 = vadd.f32 %v1018, %v1106
  %v1108 = vpop.f32.mrf.mxu0
  %v1109 = vpop.f32.mrf.mxu0
  %v1110 = vadd.f32 %v1021, %v1109
  %v1111 = vpop.f32.mrf.mxu0
  %1112 = vmatprep.mubr.bf16.mxu0 %v411
  %1113 = vmatmul.mubr.bf16.gmra.mxu0 %v410
  %v1114 = vpop.f32.mrf.mxu0
  %v1115 = vadd.f32 %v1026, %v1114
  %v1116 = vpop.f32.mrf.mxu0
  %v1117 = vpop.f32.mrf.mxu0
  %v1118 = vadd.f32 %v1029, %v1117
  %v1119 = vpop.f32.mrf.mxu0
  %1120 = vmatprep.mubr.bf16.mxu0 %v419
  %1121 = vmatmul.mubr.bf16.gmra.mxu0 %v418
  %v1122 = vpop.f32.mrf.mxu0
  %v1123 = vadd.f32 %v1034, %v1122
  %v1124 = vpop.f32.mrf.mxu0
  %v1125 = vpop.f32.mrf.mxu0
  %v1126 = vadd.f32 %v1037, %v1125
  %v1127 = vpop.f32.mrf.mxu0
  %1128 = vdwg.mxu0
  %1129 = vmatprep.subr.bf16.mxu0 0
  %1130 = vmatpush1.bf16.msra.mxu0 %v789
  %1131 = vmatprep.subr.bf16.mxu0 0
  %1132 = vmatpush1.bf16.msra.mxu0 %v788
  %1133 = vmatprep.subr.bf16.mxu0 0
  %1134 = vmatpush1.bf16.msra.mxu0 %v787
  %1135 = vmatprep.subr.bf16.mxu0 0
  %1136 = vmatpush1.bf16.msra.mxu0 %v786
  %1137 = vmatprep.subr.bf16.mxu0 0
  %1138 = vmatpush1.bf16.msra.mxu0 %v785
  %1139 = vmatprep.subr.bf16.mxu0 0
  %1140 = vmatpush1.bf16.msra.mxu0 %v784
  %1141 = vmatprep.subr.bf16.mxu0 0
  %1142 = vmatpush1.bf16.msra.mxu0 %v783
  %1143 = vmatprep.subr.bf16.mxu0 0
  %1144 = vmatpush1.bf16.msra.mxu0 %v782
  %1145 = vmatprep.subr.bf16.mxu0 0
  %1146 = vmatpush2.bf16.msra.mxu0 %v797
  %1147 = vmatprep.subr.bf16.mxu0 0
  %1148 = vmatpush2.bf16.msra.mxu0 %v796
  %1149 = vmatprep.subr.bf16.mxu0 0
  %1150 = vmatpush2.bf16.msra.mxu0 %v795
  %1151 = vmatprep.subr.bf16.mxu0 0
  %1152 = vmatpush2.bf16.msra.mxu0 %v794
  %1153 = vmatprep.subr.bf16.mxu0 0
  %1154 = vmatpush2.bf16.msra.mxu0 %v793
  %1155 = vmatprep.subr.bf16.mxu0 0
  %1156 = vmatpush2.bf16.msra.mxu0 %v792
  %1157 = vmatprep.subr.bf16.mxu0 0
  %1158 = vmatpush2.bf16.msra.mxu0 %v791
  %1159 = vmatprep.subr.bf16.mxu0 0
  %1160 = vmatpush2.bf16.msra.mxu0 %v790
  %1161 = vmatprep.mubr.bf16.mxu0 %v373
  %1162 = vmatmul.mubr.bf16.gmra.mxu0 %v372
  %v1163 = vpop.f32.mrf.mxu0
  %v1164 = vadd.f32 %v1075, %v1163
  %v1165 = vpop.f32.mrf.mxu0
  %v1166 = vpop.f32.mrf.mxu0
  %v1167 = vadd.f32 %v1078, %v1166
  %v1168 = vpop.f32.mrf.mxu0
  %1169 = vmatprep.mubr.bf16.mxu0 %v381
  %1170 = vmatmul.mubr.bf16.gmra.mxu0 %v380
  %v1171 = vpop.f32.mrf.mxu0
  %v1172 = vadd.f32 %v1083, %v1171
  %v1173 = vpop.f32.mrf.mxu0
  %v1174 = vpop.f32.mrf.mxu0
  %v1175 = vadd.f32 %v1086, %v1174
  %v1176 = vpop.f32.mrf.mxu0
  %1177 = vmatprep.mubr.bf16.mxu0 %v389
  %1178 = vmatmul.mubr.bf16.gmra.mxu0 %v388
  %v1179 = vpop.f32.mrf.mxu0
  %v1180 = vadd.f32 %v1091, %v1179
  %v1181 = vpop.f32.mrf.mxu0
  %v1182 = vpop.f32.mrf.mxu0
  %v1183 = vadd.f32 %v1094, %v1182
  %v1184 = vpop.f32.mrf.mxu0
  %1185 = vmatprep.mubr.bf16.mxu0 %v397
  %1186 = vmatmul.mubr.bf16.gmra.mxu0 %v396
  %v1187 = vpop.f32.mrf.mxu0
  %v1188 = vadd.f32 %v1099, %v1187
  %v1189 = vpop.f32.mrf.mxu0
  %v1190 = vpop.f32.mrf.mxu0
  %v1191 = vadd.f32 %v1102, %v1190
  %v1192 = vpop.f32.mrf.mxu0
  %1193 = vmatprep.mubr.bf16.mxu0 %v405
  %1194 = vmatmul.mubr.bf16.gmra.mxu0 %v404
  %v1195 = vpop.f32.mrf.mxu0
  %v1196 = vadd.f32 %v1107, %v1195
  %v1197 = vpop.f32.mrf.mxu0
  %v1198 = vpop.f32.mrf.mxu0
  %v1199 = vadd.f32 %v1110, %v1198
  %v1200 = vpop.f32.mrf.mxu0
  %1201 = vmatprep.mubr.bf16.mxu0 %v413
  %1202 = vmatmul.mubr.bf16.gmra.mxu0 %v412
  %v1203 = vpop.f32.mrf.mxu0
  %v1204 = vadd.f32 %v1115, %v1203
  %v1205 = vpop.f32.mrf.mxu0
  %v1206 = vpop.f32.mrf.mxu0
  %v1207 = vadd.f32 %v1118, %v1206
  %v1208 = vpop.f32.mrf.mxu0
  %1209 = vmatprep.mubr.bf16.mxu0 %v421
  %1210 = vmatmul.mubr.bf16.gmra.mxu0 %v420
  %v1211 = vpop.f32.mrf.mxu0
  %v1212 = vadd.f32 %v1123, %v1211
  %v1213 = vpop.f32.mrf.mxu0
  %v1214 = vpop.f32.mrf.mxu0
  %v1215 = vadd.f32 %v1126, %v1214
  %v1216 = vpop.f32.mrf.mxu0
  %1217 = vdwg.mxu0
  %v1218 = vpack.c.bf16 %v1167, %v1164
  %v1219 = vpack.c.bf16 %v1175, %v1172
  %v1220 = vpack.c.bf16 %v1183, %v1180
  %v1221 = vpack.c.bf16 %v1191, %v1188
  %v1222 = vpack.c.bf16 %v1199, %v1196
  %v1223 = vpack.c.bf16 %v1207, %v1204
  %v1224 = vpack.c.bf16 %v1215, %v1212
  %v1232 = vunpack.c.l.b16 %v1218
  %v1233 = vunpack.c.h.b16 %v1218
  %v1234 = vunpack.c.l.b16 %v1219
  %v1235 = vunpack.c.h.b16 %v1219
  %v1236 = vunpack.c.l.b16 %v1220
  %v1237 = vunpack.c.h.b16 %v1220
  %v1238 = vunpack.c.l.b16 %v1221
  %v1239 = vunpack.c.h.b16 %v1221
  %v1240 = vunpack.c.l.b16 %v1222
  %v1241 = vunpack.c.h.b16 %v1222
  %v1242 = vunpack.c.l.b16 %v1223
  %v1243 = vunpack.c.h.b16 %v1223
  %v1244 = vunpack.c.l.b16 %v1224
  %v1245 = vunpack.c.h.b16 %v1224
  %v1246 = vpack.c.b16 %v1232, %v1232
  %v1247 = vpack.c.b16 %v1233, %v1233
  %v1248 = vpack.c.b16 %v1234, %v1234
  %v1249 = vpack.c.b16 %v1235, %v1235
  %v1250 = vpack.c.b16 %v1236, %v1236
  %v1251 = vpack.c.b16 %v1237, %v1237
  %v1252 = vpack.c.b16 %v1238, %v1238
  %v1253 = vpack.c.b16 %v1239, %v1239
  %v1254 = vpack.c.b16 %v1240, %v1240
  %v1255 = vpack.c.b16 %v1241, %v1241
  %v1256 = vpack.c.b16 %v1242, %v1242
  %v1257 = vpack.c.b16 %v1243, %v1243
  %v1258 = vpack.c.b16 %v1244, %v1244
  %v1259 = vpack.c.b16 %v1245, %v1245
  %1274 = vst [vmem:[%s2] sm:$0xf] %v1246
  %1275 = vst [vmem:[%s2 + $0x4] sm:$0xf] %v1247
  %1276 = vst [vmem:[%s2 + $0x8] sm:$0xf] %v1248
  %1277 = vst [vmem:[%s2 + $0xc] sm:$0xf] %v1249
  %1278 = vst [vmem:[%s2 + $0x10] sm:$0xf] %v1250
  %1279 = vst [vmem:[%s2 + $0x14] sm:$0xf] %v1251
  %1280 = vst [vmem:[%s2 + $0x18] sm:$0xf] %v1252
  %1281 = vst [vmem:[%s2 + $0x1c] sm:$0xf] %v1253
  %1282 = vst [vmem:[%s2 + $0x20] sm:$0xf] %v1254
  %1283 = vst [vmem:[%s2 + $0x24] sm:$0xf] %v1255
  %1284 = vst [vmem:[%s2 + $0x28] sm:$0xf] %v1256
  %1285 = vst [vmem:[%s2 + $0x2c] sm:$0xf] %v1257
  %1286 = vst [vmem:[%s2 + $0x30] sm:$0xf] %v1258
  %1287 = vst [vmem:[%s2 + $0x34] sm:$0xf] %v1259
  %s1288 = smul.u32 0, 112
  %v1289 = vlaneseq
  %v1290 = vshrl.u32 %v1289, 7
  %v1291 = vadd.s32 %v1290, 8
  %v1292 = vadd.s32 %v1290, 16
  %v1293 = vadd.s32 %v1290, 24
  %v1294 = vadd.s32 %v1290, 32
  %v1295 = vadd.s32 %v1290, 40
  %v1296 = vadd.s32 %v1290, 48
  %v1297 = vadd.s32 %v1290, 56
  %v1298 = vadd.s32 %v1290, 64
  %v1299 = vadd.s32 %v1290, 72
  %v1300 = vadd.s32 %v1290, 80
  %v1301 = vadd.s32 %v1290, 88
  %v1302 = vadd.s32 %v1290, 96
  %v1303 = vadd.s32 %v1290, 104
  %v1304 = vstv %s1288
  %v1305 = vadd.s32 %v1304, %v1290
  %v1306 = vadd.s32 %v1304, %v1291
  %v1307 = vadd.s32 %v1304, %v1292
  %v1308 = vadd.s32 %v1304, %v1293
  %v1309 = vadd.s32 %v1304, %v1294
  %v1310 = vadd.s32 %v1304, %v1295
  %v1311 = vadd.s32 %v1304, %v1296
  %v1312 = vadd.s32 %v1304, %v1297
  %v1313 = vadd.s32 %v1304, %v1298
  %v1314 = vadd.s32 %v1304, %v1299
  %v1315 = vadd.s32 %v1304, %v1300
  %v1316 = vadd.s32 %v1304, %v1301
  %v1317 = vadd.s32 %v1304, %v1302
  %v1318 = vadd.s32 %v1304, %v1303
  %vm1319 = vcmp.lt.s32.totalorder %v1305, 98
  %vm1320 = vcmp.lt.s32.totalorder %v1306, 98
  %vm1321 = vcmp.lt.s32.totalorder %v1307, 98
  %vm1322 = vcmp.lt.s32.totalorder %v1308, 98
  %vm1323 = vcmp.lt.s32.totalorder %v1309, 98
  %vm1324 = vcmp.lt.s32.totalorder %v1310, 98
  %vm1325 = vcmp.lt.s32.totalorder %v1311, 98
  %vm1326 = vcmp.lt.s32.totalorder %v1312, 98
  %vm1327 = vcmp.lt.s32.totalorder %v1313, 98
  %vm1328 = vcmp.lt.s32.totalorder %v1314, 98
  %vm1329 = vcmp.lt.s32.totalorder %v1315, 98
  %vm1330 = vcmp.lt.s32.totalorder %v1316, 98
  %vm1331 = vcmp.lt.s32.totalorder %v1317, 98
  %vm1332 = vcmp.lt.s32.totalorder %v1318, 98
  %v1333 = vsel %vm1319, %v1164, 0.0
  %v1334 = vsel %vm1320, %v1167, 0.0
  %v1335 = vsel %vm1321, %v1172, 0.0
  %v1336 = vsel %vm1322, %v1175, 0.0
  %v1337 = vsel %vm1323, %v1180, 0.0
  %v1338 = vsel %vm1324, %v1183, 0.0
  %v1339 = vsel %vm1325, %v1188, 0.0
  %v1340 = vsel %vm1326, %v1191, 0.0
  %v1341 = vsel %vm1327, %v1196, 0.0
  %v1342 = vsel %vm1328, %v1199, 0.0
  %v1343 = vsel %vm1329, %v1204, 0.0
  %v1344 = vsel %vm1330, %v1207, 0.0
  %v1345 = vsel %vm1331, %v1212, 0.0
  %v1346 = vsel %vm1332, %v1215, 0.0
  %v1347 = vadd.f32 %v1333, %v1334
  %v1348 = vadd.f32 %v1347, %v1335
  %v1349 = vadd.f32 %v1348, %v1336
  %v1350 = vadd.f32 %v1349, %v1337
  %v1351 = vadd.f32 %v1350, %v1338
  %v1352 = vadd.f32 %v1351, %v1339
  %v1353 = vadd.f32 %v1352, %v1340
  %v1354 = vadd.f32 %v1353, %v1341
  %v1355 = vadd.f32 %v1354, %v1342
  %v1356 = vadd.f32 %v1355, %v1343
  %v1357 = vadd.f32 %v1356, %v1344
  %v1358 = vadd.f32 %v1357, %v1345
  %v1359 = vadd.f32 %v1358, %v1346
  %v1360 = vrot.slane %v1359, 4
  %v1361 = vadd.f32 %v1359, %v1360
  %v1362 = vrot.slane %v1361, 2
  %v1363 = vadd.f32 %v1361, %v1362
  %v1364 = vrot.slane %v1363, 1
  %v1365 = vadd.f32 %v1363, %v1364
  %1366 = vst [vmem:[%s3] sm:$0x1] %v1365
  %v1367 = vmul.f32 %v1333, %v1333
  %v1368 = vmul.f32 %v1334, %v1334
  %v1369 = vmul.f32 %v1335, %v1335
  %v1370 = vmul.f32 %v1336, %v1336
  %v1371 = vmul.f32 %v1337, %v1337
  %v1372 = vmul.f32 %v1338, %v1338
  %v1373 = vmul.f32 %v1339, %v1339
  %v1374 = vmul.f32 %v1340, %v1340
  %v1375 = vmul.f32 %v1341, %v1341
  %v1376 = vmul.f32 %v1342, %v1342
  %v1377 = vmul.f32 %v1343, %v1343
  %v1378 = vmul.f32 %v1344, %v1344
  %v1379 = vmul.f32 %v1345, %v1345
  %v1380 = vmul.f32 %v1346, %v1346
  %v1381 = vadd.f32 %v1367, %v1368
  %v1382 = vadd.f32 %v1381, %v1369
  %v1383 = vadd.f32 %v1382, %v1370
  %v1384 = vadd.f32 %v1383, %v1371
  %v1385 = vadd.f32 %v1384, %v1372
  %v1386 = vadd.f32 %v1385, %v1373
  %v1387 = vadd.f32 %v1386, %v1374
  %v1388 = vadd.f32 %v1387, %v1375
  %v1389 = vadd.f32 %v1388, %v1376
  %v1390 = vadd.f32 %v1389, %v1377
  %v1391 = vadd.f32 %v1390, %v1378
  %v1392 = vadd.f32 %v1391, %v1379
  %v1393 = vadd.f32 %v1392, %v1380
  %v1394 = vrot.slane %v1393, 4
  %v1395 = vadd.f32 %v1393, %v1394
  %v1396 = vrot.slane %v1395, 2
  %v1397 = vadd.f32 %v1395, %v1396
  %v1398 = vrot.slane %v1397, 1
  %v1399 = vadd.f32 %v1397, %v1398
  %1400 = vst [vmem:[%s3 + $0x1] sm:$0x1] %v1399
  // Predicated region
  $region10: #{encoder_forward.5} parent=0 // pred_check
    _
  $region11: #{encoder_forward.5} parent=0 // pred_check_branch
    %1402 = sbr.rel (0) target = $region13
  $region12: #{encoder_forward.5} parent=0 // pred_region
    _
  $region13: #{encoder_forward.5} parent=0 // pred_fallthru
    _
  // Predicated region
  $region14: #{encoder_forward.5} parent=0 // pred_check
    _
  $region15: #{encoder_forward.5} parent=0 // pred_check_branch
    %1404 = sbr.rel (0) target = $region17
  $region16: #{encoder_forward.5} parent=0 // pred_region
    _
  $region17: #{encoder_forward.5} parent=0 // pred_fallthru
    _
  // Predicated region
  $region18: #{encoder_forward.5} parent=0 // pred_check
    _
  $region19: #{encoder_forward.5} parent=0 // pred_check_branch
    %1406 = sbr.rel (0) target = $region21
  $region20: #{encoder_forward.5} parent=0 // pred_region
    _
  $region21: #{encoder_forward.5} parent=0 // pred_fallthru
    _
  // Predicated region
  $region22: #{encoder_forward.5} parent=0 // pred_check
    _
  $region23: #{encoder_forward.5} parent=0 // pred_check_branch
    %1408 = sbr.rel (0) target = $region25
  $region24: #{encoder_forward.5} parent=0 // pred_region
    _
  $region25: #{encoder_forward.5} parent=0 // pred_fallthru
    _

// kernel: encoder_forward.7
$region0: #{encoder_forward.7}
  #allocation0 [shape = 'u32[]', space=smem, size = 0x4, offset = 0x4, fixed_abs, tag = 'smem constant byte address 0x4 - core index']
  #allocation1 [shape = 'u32[144,128]{1,0:T(1,128)}', space=vmem, size = 0x12000, scoped, tag = 'internal scratch']
  %s0 = inlined_call_operand.vmem [shape: f32[16,128], index: 0, kind: input, shape index: {}]
  %s1 = inlined_call_operand.vmem [shape: f32[1,128], index: 1, kind: input, shape index: {}]
  %s2 = inlined_call_operand.vmem [shape: f32[1,128], index: 2, kind: input, shape index: {}]
  %s3 = inlined_call_operand.vmem [shape: f32[16,128], index: 3, kind: output, shape index: {}]
  %s4 = sld [smem:[#allocation0]]
  $region22: #{encoder_forward.7} parent=0
    _
  %s6 = ssub.s32 1, %s4
  %s7 = scalar_select 0, %s6, %s4
  // Predicated region
  $region2: #{encoder_forward.7} parent=0 // pred_check
    _
  $region3: #{encoder_forward.7} parent=0 // pred_check_branch
    %9 = sbr.rel (0) target = $region5
  $region4: #{encoder_forward.7} parent=0 // pred_region
    _
  $region5: #{encoder_forward.7} parent=0 // pred_fallthru
    _
  // Predicated region
  $region6: #{encoder_forward.7} parent=0 // pred_check
    _
  $region7: #{encoder_forward.7} parent=0 // pred_check_branch
    %11 = sbr.rel (0) target = $region9
  $region8: #{encoder_forward.7} parent=0 // pred_region
    _
  $region9: #{encoder_forward.7} parent=0 // pred_fallthru
    _
  // Predicated region
  $region10: #{encoder_forward.7} parent=0 // pred_check
    _
  $region11: #{encoder_forward.7} parent=0 // pred_check_branch
    %13 = sbr.rel (0) target = $region13
  $region12: #{encoder_forward.7} parent=0 // pred_region
    _
  $region13: #{encoder_forward.7} parent=0 // pred_fallthru
    _
  %v14 = vld [vmem:[%s0] sm:$0xff]
  %v15 = vld [vmem:[%s0 + $0x8] sm:$0xff]
  %v16 = vld [vmem:[%s1] sm:$0x1]
  %v18 = vlaneseq
  %v19 = vshrl.u32 %v18, 7
  %v20 = vsub.s32 0, %v19
  %v21 = vrot.slane %v16, %v20
  %v23 = vmul.f32 %v14, %v21
  %v24 = vmul.f32 %v15, %v21
  %v25 = vld [vmem:[%s2] sm:$0x1]
  %v27 = vlaneseq
  %v28 = vshrl.u32 %v27, 7
  %v29 = vsub.s32 0, %v28
  %v30 = vrot.slane %v25, %v29
  %v32 = vadd.f32 %v23, %v30
  %v33 = vadd.f32 %v24, %v30
  %vm34 = vcmp.gt.f32.partialorder %v32, 0.0
  %vm35 = vcmp.gt.f32.partialorder %v33, 0.0
  %v36 = vmul.f32 %v32, 0.1
  %v37 = vmul.f32 %v33, 0.1
  %v38 = vsel %vm34, %v32, %v36
  %v39 = vsel %vm35, %v33, %v37
  %40 = vst [vmem:[%s3] sm:$0xff] %v38
  %41 = vst [vmem:[%s3 + $0x8] sm:$0xff] %v39
  // Predicated region
  $region14: #{encoder_forward.7} parent=0 // pred_check
    _
  $region15: #{encoder_forward.7} parent=0 // pred_check_branch
    %43 = sbr.rel (0) target = $region17
  $region16: #{encoder_forward.7} parent=0 // pred_region
    _
  $region17: #{encoder_forward.7} parent=0 // pred_fallthru
    _
  // Predicated region
  $region18: #{encoder_forward.7} parent=0 // pred_check
    _
  $region19: #{encoder_forward.7} parent=0 // pred_check_branch
    %45 = sbr.rel (0) target = $region21
  $region20: #{encoder_forward.7} parent=0 // pred_region
    _
  $region21: #{encoder_forward.7} parent=0 // pred_fallthru
    _

// kernel: encoder_forward.6
$region0: #{encoder_forward.6}
  #allocation0 [shape = 'u32[]', space=smem, size = 0x4, offset = 0x4, fixed_abs, tag = 'smem constant byte address 0x4 - core index']
  #allocation1 [shape = 'u32[144,128]{1,0:T(1,128)}', space=vmem, size = 0x12000, scoped, tag = 'internal scratch']
  %s0 = inlined_call_operand.vmem [shape: bf16[16,6272], index: 0, kind: input, shape index: {}]
  %s1 = inlined_call_operand.vmem [shape: f32[1,6272], index: 1, kind: input, shape index: {}]
  %s2 = inlined_call_operand.vmem [shape: f32[1,6272], index: 2, kind: input, shape index: {}]
  %s3 = inlined_call_operand.vmem [shape: bf16[6272,128], index: 3, kind: input, shape index: {}]
  %s4 = inlined_call_operand.vmem [shape: f32[16,128], index: 4, kind: output, shape index: {0}]
  %s5 = inlined_call_operand.vmem [shape: f32[1,2,128], index: 5, kind: output, shape index: {1}]
  %6 = xla_tuple %s4, %s5
  %s7 = sld [smem:[#allocation0]]
  $region34: #{encoder_forward.6} parent=0
    _
  %s9 = ssub.s32 1, %s7
  %s10 = scalar_select 0, %s9, %s7
  // Predicated region
  $region2: #{encoder_forward.6} parent=0 // pred_check
    _
  $region3: #{encoder_forward.6} parent=0 // pred_check_branch
    %12 = sbr.rel (0) target = $region5
  $region4: #{encoder_forward.6} parent=0 // pred_region
    _
  $region5: #{encoder_forward.6} parent=0 // pred_fallthru
    _
  // Predicated region
  $region6: #{encoder_forward.6} parent=0 // pred_check
    _
  $region7: #{encoder_forward.6} parent=0 // pred_check_branch
    %14 = sbr.rel (0) target = $region9
  $region8: #{encoder_forward.6} parent=0 // pred_region
    _
  $region9: #{encoder_forward.6} parent=0 // pred_fallthru
    _
  // Predicated region
  $region10: #{encoder_forward.6} parent=0 // pred_check
    _
  $region11: #{encoder_forward.6} parent=0 // pred_check_branch
    %16 = sbr.rel (0) target = $region13
  $region12: #{encoder_forward.6} parent=0 // pred_region
    _
  $region13: #{encoder_forward.6} parent=0 // pred_fallthru
    _
  // Predicated region
  $region14: #{encoder_forward.6} parent=0 // pred_check
    _
  $region15: #{encoder_forward.6} parent=0 // pred_check_branch
    %18 = sbr.rel (0) target = $region17
  $region16: #{encoder_forward.6} parent=0 // pred_region
    _
  $region17: #{encoder_forward.6} parent=0 // pred_fallthru
    _
  %v20 = vld [vmem:[%s0] sm:$0xff]
  %v21 = vld [vmem:[%s0 + $0x8] sm:$0xff]
  %v22 = vld [vmem:[%s0 + $0x10] sm:$0xff]
  %v23 = vld [vmem:[%s0 + $0x18] sm:$0xff]
  %v24 = vld [vmem:[%s0 + $0x20] sm:$0xff]
  %v25 = vld [vmem:[%s0 + $0x28] sm:$0xff]
  %v26 = vld [vmem:[%s0 + $0x30] sm:$0xff]
  %v27 = vld [vmem:[%s0 + $0x38] sm:$0xff]
  %v28 = vld [vmem:[%s0 + $0x40] sm:$0xff]
  %v29 = vld [vmem:[%s0 + $0x48] sm:$0xff]
  %v30 = vld [vmem:[%s0 + $0x50] sm:$0xff]
  %v31 = vld [vmem:[%s0 + $0x58] sm:$0xff]
  %v32 = vld [vmem:[%s0 + $0x60] sm:$0xff]
  %v33 = vld [vmem:[%s0 + $0x68] sm:$0xff]
  %v34 = vld [vmem:[%s0 + $0x70] sm:$0xff]
  %v35 = vld [vmem:[%s0 + $0x78] sm:$0xff]
  %v36 = vld [vmem:[%s0 + $0x80] sm:$0xff]
  %v37 = vld [vmem:[%s0 + $0x88] sm:$0xff]
  %v38 = vld [vmem:[%s0 + $0x90] sm:$0xff]
  %v39 = vld [vmem:[%s0 + $0x98] sm:$0xff]
  %v40 = vld [vmem:[%s0 + $0xa0] sm:$0xff]
  %v41 = vld [vmem:[%s0 + $0xa8] sm:$0xff]
  %v42 = vld [vmem:[%s0 + $0xb0] sm:$0xff]
  %v43 = vld [vmem:[%s0 + $0xb8] sm:$0xff]
  %v44 = vld [vmem:[%s0 + $0xc0] sm:$0xf]
  %v45 = vld [vmem:[%s0 + $0xc4] sm:$0xff]
  %v46 = vld [vmem:[%s0 + $0xcc] sm:$0xff]
  %v47 = vld [vmem:[%s0 + $0xd4] sm:$0xff]
  %v48 = vld [vmem:[%s0 + $0xdc] sm:$0xff]
  %v49 = vld [vmem:[%s0 + $0xe4] sm:$0xff]
  %v50 = vld [vmem:[%s0 + $0xec] sm:$0xff]
  %v51 = vld [vmem:[%s0 + $0xf4] sm:$0xff]
  %v52 = vld [vmem:[%s0 + $0xfc] sm:$0xff]
  %v53 = vld [vmem:[%s0 + $0x104] sm:$0xff]
  %v54 = vld [vmem:[%s0 + $0x10c] sm:$0xff]
  %v55 = vld [vmem:[%s0 + $0x114] sm:$0xff]
  %v56 = vld [vmem:[%s0 + $0x11c] sm:$0xff]
  %v57 = vld [vmem:[%s0 + $0x124] sm:$0xff]
  %v58 = vld [vmem:[%s0 + $0x12c] sm:$0xff]
  %v59 = vld [vmem:[%s0 + $0x134] sm:$0xff]
  %v60 = vld [vmem:[%s0 + $0x13c] sm:$0xff]
  %v61 = vld [vmem:[%s0 + $0x144] sm:$0xff]
  %v62 = vld [vmem:[%s0 + $0x14c] sm:$0xff]
  %v63 = vld [vmem:[%s0 + $0x154] sm:$0xff]
  %v64 = vld [vmem:[%s0 + $0x15c] sm:$0xff]
  %v65 = vld [vmem:[%s0 + $0x164] sm:$0xff]
  %v66 = vld [vmem:[%s0 + $0x16c] sm:$0xff]
  %v67 = vld [vmem:[%s0 + $0x174] sm:$0xff]
  %v68 = vld [vmem:[%s0 + $0x17c] sm:$0xff]
  %v69 = vld [vmem:[%s0 + $0x184] sm:$0xf]
  %v70 = vld [vmem:[%s1] sm:$0xff]
  %v71 = vld [vmem:[%s1 + $0x8] sm:$0xff]
  %v72 = vld [vmem:[%s1 + $0x10] sm:$0xff]
  %v73 = vld [vmem:[%s1 + $0x18] sm:$0xff]
  %v74 = vld [vmem:[%s1 + $0x20] sm:$0xff]
  %v75 = vld [vmem:[%s1 + $0x28] sm:$0xff]
  %v76 = vld [vmem:[%s1 + $0x30] sm:$0x1]
  %v77 = vunpack.c.l.bf16 %v20
  %v78 = vunpack.c.h.bf16 %v20
  %v79 = vunpack.c.l.bf16 %v21
  %v80 = vunpack.c.h.bf16 %v21
  %v81 = vunpack.c.l.bf16 %v22
  %v82 = vunpack.c.h.bf16 %v22
  %v83 = vunpack.c.l.bf16 %v23
  %v84 = vunpack.c.h.bf16 %v23
  %v85 = vunpack.c.l.bf16 %v24
  %v86 = vunpack.c.h.bf16 %v24
  %v87 = vunpack.c.l.bf16 %v25
  %v88 = vunpack.c.h.bf16 %v25
  %v89 = vunpack.c.l.bf16 %v26
  %v90 = vunpack.c.h.bf16 %v26
  %v91 = vunpack.c.l.bf16 %v27
  %v92 = vunpack.c.h.bf16 %v27
  %v93 = vunpack.c.l.bf16 %v28
  %v94 = vunpack.c.h.bf16 %v28
  %v95 = vunpack.c.l.bf16 %v29
  %v96 = vunpack.c.h.bf16 %v29
  %v97 = vunpack.c.l.bf16 %v30
  %v98 = vunpack.c.h.bf16 %v30
  %v99 = vunpack.c.l.bf16 %v31
  %v100 = vunpack.c.h.bf16 %v31
  %v101 = vunpack.c.l.bf16 %v32
  %v102 = vunpack.c.h.bf16 %v32
  %v103 = vunpack.c.l.bf16 %v33
  %v104 = vunpack.c.h.bf16 %v33
  %v105 = vunpack.c.l.bf16 %v34
  %v106 = vunpack.c.h.bf16 %v34
  %v107 = vunpack.c.l.bf16 %v35
  %v108 = vunpack.c.h.bf16 %v35
  %v109 = vunpack.c.l.bf16 %v36
  %v110 = vunpack.c.h.bf16 %v36
  %v111 = vunpack.c.l.bf16 %v37
  %v112 = vunpack.c.h.bf16 %v37
  %v113 = vunpack.c.l.bf16 %v38
  %v114 = vunpack.c.h.bf16 %v38
  %v115 = vunpack.c.l.bf16 %v39
  %v116 = vunpack.c.h.bf16 %v39
  %v117 = vunpack.c.l.bf16 %v40
  %v118 = vunpack.c.h.bf16 %v40
  %v119 = vunpack.c.l.bf16 %v41
  %v120 = vunpack.c.h.bf16 %v41
  %v121 = vunpack.c.l.bf16 %v42
  %v122 = vunpack.c.h.bf16 %v42
  %v123 = vunpack.c.l.bf16 %v43
  %v124 = vunpack.c.h.bf16 %v43
  %v125 = vunpack.c.l.bf16 %v44
  %v126 = vunpack.c.l.bf16 %v45
  %v127 = vunpack.c.h.bf16 %v45
  %v128 = vunpack.c.l.bf16 %v46
  %v129 = vunpack.c.h.bf16 %v46
  %v130 = vunpack.c.l.bf16 %v47
  %v131 = vunpack.c.h.bf16 %v47
  %v132 = vunpack.c.l.bf16 %v48
  %v133 = vunpack.c.h.bf16 %v48
  %v134 = vunpack.c.l.bf16 %v49
  %v135 = vunpack.c.h.bf16 %v49
  %v136 = vunpack.c.l.bf16 %v50
  %v137 = vunpack.c.h.bf16 %v50
  %v138 = vunpack.c.l.bf16 %v51
  %v139 = vunpack.c.h.bf16 %v51
  %v140 = vunpack.c.l.bf16 %v52
  %v141 = vunpack.c.h.bf16 %v52
  %v142 = vunpack.c.l.bf16 %v53
  %v143 = vunpack.c.h.bf16 %v53
  %v144 = vunpack.c.l.bf16 %v54
  %v145 = vunpack.c.h.bf16 %v54
  %v146 = vunpack.c.l.bf16 %v55
  %v147 = vunpack.c.h.bf16 %v55
  %v148 = vunpack.c.l.bf16 %v56
  %v149 = vunpack.c.h.bf16 %v56
  %v150 = vunpack.c.l.bf16 %v57
  %v151 = vunpack.c.h.bf16 %v57
  %v152 = vunpack.c.l.bf16 %v58
  %v153 = vunpack.c.h.bf16 %v58
  %v154 = vunpack.c.l.bf16 %v59
  %v155 = vunpack.c.h.bf16 %v59
  %v156 = vunpack.c.l.bf16 %v60
  %v157 = vunpack.c.h.bf16 %v60
  %v158 = vunpack.c.l.bf16 %v61
  %v159 = vunpack.c.h.bf16 %v61
  %v160 = vunpack.c.l.bf16 %v62
  %v161 = vunpack.c.h.bf16 %v62
  %v162 = vunpack.c.l.bf16 %v63
  %v163 = vunpack.c.h.bf16 %v63
  %v164 = vunpack.c.l.bf16 %v64
  %v165 = vunpack.c.h.bf16 %v64
  %v166 = vunpack.c.l.bf16 %v65
  %v167 = vunpack.c.h.bf16 %v65
  %v168 = vunpack.c.l.bf16 %v66
  %v169 = vunpack.c.h.bf16 %v66
  %v170 = vunpack.c.l.bf16 %v67
  %v171 = vunpack.c.h.bf16 %v67
  %v172 = vunpack.c.l.bf16 %v68
  %v173 = vunpack.c.h.bf16 %v68
  %v174 = vunpack.c.l.bf16 %v69
  %v182 = vlaneseq
  %v183 = vshrl.u32 %v182, 7
  %v184 = vsub.s32 0, %v183
  %v185 = vrot.slane %v70, %v184
  %v186 = vlaneseq
  %v187 = vshrl.u32 %v186, 7
  %v188 = vsub.s32 1, %v187
  %v189 = vrot.slane %v70, %v188
  %v190 = vlaneseq
  %v191 = vshrl.u32 %v190, 7
  %v192 = vsub.s32 2, %v191
  %v193 = vrot.slane %v70, %v192
  %v194 = vlaneseq
  %v195 = vshrl.u32 %v194, 7
  %v196 = vsub.s32 3, %v195
  %v197 = vrot.slane %v70, %v196
  %v198 = vlaneseq
  %v199 = vshrl.u32 %v198, 7
  %v200 = vsub.s32 4, %v199
  %v201 = vrot.slane %v70, %v200
  %v202 = vlaneseq
  %v203 = vshrl.u32 %v202, 7
  %v204 = vsub.s32 5, %v203
  %v205 = vrot.slane %v70, %v204
  %v206 = vlaneseq
  %v207 = vshrl.u32 %v206, 7
  %v208 = vsub.s32 6, %v207
  %v209 = vrot.slane %v70, %v208
  %v210 = vlaneseq
  %v211 = vshrl.u32 %v210, 7
  %v212 = vsub.s32 7, %v211
  %v213 = vrot.slane %v70, %v212
  %v214 = vlaneseq
  %v215 = vshrl.u32 %v214, 7
  %v216 = vsub.s32 0, %v215
  %v217 = vrot.slane %v71, %v216
  %v218 = vlaneseq
  %v219 = vshrl.u32 %v218, 7
  %v220 = vsub.s32 1, %v219
  %v221 = vrot.slane %v71, %v220
  %v222 = vlaneseq
  %v223 = vshrl.u32 %v222, 7
  %v224 = vsub.s32 2, %v223
  %v225 = vrot.slane %v71, %v224
  %v226 = vlaneseq
  %v227 = vshrl.u32 %v226, 7
  %v228 = vsub.s32 3, %v227
  %v229 = vrot.slane %v71, %v228
  %v230 = vlaneseq
  %v231 = vshrl.u32 %v230, 7
  %v232 = vsub.s32 4, %v231
  %v233 = vrot.slane %v71, %v232
  %v234 = vlaneseq
  %v235 = vshrl.u32 %v234, 7
  %v236 = vsub.s32 5, %v235
  %v237 = vrot.slane %v71, %v236
  %v238 = vlaneseq
  %v239 = vshrl.u32 %v238, 7
  %v240 = vsub.s32 6, %v239
  %v241 = vrot.slane %v71, %v240
  %v242 = vlaneseq
  %v243 = vshrl.u32 %v242, 7
  %v244 = vsub.s32 7, %v243
  %v245 = vrot.slane %v71, %v244
  %v246 = vlaneseq
  %v247 = vshrl.u32 %v246, 7
  %v248 = vsub.s32 0, %v247
  %v249 = vrot.slane %v72, %v248
  %v250 = vlaneseq
  %v251 = vshrl.u32 %v250, 7
  %v252 = vsub.s32 1, %v251
  %v253 = vrot.slane %v72, %v252
  %v254 = vlaneseq
  %v255 = vshrl.u32 %v254, 7
  %v256 = vsub.s32 2, %v255
  %v257 = vrot.slane %v72, %v256
  %v258 = vlaneseq
  %v259 = vshrl.u32 %v258, 7
  %v260 = vsub.s32 3, %v259
  %v261 = vrot.slane %v72, %v260
  %v262 = vlaneseq
  %v263 = vshrl.u32 %v262, 7
  %v264 = vsub.s32 4, %v263
  %v265 = vrot.slane %v72, %v264
  %v266 = vlaneseq
  %v267 = vshrl.u32 %v266, 7
  %v268 = vsub.s32 5, %v267
  %v269 = vrot.slane %v72, %v268
  %v270 = vlaneseq
  %v271 = vshrl.u32 %v270, 7
  %v272 = vsub.s32 6, %v271
  %v273 = vrot.slane %v72, %v272
  %v274 = vlaneseq
  %v275 = vshrl.u32 %v274, 7
  %v276 = vsub.s32 7, %v275
  %v277 = vrot.slane %v72, %v276
  %v278 = vlaneseq
  %v279 = vshrl.u32 %v278, 7
  %v280 = vsub.s32 0, %v279
  %v281 = vrot.slane %v73, %v280
  %v282 = vlaneseq
  %v283 = vshrl.u32 %v282, 7
  %v284 = vsub.s32 1, %v283
  %v285 = vrot.slane %v73, %v284
  %v286 = vlaneseq
  %v287 = vshrl.u32 %v286, 7
  %v288 = vsub.s32 2, %v287
  %v289 = vrot.slane %v73, %v288
  %v290 = vlaneseq
  %v291 = vshrl.u32 %v290, 7
  %v292 = vsub.s32 3, %v291
  %v293 = vrot.slane %v73, %v292
  %v294 = vlaneseq
  %v295 = vshrl.u32 %v294, 7
  %v296 = vsub.s32 4, %v295
  %v297 = vrot.slane %v73, %v296
  %v298 = vlaneseq
  %v299 = vshrl.u32 %v298, 7
  %v300 = vsub.s32 5, %v299
  %v301 = vrot.slane %v73, %v300
  %v302 = vlaneseq
  %v303 = vshrl.u32 %v302, 7
  %v304 = vsub.s32 6, %v303
  %v305 = vrot.slane %v73, %v304
  %v306 = vlaneseq
  %v307 = vshrl.u32 %v306, 7
  %v308 = vsub.s32 7, %v307
  %v309 = vrot.slane %v73, %v308
  %v310 = vlaneseq
  %v311 = vshrl.u32 %v310, 7
  %v312 = vsub.s32 0, %v311
  %v313 = vrot.slane %v74, %v312
  %v314 = vlaneseq
  %v315 = vshrl.u32 %v314, 7
  %v316 = vsub.s32 1, %v315
  %v317 = vrot.slane %v74, %v316
  %v318 = vlaneseq
  %v319 = vshrl.u32 %v318, 7
  %v320 = vsub.s32 2, %v319
  %v321 = vrot.slane %v74, %v320
  %v322 = vlaneseq
  %v323 = vshrl.u32 %v322, 7
  %v324 = vsub.s32 3, %v323
  %v325 = vrot.slane %v74, %v324
  %v326 = vlaneseq
  %v327 = vshrl.u32 %v326, 7
  %v328 = vsub.s32 4, %v327
  %v329 = vrot.slane %v74, %v328
  %v330 = vlaneseq
  %v331 = vshrl.u32 %v330, 7
  %v332 = vsub.s32 5, %v331
  %v333 = vrot.slane %v74, %v332
  %v334 = vlaneseq
  %v335 = vshrl.u32 %v334, 7
  %v336 = vsub.s32 6, %v335
  %v337 = vrot.slane %v74, %v336
  %v338 = vlaneseq
  %v339 = vshrl.u32 %v338, 7
  %v340 = vsub.s32 7, %v339
  %v341 = vrot.slane %v74, %v340
  %v342 = vlaneseq
  %v343 = vshrl.u32 %v342, 7
  %v344 = vsub.s32 0, %v343
  %v345 = vrot.slane %v75, %v344
  %v346 = vlaneseq
  %v347 = vshrl.u32 %v346, 7
  %v348 = vsub.s32 1, %v347
  %v349 = vrot.slane %v75, %v348
  %v350 = vlaneseq
  %v351 = vshrl.u32 %v350, 7
  %v352 = vsub.s32 2, %v351
  %v353 = vrot.slane %v75, %v352
  %v354 = vlaneseq
  %v355 = vshrl.u32 %v354, 7
  %v356 = vsub.s32 3, %v355
  %v357 = vrot.slane %v75, %v356
  %v358 = vlaneseq
  %v359 = vshrl.u32 %v358, 7
  %v360 = vsub.s32 4, %v359
  %v361 = vrot.slane %v75, %v360
  %v362 = vlaneseq
  %v363 = vshrl.u32 %v362, 7
  %v364 = vsub.s32 5, %v363
  %v365 = vrot.slane %v75, %v364
  %v366 = vlaneseq
  %v367 = vshrl.u32 %v366, 7
  %v368 = vsub.s32 6, %v367
  %v369 = vrot.slane %v75, %v368
  %v370 = vlaneseq
  %v371 = vshrl.u32 %v370, 7
  %v372 = vsub.s32 7, %v371
  %v373 = vrot.slane %v75, %v372
  %v374 = vlaneseq
  %v375 = vshrl.u32 %v374, 7
  %v376 = vsub.s32 0, %v375
  %v377 = vrot.slane %v76, %v376
  %v427 = vmul.f32 %v77, %v185
  %v428 = vmul.f32 %v78, %v189
  %v429 = vmul.f32 %v79, %v193
  %v430 = vmul.f32 %v80, %v197
  %v431 = vmul.f32 %v81, %v201
  %v432 = vmul.f32 %v82, %v205
  %v433 = vmul.f32 %v83, %v209
  %v434 = vmul.f32 %v84, %v213
  %v435 = vmul.f32 %v85, %v217
  %v436 = vmul.f32 %v86, %v221
  %v437 = vmul.f32 %v87, %v225
  %v438 = vmul.f32 %v88, %v229
  %v439 = vmul.f32 %v89, %v233
  %v440 = vmul.f32 %v90, %v237
  %v441 = vmul.f32 %v91, %v241
  %v442 = vmul.f32 %v92, %v245
  %v443 = vmul.f32 %v93, %v249
  %v444 = vmul.f32 %v94, %v253
  %v445 = vmul.f32 %v95, %v257
  %v446 = vmul.f32 %v96, %v261
  %v447 = vmul.f32 %v97, %v265
  %v448 = vmul.f32 %v98, %v269
  %v449 = vmul.f32 %v99, %v273
  %v450 = vmul.f32 %v100, %v277
  %v451 = vmul.f32 %v101, %v281
  %v452 = vmul.f32 %v102, %v285
  %v453 = vmul.f32 %v103, %v289
  %v454 = vmul.f32 %v104, %v293
  %v455 = vmul.f32 %v105, %v297
  %v456 = vmul.f32 %v106, %v301
  %v457 = vmul.f32 %v107, %v305
  %v458 = vmul.f32 %v108, %v309
  %v459 = vmul.f32 %v109, %v313
  %v460 = vmul.f32 %v110, %v317
  %v461 = vmul.f32 %v111, %v321
  %v462 = vmul.f32 %v112, %v325
  %v463 = vmul.f32 %v113, %v329
  %v464 = vmul.f32 %v114, %v333
  %v465 = vmul.f32 %v115, %v337
  %v466 = vmul.f32 %v116, %v341
  %v467 = vmul.f32 %v117, %v345
  %v468 = vmul.f32 %v118, %v349
  %v469 = vmul.f32 %v119, %v353
  %v470 = vmul.f32 %v120, %v357
  %v471 = vmul.f32 %v121, %v361
  %v472 = vmul.f32 %v122, %v365
  %v473 = vmul.f32 %v123, %v369
  %v474 = vmul.f32 %v124, %v373
  %v475 = vmul.f32 %v125, %v377
  %v476 = vmul.f32 %v126, %v185
  %v477 = vmul.f32 %v127, %v189
  %v478 = vmul.f32 %v128, %v193
  %v479 = vmul.f32 %v129, %v197
  %v480 = vmul.f32 %v130, %v201
  %v481 = vmul.f32 %v131, %v205
  %v482 = vmul.f32 %v132, %v209
  %v483 = vmul.f32 %v133, %v213
  %v484 = vmul.f32 %v134, %v217
  %v485 = vmul.f32 %v135, %v221
  %v486 = vmul.f32 %v136, %v225
  %v487 = vmul.f32 %v137, %v229
  %v488 = vmul.f32 %v138, %v233
  %v489 = vmul.f32 %v139, %v237
  %v490 = vmul.f32 %v140, %v241
  %v491 = vmul.f32 %v141, %v245
  %v492 = vmul.f32 %v142, %v249
  %v493 = vmul.f32 %v143, %v253
  %v494 = vmul.f32 %v144, %v257
  %v495 = vmul.f32 %v145, %v261
  %v496 = vmul.f32 %v146, %v265
  %v497 = vmul.f32 %v147, %v269
  %v498 = vmul.f32 %v148, %v273
  %v499 = vmul.f32 %v149, %v277
  %v500 = vmul.f32 %v150, %v281
  %v501 = vmul.f32 %v151, %v285
  %v502 = vmul.f32 %v152, %v289
  %v503 = vmul.f32 %v153, %v293
  %v504 = vmul.f32 %v154, %v297
  %v505 = vmul.f32 %v155, %v301
  %v506 = vmul.f32 %v156, %v305
  %v507 = vmul.f32 %v157, %v309
  %v508 = vmul.f32 %v158, %v313
  %v509 = vmul.f32 %v159, %v317
  %v510 = vmul.f32 %v160, %v321
  %v511 = vmul.f32 %v161, %v325
  %v512 = vmul.f32 %v162, %v329
  %v513 = vmul.f32 %v163, %v333
  %v514 = vmul.f32 %v164, %v337
  %v515 = vmul.f32 %v165, %v341
  %v516 = vmul.f32 %v166, %v345
  %v517 = vmul.f32 %v167, %v349
  %v518 = vmul.f32 %v168, %v353
  %v519 = vmul.f32 %v169, %v357
  %v520 = vmul.f32 %v170, %v361
  %v521 = vmul.f32 %v171, %v365
  %v522 = vmul.f32 %v172, %v369
  %v523 = vmul.f32 %v173, %v373
  %v524 = vmul.f32 %v174, %v377
  %v525 = vld [vmem:[%s2] sm:$0xff]
  %v526 = vld [vmem:[%s2 + $0x8] sm:$0xff]
  %v527 = vld [vmem:[%s2 + $0x10] sm:$0xff]
  %v528 = vld [vmem:[%s2 + $0x18] sm:$0xff]
  %v529 = vld [vmem:[%s2 + $0x20] sm:$0xff]
  %v530 = vld [vmem:[%s2 + $0x28] sm:$0xff]
  %v531 = vld [vmem:[%s2 + $0x30] sm:$0x1]
  %v539 = vlaneseq
  %v540 = vshrl.u32 %v539, 7
  %v541 = vsub.s32 0, %v540
  %v542 = vrot.slane %v525, %v541
  %v543 = vlaneseq
  %v544 = vshrl.u32 %v543, 7
  %v545 = vsub.s32 1, %v544
  %v546 = vrot.slane %v525, %v545
  %v547 = vlaneseq
  %v548 = vshrl.u32 %v547, 7
  %v549 = vsub.s32 2, %v548
  %v550 = vrot.slane %v525, %v549
  %v551 = vlaneseq
  %v552 = vshrl.u32 %v551, 7
  %v553 = vsub.s32 3, %v552
  %v554 = vrot.slane %v525, %v553
  %v555 = vlaneseq
  %v556 = vshrl.u32 %v555, 7
  %v557 = vsub.s32 4, %v556
  %v558 = vrot.slane %v525, %v557
  %v559 = vlaneseq
  %v560 = vshrl.u32 %v559, 7
  %v561 = vsub.s32 5, %v560
  %v562 = vrot.slane %v525, %v561
  %v563 = vlaneseq
  %v564 = vshrl.u32 %v563, 7
  %v565 = vsub.s32 6, %v564
  %v566 = vrot.slane %v525, %v565
  %v567 = vlaneseq
  %v568 = vshrl.u32 %v567, 7
  %v569 = vsub.s32 7, %v568
  %v570 = vrot.slane %v525, %v569
  %v571 = vlaneseq
  %v572 = vshrl.u32 %v571, 7
  %v573 = vsub.s32 0, %v572
  %v574 = vrot.slane %v526, %v573
  %v575 = vlaneseq
  %v576 = vshrl.u32 %v575, 7
  %v577 = vsub.s32 1, %v576
  %v578 = vrot.slane %v526, %v577
  %v579 = vlaneseq
  %v580 = vshrl.u32 %v579, 7
  %v581 = vsub.s32 2, %v580
  %v582 = vrot.slane %v526, %v581
  %v583 = vlaneseq
  %v584 = vshrl.u32 %v583, 7
  %v585 = vsub.s32 3, %v584
  %v586 = vrot.slane %v526, %v585
  %v587 = vlaneseq
  %v588 = vshrl.u32 %v587, 7
  %v589 = vsub.s32 4, %v588
  %v590 = vrot.slane %v526, %v589
  %v591 = vlaneseq
  %v592 = vshrl.u32 %v591, 7
  %v593 = vsub.s32 5, %v592
  %v594 = vrot.slane %v526, %v593
  %v595 = vlaneseq
  %v596 = vshrl.u32 %v595, 7
  %v597 = vsub.s32 6, %v596
  %v598 = vrot.slane %v526, %v597
  %v599 = vlaneseq
  %v600 = vshrl.u32 %v599, 7
  %v601 = vsub.s32 7, %v600
  %v602 = vrot.slane %v526, %v601
  %v603 = vlaneseq
  %v604 = vshrl.u32 %v603, 7
  %v605 = vsub.s32 0, %v604
  %v606 = vrot.slane %v527, %v605
  %v607 = vlaneseq
  %v608 = vshrl.u32 %v607, 7
  %v609 = vsub.s32 1, %v608
  %v610 = vrot.slane %v527, %v609
  %v611 = vlaneseq
  %v612 = vshrl.u32 %v611, 7
  %v613 = vsub.s32 2, %v612
  %v614 = vrot.slane %v527, %v613
  %v615 = vlaneseq
  %v616 = vshrl.u32 %v615, 7
  %v617 = vsub.s32 3, %v616
  %v618 = vrot.slane %v527, %v617
  %v619 = vlaneseq
  %v620 = vshrl.u32 %v619, 7
  %v621 = vsub.s32 4, %v620
  %v622 = vrot.slane %v527, %v621
  %v623 = vlaneseq
  %v624 = vshrl.u32 %v623, 7
  %v625 = vsub.s32 5, %v624
  %v626 = vrot.slane %v527, %v625
  %v627 = vlaneseq
  %v628 = vshrl.u32 %v627, 7
  %v629 = vsub.s32 6, %v628
  %v630 = vrot.slane %v527, %v629
  %v631 = vlaneseq
  %v632 = vshrl.u32 %v631, 7
  %v633 = vsub.s32 7, %v632
  %v634 = vrot.slane %v527, %v633
  %v635 = vlaneseq
  %v636 = vshrl.u32 %v635, 7
  %v637 = vsub.s32 0, %v636
  %v638 = vrot.slane %v528, %v637
  %v639 = vlaneseq
  %v640 = vshrl.u32 %v639, 7
  %v641 = vsub.s32 1, %v640
  %v642 = vrot.slane %v528, %v641
  %v643 = vlaneseq
  %v644 = vshrl.u32 %v643, 7
  %v645 = vsub.s32 2, %v644
  %v646 = vrot.slane %v528, %v645
  %v647 = vlaneseq
  %v648 = vshrl.u32 %v647, 7
  %v649 = vsub.s32 3, %v648
  %v650 = vrot.slane %v528, %v649
  %v651 = vlaneseq
  %v652 = vshrl.u32 %v651, 7
  %v653 = vsub.s32 4, %v652
  %v654 = vrot.slane %v528, %v653
  %v655 = vlaneseq
  %v656 = vshrl.u32 %v655, 7
  %v657 = vsub.s32 5, %v656
  %v658 = vrot.slane %v528, %v657
  %v659 = vlaneseq
  %v660 = vshrl.u32 %v659, 7
  %v661 = vsub.s32 6, %v660
  %v662 = vrot.slane %v528, %v661
  %v663 = vlaneseq
  %v664 = vshrl.u32 %v663, 7
  %v665 = vsub.s32 7, %v664
  %v666 = vrot.slane %v528, %v665
  %v667 = vlaneseq
  %v668 = vshrl.u32 %v667, 7
  %v669 = vsub.s32 0, %v668
  %v670 = vrot.slane %v529, %v669
  %v671 = vlaneseq
  %v672 = vshrl.u32 %v671, 7
  %v673 = vsub.s32 1, %v672
  %v674 = vrot.slane %v529, %v673
  %v675 = vlaneseq
  %v676 = vshrl.u32 %v675, 7
  %v677 = vsub.s32 2, %v676
  %v678 = vrot.slane %v529, %v677
  %v679 = vlaneseq
  %v680 = vshrl.u32 %v679, 7
  %v681 = vsub.s32 3, %v680
  %v682 = vrot.slane %v529, %v681
  %v683 = vlaneseq
  %v684 = vshrl.u32 %v683, 7
  %v685 = vsub.s32 4, %v684
  %v686 = vrot.slane %v529, %v685
  %v687 = vlaneseq
  %v688 = vshrl.u32 %v687, 7
  %v689 = vsub.s32 5, %v688
  %v690 = vrot.slane %v529, %v689
  %v691 = vlaneseq
  %v692 = vshrl.u32 %v691, 7
  %v693 = vsub.s32 6, %v692
  %v694 = vrot.slane %v529, %v693
  %v695 = vlaneseq
  %v696 = vshrl.u32 %v695, 7
  %v697 = vsub.s32 7, %v696
  %v698 = vrot.slane %v529, %v697
  %v699 = vlaneseq
  %v700 = vshrl.u32 %v699, 7
  %v701 = vsub.s32 0, %v700
  %v702 = vrot.slane %v530, %v701
  %v703 = vlaneseq
  %v704 = vshrl.u32 %v703, 7
  %v705 = vsub.s32 1, %v704
  %v706 = vrot.slane %v530, %v705
  %v707 = vlaneseq
  %v708 = vshrl.u32 %v707, 7
  %v709 = vsub.s32 2, %v708
  %v710 = vrot.slane %v530, %v709
  %v711 = vlaneseq
  %v712 = vshrl.u32 %v711, 7
  %v713 = vsub.s32 3, %v712
  %v714 = vrot.slane %v530, %v713
  %v715 = vlaneseq
  %v716 = vshrl.u32 %v715, 7
  %v717 = vsub.s32 4, %v716
  %v718 = vrot.slane %v530, %v717
  %v719 = vlaneseq
  %v720 = vshrl.u32 %v719, 7
  %v721 = vsub.s32 5, %v720
  %v722 = vrot.slane %v530, %v721
  %v723 = vlaneseq
  %v724 = vshrl.u32 %v723, 7
  %v725 = vsub.s32 6, %v724
  %v726 = vrot.slane %v530, %v725
  %v727 = vlaneseq
  %v728 = vshrl.u32 %v727, 7
  %v729 = vsub.s32 7, %v728
  %v730 = vrot.slane %v530, %v729
  %v731 = vlaneseq
  %v732 = vshrl.u32 %v731, 7
  %v733 = vsub.s32 0, %v732
  %v734 = vrot.slane %v531, %v733
  %v784 = vadd.f32 %v427, %v542
  %v785 = vadd.f32 %v428, %v546
  %v786 = vadd.f32 %v429, %v550
  %v787 = vadd.f32 %v430, %v554
  %v788 = vadd.f32 %v431, %v558
  %v789 = vadd.f32 %v432, %v562
  %v790 = vadd.f32 %v433, %v566
  %v791 = vadd.f32 %v434, %v570
  %v792 = vadd.f32 %v435, %v574
  %v793 = vadd.f32 %v436, %v578
  %v794 = vadd.f32 %v437, %v582
  %v795 = vadd.f32 %v438, %v586
  %v796 = vadd.f32 %v439, %v590
  %v797 = vadd.f32 %v440, %v594
  %v798 = vadd.f32 %v441, %v598
  %v799 = vadd.f32 %v442, %v602
  %v800 = vadd.f32 %v443, %v606
  %v801 = vadd.f32 %v444, %v610
  %v802 = vadd.f32 %v445, %v614
  %v803 = vadd.f32 %v446, %v618
  %v804 = vadd.f32 %v447, %v622
  %v805 = vadd.f32 %v448, %v626
  %v806 = vadd.f32 %v449, %v630
  %v807 = vadd.f32 %v450, %v634
  %v808 = vadd.f32 %v451, %v638
  %v809 = vadd.f32 %v452, %v642
  %v810 = vadd.f32 %v453, %v646
  %v811 = vadd.f32 %v454, %v650
  %v812 = vadd.f32 %v455, %v654
  %v813 = vadd.f32 %v456, %v658
  %v814 = vadd.f32 %v457, %v662
  %v815 = vadd.f32 %v458, %v666
  %v816 = vadd.f32 %v459, %v670
  %v817 = vadd.f32 %v460, %v674
  %v818 = vadd.f32 %v461, %v678
  %v819 = vadd.f32 %v462, %v682
  %v820 = vadd.f32 %v463, %v686
  %v821 = vadd.f32 %v464, %v690
  %v822 = vadd.f32 %v465, %v694
  %v823 = vadd.f32 %v466, %v698
  %v824 = vadd.f32 %v467, %v702
  %v825 = vadd.f32 %v468, %v706
  %v826 = vadd.f32 %v469, %v710
  %v827 = vadd.f32 %v470, %v714
  %v828 = vadd.f32 %v471, %v718
  %v829 = vadd.f32 %v472, %v722
  %v830 = vadd.f32 %v473, %v726
  %v831 = vadd.f32 %v474, %v730
  %v832 = vadd.f32 %v475, %v734
  %v833 = vadd.f32 %v476, %v542
  %v834 = vadd.f32 %v477, %v546
  %v835 = vadd.f32 %v478, %v550
  %v836 = vadd.f32 %v479, %v554
  %v837 = vadd.f32 %v480, %v558
  %v838 = vadd.f32 %v481, %v562
  %v839 = vadd.f32 %v482, %v566
  %v840 = vadd.f32 %v483, %v570
  %v841 = vadd.f32 %v484, %v574
  %v842 = vadd.f32 %v485, %v578
  %v843 = vadd.f32 %v486, %v582
  %v844 = vadd.f32 %v487, %v586
  %v845 = vadd.f32 %v488, %v590
  %v846 = vadd.f32 %v489, %v594
  %v847 = vadd.f32 %v490, %v598
  %v848 = vadd.f32 %v491, %v602
  %v849 = vadd.f32 %v492, %v606
  %v850 = vadd.f32 %v493, %v610
  %v851 = vadd.f32 %v494, %v614
  %v852 = vadd.f32 %v495, %v618
  %v853 = vadd.f32 %v496, %v622
  %v854 = vadd.f32 %v497, %v626
  %v855 = vadd.f32 %v498, %v630
  %v856 = vadd.f32 %v499, %v634
  %v857 = vadd.f32 %v500, %v638
  %v858 = vadd.f32 %v501, %v642
  %v859 = vadd.f32 %v502, %v646
  %v860 = vadd.f32 %v503, %v650
  %v861 = vadd.f32 %v504, %v654
  %v862 = vadd.f32 %v505, %v658
  %v863 = vadd.f32 %v506, %v662
  %v864 = vadd.f32 %v507, %v666
  %v865 = vadd.f32 %v508, %v670
  %v866 = vadd.f32 %v509, %v674
  %v867 = vadd.f32 %v510, %v678
  %v868 = vadd.f32 %v511, %v682
  %v869 = vadd.f32 %v512, %v686
  %v870 = vadd.f32 %v513, %v690
  %v871 = vadd.f32 %v514, %v694
  %v872 = vadd.f32 %v515, %v698
  %v873 = vadd.f32 %v516, %v702
  %v874 = vadd.f32 %v517, %v706
  %v875 = vadd.f32 %v518, %v710
  %v876 = vadd.f32 %v519, %v714
  %v877 = vadd.f32 %v520, %v718
  %v878 = vadd.f32 %v521, %v722
  %v879 = vadd.f32 %v522, %v726
  %v880 = vadd.f32 %v523, %v730
  %v881 = vadd.f32 %v524, %v734
  %vm882 = vcmp.gt.f32.partialorder %v784, 0.0
  %vm883 = vcmp.gt.f32.partialorder %v785, 0.0
  %vm884 = vcmp.gt.f32.partialorder %v786, 0.0
  %vm885 = vcmp.gt.f32.partialorder %v787, 0.0
  %vm886 = vcmp.gt.f32.partialorder %v788, 0.0
  %vm887 = vcmp.gt.f32.partialorder %v789, 0.0
  %vm888 = vcmp.gt.f32.partialorder %v790, 0.0
  %vm889 = vcmp.gt.f32.partialorder %v791, 0.0
  %vm890 = vcmp.gt.f32.partialorder %v792, 0.0
  %vm891 = vcmp.gt.f32.partialorder %v793, 0.0
  %vm892 = vcmp.gt.f32.partialorder %v794, 0.0
  %vm893 = vcmp.gt.f32.partialorder %v795, 0.0
  %vm894 = vcmp.gt.f32.partialorder %v796, 0.0
  %vm895 = vcmp.gt.f32.partialorder %v797, 0.0
  %vm896 = vcmp.gt.f32.partialorder %v798, 0.0
  %vm897 = vcmp.gt.f32.partialorder %v799, 0.0
  %vm898 = vcmp.gt.f32.partialorder %v800, 0.0
  %vm899 = vcmp.gt.f32.partialorder %v801, 0.0
  %vm900 = vcmp.gt.f32.partialorder %v802, 0.0
  %vm901 = vcmp.gt.f32.partialorder %v803, 0.0
  %vm902 = vcmp.gt.f32.partialorder %v804, 0.0
  %vm903 = vcmp.gt.f32.partialorder %v805, 0.0
  %vm904 = vcmp.gt.f32.partialorder %v806, 0.0
  %vm905 = vcmp.gt.f32.partialorder %v807, 0.0
  %vm906 = vcmp.gt.f32.partialorder %v808, 0.0
  %vm907 = vcmp.gt.f32.partialorder %v809, 0.0
  %vm908 = vcmp.gt.f32.partialorder %v810, 0.0
  %vm909 = vcmp.gt.f32.partialorder %v811, 0.0
  %vm910 = vcmp.gt.f32.partialorder %v812, 0.0
  %vm911 = vcmp.gt.f32.partialorder %v813, 0.0
  %vm912 = vcmp.gt.f32.partialorder %v814, 0.0
  %vm913 = vcmp.gt.f32.partialorder %v815, 0.0
  %vm914 = vcmp.gt.f32.partialorder %v816, 0.0
  %vm915 = vcmp.gt.f32.partialorder %v817, 0.0
  %vm916 = vcmp.gt.f32.partialorder %v818, 0.0
  %vm917 = vcmp.gt.f32.partialorder %v819, 0.0
  %vm918 = vcmp.gt.f32.partialorder %v820, 0.0
  %vm919 = vcmp.gt.f32.partialorder %v821, 0.0
  %vm920 = vcmp.gt.f32.partialorder %v822, 0.0
  %vm921 = vcmp.gt.f32.partialorder %v823, 0.0
  %vm922 = vcmp.gt.f32.partialorder %v824, 0.0
  %vm923 = vcmp.gt.f32.partialorder %v825, 0.0
  %vm924 = vcmp.gt.f32.partialorder %v826, 0.0
  %vm925 = vcmp.gt.f32.partialorder %v827, 0.0
  %vm926 = vcmp.gt.f32.partialorder %v828, 0.0
  %vm927 = vcmp.gt.f32.partialorder %v829, 0.0
  %vm928 = vcmp.gt.f32.partialorder %v830, 0.0
  %vm929 = vcmp.gt.f32.partialorder %v831, 0.0
  %vm930 = vcmp.gt.f32.partialorder %v832, 0.0
  %vm931 = vcmp.gt.f32.partialorder %v833, 0.0
  %vm932 = vcmp.gt.f32.partialorder %v834, 0.0
  %vm933 = vcmp.gt.f32.partialorder %v835, 0.0
  %vm934 = vcmp.gt.f32.partialorder %v836, 0.0
  %vm935 = vcmp.gt.f32.partialorder %v837, 0.0
  %vm936 = vcmp.gt.f32.partialorder %v838, 0.0
  %vm937 = vcmp.gt.f32.partialorder %v839, 0.0
  %vm938 = vcmp.gt.f32.partialorder %v840, 0.0
  %vm939 = vcmp.gt.f32.partialorder %v841, 0.0
  %vm940 = vcmp.gt.f32.partialorder %v842, 0.0
  %vm941 = vcmp.gt.f32.partialorder %v843, 0.0
  %vm942 = vcmp.gt.f32.partialorder %v844, 0.0
  %vm943 = vcmp.gt.f32.partialorder %v845, 0.0
  %vm944 = vcmp.gt.f32.partialorder %v846, 0.0
  %vm945 = vcmp.gt.f32.partialorder %v847, 0.0
  %vm946 = vcmp.gt.f32.partialorder %v848, 0.0
  %vm947 = vcmp.gt.f32.partialorder %v849, 0.0
  %vm948 = vcmp.gt.f32.partialorder %v850, 0.0
  %vm949 = vcmp.gt.f32.partialorder %v851, 0.0
  %vm950 = vcmp.gt.f32.partialorder %v852, 0.0
  %vm951 = vcmp.gt.f32.partialorder %v853, 0.0
  %vm952 = vcmp.gt.f32.partialorder %v854, 0.0
  %vm953 = vcmp.gt.f32.partialorder %v855, 0.0
  %vm954 = vcmp.gt.f32.partialorder %v856, 0.0
  %vm955 = vcmp.gt.f32.partialorder %v857, 0.0
  %vm956 = vcmp.gt.f32.partialorder %v858, 0.0
  %vm957 = vcmp.gt.f32.partialorder %v859, 0.0
  %vm958 = vcmp.gt.f32.partialorder %v860, 0.0
  %vm959 = vcmp.gt.f32.partialorder %v861, 0.0
  %vm960 = vcmp.gt.f32.partialorder %v862, 0.0
  %vm961 = vcmp.gt.f32.partialorder %v863, 0.0
  %vm962 = vcmp.gt.f32.partialorder %v864, 0.0
  %vm963 = vcmp.gt.f32.partialorder %v865, 0.0
  %vm964 = vcmp.gt.f32.partialorder %v866, 0.0
  %vm965 = vcmp.gt.f32.partialorder %v867, 0.0
  %vm966 = vcmp.gt.f32.partialorder %v868, 0.0
  %vm967 = vcmp.gt.f32.partialorder %v869, 0.0
  %vm968 = vcmp.gt.f32.partialorder %v870, 0.0
  %vm969 = vcmp.gt.f32.partialorder %v871, 0.0
  %vm970 = vcmp.gt.f32.partialorder %v872, 0.0
  %vm971 = vcmp.gt.f32.partialorder %v873, 0.0
  %vm972 = vcmp.gt.f32.partialorder %v874, 0.0
  %vm973 = vcmp.gt.f32.partialorder %v875, 0.0
  %vm974 = vcmp.gt.f32.partialorder %v876, 0.0
  %vm975 = vcmp.gt.f32.partialorder %v877, 0.0
  %vm976 = vcmp.gt.f32.partialorder %v878, 0.0
  %vm977 = vcmp.gt.f32.partialorder %v879, 0.0
  %vm978 = vcmp.gt.f32.partialorder %v880, 0.0
  %vm979 = vcmp.gt.f32.partialorder %v881, 0.0
  %v980 = vmul.f32 %v784, 0.1
  %v981 = vmul.f32 %v785, 0.1
  %v982 = vmul.f32 %v786, 0.1
  %v983 = vmul.f32 %v787, 0.1
  %v984 = vmul.f32 %v788, 0.1
  %v985 = vmul.f32 %v789, 0.1
  %v986 = vmul.f32 %v790, 0.1
  %v987 = vmul.f32 %v791, 0.1
  %v988 = vmul.f32 %v792, 0.1
  %v989 = vmul.f32 %v793, 0.1
  %v990 = vmul.f32 %v794, 0.1
  %v991 = vmul.f32 %v795, 0.1
  %v992 = vmul.f32 %v796, 0.1
  %v993 = vmul.f32 %v797, 0.1
  %v994 = vmul.f32 %v798, 0.1
  %v995 = vmul.f32 %v799, 0.1
  %v996 = vmul.f32 %v800, 0.1
  %v997 = vmul.f32 %v801, 0.1
  %v998 = vmul.f32 %v802, 0.1
  %v999 = vmul.f32 %v803, 0.1
  %v1000 = vmul.f32 %v804, 0.1
  %v1001 = vmul.f32 %v805, 0.1
  %v1002 = vmul.f32 %v806, 0.1
  %v1003 = vmul.f32 %v807, 0.1
  %v1004 = vmul.f32 %v808, 0.1
  %v1005 = vmul.f32 %v809, 0.1
  %v1006 = vmul.f32 %v810, 0.1
  %v1007 = vmul.f32 %v811, 0.1
  %v1008 = vmul.f32 %v812, 0.1
  %v1009 = vmul.f32 %v813, 0.1
  %v1010 = vmul.f32 %v814, 0.1
  %v1011 = vmul.f32 %v815, 0.1
  %v1012 = vmul.f32 %v816, 0.1
  %v1013 = vmul.f32 %v817, 0.1
  %v1014 = vmul.f32 %v818, 0.1
  %v1015 = vmul.f32 %v819, 0.1
  %v1016 = vmul.f32 %v820, 0.1
  %v1017 = vmul.f32 %v821, 0.1
  %v1018 = vmul.f32 %v822, 0.1
  %v1019 = vmul.f32 %v823, 0.1
  %v1020 = vmul.f32 %v824, 0.1
  %v1021 = vmul.f32 %v825, 0.1
  %v1022 = vmul.f32 %v826, 0.1
  %v1023 = vmul.f32 %v827, 0.1
  %v1024 = vmul.f32 %v828, 0.1
  %v1025 = vmul.f32 %v829, 0.1
  %v1026 = vmul.f32 %v830, 0.1
  %v1027 = vmul.f32 %v831, 0.1
  %v1028 = vmul.f32 %v832, 0.1
  %v1029 = vmul.f32 %v833, 0.1
  %v1030 = vmul.f32 %v834, 0.1
  %v1031 = vmul.f32 %v835, 0.1
  %v1032 = vmul.f32 %v836, 0.1
  %v1033 = vmul.f32 %v837, 0.1
  %v1034 = vmul.f32 %v838, 0.1
  %v1035 = vmul.f32 %v839, 0.1
  %v1036 = vmul.f32 %v840, 0.1
  %v1037 = vmul.f32 %v841, 0.1
  %v1038 = vmul.f32 %v842, 0.1
  %v1039 = vmul.f32 %v843, 0.1
  %v1040 = vmul.f32 %v844, 0.1
  %v1041 = vmul.f32 %v845, 0.1
  %v1042 = vmul.f32 %v846, 0.1
  %v1043 = vmul.f32 %v847, 0.1
  %v1044 = vmul.f32 %v848, 0.1
  %v1045 = vmul.f32 %v849, 0.1
  %v1046 = vmul.f32 %v850, 0.1
  %v1047 = vmul.f32 %v851, 0.1
  %v1048 = vmul.f32 %v852, 0.1
  %v1049 = vmul.f32 %v853, 0.1
  %v1050 = vmul.f32 %v854, 0.1
  %v1051 = vmul.f32 %v855, 0.1
  %v1052 = vmul.f32 %v856, 0.1
  %v1053 = vmul.f32 %v857, 0.1
  %v1054 = vmul.f32 %v858, 0.1
  %v1055 = vmul.f32 %v859, 0.1
  %v1056 = vmul.f32 %v860, 0.1
  %v1057 = vmul.f32 %v861, 0.1
  %v1058 = vmul.f32 %v862, 0.1
  %v1059 = vmul.f32 %v863, 0.1
  %v1060 = vmul.f32 %v864, 0.1
  %v1061 = vmul.f32 %v865, 0.1
  %v1062 = vmul.f32 %v866, 0.1
  %v1063 = vmul.f32 %v867, 0.1
  %v1064 = vmul.f32 %v868, 0.1
  %v1065 = vmul.f32 %v869, 0.1
  %v1066 = vmul.f32 %v870, 0.1
  %v1067 = vmul.f32 %v871, 0.1
  %v1068 = vmul.f32 %v872, 0.1
  %v1069 = vmul.f32 %v873, 0.1
  %v1070 = vmul.f32 %v874, 0.1
  %v1071 = vmul.f32 %v875, 0.1
  %v1072 = vmul.f32 %v876, 0.1
  %v1073 = vmul.f32 %v877, 0.1
  %v1074 = vmul.f32 %v878, 0.1
  %v1075 = vmul.f32 %v879, 0.1
  %v1076 = vmul.f32 %v880, 0.1
  %v1077 = vmul.f32 %v881, 0.1
  %v1078 = vsel %vm882, %v784, %v980
  %v1079 = vsel %vm883, %v785, %v981
  %v1080 = vsel %vm884, %v786, %v982
  %v1081 = vsel %vm885, %v787, %v983
  %v1082 = vsel %vm886, %v788, %v984
  %v1083 = vsel %vm887, %v789, %v985
  %v1084 = vsel %vm888, %v790, %v986
  %v1085 = vsel %vm889, %v791, %v987
  %v1086 = vsel %vm890, %v792, %v988
  %v1087 = vsel %vm891, %v793, %v989
  %v1088 = vsel %vm892, %v794, %v990
  %v1089 = vsel %vm893, %v795, %v991
  %v1090 = vsel %vm894, %v796, %v992
  %v1091 = vsel %vm895, %v797, %v993
  %v1092 = vsel %vm896, %v798, %v994
  %v1093 = vsel %vm897, %v799, %v995
  %v1094 = vsel %vm898, %v800, %v996
  %v1095 = vsel %vm899, %v801, %v997
  %v1096 = vsel %vm900, %v802, %v998
  %v1097 = vsel %vm901, %v803, %v999
  %v1098 = vsel %vm902, %v804, %v1000
  %v1099 = vsel %vm903, %v805, %v1001
  %v1100 = vsel %vm904, %v806, %v1002
  %v1101 = vsel %vm905, %v807, %v1003
  %v1102 = vsel %vm906, %v808, %v1004
  %v1103 = vsel %vm907, %v809, %v1005
  %v1104 = vsel %vm908, %v810, %v1006
  %v1105 = vsel %vm909, %v811, %v1007
  %v1106 = vsel %vm910, %v812, %v1008
  %v1107 = vsel %vm911, %v813, %v1009
  %v1108 = vsel %vm912, %v814, %v1010
  %v1109 = vsel %vm913, %v815, %v1011
  %v1110 = vsel %vm914, %v816, %v1012
  %v1111 = vsel %vm915, %v817, %v1013
  %v1112 = vsel %vm916, %v818, %v1014
  %v1113 = vsel %vm917, %v819, %v1015
  %v1114 = vsel %vm918, %v820, %v1016
  %v1115 = vsel %vm919, %v821, %v1017
  %v1116 = vsel %vm920, %v822, %v1018
  %v1117 = vsel %vm921, %v823, %v1019
  %v1118 = vsel %vm922, %v824, %v1020
  %v1119 = vsel %vm923, %v825, %v1021
  %v1120 = vsel %vm924, %v826, %v1022
  %v1121 = vsel %vm925, %v827, %v1023
  %v1122 = vsel %vm926, %v828, %v1024
  %v1123 = vsel %vm927, %v829, %v1025
  %v1124 = vsel %vm928, %v830, %v1026
  %v1125 = vsel %vm929, %v831, %v1027
  %v1126 = vsel %vm930, %v832, %v1028
  %v1127 = vsel %vm931, %v833, %v1029
  %v1128 = vsel %vm932, %v834, %v1030
  %v1129 = vsel %vm933, %v835, %v1031
  %v1130 = vsel %vm934, %v836, %v1032
  %v1131 = vsel %vm935, %v837, %v1033
  %v1132 = vsel %vm936, %v838, %v1034
  %v1133 = vsel %vm937, %v839, %v1035
  %v1134 = vsel %vm938, %v840, %v1036
  %v1135 = vsel %vm939, %v841, %v1037
  %v1136 = vsel %vm940, %v842, %v1038
  %v1137 = vsel %vm941, %v843, %v1039
  %v1138 = vsel %vm942, %v844, %v1040
  %v1139 = vsel %vm943, %v845, %v1041
  %v1140 = vsel %vm944, %v846, %v1042
  %v1141 = vsel %vm945, %v847, %v1043
  %v1142 = vsel %vm946, %v848, %v1044
  %v1143 = vsel %vm947, %v849, %v1045
  %v1144 = vsel %vm948, %v850, %v1046
  %v1145 = vsel %vm949, %v851, %v1047
  %v1146 = vsel %vm950, %v852, %v1048
  %v1147 = vsel %vm951, %v853, %v1049
  %v1148 = vsel %vm952, %v854, %v1050
  %v1149 = vsel %vm953, %v855, %v1051
  %v1150 = vsel %vm954, %v856, %v1052
  %v1151 = vsel %vm955, %v857, %v1053
  %v1152 = vsel %vm956, %v858, %v1054
  %v1153 = vsel %vm957, %v859, %v1055
  %v1154 = vsel %vm958, %v860, %v1056
  %v1155 = vsel %vm959, %v861, %v1057
  %v1156 = vsel %vm960, %v862, %v1058
  %v1157 = vsel %vm961, %v863, %v1059
  %v1158 = vsel %vm962, %v864, %v1060
  %v1159 = vsel %vm963, %v865, %v1061
  %v1160 = vsel %vm964, %v866, %v1062
  %v1161 = vsel %vm965, %v867, %v1063
  %v1162 = vsel %vm966, %v868, %v1064
  %v1163 = vsel %vm967, %v869, %v1065
  %v1164 = vsel %vm968, %v870, %v1066
  %v1165 = vsel %vm969, %v871, %v1067
  %v1166 = vsel %vm970, %v872, %v1068
  %v1167 = vsel %vm971, %v873, %v1069
  %v1168 = vsel %vm972, %v874, %v1070
  %v1169 = vsel %vm973, %v875, %v1071
  %v1170 = vsel %vm974, %v876, %v1072
  %v1171 = vsel %vm975, %v877, %v1073
  %v1172 = vsel %vm976, %v878, %v1074
  %v1173 = vsel %vm977, %v879, %v1075
  %v1174 = vsel %vm978, %v880, %v1076
  %v1175 = vsel %vm979, %v881, %v1077
  %v1176 = vpack.c.bf16 %v1127, %v1078
  %v1177 = vpack.c.bf16 %v1128, %v1079
  %v1178 = vpack.c.bf16 %v1129, %v1080
  %v1179 = vpack.c.bf16 %v1130, %v1081
  %v1180 = vpack.c.bf16 %v1131, %v1082
  %v1181 = vpack.c.bf16 %v1132, %v1083
  %v1182 = vpack.c.bf16 %v1133, %v1084
  %v1183 = vpack.c.bf16 %v1134, %v1085
  %v1184 = vpack.c.bf16 %v1135, %v1086
  %v1185 = vpack.c.bf16 %v1136, %v1087
  %v1186 = vpack.c.bf16 %v1137, %v1088
  %v1187 = vpack.c.bf16 %v1138, %v1089
  %v1188 = vpack.c.bf16 %v1139, %v1090
  %v1189 = vpack.c.bf16 %v1140, %v1091
  %v1190 = vpack.c.bf16 %v1141, %v1092
  %v1191 = vpack.c.bf16 %v1142, %v1093
  %v1192 = vpack.c.bf16 %v1143, %v1094
  %v1193 = vpack.c.bf16 %v1144, %v1095
  %v1194 = vpack.c.bf16 %v1145, %v1096
  %v1195 = vpack.c.bf16 %v1146, %v1097
  %v1196 = vpack.c.bf16 %v1147, %v1098
  %v1197 = vpack.c.bf16 %v1148, %v1099
  %v1198 = vpack.c.bf16 %v1149, %v1100
  %v1199 = vpack.c.bf16 %v1150, %v1101
  %v1200 = vpack.c.bf16 %v1151, %v1102
  %v1201 = vpack.c.bf16 %v1152, %v1103
  %v1202 = vpack.c.bf16 %v1153, %v1104
  %v1203 = vpack.c.bf16 %v1154, %v1105
  %v1204 = vpack.c.bf16 %v1155, %v1106
  %v1205 = vpack.c.bf16 %v1156, %v1107
  %v1206 = vpack.c.bf16 %v1157, %v1108
  %v1207 = vpack.c.bf16 %v1158, %v1109
  %v1208 = vpack.c.bf16 %v1159, %v1110
  %v1209 = vpack.c.bf16 %v1160, %v1111
  %v1210 = vpack.c.bf16 %v1161, %v1112
  %v1211 = vpack.c.bf16 %v1162, %v1113
  %v1212 = vpack.c.bf16 %v1163, %v1114
  %v1213 = vpack.c.bf16 %v1164, %v1115
  %v1214 = vpack.c.bf16 %v1165, %v1116
  %v1215 = vpack.c.bf16 %v1166, %v1117
  %v1216 = vpack.c.bf16 %v1167, %v1118
  %v1217 = vpack.c.bf16 %v1168, %v1119
  %v1218 = vpack.c.bf16 %v1169, %v1120
  %v1219 = vpack.c.bf16 %v1170, %v1121
  %v1220 = vpack.c.bf16 %v1171, %v1122
  %v1221 = vpack.c.bf16 %v1172, %v1123
  %v1222 = vpack.c.bf16 %v1173, %v1124
  %v1223 = vpack.c.bf16 %v1174, %v1125
  %v1224 = vpack.c.bf16 %v1175, %v1126
  %v1225 = vld [vmem:[%s3] sm:$0xf]
  %v1226 = vld [vmem:[%s3 + $0x4] sm:$0xf]
  %v1227 = vld [vmem:[%s3 + $0x8] sm:$0xf]
  %v1228 = vld [vmem:[%s3 + $0xc] sm:$0xf]
  %v1229 = vld [vmem:[%s3 + $0x10] sm:$0xf]
  %v1230 = vld [vmem:[%s3 + $0x14] sm:$0xf]
  %v1231 = vld [vmem:[%s3 + $0x18] sm:$0xf]
  %v1232 = vld [vmem:[%s3 + $0x1c] sm:$0xf]
  %v1233 = vld [vmem:[%s3 + $0x20] sm:$0xf]
  %v1234 = vld [vmem:[%s3 + $0x24] sm:$0xf]
  %v1235 = vld [vmem:[%s3 + $0x28] sm:$0xf]
  %v1236 = vld [vmem:[%s3 + $0x2c] sm:$0xf]
  %v1237 = vld [vmem:[%s3 + $0x30] sm:$0xf]
  %v1238 = vld [vmem:[%s3 + $0x34] sm:$0xf]
  %v1239 = vld [vmem:[%s3 + $0x38] sm:$0xf]
  %v1240 = vld [vmem:[%s3 + $0x3c] sm:$0xf]
  %v1241 = vld [vmem:[%s3 + $0x40] sm:$0xf]
  %v1242 = vld [vmem:[%s3 + $0x44] sm:$0xf]
  %v1243 = vld [vmem:[%s3 + $0x48] sm:$0xf]
  %v1244 = vld [vmem:[%s3 + $0x4c] sm:$0xf]
  %v1245 = vld [vmem:[%s3 + $0x50] sm:$0xf]
  %v1246 = vld [vmem:[%s3 + $0x54] sm:$0xf]
  %v1247 = vld [vmem:[%s3 + $0x58] sm:$0xf]
  %v1248 = vld [vmem:[%s3 + $0x5c] sm:$0xf]
  %v1249 = vld [vmem:[%s3 + $0x60] sm:$0xf]
  %v1250 = vld [vmem:[%s3 + $0x64] sm:$0xf]
  %v1251 = vld [vmem:[%s3 + $0x68] sm:$0xf]
  %v1252 = vld [vmem:[%s3 + $0x6c] sm:$0xf]
  %v1253 = vld [vmem:[%s3 + $0x70] sm:$0xf]
  %v1254 = vld [vmem:[%s3 + $0x74] sm:$0xf]
  %v1255 = vld [vmem:[%s3 + $0x78] sm:$0xf]
  %v1256 = vld [vmem:[%s3 + $0x7c] sm:$0xf]
  %v1257 = vld [vmem:[%s3 + $0x80] sm:$0xf]
  %v1258 = vld [vmem:[%s3 + $0x84] sm:$0xf]
  %v1259 = vld [vmem:[%s3 + $0x88] sm:$0xf]
  %v1260 = vld [vmem:[%s3 + $0x8c] sm:$0xf]
  %v1261 = vld [vmem:[%s3 + $0x90] sm:$0xf]
  %v1262 = vld [vmem:[%s3 + $0x94] sm:$0xf]
  %v1263 = vld [vmem:[%s3 + $0x98] sm:$0xf]
  %v1264 = vld [vmem:[%s3 + $0x9c] sm:$0xf]
  %v1265 = vld [vmem:[%s3 + $0xa0] sm:$0xf]
  %v1266 = vld [vmem:[%s3 + $0xa4] sm:$0xf]
  %v1267 = vld [vmem:[%s3 + $0xa8] sm:$0xf]
  %v1268 = vld [vmem:[%s3 + $0xac] sm:$0xf]
  %v1269 = vld [vmem:[%s3 + $0xb0] sm:$0xf]
  %v1270 = vld [vmem:[%s3 + $0xb4] sm:$0xf]
  %v1271 = vld [vmem:[%s3 + $0xb8] sm:$0xf]
  %v1272 = vld [vmem:[%s3 + $0xbc] sm:$0xf]
  %v1273 = vld [vmem:[%s3 + $0xc0] sm:$0xf]
  %v1274 = vld [vmem:[%s3 + $0xc4] sm:$0xf]
  %v1275 = vld [vmem:[%s3 + $0xc8] sm:$0xf]
  %v1276 = vld [vmem:[%s3 + $0xcc] sm:$0xf]
  %v1277 = vld [vmem:[%s3 + $0xd0] sm:$0xf]
  %v1278 = vld [vmem:[%s3 + $0xd4] sm:$0xf]
  %v1279 = vld [vmem:[%s3 + $0xd8] sm:$0xf]
  %v1280 = vld [vmem:[%s3 + $0xdc] sm:$0xf]
  %v1281 = vld [vmem:[%s3 + $0xe0] sm:$0xf]
  %v1282 = vld [vmem:[%s3 + $0xe4] sm:$0xf]
  %v1283 = vld [vmem:[%s3 + $0xe8] sm:$0xf]
  %v1284 = vld [vmem:[%s3 + $0xec] sm:$0xf]
  %v1285 = vld [vmem:[%s3 + $0xf0] sm:$0xf]
  %v1286 = vld [vmem:[%s3 + $0xf4] sm:$0xf]
  %v1287 = vld [vmem:[%s3 + $0xf8] sm:$0xf]
  %v1288 = vld [vmem:[%s3 + $0xfc] sm:$0xf]
  %v1289 = vld [vmem:[%s3 + $0x100] sm:$0xf]
  %v1290 = vld [vmem:[%s3 + $0x104] sm:$0xf]
  %v1291 = vld [vmem:[%s3 + $0x108] sm:$0xf]
  %v1292 = vld [vmem:[%s3 + $0x10c] sm:$0xf]
  %v1293 = vld [vmem:[%s3 + $0x110] sm:$0xf]
  %v1294 = vld [vmem:[%s3 + $0x114] sm:$0xf]
  %v1295 = vld [vmem:[%s3 + $0x118] sm:$0xf]
  %v1296 = vld [vmem:[%s3 + $0x11c] sm:$0xf]
  %v1297 = vld [vmem:[%s3 + $0x120] sm:$0xf]
  %v1298 = vld [vmem:[%s3 + $0x124] sm:$0xf]
  %v1299 = vld [vmem:[%s3 + $0x128] sm:$0xf]
  %v1300 = vld [vmem:[%s3 + $0x12c] sm:$0xf]
  %v1301 = vld [vmem:[%s3 + $0x130] sm:$0xf]
  %v1302 = vld [vmem:[%s3 + $0x134] sm:$0xf]
  %v1303 = vld [vmem:[%s3 + $0x138] sm:$0xf]
  %v1304 = vld [vmem:[%s3 + $0x13c] sm:$0xf]
  %v1305 = vld [vmem:[%s3 + $0x140] sm:$0xf]
  %v1306 = vld [vmem:[%s3 + $0x144] sm:$0xf]
  %v1307 = vld [vmem:[%s3 + $0x148] sm:$0xf]
  %v1308 = vld [vmem:[%s3 + $0x14c] sm:$0xf]
  %v1309 = vld [vmem:[%s3 + $0x150] sm:$0xf]
  %v1310 = vld [vmem:[%s3 + $0x154] sm:$0xf]
  %v1311 = vld [vmem:[%s3 + $0x158] sm:$0xf]
  %v1312 = vld [vmem:[%s3 + $0x15c] sm:$0xf]
  %v1313 = vld [vmem:[%s3 + $0x160] sm:$0xf]
  %v1314 = vld [vmem:[%s3 + $0x164] sm:$0xf]
  %v1315 = vld [vmem:[%s3 + $0x168] sm:$0xf]
  %v1316 = vld [vmem:[%s3 + $0x16c] sm:$0xf]
  %v1317 = vld [vmem:[%s3 + $0x170] sm:$0xf]
  %v1318 = vld [vmem:[%s3 + $0x174] sm:$0xf]
  %v1319 = vld [vmem:[%s3 + $0x178] sm:$0xf]
  %v1320 = vld [vmem:[%s3 + $0x17c] sm:$0xf]
  %v1321 = vld [vmem:[%s3 + $0x180] sm:$0xf]
  %v1322 = vld [vmem:[%s3 + $0x184] sm:$0xf]
  %v1323 = vld [vmem:[%s3 + $0x188] sm:$0xf]
  %v1324 = vld [vmem:[%s3 + $0x18c] sm:$0xf]
  %v1325 = vld [vmem:[%s3 + $0x190] sm:$0xf]
  %v1326 = vld [vmem:[%s3 + $0x194] sm:$0xf]
  %v1327 = vld [vmem:[%s3 + $0x198] sm:$0xf]
  %v1328 = vld [vmem:[%s3 + $0x19c] sm:$0xf]
  %v1329 = vld [vmem:[%s3 + $0x1a0] sm:$0xf]
  %v1330 = vld [vmem:[%s3 + $0x1a4] sm:$0xf]
  %v1331 = vld [vmem:[%s3 + $0x1a8] sm:$0xf]
  %v1332 = vld [vmem:[%s3 + $0x1ac] sm:$0xf]
  %v1333 = vld [vmem:[%s3 + $0x1b0] sm:$0xf]
  %v1334 = vld [vmem:[%s3 + $0x1b4] sm:$0xf]
  %v1335 = vld [vmem:[%s3 + $0x1b8] sm:$0xf]
  %v1336 = vld [vmem:[%s3 + $0x1bc] sm:$0xf]
  %v1337 = vld [vmem:[%s3 + $0x1c0] sm:$0xf]
  %v1338 = vld [vmem:[%s3 + $0x1c4] sm:$0xf]
  %v1339 = vld [vmem:[%s3 + $0x1c8] sm:$0xf]
  %v1340 = vld [vmem:[%s3 + $0x1cc] sm:$0xf]
  %v1341 = vld [vmem:[%s3 + $0x1d0] sm:$0xf]
  %v1342 = vld [vmem:[%s3 + $0x1d4] sm:$0xf]
  %v1343 = vld [vmem:[%s3 + $0x1d8] sm:$0xf]
  %v1344 = vld [vmem:[%s3 + $0x1dc] sm:$0xf]
  %v1345 = vld [vmem:[%s3 + $0x1e0] sm:$0xf]
  %v1346 = vld [vmem:[%s3 + $0x1e4] sm:$0xf]
  %v1347 = vld [vmem:[%s3 + $0x1e8] sm:$0xf]
  %v1348 = vld [vmem:[%s3 + $0x1ec] sm:$0xf]
  %v1349 = vld [vmem:[%s3 + $0x1f0] sm:$0xf]
  %v1350 = vld [vmem:[%s3 + $0x1f4] sm:$0xf]
  %v1351 = vld [vmem:[%s3 + $0x1f8] sm:$0xf]
  %v1352 = vld [vmem:[%s3 + $0x1fc] sm:$0xf]
  %v1353 = vld [vmem:[%s3 + $0x200] sm:$0xf]
  %v1354 = vld [vmem:[%s3 + $0x204] sm:$0xf]
  %v1355 = vld [vmem:[%s3 + $0x208] sm:$0xf]
  %v1356 = vld [vmem:[%s3 + $0x20c] sm:$0xf]
  %v1357 = vld [vmem:[%s3 + $0x210] sm:$0xf]
  %v1358 = vld [vmem:[%s3 + $0x214] sm:$0xf]
  %v1359 = vld [vmem:[%s3 + $0x218] sm:$0xf]
  %v1360 = vld [vmem:[%s3 + $0x21c] sm:$0xf]
  %v1361 = vld [vmem:[%s3 + $0x220] sm:$0xf]
  %v1362 = vld [vmem:[%s3 + $0x224] sm:$0xf]
  %v1363 = vld [vmem:[%s3 + $0x228] sm:$0xf]
  %v1364 = vld [vmem:[%s3 + $0x22c] sm:$0xf]
  %v1365 = vld [vmem:[%s3 + $0x230] sm:$0xf]
  %v1366 = vld [vmem:[%s3 + $0x234] sm:$0xf]
  %v1367 = vld [vmem:[%s3 + $0x238] sm:$0xf]
  %v1368 = vld [vmem:[%s3 + $0x23c] sm:$0xf]
  %v1369 = vld [vmem:[%s3 + $0x240] sm:$0xf]
  %v1370 = vld [vmem:[%s3 + $0x244] sm:$0xf]
  %v1371 = vld [vmem:[%s3 + $0x248] sm:$0xf]
  %v1372 = vld [vmem:[%s3 + $0x24c] sm:$0xf]
  %v1373 = vld [vmem:[%s3 + $0x250] sm:$0xf]
  %v1374 = vld [vmem:[%s3 + $0x254] sm:$0xf]
  %v1375 = vld [vmem:[%s3 + $0x258] sm:$0xf]
  %v1376 = vld [vmem:[%s3 + $0x25c] sm:$0xf]
  %v1377 = vld [vmem:[%s3 + $0x260] sm:$0xf]
  %v1378 = vld [vmem:[%s3 + $0x264] sm:$0xf]
  %v1379 = vld [vmem:[%s3 + $0x268] sm:$0xf]
  %v1380 = vld [vmem:[%s3 + $0x26c] sm:$0xf]
  %v1381 = vld [vmem:[%s3 + $0x270] sm:$0xf]
  %v1382 = vld [vmem:[%s3 + $0x274] sm:$0xf]
  %v1383 = vld [vmem:[%s3 + $0x278] sm:$0xf]
  %v1384 = vld [vmem:[%s3 + $0x27c] sm:$0xf]
  %v1385 = vld [vmem:[%s3 + $0x280] sm:$0xf]
  %v1386 = vld [vmem:[%s3 + $0x284] sm:$0xf]
  %v1387 = vld [vmem:[%s3 + $0x288] sm:$0xf]
  %v1388 = vld [vmem:[%s3 + $0x28c] sm:$0xf]
  %v1389 = vld [vmem:[%s3 + $0x290] sm:$0xf]
  %v1390 = vld [vmem:[%s3 + $0x294] sm:$0xf]
  %v1391 = vld [vmem:[%s3 + $0x298] sm:$0xf]
  %v1392 = vld [vmem:[%s3 + $0x29c] sm:$0xf]
  %v1393 = vld [vmem:[%s3 + $0x2a0] sm:$0xf]
  %v1394 = vld [vmem:[%s3 + $0x2a4] sm:$0xf]
  %v1395 = vld [vmem:[%s3 + $0x2a8] sm:$0xf]
  %v1396 = vld [vmem:[%s3 + $0x2ac] sm:$0xf]
  %v1397 = vld [vmem:[%s3 + $0x2b0] sm:$0xf]
  %v1398 = vld [vmem:[%s3 + $0x2b4] sm:$0xf]
  %v1399 = vld [vmem:[%s3 + $0x2b8] sm:$0xf]
  %v1400 = vld [vmem:[%s3 + $0x2bc] sm:$0xf]
  %v1401 = vld [vmem:[%s3 + $0x2c0] sm:$0xf]
  %v1402 = vld [vmem:[%s3 + $0x2c4] sm:$0xf]
  %v1403 = vld [vmem:[%s3 + $0x2c8] sm:$0xf]
  %v1404 = vld [vmem:[%s3 + $0x2cc] sm:$0xf]
  %v1405 = vld [vmem:[%s3 + $0x2d0] sm:$0xf]
  %v1406 = vld [vmem:[%s3 + $0x2d4] sm:$0xf]
  %v1407 = vld [vmem:[%s3 + $0x2d8] sm:$0xf]
  %v1408 = vld [vmem:[%s3 + $0x2dc] sm:$0xf]
  %v1409 = vld [vmem:[%s3 + $0x2e0] sm:$0xf]
  %v1410 = vld [vmem:[%s3 + $0x2e4] sm:$0xf]
  %v1411 = vld [vmem:[%s3 + $0x2e8] sm:$0xf]
  %v1412 = vld [vmem:[%s3 + $0x2ec] sm:$0xf]
  %v1413 = vld [vmem:[%s3 + $0x2f0] sm:$0xf]
  %v1414 = vld [vmem:[%s3 + $0x2f4] sm:$0xf]
  %v1415 = vld [vmem:[%s3 + $0x2f8] sm:$0xf]
  %v1416 = vld [vmem:[%s3 + $0x2fc] sm:$0xf]
  %v1417 = vld [vmem:[%s3 + $0x300] sm:$0xf]
  %v1418 = vld [vmem:[%s3 + $0x304] sm:$0xf]
  %v1419 = vld [vmem:[%s3 + $0x308] sm:$0xf]
  %v1420 = vld [vmem:[%s3 + $0x30c] sm:$0xf]
  %v1421 = vld [vmem:[%s3 + $0x310] sm:$0xf]
  %v1422 = vld [vmem:[%s3 + $0x314] sm:$0xf]
  %v1423 = vld [vmem:[%s3 + $0x318] sm:$0xf]
  %v1424 = vld [vmem:[%s3 + $0x31c] sm:$0xf]
  %v1425 = vld [vmem:[%s3 + $0x320] sm:$0xf]
  %v1426 = vld [vmem:[%s3 + $0x324] sm:$0xf]
  %v1427 = vld [vmem:[%s3 + $0x328] sm:$0xf]
  %v1428 = vld [vmem:[%s3 + $0x32c] sm:$0xf]
  %v1429 = vld [vmem:[%s3 + $0x330] sm:$0xf]
  %v1430 = vld [vmem:[%s3 + $0x334] sm:$0xf]
  %v1431 = vld [vmem:[%s3 + $0x338] sm:$0xf]
  %v1432 = vld [vmem:[%s3 + $0x33c] sm:$0xf]
  %v1433 = vld [vmem:[%s3 + $0x340] sm:$0xf]
  %v1434 = vld [vmem:[%s3 + $0x344] sm:$0xf]
  %v1435 = vld [vmem:[%s3 + $0x348] sm:$0xf]
  %v1436 = vld [vmem:[%s3 + $0x34c] sm:$0xf]
  %v1437 = vld [vmem:[%s3 + $0x350] sm:$0xf]
  %v1438 = vld [vmem:[%s3 + $0x354] sm:$0xf]
  %v1439 = vld [vmem:[%s3 + $0x358] sm:$0xf]
  %v1440 = vld [vmem:[%s3 + $0x35c] sm:$0xf]
  %v1441 = vld [vmem:[%s3 + $0x360] sm:$0xf]
  %v1442 = vld [vmem:[%s3 + $0x364] sm:$0xf]
  %v1443 = vld [vmem:[%s3 + $0x368] sm:$0xf]
  %v1444 = vld [vmem:[%s3 + $0x36c] sm:$0xf]
  %v1445 = vld [vmem:[%s3 + $0x370] sm:$0xf]
  %v1446 = vld [vmem:[%s3 + $0x374] sm:$0xf]
  %v1447 = vld [vmem:[%s3 + $0x378] sm:$0xf]
  %v1448 = vld [vmem:[%s3 + $0x37c] sm:$0xf]
  %v1449 = vld [vmem:[%s3 + $0x380] sm:$0xf]
  %v1450 = vld [vmem:[%s3 + $0x384] sm:$0xf]
  %v1451 = vld [vmem:[%s3 + $0x388] sm:$0xf]
  %v1452 = vld [vmem:[%s3 + $0x38c] sm:$0xf]
  %v1453 = vld [vmem:[%s3 + $0x390] sm:$0xf]
  %v1454 = vld [vmem:[%s3 + $0x394] sm:$0xf]
  %v1455 = vld [vmem:[%s3 + $0x398] sm:$0xf]
  %v1456 = vld [vmem:[%s3 + $0x39c] sm:$0xf]
  %v1457 = vld [vmem:[%s3 + $0x3a0] sm:$0xf]
  %v1458 = vld [vmem:[%s3 + $0x3a4] sm:$0xf]
  %v1459 = vld [vmem:[%s3 + $0x3a8] sm:$0xf]
  %v1460 = vld [vmem:[%s3 + $0x3ac] sm:$0xf]
  %v1461 = vld [vmem:[%s3 + $0x3b0] sm:$0xf]
  %v1462 = vld [vmem:[%s3 + $0x3b4] sm:$0xf]
  %v1463 = vld [vmem:[%s3 + $0x3b8] sm:$0xf]
  %v1464 = vld [vmem:[%s3 + $0x3bc] sm:$0xf]
  %v1465 = vld [vmem:[%s3 + $0x3c0] sm:$0xf]
  %v1466 = vld [vmem:[%s3 + $0x3c4] sm:$0xf]
  %v1467 = vld [vmem:[%s3 + $0x3c8] sm:$0xf]
  %v1468 = vld [vmem:[%s3 + $0x3cc] sm:$0xf]
  %v1469 = vld [vmem:[%s3 + $0x3d0] sm:$0xf]
  %v1470 = vld [vmem:[%s3 + $0x3d4] sm:$0xf]
  %v1471 = vld [vmem:[%s3 + $0x3d8] sm:$0xf]
  %v1472 = vld [vmem:[%s3 + $0x3dc] sm:$0xf]
  %v1473 = vld [vmem:[%s3 + $0x3e0] sm:$0xf]
  %v1474 = vld [vmem:[%s3 + $0x3e4] sm:$0xf]
  %v1475 = vld [vmem:[%s3 + $0x3e8] sm:$0xf]
  %v1476 = vld [vmem:[%s3 + $0x3ec] sm:$0xf]
  %v1477 = vld [vmem:[%s3 + $0x3f0] sm:$0xf]
  %v1478 = vld [vmem:[%s3 + $0x3f4] sm:$0xf]
  %v1479 = vld [vmem:[%s3 + $0x3f8] sm:$0xf]
  %v1480 = vld [vmem:[%s3 + $0x3fc] sm:$0xf]
  %v1481 = vld [vmem:[%s3 + $0x400] sm:$0xf]
  %v1482 = vld [vmem:[%s3 + $0x404] sm:$0xf]
  %v1483 = vld [vmem:[%s3 + $0x408] sm:$0xf]
  %v1484 = vld [vmem:[%s3 + $0x40c] sm:$0xf]
  %v1485 = vld [vmem:[%s3 + $0x410] sm:$0xf]
  %v1486 = vld [vmem:[%s3 + $0x414] sm:$0xf]
  %v1487 = vld [vmem:[%s3 + $0x418] sm:$0xf]
  %v1488 = vld [vmem:[%s3 + $0x41c] sm:$0xf]
  %v1489 = vld [vmem:[%s3 + $0x420] sm:$0xf]
  %v1490 = vld [vmem:[%s3 + $0x424] sm:$0xf]
  %v1491 = vld [vmem:[%s3 + $0x428] sm:$0xf]
  %v1492 = vld [vmem:[%s3 + $0x42c] sm:$0xf]
  %v1493 = vld [vmem:[%s3 + $0x430] sm:$0xf]
  %v1494 = vld [vmem:[%s3 + $0x434] sm:$0xf]
  %v1495 = vld [vmem:[%s3 + $0x438] sm:$0xf]
  %v1496 = vld [vmem:[%s3 + $0x43c] sm:$0xf]
  %v1497 = vld [vmem:[%s3 + $0x440] sm:$0xf]
  %v1498 = vld [vmem:[%s3 + $0x444] sm:$0xf]
  %v1499 = vld [vmem:[%s3 + $0x448] sm:$0xf]
  %v1500 = vld [vmem:[%s3 + $0x44c] sm:$0xf]
  %v1501 = vld [vmem:[%s3 + $0x450] sm:$0xf]
  %v1502 = vld [vmem:[%s3 + $0x454] sm:$0xf]
  %v1503 = vld [vmem:[%s3 + $0x458] sm:$0xf]
  %v1504 = vld [vmem:[%s3 + $0x45c] sm:$0xf]
  %v1505 = vld [vmem:[%s3 + $0x460] sm:$0xf]
  %v1506 = vld [vmem:[%s3 + $0x464] sm:$0xf]
  %v1507 = vld [vmem:[%s3 + $0x468] sm:$0xf]
  %v1508 = vld [vmem:[%s3 + $0x46c] sm:$0xf]
  %v1509 = vld [vmem:[%s3 + $0x470] sm:$0xf]
  %v1510 = vld [vmem:[%s3 + $0x474] sm:$0xf]
  %v1511 = vld [vmem:[%s3 + $0x478] sm:$0xf]
  %v1512 = vld [vmem:[%s3 + $0x47c] sm:$0xf]
  %v1513 = vld [vmem:[%s3 + $0x480] sm:$0xf]
  %v1514 = vld [vmem:[%s3 + $0x484] sm:$0xf]
  %v1515 = vld [vmem:[%s3 + $0x488] sm:$0xf]
  %v1516 = vld [vmem:[%s3 + $0x48c] sm:$0xf]
  %v1517 = vld [vmem:[%s3 + $0x490] sm:$0xf]
  %v1518 = vld [vmem:[%s3 + $0x494] sm:$0xf]
  %v1519 = vld [vmem:[%s3 + $0x498] sm:$0xf]
  %v1520 = vld [vmem:[%s3 + $0x49c] sm:$0xf]
  %v1521 = vld [vmem:[%s3 + $0x4a0] sm:$0xf]
  %v1522 = vld [vmem:[%s3 + $0x4a4] sm:$0xf]
  %v1523 = vld [vmem:[%s3 + $0x4a8] sm:$0xf]
  %v1524 = vld [vmem:[%s3 + $0x4ac] sm:$0xf]
  %v1525 = vld [vmem:[%s3 + $0x4b0] sm:$0xf]
  %v1526 = vld [vmem:[%s3 + $0x4b4] sm:$0xf]
  %v1527 = vld [vmem:[%s3 + $0x4b8] sm:$0xf]
  %v1528 = vld [vmem:[%s3 + $0x4bc] sm:$0xf]
  %v1529 = vld [vmem:[%s3 + $0x4c0] sm:$0xf]
  %v1530 = vld [vmem:[%s3 + $0x4c4] sm:$0xf]
  %v1531 = vld [vmem:[%s3 + $0x4c8] sm:$0xf]
  %v1532 = vld [vmem:[%s3 + $0x4cc] sm:$0xf]
  %v1533 = vld [vmem:[%s3 + $0x4d0] sm:$0xf]
  %v1534 = vld [vmem:[%s3 + $0x4d4] sm:$0xf]
  %v1535 = vld [vmem:[%s3 + $0x4d8] sm:$0xf]
  %v1536 = vld [vmem:[%s3 + $0x4dc] sm:$0xf]
  %v1537 = vld [vmem:[%s3 + $0x4e0] sm:$0xf]
  %v1538 = vld [vmem:[%s3 + $0x4e4] sm:$0xf]
  %v1539 = vld [vmem:[%s3 + $0x4e8] sm:$0xf]
  %v1540 = vld [vmem:[%s3 + $0x4ec] sm:$0xf]
  %v1541 = vld [vmem:[%s3 + $0x4f0] sm:$0xf]
  %v1542 = vld [vmem:[%s3 + $0x4f4] sm:$0xf]
  %v1543 = vld [vmem:[%s3 + $0x4f8] sm:$0xf]
  %v1544 = vld [vmem:[%s3 + $0x4fc] sm:$0xf]
  %v1545 = vld [vmem:[%s3 + $0x500] sm:$0xf]
  %v1546 = vld [vmem:[%s3 + $0x504] sm:$0xf]
  %v1547 = vld [vmem:[%s3 + $0x508] sm:$0xf]
  %v1548 = vld [vmem:[%s3 + $0x50c] sm:$0xf]
  %v1549 = vld [vmem:[%s3 + $0x510] sm:$0xf]
  %v1550 = vld [vmem:[%s3 + $0x514] sm:$0xf]
  %v1551 = vld [vmem:[%s3 + $0x518] sm:$0xf]
  %v1552 = vld [vmem:[%s3 + $0x51c] sm:$0xf]
  %v1553 = vld [vmem:[%s3 + $0x520] sm:$0xf]
  %v1554 = vld [vmem:[%s3 + $0x524] sm:$0xf]
  %v1555 = vld [vmem:[%s3 + $0x528] sm:$0xf]
  %v1556 = vld [vmem:[%s3 + $0x52c] sm:$0xf]
  %v1557 = vld [vmem:[%s3 + $0x530] sm:$0xf]
  %v1558 = vld [vmem:[%s3 + $0x534] sm:$0xf]
  %v1559 = vld [vmem:[%s3 + $0x538] sm:$0xf]
  %v1560 = vld [vmem:[%s3 + $0x53c] sm:$0xf]
  %v1561 = vld [vmem:[%s3 + $0x540] sm:$0xf]
  %v1562 = vld [vmem:[%s3 + $0x544] sm:$0xf]
  %v1563 = vld [vmem:[%s3 + $0x548] sm:$0xf]
  %v1564 = vld [vmem:[%s3 + $0x54c] sm:$0xf]
  %v1565 = vld [vmem:[%s3 + $0x550] sm:$0xf]
  %v1566 = vld [vmem:[%s3 + $0x554] sm:$0xf]
  %v1567 = vld [vmem:[%s3 + $0x558] sm:$0xf]
  %v1568 = vld [vmem:[%s3 + $0x55c] sm:$0xf]
  %v1569 = vld [vmem:[%s3 + $0x560] sm:$0xf]
  %v1570 = vld [vmem:[%s3 + $0x564] sm:$0xf]
  %v1571 = vld [vmem:[%s3 + $0x568] sm:$0xf]
  %v1572 = vld [vmem:[%s3 + $0x56c] sm:$0xf]
  %v1573 = vld [vmem:[%s3 + $0x570] sm:$0xf]
  %v1574 = vld [vmem:[%s3 + $0x574] sm:$0xf]
  %v1575 = vld [vmem:[%s3 + $0x578] sm:$0xf]
  %v1576 = vld [vmem:[%s3 + $0x57c] sm:$0xf]
  %v1577 = vld [vmem:[%s3 + $0x580] sm:$0xf]
  %v1578 = vld [vmem:[%s3 + $0x584] sm:$0xf]
  %v1579 = vld [vmem:[%s3 + $0x588] sm:$0xf]
  %v1580 = vld [vmem:[%s3 + $0x58c] sm:$0xf]
  %v1581 = vld [vmem:[%s3 + $0x590] sm:$0xf]
  %v1582 = vld [vmem:[%s3 + $0x594] sm:$0xf]
  %v1583 = vld [vmem:[%s3 + $0x598] sm:$0xf]
  %v1584 = vld [vmem:[%s3 + $0x59c] sm:$0xf]
  %v1585 = vld [vmem:[%s3 + $0x5a0] sm:$0xf]
  %v1586 = vld [vmem:[%s3 + $0x5a4] sm:$0xf]
  %v1587 = vld [vmem:[%s3 + $0x5a8] sm:$0xf]
  %v1588 = vld [vmem:[%s3 + $0x5ac] sm:$0xf]
  %v1589 = vld [vmem:[%s3 + $0x5b0] sm:$0xf]
  %v1590 = vld [vmem:[%s3 + $0x5b4] sm:$0xf]
  %v1591 = vld [vmem:[%s3 + $0x5b8] sm:$0xf]
  %v1592 = vld [vmem:[%s3 + $0x5bc] sm:$0xf]
  %v1593 = vld [vmem:[%s3 + $0x5c0] sm:$0xf]
  %v1594 = vld [vmem:[%s3 + $0x5c4] sm:$0xf]
  %v1595 = vld [vmem:[%s3 + $0x5c8] sm:$0xf]
  %v1596 = vld [vmem:[%s3 + $0x5cc] sm:$0xf]
  %v1597 = vld [vmem:[%s3 + $0x5d0] sm:$0xf]
  %v1598 = vld [vmem:[%s3 + $0x5d4] sm:$0xf]
  %v1599 = vld [vmem:[%s3 + $0x5d8] sm:$0xf]
  %v1600 = vld [vmem:[%s3 + $0x5dc] sm:$0xf]
  %v1601 = vld [vmem:[%s3 + $0x5e0] sm:$0xf]
  %v1602 = vld [vmem:[%s3 + $0x5e4] sm:$0xf]
  %v1603 = vld [vmem:[%s3 + $0x5e8] sm:$0xf]
  %v1604 = vld [vmem:[%s3 + $0x5ec] sm:$0xf]
  %v1605 = vld [vmem:[%s3 + $0x5f0] sm:$0xf]
  %v1606 = vld [vmem:[%s3 + $0x5f4] sm:$0xf]
  %v1607 = vld [vmem:[%s3 + $0x5f8] sm:$0xf]
  %v1608 = vld [vmem:[%s3 + $0x5fc] sm:$0xf]
  %v1609 = vld [vmem:[%s3 + $0x600] sm:$0xf]
  %v1610 = vld [vmem:[%s3 + $0x604] sm:$0xf]
  %v1611 = vld [vmem:[%s3 + $0x608] sm:$0xf]
  %v1612 = vld [vmem:[%s3 + $0x60c] sm:$0xf]
  %v1613 = vld [vmem:[%s3 + $0x610] sm:$0xf]
  %v1614 = vld [vmem:[%s3 + $0x614] sm:$0xf]
  %v1615 = vld [vmem:[%s3 + $0x618] sm:$0xf]
  %v1616 = vld [vmem:[%s3 + $0x61c] sm:$0xf]
  %v1617 = vld [vmem:[%s3 + $0x620] sm:$0xf]
  %v1618 = vld [vmem:[%s3 + $0x624] sm:$0xf]
  %v1619 = vld [vmem:[%s3 + $0x628] sm:$0xf]
  %v1620 = vld [vmem:[%s3 + $0x62c] sm:$0xf]
  %v1621 = vld [vmem:[%s3 + $0x630] sm:$0xf]
  %v1622 = vld [vmem:[%s3 + $0x634] sm:$0xf]
  %v1623 = vld [vmem:[%s3 + $0x638] sm:$0xf]
  %v1624 = vld [vmem:[%s3 + $0x63c] sm:$0xf]
  %v1625 = vld [vmem:[%s3 + $0x640] sm:$0xf]
  %v1626 = vld [vmem:[%s3 + $0x644] sm:$0xf]
  %v1627 = vld [vmem:[%s3 + $0x648] sm:$0xf]
  %v1628 = vld [vmem:[%s3 + $0x64c] sm:$0xf]
  %v1629 = vld [vmem:[%s3 + $0x650] sm:$0xf]
  %v1630 = vld [vmem:[%s3 + $0x654] sm:$0xf]
  %v1631 = vld [vmem:[%s3 + $0x658] sm:$0xf]
  %v1632 = vld [vmem:[%s3 + $0x65c] sm:$0xf]
  %v1633 = vld [vmem:[%s3 + $0x660] sm:$0xf]
  %v1634 = vld [vmem:[%s3 + $0x664] sm:$0xf]
  %v1635 = vld [vmem:[%s3 + $0x668] sm:$0xf]
  %v1636 = vld [vmem:[%s3 + $0x66c] sm:$0xf]
  %v1637 = vld [vmem:[%s3 + $0x670] sm:$0xf]
  %v1638 = vld [vmem:[%s3 + $0x674] sm:$0xf]
  %v1639 = vld [vmem:[%s3 + $0x678] sm:$0xf]
  %v1640 = vld [vmem:[%s3 + $0x67c] sm:$0xf]
  %v1641 = vld [vmem:[%s3 + $0x680] sm:$0xf]
  %v1642 = vld [vmem:[%s3 + $0x684] sm:$0xf]
  %v1643 = vld [vmem:[%s3 + $0x688] sm:$0xf]
  %v1644 = vld [vmem:[%s3 + $0x68c] sm:$0xf]
  %v1645 = vld [vmem:[%s3 + $0x690] sm:$0xf]
  %v1646 = vld [vmem:[%s3 + $0x694] sm:$0xf]
  %v1647 = vld [vmem:[%s3 + $0x698] sm:$0xf]
  %v1648 = vld [vmem:[%s3 + $0x69c] sm:$0xf]
  %v1649 = vld [vmem:[%s3 + $0x6a0] sm:$0xf]
  %v1650 = vld [vmem:[%s3 + $0x6a4] sm:$0xf]
  %v1651 = vld [vmem:[%s3 + $0x6a8] sm:$0xf]
  %v1652 = vld [vmem:[%s3 + $0x6ac] sm:$0xf]
  %v1653 = vld [vmem:[%s3 + $0x6b0] sm:$0xf]
  %v1654 = vld [vmem:[%s3 + $0x6b4] sm:$0xf]
  %v1655 = vld [vmem:[%s3 + $0x6b8] sm:$0xf]
  %v1656 = vld [vmem:[%s3 + $0x6bc] sm:$0xf]
  %v1657 = vld [vmem:[%s3 + $0x6c0] sm:$0xf]
  %v1658 = vld [vmem:[%s3 + $0x6c4] sm:$0xf]
  %v1659 = vld [vmem:[%s3 + $0x6c8] sm:$0xf]
  %v1660 = vld [vmem:[%s3 + $0x6cc] sm:$0xf]
  %v1661 = vld [vmem:[%s3 + $0x6d0] sm:$0xf]
  %v1662 = vld [vmem:[%s3 + $0x6d4] sm:$0xf]
  %v1663 = vld [vmem:[%s3 + $0x6d8] sm:$0xf]
  %v1664 = vld [vmem:[%s3 + $0x6dc] sm:$0xf]
  %v1665 = vld [vmem:[%s3 + $0x6e0] sm:$0xf]
  %v1666 = vld [vmem:[%s3 + $0x6e4] sm:$0xf]
  %v1667 = vld [vmem:[%s3 + $0x6e8] sm:$0xf]
  %v1668 = vld [vmem:[%s3 + $0x6ec] sm:$0xf]
  %v1669 = vld [vmem:[%s3 + $0x6f0] sm:$0xf]
  %v1670 = vld [vmem:[%s3 + $0x6f4] sm:$0xf]
  %v1671 = vld [vmem:[%s3 + $0x6f8] sm:$0xf]
  %v1672 = vld [vmem:[%s3 + $0x6fc] sm:$0xf]
  %v1673 = vld [vmem:[%s3 + $0x700] sm:$0xf]
  %v1674 = vld [vmem:[%s3 + $0x704] sm:$0xf]
  %v1675 = vld [vmem:[%s3 + $0x708] sm:$0xf]
  %v1676 = vld [vmem:[%s3 + $0x70c] sm:$0xf]
  %v1677 = vld [vmem:[%s3 + $0x710] sm:$0xf]
  %v1678 = vld [vmem:[%s3 + $0x714] sm:$0xf]
  %v1679 = vld [vmem:[%s3 + $0x718] sm:$0xf]
  %v1680 = vld [vmem:[%s3 + $0x71c] sm:$0xf]
  %v1681 = vld [vmem:[%s3 + $0x720] sm:$0xf]
  %v1682 = vld [vmem:[%s3 + $0x724] sm:$0xf]
  %v1683 = vld [vmem:[%s3 + $0x728] sm:$0xf]
  %v1684 = vld [vmem:[%s3 + $0x72c] sm:$0xf]
  %v1685 = vld [vmem:[%s3 + $0x730] sm:$0xf]
  %v1686 = vld [vmem:[%s3 + $0x734] sm:$0xf]
  %v1687 = vld [vmem:[%s3 + $0x738] sm:$0xf]
  %v1688 = vld [vmem:[%s3 + $0x73c] sm:$0xf]
  %v1689 = vld [vmem:[%s3 + $0x740] sm:$0xf]
  %v1690 = vld [vmem:[%s3 + $0x744] sm:$0xf]
  %v1691 = vld [vmem:[%s3 + $0x748] sm:$0xf]
  %v1692 = vld [vmem:[%s3 + $0x74c] sm:$0xf]
  %v1693 = vld [vmem:[%s3 + $0x750] sm:$0xf]
  %v1694 = vld [vmem:[%s3 + $0x754] sm:$0xf]
  %v1695 = vld [vmem:[%s3 + $0x758] sm:$0xf]
  %v1696 = vld [vmem:[%s3 + $0x75c] sm:$0xf]
  %v1697 = vld [vmem:[%s3 + $0x760] sm:$0xf]
  %v1698 = vld [vmem:[%s3 + $0x764] sm:$0xf]
  %v1699 = vld [vmem:[%s3 + $0x768] sm:$0xf]
  %v1700 = vld [vmem:[%s3 + $0x76c] sm:$0xf]
  %v1701 = vld [vmem:[%s3 + $0x770] sm:$0xf]
  %v1702 = vld [vmem:[%s3 + $0x774] sm:$0xf]
  %v1703 = vld [vmem:[%s3 + $0x778] sm:$0xf]
  %v1704 = vld [vmem:[%s3 + $0x77c] sm:$0xf]
  %v1705 = vld [vmem:[%s3 + $0x780] sm:$0xf]
  %v1706 = vld [vmem:[%s3 + $0x784] sm:$0xf]
  %v1707 = vld [vmem:[%s3 + $0x788] sm:$0xf]
  %v1708 = vld [vmem:[%s3 + $0x78c] sm:$0xf]
  %v1709 = vld [vmem:[%s3 + $0x790] sm:$0xf]
  %v1710 = vld [vmem:[%s3 + $0x794] sm:$0xf]
  %v1711 = vld [vmem:[%s3 + $0x798] sm:$0xf]
  %v1712 = vld [vmem:[%s3 + $0x79c] sm:$0xf]
  %v1713 = vld [vmem:[%s3 + $0x7a0] sm:$0xf]
  %v1714 = vld [vmem:[%s3 + $0x7a4] sm:$0xf]
  %v1715 = vld [vmem:[%s3 + $0x7a8] sm:$0xf]
  %v1716 = vld [vmem:[%s3 + $0x7ac] sm:$0xf]
  %v1717 = vld [vmem:[%s3 + $0x7b0] sm:$0xf]
  %v1718 = vld [vmem:[%s3 + $0x7b4] sm:$0xf]
  %v1719 = vld [vmem:[%s3 + $0x7b8] sm:$0xf]
  %v1720 = vld [vmem:[%s3 + $0x7bc] sm:$0xf]
  %v1721 = vld [vmem:[%s3 + $0x7c0] sm:$0xf]
  %v1722 = vld [vmem:[%s3 + $0x7c4] sm:$0xf]
  %v1723 = vld [vmem:[%s3 + $0x7c8] sm:$0xf]
  %v1724 = vld [vmem:[%s3 + $0x7cc] sm:$0xf]
  %v1725 = vld [vmem:[%s3 + $0x7d0] sm:$0xf]
  %v1726 = vld [vmem:[%s3 + $0x7d4] sm:$0xf]
  %v1727 = vld [vmem:[%s3 + $0x7d8] sm:$0xf]
  %v1728 = vld [vmem:[%s3 + $0x7dc] sm:$0xf]
  %v1729 = vld [vmem:[%s3 + $0x7e0] sm:$0xf]
  %v1730 = vld [vmem:[%s3 + $0x7e4] sm:$0xf]
  %v1731 = vld [vmem:[%s3 + $0x7e8] sm:$0xf]
  %v1732 = vld [vmem:[%s3 + $0x7ec] sm:$0xf]
  %v1733 = vld [vmem:[%s3 + $0x7f0] sm:$0xf]
  %v1734 = vld [vmem:[%s3 + $0x7f4] sm:$0xf]
  %v1735 = vld [vmem:[%s3 + $0x7f8] sm:$0xf]
  %v1736 = vld [vmem:[%s3 + $0x7fc] sm:$0xf]
  %v1737 = vld [vmem:[%s3 + $0x800] sm:$0xf]
  %v1738 = vld [vmem:[%s3 + $0x804] sm:$0xf]
  %v1739 = vld [vmem:[%s3 + $0x808] sm:$0xf]
  %v1740 = vld [vmem:[%s3 + $0x80c] sm:$0xf]
  %v1741 = vld [vmem:[%s3 + $0x810] sm:$0xf]
  %v1742 = vld [vmem:[%s3 + $0x814] sm:$0xf]
  %v1743 = vld [vmem:[%s3 + $0x818] sm:$0xf]
  %v1744 = vld [vmem:[%s3 + $0x81c] sm:$0xf]
  %v1745 = vld [vmem:[%s3 + $0x820] sm:$0xf]
  %v1746 = vld [vmem:[%s3 + $0x824] sm:$0xf]
  %v1747 = vld [vmem:[%s3 + $0x828] sm:$0xf]
  %v1748 = vld [vmem:[%s3 + $0x82c] sm:$0xf]
  %v1749 = vld [vmem:[%s3 + $0x830] sm:$0xf]
  %v1750 = vld [vmem:[%s3 + $0x834] sm:$0xf]
  %v1751 = vld [vmem:[%s3 + $0x838] sm:$0xf]
  %v1752 = vld [vmem:[%s3 + $0x83c] sm:$0xf]
  %v1753 = vld [vmem:[%s3 + $0x840] sm:$0xf]
  %v1754 = vld [vmem:[%s3 + $0x844] sm:$0xf]
  %v1755 = vld [vmem:[%s3 + $0x848] sm:$0xf]
  %v1756 = vld [vmem:[%s3 + $0x84c] sm:$0xf]
  %v1757 = vld [vmem:[%s3 + $0x850] sm:$0xf]
  %v1758 = vld [vmem:[%s3 + $0x854] sm:$0xf]
  %v1759 = vld [vmem:[%s3 + $0x858] sm:$0xf]
  %v1760 = vld [vmem:[%s3 + $0x85c] sm:$0xf]
  %v1761 = vld [vmem:[%s3 + $0x860] sm:$0xf]
  %v1762 = vld [vmem:[%s3 + $0x864] sm:$0xf]
  %v1763 = vld [vmem:[%s3 + $0x868] sm:$0xf]
  %v1764 = vld [vmem:[%s3 + $0x86c] sm:$0xf]
  %v1765 = vld [vmem:[%s3 + $0x870] sm:$0xf]
  %v1766 = vld [vmem:[%s3 + $0x874] sm:$0xf]
  %v1767 = vld [vmem:[%s3 + $0x878] sm:$0xf]
  %v1768 = vld [vmem:[%s3 + $0x87c] sm:$0xf]
  %v1769 = vld [vmem:[%s3 + $0x880] sm:$0xf]
  %v1770 = vld [vmem:[%s3 + $0x884] sm:$0xf]
  %v1771 = vld [vmem:[%s3 + $0x888] sm:$0xf]
  %v1772 = vld [vmem:[%s3 + $0x88c] sm:$0xf]
  %v1773 = vld [vmem:[%s3 + $0x890] sm:$0xf]
  %v1774 = vld [vmem:[%s3 + $0x894] sm:$0xf]
  %v1775 = vld [vmem:[%s3 + $0x898] sm:$0xf]
  %v1776 = vld [vmem:[%s3 + $0x89c] sm:$0xf]
  %v1777 = vld [vmem:[%s3 + $0x8a0] sm:$0xf]
  %v1778 = vld [vmem:[%s3 + $0x8a4] sm:$0xf]
  %v1779 = vld [vmem:[%s3 + $0x8a8] sm:$0xf]
  %v1780 = vld [vmem:[%s3 + $0x8ac] sm:$0xf]
  %v1781 = vld [vmem:[%s3 + $0x8b0] sm:$0xf]
  %v1782 = vld [vmem:[%s3 + $0x8b4] sm:$0xf]
  %v1783 = vld [vmem:[%s3 + $0x8b8] sm:$0xf]
  %v1784 = vld [vmem:[%s3 + $0x8bc] sm:$0xf]
  %v1785 = vld [vmem:[%s3 + $0x8c0] sm:$0xf]
  %v1786 = vld [vmem:[%s3 + $0x8c4] sm:$0xf]
  %v1787 = vld [vmem:[%s3 + $0x8c8] sm:$0xf]
  %v1788 = vld [vmem:[%s3 + $0x8cc] sm:$0xf]
  %v1789 = vld [vmem:[%s3 + $0x8d0] sm:$0xf]
  %v1790 = vld [vmem:[%s3 + $0x8d4] sm:$0xf]
  %v1791 = vld [vmem:[%s3 + $0x8d8] sm:$0xf]
  %v1792 = vld [vmem:[%s3 + $0x8dc] sm:$0xf]
  %v1793 = vld [vmem:[%s3 + $0x8e0] sm:$0xf]
  %v1794 = vld [vmem:[%s3 + $0x8e4] sm:$0xf]
  %v1795 = vld [vmem:[%s3 + $0x8e8] sm:$0xf]
  %v1796 = vld [vmem:[%s3 + $0x8ec] sm:$0xf]
  %v1797 = vld [vmem:[%s3 + $0x8f0] sm:$0xf]
  %v1798 = vld [vmem:[%s3 + $0x8f4] sm:$0xf]
  %v1799 = vld [vmem:[%s3 + $0x8f8] sm:$0xf]
  %v1800 = vld [vmem:[%s3 + $0x8fc] sm:$0xf]
  %v1801 = vld [vmem:[%s3 + $0x900] sm:$0xf]
  %v1802 = vld [vmem:[%s3 + $0x904] sm:$0xf]
  %v1803 = vld [vmem:[%s3 + $0x908] sm:$0xf]
  %v1804 = vld [vmem:[%s3 + $0x90c] sm:$0xf]
  %v1805 = vld [vmem:[%s3 + $0x910] sm:$0xf]
  %v1806 = vld [vmem:[%s3 + $0x914] sm:$0xf]
  %v1807 = vld [vmem:[%s3 + $0x918] sm:$0xf]
  %v1808 = vld [vmem:[%s3 + $0x91c] sm:$0xf]
  %v1809 = vld [vmem:[%s3 + $0x920] sm:$0xf]
  %v1810 = vld [vmem:[%s3 + $0x924] sm:$0xf]
  %v1811 = vld [vmem:[%s3 + $0x928] sm:$0xf]
  %v1812 = vld [vmem:[%s3 + $0x92c] sm:$0xf]
  %v1813 = vld [vmem:[%s3 + $0x930] sm:$0xf]
  %v1814 = vld [vmem:[%s3 + $0x934] sm:$0xf]
  %v1815 = vld [vmem:[%s3 + $0x938] sm:$0xf]
  %v1816 = vld [vmem:[%s3 + $0x93c] sm:$0xf]
  %v1817 = vld [vmem:[%s3 + $0x940] sm:$0xf]
  %v1818 = vld [vmem:[%s3 + $0x944] sm:$0xf]
  %v1819 = vld [vmem:[%s3 + $0x948] sm:$0xf]
  %v1820 = vld [vmem:[%s3 + $0x94c] sm:$0xf]
  %v1821 = vld [vmem:[%s3 + $0x950] sm:$0xf]
  %v1822 = vld [vmem:[%s3 + $0x954] sm:$0xf]
  %v1823 = vld [vmem:[%s3 + $0x958] sm:$0xf]
  %v1824 = vld [vmem:[%s3 + $0x95c] sm:$0xf]
  %v1825 = vld [vmem:[%s3 + $0x960] sm:$0xf]
  %v1826 = vld [vmem:[%s3 + $0x964] sm:$0xf]
  %v1827 = vld [vmem:[%s3 + $0x968] sm:$0xf]
  %v1828 = vld [vmem:[%s3 + $0x96c] sm:$0xf]
  %v1829 = vld [vmem:[%s3 + $0x970] sm:$0xf]
  %v1830 = vld [vmem:[%s3 + $0x974] sm:$0xf]
  %v1831 = vld [vmem:[%s3 + $0x978] sm:$0xf]
  %v1832 = vld [vmem:[%s3 + $0x97c] sm:$0xf]
  %v1833 = vld [vmem:[%s3 + $0x980] sm:$0xf]
  %v1834 = vld [vmem:[%s3 + $0x984] sm:$0xf]
  %v1835 = vld [vmem:[%s3 + $0x988] sm:$0xf]
  %v1836 = vld [vmem:[%s3 + $0x98c] sm:$0xf]
  %v1837 = vld [vmem:[%s3 + $0x990] sm:$0xf]
  %v1838 = vld [vmem:[%s3 + $0x994] sm:$0xf]
  %v1839 = vld [vmem:[%s3 + $0x998] sm:$0xf]
  %v1840 = vld [vmem:[%s3 + $0x99c] sm:$0xf]
  %v1841 = vld [vmem:[%s3 + $0x9a0] sm:$0xf]
  %v1842 = vld [vmem:[%s3 + $0x9a4] sm:$0xf]
  %v1843 = vld [vmem:[%s3 + $0x9a8] sm:$0xf]
  %v1844 = vld [vmem:[%s3 + $0x9ac] sm:$0xf]
  %v1845 = vld [vmem:[%s3 + $0x9b0] sm:$0xf]
  %v1846 = vld [vmem:[%s3 + $0x9b4] sm:$0xf]
  %v1847 = vld [vmem:[%s3 + $0x9b8] sm:$0xf]
  %v1848 = vld [vmem:[%s3 + $0x9bc] sm:$0xf]
  %v1849 = vld [vmem:[%s3 + $0x9c0] sm:$0xf]
  %v1850 = vld [vmem:[%s3 + $0x9c4] sm:$0xf]
  %v1851 = vld [vmem:[%s3 + $0x9c8] sm:$0xf]
  %v1852 = vld [vmem:[%s3 + $0x9cc] sm:$0xf]
  %v1853 = vld [vmem:[%s3 + $0x9d0] sm:$0xf]
  %v1854 = vld [vmem:[%s3 + $0x9d4] sm:$0xf]
  %v1855 = vld [vmem:[%s3 + $0x9d8] sm:$0xf]
  %v1856 = vld [vmem:[%s3 + $0x9dc] sm:$0xf]
  %v1857 = vld [vmem:[%s3 + $0x9e0] sm:$0xf]
  %v1858 = vld [vmem:[%s3 + $0x9e4] sm:$0xf]
  %v1859 = vld [vmem:[%s3 + $0x9e8] sm:$0xf]
  %v1860 = vld [vmem:[%s3 + $0x9ec] sm:$0xf]
  %v1861 = vld [vmem:[%s3 + $0x9f0] sm:$0xf]
  %v1862 = vld [vmem:[%s3 + $0x9f4] sm:$0xf]
  %v1863 = vld [vmem:[%s3 + $0x9f8] sm:$0xf]
  %v1864 = vld [vmem:[%s3 + $0x9fc] sm:$0xf]
  %v1865 = vld [vmem:[%s3 + $0xa00] sm:$0xf]
  %v1866 = vld [vmem:[%s3 + $0xa04] sm:$0xf]
  %v1867 = vld [vmem:[%s3 + $0xa08] sm:$0xf]
  %v1868 = vld [vmem:[%s3 + $0xa0c] sm:$0xf]
  %v1869 = vld [vmem:[%s3 + $0xa10] sm:$0xf]
  %v1870 = vld [vmem:[%s3 + $0xa14] sm:$0xf]
  %v1871 = vld [vmem:[%s3 + $0xa18] sm:$0xf]
  %v1872 = vld [vmem:[%s3 + $0xa1c] sm:$0xf]
  %v1873 = vld [vmem:[%s3 + $0xa20] sm:$0xf]
  %v1874 = vld [vmem:[%s3 + $0xa24] sm:$0xf]
  %v1875 = vld [vmem:[%s3 + $0xa28] sm:$0xf]
  %v1876 = vld [vmem:[%s3 + $0xa2c] sm:$0xf]
  %v1877 = vld [vmem:[%s3 + $0xa30] sm:$0xf]
  %v1878 = vld [vmem:[%s3 + $0xa34] sm:$0xf]
  %v1879 = vld [vmem:[%s3 + $0xa38] sm:$0xf]
  %v1880 = vld [vmem:[%s3 + $0xa3c] sm:$0xf]
  %v1881 = vld [vmem:[%s3 + $0xa40] sm:$0xf]
  %v1882 = vld [vmem:[%s3 + $0xa44] sm:$0xf]
  %v1883 = vld [vmem:[%s3 + $0xa48] sm:$0xf]
  %v1884 = vld [vmem:[%s3 + $0xa4c] sm:$0xf]
  %v1885 = vld [vmem:[%s3 + $0xa50] sm:$0xf]
  %v1886 = vld [vmem:[%s3 + $0xa54] sm:$0xf]
  %v1887 = vld [vmem:[%s3 + $0xa58] sm:$0xf]
  %v1888 = vld [vmem:[%s3 + $0xa5c] sm:$0xf]
  %v1889 = vld [vmem:[%s3 + $0xa60] sm:$0xf]
  %v1890 = vld [vmem:[%s3 + $0xa64] sm:$0xf]
  %v1891 = vld [vmem:[%s3 + $0xa68] sm:$0xf]
  %v1892 = vld [vmem:[%s3 + $0xa6c] sm:$0xf]
  %v1893 = vld [vmem:[%s3 + $0xa70] sm:$0xf]
  %v1894 = vld [vmem:[%s3 + $0xa74] sm:$0xf]
  %v1895 = vld [vmem:[%s3 + $0xa78] sm:$0xf]
  %v1896 = vld [vmem:[%s3 + $0xa7c] sm:$0xf]
  %v1897 = vld [vmem:[%s3 + $0xa80] sm:$0xf]
  %v1898 = vld [vmem:[%s3 + $0xa84] sm:$0xf]
  %v1899 = vld [vmem:[%s3 + $0xa88] sm:$0xf]
  %v1900 = vld [vmem:[%s3 + $0xa8c] sm:$0xf]
  %v1901 = vld [vmem:[%s3 + $0xa90] sm:$0xf]
  %v1902 = vld [vmem:[%s3 + $0xa94] sm:$0xf]
  %v1903 = vld [vmem:[%s3 + $0xa98] sm:$0xf]
  %v1904 = vld [vmem:[%s3 + $0xa9c] sm:$0xf]
  %v1905 = vld [vmem:[%s3 + $0xaa0] sm:$0xf]
  %v1906 = vld [vmem:[%s3 + $0xaa4] sm:$0xf]
  %v1907 = vld [vmem:[%s3 + $0xaa8] sm:$0xf]
  %v1908 = vld [vmem:[%s3 + $0xaac] sm:$0xf]
  %v1909 = vld [vmem:[%s3 + $0xab0] sm:$0xf]
  %v1910 = vld [vmem:[%s3 + $0xab4] sm:$0xf]
  %v1911 = vld [vmem:[%s3 + $0xab8] sm:$0xf]
  %v1912 = vld [vmem:[%s3 + $0xabc] sm:$0xf]
  %v1913 = vld [vmem:[%s3 + $0xac0] sm:$0xf]
  %v1914 = vld [vmem:[%s3 + $0xac4] sm:$0xf]
  %v1915 = vld [vmem:[%s3 + $0xac8] sm:$0xf]
  %v1916 = vld [vmem:[%s3 + $0xacc] sm:$0xf]
  %v1917 = vld [vmem:[%s3 + $0xad0] sm:$0xf]
  %v1918 = vld [vmem:[%s3 + $0xad4] sm:$0xf]
  %v1919 = vld [vmem:[%s3 + $0xad8] sm:$0xf]
  %v1920 = vld [vmem:[%s3 + $0xadc] sm:$0xf]
  %v1921 = vld [vmem:[%s3 + $0xae0] sm:$0xf]
  %v1922 = vld [vmem:[%s3 + $0xae4] sm:$0xf]
  %v1923 = vld [vmem:[%s3 + $0xae8] sm:$0xf]
  %v1924 = vld [vmem:[%s3 + $0xaec] sm:$0xf]
  %v1925 = vld [vmem:[%s3 + $0xaf0] sm:$0xf]
  %v1926 = vld [vmem:[%s3 + $0xaf4] sm:$0xf]
  %v1927 = vld [vmem:[%s3 + $0xaf8] sm:$0xf]
  %v1928 = vld [vmem:[%s3 + $0xafc] sm:$0xf]
  %v1929 = vld [vmem:[%s3 + $0xb00] sm:$0xf]
  %v1930 = vld [vmem:[%s3 + $0xb04] sm:$0xf]
  %v1931 = vld [vmem:[%s3 + $0xb08] sm:$0xf]
  %v1932 = vld [vmem:[%s3 + $0xb0c] sm:$0xf]
  %v1933 = vld [vmem:[%s3 + $0xb10] sm:$0xf]
  %v1934 = vld [vmem:[%s3 + $0xb14] sm:$0xf]
  %v1935 = vld [vmem:[%s3 + $0xb18] sm:$0xf]
  %v1936 = vld [vmem:[%s3 + $0xb1c] sm:$0xf]
  %v1937 = vld [vmem:[%s3 + $0xb20] sm:$0xf]
  %v1938 = vld [vmem:[%s3 + $0xb24] sm:$0xf]
  %v1939 = vld [vmem:[%s3 + $0xb28] sm:$0xf]
  %v1940 = vld [vmem:[%s3 + $0xb2c] sm:$0xf]
  %v1941 = vld [vmem:[%s3 + $0xb30] sm:$0xf]
  %v1942 = vld [vmem:[%s3 + $0xb34] sm:$0xf]
  %v1943 = vld [vmem:[%s3 + $0xb38] sm:$0xf]
  %v1944 = vld [vmem:[%s3 + $0xb3c] sm:$0xf]
  %v1945 = vld [vmem:[%s3 + $0xb40] sm:$0xf]
  %v1946 = vld [vmem:[%s3 + $0xb44] sm:$0xf]
  %v1947 = vld [vmem:[%s3 + $0xb48] sm:$0xf]
  %v1948 = vld [vmem:[%s3 + $0xb4c] sm:$0xf]
  %v1949 = vld [vmem:[%s3 + $0xb50] sm:$0xf]
  %v1950 = vld [vmem:[%s3 + $0xb54] sm:$0xf]
  %v1951 = vld [vmem:[%s3 + $0xb58] sm:$0xf]
  %v1952 = vld [vmem:[%s3 + $0xb5c] sm:$0xf]
  %v1953 = vld [vmem:[%s3 + $0xb60] sm:$0xf]
  %v1954 = vld [vmem:[%s3 + $0xb64] sm:$0xf]
  %v1955 = vld [vmem:[%s3 + $0xb68] sm:$0xf]
  %v1956 = vld [vmem:[%s3 + $0xb6c] sm:$0xf]
  %v1957 = vld [vmem:[%s3 + $0xb70] sm:$0xf]
  %v1958 = vld [vmem:[%s3 + $0xb74] sm:$0xf]
  %v1959 = vld [vmem:[%s3 + $0xb78] sm:$0xf]
  %v1960 = vld [vmem:[%s3 + $0xb7c] sm:$0xf]
  %v1961 = vld [vmem:[%s3 + $0xb80] sm:$0xf]
  %v1962 = vld [vmem:[%s3 + $0xb84] sm:$0xf]
  %v1963 = vld [vmem:[%s3 + $0xb88] sm:$0xf]
  %v1964 = vld [vmem:[%s3 + $0xb8c] sm:$0xf]
  %v1965 = vld [vmem:[%s3 + $0xb90] sm:$0xf]
  %v1966 = vld [vmem:[%s3 + $0xb94] sm:$0xf]
  %v1967 = vld [vmem:[%s3 + $0xb98] sm:$0xf]
  %v1968 = vld [vmem:[%s3 + $0xb9c] sm:$0xf]
  %v1969 = vld [vmem:[%s3 + $0xba0] sm:$0xf]
  %v1970 = vld [vmem:[%s3 + $0xba4] sm:$0xf]
  %v1971 = vld [vmem:[%s3 + $0xba8] sm:$0xf]
  %v1972 = vld [vmem:[%s3 + $0xbac] sm:$0xf]
  %v1973 = vld [vmem:[%s3 + $0xbb0] sm:$0xf]
  %v1974 = vld [vmem:[%s3 + $0xbb4] sm:$0xf]
  %v1975 = vld [vmem:[%s3 + $0xbb8] sm:$0xf]
  %v1976 = vld [vmem:[%s3 + $0xbbc] sm:$0xf]
  %v1977 = vld [vmem:[%s3 + $0xbc0] sm:$0xf]
  %v1978 = vld [vmem:[%s3 + $0xbc4] sm:$0xf]
  %v1979 = vld [vmem:[%s3 + $0xbc8] sm:$0xf]
  %v1980 = vld [vmem:[%s3 + $0xbcc] sm:$0xf]
  %v1981 = vld [vmem:[%s3 + $0xbd0] sm:$0xf]
  %v1982 = vld [vmem:[%s3 + $0xbd4] sm:$0xf]
  %v1983 = vld [vmem:[%s3 + $0xbd8] sm:$0xf]
  %v1984 = vld [vmem:[%s3 + $0xbdc] sm:$0xf]
  %v1985 = vld [vmem:[%s3 + $0xbe0] sm:$0xf]
  %v1986 = vld [vmem:[%s3 + $0xbe4] sm:$0xf]
  %v1987 = vld [vmem:[%s3 + $0xbe8] sm:$0xf]
  %v1988 = vld [vmem:[%s3 + $0xbec] sm:$0xf]
  %v1989 = vld [vmem:[%s3 + $0xbf0] sm:$0xf]
  %v1990 = vld [vmem:[%s3 + $0xbf4] sm:$0xf]
  %v1991 = vld [vmem:[%s3 + $0xbf8] sm:$0xf]
  %v1992 = vld [vmem:[%s3 + $0xbfc] sm:$0xf]
  %v1993 = vld [vmem:[%s3 + $0xc00] sm:$0xf]
  %v1994 = vld [vmem:[%s3 + $0xc04] sm:$0xf]
  %v1995 = vld [vmem:[%s3 + $0xc08] sm:$0xf]
  %v1996 = vld [vmem:[%s3 + $0xc0c] sm:$0xf]
  %v1997 = vld [vmem:[%s3 + $0xc10] sm:$0xf]
  %v1998 = vld [vmem:[%s3 + $0xc14] sm:$0xf]
  %v1999 = vld [vmem:[%s3 + $0xc18] sm:$0xf]
  %v2000 = vld [vmem:[%s3 + $0xc1c] sm:$0xf]
  %v2001 = vld [vmem:[%s3 + $0xc20] sm:$0xf]
  %v2002 = vld [vmem:[%s3 + $0xc24] sm:$0xf]
  %v2003 = vld [vmem:[%s3 + $0xc28] sm:$0xf]
  %v2004 = vld [vmem:[%s3 + $0xc2c] sm:$0xf]
  %v2005 = vld [vmem:[%s3 + $0xc30] sm:$0xf]
  %v2006 = vld [vmem:[%s3 + $0xc34] sm:$0xf]
  %v2007 = vld [vmem:[%s3 + $0xc38] sm:$0xf]
  %v2008 = vld [vmem:[%s3 + $0xc3c] sm:$0xf]
  %v2793 = vunpack.c.l.b16 %v1225
  %v2794 = vunpack.c.l.b16 %v1226
  %v2795 = vunpack.c.l.b16 %v1227
  %v2796 = vunpack.c.l.b16 %v1228
  %v2797 = vunpack.c.l.b16 %v1229
  %v2798 = vunpack.c.l.b16 %v1230
  %v2799 = vunpack.c.l.b16 %v1231
  %v2800 = vunpack.c.l.b16 %v1232
  %v2801 = vunpack.c.l.b16 %v1233
  %v2802 = vunpack.c.l.b16 %v1234
  %v2803 = vunpack.c.l.b16 %v1235
  %v2804 = vunpack.c.l.b16 %v1236
  %v2805 = vunpack.c.l.b16 %v1237
  %v2806 = vunpack.c.l.b16 %v1238
  %v2807 = vunpack.c.l.b16 %v1239
  %v2808 = vunpack.c.l.b16 %v1240
  %v2809 = vunpack.c.l.b16 %v1241
  %v2810 = vunpack.c.l.b16 %v1242
  %v2811 = vunpack.c.l.b16 %v1243
  %v2812 = vunpack.c.l.b16 %v1244
  %v2813 = vunpack.c.l.b16 %v1245
  %v2814 = vunpack.c.l.b16 %v1246
  %v2815 = vunpack.c.l.b16 %v1247
  %v2816 = vunpack.c.l.b16 %v1248
  %v2817 = vunpack.c.l.b16 %v1249
  %v2818 = vunpack.c.l.b16 %v1250
  %v2819 = vunpack.c.l.b16 %v1251
  %v2820 = vunpack.c.l.b16 %v1252
  %v2821 = vunpack.c.l.b16 %v1253
  %v2822 = vunpack.c.l.b16 %v1254
  %v2823 = vunpack.c.l.b16 %v1255
  %v2824 = vunpack.c.l.b16 %v1256
  %v2825 = vunpack.c.l.b16 %v1257
  %v2826 = vunpack.c.l.b16 %v1258
  %v2827 = vunpack.c.l.b16 %v1259
  %v2828 = vunpack.c.l.b16 %v1260
  %v2829 = vunpack.c.l.b16 %v1261
  %v2830 = vunpack.c.l.b16 %v1262
  %v2831 = vunpack.c.l.b16 %v1263
  %v2832 = vunpack.c.l.b16 %v1264
  %v2833 = vunpack.c.l.b16 %v1265
  %v2834 = vunpack.c.l.b16 %v1266
  %v2835 = vunpack.c.l.b16 %v1267
  %v2836 = vunpack.c.l.b16 %v1268
  %v2837 = vunpack.c.l.b16 %v1269
  %v2838 = vunpack.c.l.b16 %v1270
  %v2839 = vunpack.c.l.b16 %v1271
  %v2840 = vunpack.c.l.b16 %v1272
  %v2841 = vunpack.c.l.b16 %v1273
  %v2842 = vunpack.c.l.b16 %v1274
  %v2843 = vunpack.c.l.b16 %v1275
  %v2844 = vunpack.c.l.b16 %v1276
  %v2845 = vunpack.c.l.b16 %v1277
  %v2846 = vunpack.c.l.b16 %v1278
  %v2847 = vunpack.c.l.b16 %v1279
  %v2848 = vunpack.c.l.b16 %v1280
  %v2849 = vunpack.c.l.b16 %v1281
  %v2850 = vunpack.c.l.b16 %v1282
  %v2851 = vunpack.c.l.b16 %v1283
  %v2852 = vunpack.c.l.b16 %v1284
  %v2853 = vunpack.c.l.b16 %v1285
  %v2854 = vunpack.c.l.b16 %v1286
  %v2855 = vunpack.c.l.b16 %v1287
  %v2856 = vunpack.c.l.b16 %v1288
  %v2857 = vunpack.c.l.b16 %v1289
  %v2858 = vunpack.c.l.b16 %v1290
  %v2859 = vunpack.c.l.b16 %v1291
  %v2860 = vunpack.c.l.b16 %v1292
  %v2861 = vunpack.c.l.b16 %v1293
  %v2862 = vunpack.c.l.b16 %v1294
  %v2863 = vunpack.c.l.b16 %v1295
  %v2864 = vunpack.c.l.b16 %v1296
  %v2865 = vunpack.c.l.b16 %v1297
  %v2866 = vunpack.c.l.b16 %v1298
  %v2867 = vunpack.c.l.b16 %v1299
  %v2868 = vunpack.c.l.b16 %v1300
  %v2869 = vunpack.c.l.b16 %v1301
  %v2870 = vunpack.c.l.b16 %v1302
  %v2871 = vunpack.c.l.b16 %v1303
  %v2872 = vunpack.c.l.b16 %v1304
  %v2873 = vunpack.c.l.b16 %v1305
  %v2874 = vunpack.c.l.b16 %v1306
  %v2875 = vunpack.c.l.b16 %v1307
  %v2876 = vunpack.c.l.b16 %v1308
  %v2877 = vunpack.c.l.b16 %v1309
  %v2878 = vunpack.c.l.b16 %v1310
  %v2879 = vunpack.c.l.b16 %v1311
  %v2880 = vunpack.c.l.b16 %v1312
  %v2881 = vunpack.c.l.b16 %v1313
  %v2882 = vunpack.c.l.b16 %v1314
  %v2883 = vunpack.c.l.b16 %v1315
  %v2884 = vunpack.c.l.b16 %v1316
  %v2885 = vunpack.c.l.b16 %v1317
  %v2886 = vunpack.c.l.b16 %v1318
  %v2887 = vunpack.c.l.b16 %v1319
  %v2888 = vunpack.c.l.b16 %v1320
  %v2889 = vunpack.c.l.b16 %v1321
  %v2890 = vunpack.c.l.b16 %v1322
  %v2891 = vunpack.c.l.b16 %v1323
  %v2892 = vunpack.c.l.b16 %v1324
  %v2893 = vunpack.c.l.b16 %v1325
  %v2894 = vunpack.c.l.b16 %v1326
  %v2895 = vunpack.c.l.b16 %v1327
  %v2896 = vunpack.c.l.b16 %v1328
  %v2897 = vunpack.c.l.b16 %v1329
  %v2898 = vunpack.c.l.b16 %v1330
  %v2899 = vunpack.c.l.b16 %v1331
  %v2900 = vunpack.c.l.b16 %v1332
  %v2901 = vunpack.c.l.b16 %v1333
  %v2902 = vunpack.c.l.b16 %v1334
  %v2903 = vunpack.c.l.b16 %v1335
  %v2904 = vunpack.c.l.b16 %v1336
  %v2905 = vunpack.c.l.b16 %v1337
  %v2906 = vunpack.c.l.b16 %v1338
  %v2907 = vunpack.c.l.b16 %v1339
  %v2908 = vunpack.c.l.b16 %v1340
  %v2909 = vunpack.c.l.b16 %v1341
  %v2910 = vunpack.c.l.b16 %v1342
  %v2911 = vunpack.c.l.b16 %v1343
  %v2912 = vunpack.c.l.b16 %v1344
  %v2913 = vunpack.c.l.b16 %v1345
  %v2914 = vunpack.c.l.b16 %v1346
  %v2915 = vunpack.c.l.b16 %v1347
  %v2916 = vunpack.c.l.b16 %v1348
  %v2917 = vunpack.c.l.b16 %v1349
  %v2918 = vunpack.c.l.b16 %v1350
  %v2919 = vunpack.c.l.b16 %v1351
  %v2920 = vunpack.c.l.b16 %v1352
  %v2921 = vunpack.c.l.b16 %v1353
  %v2922 = vunpack.c.l.b16 %v1354
  %v2923 = vunpack.c.l.b16 %v1355
  %v2924 = vunpack.c.l.b16 %v1356
  %v2925 = vunpack.c.l.b16 %v1357
  %v2926 = vunpack.c.l.b16 %v1358
  %v2927 = vunpack.c.l.b16 %v1359
  %v2928 = vunpack.c.l.b16 %v1360
  %v2929 = vunpack.c.l.b16 %v1361
  %v2930 = vunpack.c.l.b16 %v1362
  %v2931 = vunpack.c.l.b16 %v1363
  %v2932 = vunpack.c.l.b16 %v1364
  %v2933 = vunpack.c.l.b16 %v1365
  %v2934 = vunpack.c.l.b16 %v1366
  %v2935 = vunpack.c.l.b16 %v1367
  %v2936 = vunpack.c.l.b16 %v1368
  %v2937 = vunpack.c.l.b16 %v1369
  %v2938 = vunpack.c.l.b16 %v1370
  %v2939 = vunpack.c.l.b16 %v1371
  %v2940 = vunpack.c.l.b16 %v1372
  %v2941 = vunpack.c.l.b16 %v1373
  %v2942 = vunpack.c.l.b16 %v1374
  %v2943 = vunpack.c.l.b16 %v1375
  %v2944 = vunpack.c.l.b16 %v1376
  %v2945 = vunpack.c.l.b16 %v1377
  %v2946 = vunpack.c.l.b16 %v1378
  %v2947 = vunpack.c.l.b16 %v1379
  %v2948 = vunpack.c.l.b16 %v1380
  %v2949 = vunpack.c.l.b16 %v1381
  %v2950 = vunpack.c.l.b16 %v1382
  %v2951 = vunpack.c.l.b16 %v1383
  %v2952 = vunpack.c.l.b16 %v1384
  %v2953 = vunpack.c.l.b16 %v1385
  %v2954 = vunpack.c.l.b16 %v1386
  %v2955 = vunpack.c.l.b16 %v1387
  %v2956 = vunpack.c.l.b16 %v1388
  %v2957 = vunpack.c.l.b16 %v1389
  %v2958 = vunpack.c.l.b16 %v1390
  %v2959 = vunpack.c.l.b16 %v1391
  %v2960 = vunpack.c.l.b16 %v1392
  %v2961 = vunpack.c.l.b16 %v1393
  %v2962 = vunpack.c.l.b16 %v1394
  %v2963 = vunpack.c.l.b16 %v1395
  %v2964 = vunpack.c.l.b16 %v1396
  %v2965 = vunpack.c.l.b16 %v1397
  %v2966 = vunpack.c.l.b16 %v1398
  %v2967 = vunpack.c.l.b16 %v1399
  %v2968 = vunpack.c.l.b16 %v1400
  %v2969 = vunpack.c.l.b16 %v1401
  %v2970 = vunpack.c.l.b16 %v1402
  %v2971 = vunpack.c.l.b16 %v1403
  %v2972 = vunpack.c.l.b16 %v1404
  %v2973 = vunpack.c.l.b16 %v1405
  %v2974 = vunpack.c.l.b16 %v1406
  %v2975 = vunpack.c.l.b16 %v1407
  %v2976 = vunpack.c.l.b16 %v1408
  %v2977 = vunpack.c.l.b16 %v1409
  %v2978 = vunpack.c.l.b16 %v1410
  %v2979 = vunpack.c.l.b16 %v1411
  %v2980 = vunpack.c.l.b16 %v1412
  %v2981 = vunpack.c.l.b16 %v1413
  %v2982 = vunpack.c.l.b16 %v1414
  %v2983 = vunpack.c.l.b16 %v1415
  %v2984 = vunpack.c.l.b16 %v1416
  %v2985 = vunpack.c.l.b16 %v1417
  %v2986 = vunpack.c.l.b16 %v1418
  %v2987 = vunpack.c.l.b16 %v1419
  %v2988 = vunpack.c.l.b16 %v1420
  %v2989 = vunpack.c.l.b16 %v1421
  %v2990 = vunpack.c.l.b16 %v1422
  %v2991 = vunpack.c.l.b16 %v1423
  %v2992 = vunpack.c.l.b16 %v1424
  %v2993 = vunpack.c.l.b16 %v1425
  %v2994 = vunpack.c.l.b16 %v1426
  %v2995 = vunpack.c.l.b16 %v1427
  %v2996 = vunpack.c.l.b16 %v1428
  %v2997 = vunpack.c.l.b16 %v1429
  %v2998 = vunpack.c.l.b16 %v1430
  %v2999 = vunpack.c.l.b16 %v1431
  %v3000 = vunpack.c.l.b16 %v1432
  %v3001 = vunpack.c.l.b16 %v1433
  %v3002 = vunpack.c.l.b16 %v1434
  %v3003 = vunpack.c.l.b16 %v1435
  %v3004 = vunpack.c.l.b16 %v1436
  %v3005 = vunpack.c.l.b16 %v1437
  %v3006 = vunpack.c.l.b16 %v1438
  %v3007 = vunpack.c.l.b16 %v1439
  %v3008 = vunpack.c.l.b16 %v1440
  %v3009 = vunpack.c.l.b16 %v1441
  %v3010 = vunpack.c.l.b16 %v1442
  %v3011 = vunpack.c.l.b16 %v1443
  %v3012 = vunpack.c.l.b16 %v1444
  %v3013 = vunpack.c.l.b16 %v1445
  %v3014 = vunpack.c.l.b16 %v1446
  %v3015 = vunpack.c.l.b16 %v1447
  %v3016 = vunpack.c.l.b16 %v1448
  %v3017 = vunpack.c.l.b16 %v1449
  %v3018 = vunpack.c.l.b16 %v1450
  %v3019 = vunpack.c.l.b16 %v1451
  %v3020 = vunpack.c.l.b16 %v1452
  %v3021 = vunpack.c.l.b16 %v1453
  %v3022 = vunpack.c.l.b16 %v1454
  %v3023 = vunpack.c.l.b16 %v1455
  %v3024 = vunpack.c.l.b16 %v1456
  %v3025 = vunpack.c.l.b16 %v1457
  %v3026 = vunpack.c.l.b16 %v1458
  %v3027 = vunpack.c.l.b16 %v1459
  %v3028 = vunpack.c.l.b16 %v1460
  %v3029 = vunpack.c.l.b16 %v1461
  %v3030 = vunpack.c.l.b16 %v1462
  %v3031 = vunpack.c.l.b16 %v1463
  %v3032 = vunpack.c.l.b16 %v1464
  %v3033 = vunpack.c.l.b16 %v1465
  %v3034 = vunpack.c.l.b16 %v1466
  %v3035 = vunpack.c.l.b16 %v1467
  %v3036 = vunpack.c.l.b16 %v1468
  %v3037 = vunpack.c.l.b16 %v1469
  %v3038 = vunpack.c.l.b16 %v1470
  %v3039 = vunpack.c.l.b16 %v1471
  %v3040 = vunpack.c.l.b16 %v1472
  %v3041 = vunpack.c.l.b16 %v1473
  %v3042 = vunpack.c.l.b16 %v1474
  %v3043 = vunpack.c.l.b16 %v1475
  %v3044 = vunpack.c.l.b16 %v1476
  %v3045 = vunpack.c.l.b16 %v1477
  %v3046 = vunpack.c.l.b16 %v1478
  %v3047 = vunpack.c.l.b16 %v1479
  %v3048 = vunpack.c.l.b16 %v1480
  %v3049 = vunpack.c.l.b16 %v1481
  %v3050 = vunpack.c.l.b16 %v1482
  %v3051 = vunpack.c.l.b16 %v1483
  %v3052 = vunpack.c.l.b16 %v1484
  %v3053 = vunpack.c.l.b16 %v1485
  %v3054 = vunpack.c.l.b16 %v1486
  %v3055 = vunpack.c.l.b16 %v1487
  %v3056 = vunpack.c.l.b16 %v1488
  %v3057 = vunpack.c.l.b16 %v1489
  %v3058 = vunpack.c.l.b16 %v1490
  %v3059 = vunpack.c.l.b16 %v1491
  %v3060 = vunpack.c.l.b16 %v1492
  %v3061 = vunpack.c.l.b16 %v1493
  %v3062 = vunpack.c.l.b16 %v1494
  %v3063 = vunpack.c.l.b16 %v1495
  %v3064 = vunpack.c.l.b16 %v1496
  %v3065 = vunpack.c.l.b16 %v1497
  %v3066 = vunpack.c.l.b16 %v1498
  %v3067 = vunpack.c.l.b16 %v1499
  %v3068 = vunpack.c.l.b16 %v1500
  %v3069 = vunpack.c.l.b16 %v1501
  %v3070 = vunpack.c.l.b16 %v1502
  %v3071 = vunpack.c.l.b16 %v1503
  %v3072 = vunpack.c.l.b16 %v1504
  %v3073 = vunpack.c.l.b16 %v1505
  %v3074 = vunpack.c.l.b16 %v1506
  %v3075 = vunpack.c.l.b16 %v1507
  %v3076 = vunpack.c.l.b16 %v1508
  %v3077 = vunpack.c.l.b16 %v1509
  %v3078 = vunpack.c.l.b16 %v1510
  %v3079 = vunpack.c.l.b16 %v1511
  %v3080 = vunpack.c.l.b16 %v1512
  %v3081 = vunpack.c.l.b16 %v1513
  %v3082 = vunpack.c.l.b16 %v1514
  %v3083 = vunpack.c.l.b16 %v1515
  %v3084 = vunpack.c.l.b16 %v1516
  %v3085 = vunpack.c.l.b16 %v1517
  %v3086 = vunpack.c.l.b16 %v1518
  %v3087 = vunpack.c.l.b16 %v1519
  %v3088 = vunpack.c.l.b16 %v1520
  %v3089 = vunpack.c.l.b16 %v1521
  %v3090 = vunpack.c.l.b16 %v1522
  %v3091 = vunpack.c.l.b16 %v1523
  %v3092 = vunpack.c.l.b16 %v1524
  %v3093 = vunpack.c.l.b16 %v1525
  %v3094 = vunpack.c.l.b16 %v1526
  %v3095 = vunpack.c.l.b16 %v1527
  %v3096 = vunpack.c.l.b16 %v1528
  %v3097 = vunpack.c.l.b16 %v1529
  %v3098 = vunpack.c.l.b16 %v1530
  %v3099 = vunpack.c.l.b16 %v1531
  %v3100 = vunpack.c.l.b16 %v1532
  %v3101 = vunpack.c.l.b16 %v1533
  %v3102 = vunpack.c.l.b16 %v1534
  %v3103 = vunpack.c.l.b16 %v1535
  %v3104 = vunpack.c.l.b16 %v1536
  %v3105 = vunpack.c.l.b16 %v1537
  %v3106 = vunpack.c.l.b16 %v1538
  %v3107 = vunpack.c.l.b16 %v1539
  %v3108 = vunpack.c.l.b16 %v1540
  %v3109 = vunpack.c.l.b16 %v1541
  %v3110 = vunpack.c.l.b16 %v1542
  %v3111 = vunpack.c.l.b16 %v1543
  %v3112 = vunpack.c.l.b16 %v1544
  %v3113 = vunpack.c.l.b16 %v1545
  %v3114 = vunpack.c.l.b16 %v1546
  %v3115 = vunpack.c.l.b16 %v1547
  %v3116 = vunpack.c.l.b16 %v1548
  %v3117 = vunpack.c.l.b16 %v1549
  %v3118 = vunpack.c.l.b16 %v1550
  %v3119 = vunpack.c.l.b16 %v1551
  %v3120 = vunpack.c.l.b16 %v1552
  %v3121 = vunpack.c.l.b16 %v1553
  %v3122 = vunpack.c.l.b16 %v1554
  %v3123 = vunpack.c.l.b16 %v1555
  %v3124 = vunpack.c.l.b16 %v1556
  %v3125 = vunpack.c.l.b16 %v1557
  %v3126 = vunpack.c.l.b16 %v1558
  %v3127 = vunpack.c.l.b16 %v1559
  %v3128 = vunpack.c.l.b16 %v1560
  %v3129 = vunpack.c.l.b16 %v1561
  %v3130 = vunpack.c.l.b16 %v1562
  %v3131 = vunpack.c.l.b16 %v1563
  %v3132 = vunpack.c.l.b16 %v1564
  %v3133 = vunpack.c.l.b16 %v1565
  %v3134 = vunpack.c.l.b16 %v1566
  %v3135 = vunpack.c.l.b16 %v1567
  %v3136 = vunpack.c.l.b16 %v1568
  %v3137 = vunpack.c.l.b16 %v1569
  %v3138 = vunpack.c.l.b16 %v1570
  %v3139 = vunpack.c.l.b16 %v1571
  %v3140 = vunpack.c.l.b16 %v1572
  %v3141 = vunpack.c.l.b16 %v1573
  %v3142 = vunpack.c.l.b16 %v1574
  %v3143 = vunpack.c.l.b16 %v1575
  %v3144 = vunpack.c.l.b16 %v1576
  %v3145 = vunpack.c.l.b16 %v1577
  %v3146 = vunpack.c.l.b16 %v1578
  %v3147 = vunpack.c.l.b16 %v1579
  %v3148 = vunpack.c.l.b16 %v1580
  %v3149 = vunpack.c.l.b16 %v1581
  %v3150 = vunpack.c.l.b16 %v1582
  %v3151 = vunpack.c.l.b16 %v1583
  %v3152 = vunpack.c.l.b16 %v1584
  %v3153 = vunpack.c.l.b16 %v1585
  %v3154 = vunpack.c.l.b16 %v1586
  %v3155 = vunpack.c.l.b16 %v1587
  %v3156 = vunpack.c.l.b16 %v1588
  %v3157 = vunpack.c.l.b16 %v1589
  %v3158 = vunpack.c.l.b16 %v1590
  %v3159 = vunpack.c.l.b16 %v1591
  %v3160 = vunpack.c.l.b16 %v1592
  %v3161 = vunpack.c.l.b16 %v1593
  %v3162 = vunpack.c.l.b16 %v1594
  %v3163 = vunpack.c.l.b16 %v1595
  %v3164 = vunpack.c.l.b16 %v1596
  %v3165 = vunpack.c.l.b16 %v1597
  %v3166 = vunpack.c.l.b16 %v1598
  %v3167 = vunpack.c.l.b16 %v1599
  %v3168 = vunpack.c.l.b16 %v1600
  %v3169 = vunpack.c.l.b16 %v1601
  %v3170 = vunpack.c.l.b16 %v1602
  %v3171 = vunpack.c.l.b16 %v1603
  %v3172 = vunpack.c.l.b16 %v1604
  %v3173 = vunpack.c.l.b16 %v1605
  %v3174 = vunpack.c.l.b16 %v1606
  %v3175 = vunpack.c.l.b16 %v1607
  %v3176 = vunpack.c.l.b16 %v1608
  %v3177 = vunpack.c.l.b16 %v1609
  %v3178 = vunpack.c.l.b16 %v1610
  %v3179 = vunpack.c.l.b16 %v1611
  %v3180 = vunpack.c.l.b16 %v1612
  %v3181 = vunpack.c.l.b16 %v1613
  %v3182 = vunpack.c.l.b16 %v1614
  %v3183 = vunpack.c.l.b16 %v1615
  %v3184 = vunpack.c.l.b16 %v1616
  %v3185 = vunpack.c.l.b16 %v1617
  %v3186 = vunpack.c.l.b16 %v1618
  %v3187 = vunpack.c.l.b16 %v1619
  %v3188 = vunpack.c.l.b16 %v1620
  %v3189 = vunpack.c.l.b16 %v1621
  %v3190 = vunpack.c.l.b16 %v1622
  %v3191 = vunpack.c.l.b16 %v1623
  %v3192 = vunpack.c.l.b16 %v1624
  %v3193 = vunpack.c.l.b16 %v1625
  %v3194 = vunpack.c.l.b16 %v1626
  %v3195 = vunpack.c.l.b16 %v1627
  %v3196 = vunpack.c.l.b16 %v1628
  %v3197 = vunpack.c.l.b16 %v1629
  %v3198 = vunpack.c.l.b16 %v1630
  %v3199 = vunpack.c.l.b16 %v1631
  %v3200 = vunpack.c.l.b16 %v1632
  %v3201 = vunpack.c.l.b16 %v1633
  %v3202 = vunpack.c.l.b16 %v1634
  %v3203 = vunpack.c.l.b16 %v1635
  %v3204 = vunpack.c.l.b16 %v1636
  %v3205 = vunpack.c.l.b16 %v1637
  %v3206 = vunpack.c.l.b16 %v1638
  %v3207 = vunpack.c.l.b16 %v1639
  %v3208 = vunpack.c.l.b16 %v1640
  %v3209 = vunpack.c.l.b16 %v1641
  %v3210 = vunpack.c.l.b16 %v1642
  %v3211 = vunpack.c.l.b16 %v1643
  %v3212 = vunpack.c.l.b16 %v1644
  %v3213 = vunpack.c.l.b16 %v1645
  %v3214 = vunpack.c.l.b16 %v1646
  %v3215 = vunpack.c.l.b16 %v1647
  %v3216 = vunpack.c.l.b16 %v1648
  %v3217 = vunpack.c.l.b16 %v1649
  %v3218 = vunpack.c.l.b16 %v1650
  %v3219 = vunpack.c.l.b16 %v1651
  %v3220 = vunpack.c.l.b16 %v1652
  %v3221 = vunpack.c.l.b16 %v1653
  %v3222 = vunpack.c.l.b16 %v1654
  %v3223 = vunpack.c.l.b16 %v1655
  %v3224 = vunpack.c.l.b16 %v1656
  %v3225 = vunpack.c.l.b16 %v1657
  %v3226 = vunpack.c.l.b16 %v1658
  %v3227 = vunpack.c.l.b16 %v1659
  %v3228 = vunpack.c.l.b16 %v1660
  %v3229 = vunpack.c.l.b16 %v1661
  %v3230 = vunpack.c.l.b16 %v1662
  %v3231 = vunpack.c.l.b16 %v1663
  %v3232 = vunpack.c.l.b16 %v1664
  %v3233 = vunpack.c.l.b16 %v1665
  %v3234 = vunpack.c.l.b16 %v1666
  %v3235 = vunpack.c.l.b16 %v1667
  %v3236 = vunpack.c.l.b16 %v1668
  %v3237 = vunpack.c.l.b16 %v1669
  %v3238 = vunpack.c.l.b16 %v1670
  %v3239 = vunpack.c.l.b16 %v1671
  %v3240 = vunpack.c.l.b16 %v1672
  %v3241 = vunpack.c.l.b16 %v1673
  %v3242 = vunpack.c.l.b16 %v1674
  %v3243 = vunpack.c.l.b16 %v1675
  %v3244 = vunpack.c.l.b16 %v1676
  %v3245 = vunpack.c.l.b16 %v1677
  %v3246 = vunpack.c.l.b16 %v1678
  %v3247 = vunpack.c.l.b16 %v1679
  %v3248 = vunpack.c.l.b16 %v1680
  %v3249 = vunpack.c.l.b16 %v1681
  %v3250 = vunpack.c.l.b16 %v1682
  %v3251 = vunpack.c.l.b16 %v1683
  %v3252 = vunpack.c.l.b16 %v1684
  %v3253 = vunpack.c.l.b16 %v1685
  %v3254 = vunpack.c.l.b16 %v1686
  %v3255 = vunpack.c.l.b16 %v1687
  %v3256 = vunpack.c.l.b16 %v1688
  %v3257 = vunpack.c.l.b16 %v1689
  %v3258 = vunpack.c.l.b16 %v1690
  %v3259 = vunpack.c.l.b16 %v1691
  %v3260 = vunpack.c.l.b16 %v1692
  %v3261 = vunpack.c.l.b16 %v1693
  %v3262 = vunpack.c.l.b16 %v1694
  %v3263 = vunpack.c.l.b16 %v1695
  %v3264 = vunpack.c.l.b16 %v1696
  %v3265 = vunpack.c.l.b16 %v1697
  %v3266 = vunpack.c.l.b16 %v1698
  %v3267 = vunpack.c.l.b16 %v1699
  %v3268 = vunpack.c.l.b16 %v1700
  %v3269 = vunpack.c.l.b16 %v1701
  %v3270 = vunpack.c.l.b16 %v1702
  %v3271 = vunpack.c.l.b16 %v1703
  %v3272 = vunpack.c.l.b16 %v1704
  %v3273 = vunpack.c.l.b16 %v1705
  %v3274 = vunpack.c.l.b16 %v1706
  %v3275 = vunpack.c.l.b16 %v1707
  %v3276 = vunpack.c.l.b16 %v1708
  %v3277 = vunpack.c.l.b16 %v1709
  %v3278 = vunpack.c.l.b16 %v1710
  %v3279 = vunpack.c.l.b16 %v1711
  %v3280 = vunpack.c.l.b16 %v1712
  %v3281 = vunpack.c.l.b16 %v1713
  %v3282 = vunpack.c.l.b16 %v1714
  %v3283 = vunpack.c.l.b16 %v1715
  %v3284 = vunpack.c.l.b16 %v1716
  %v3285 = vunpack.c.l.b16 %v1717
  %v3286 = vunpack.c.l.b16 %v1718
  %v3287 = vunpack.c.l.b16 %v1719
  %v3288 = vunpack.c.l.b16 %v1720
  %v3289 = vunpack.c.l.b16 %v1721
  %v3290 = vunpack.c.l.b16 %v1722
  %v3291 = vunpack.c.l.b16 %v1723
  %v3292 = vunpack.c.l.b16 %v1724
  %v3293 = vunpack.c.l.b16 %v1725
  %v3294 = vunpack.c.l.b16 %v1726
  %v3295 = vunpack.c.l.b16 %v1727
  %v3296 = vunpack.c.l.b16 %v1728
  %v3297 = vunpack.c.l.b16 %v1729
  %v3298 = vunpack.c.l.b16 %v1730
  %v3299 = vunpack.c.l.b16 %v1731
  %v3300 = vunpack.c.l.b16 %v1732
  %v3301 = vunpack.c.l.b16 %v1733
  %v3302 = vunpack.c.l.b16 %v1734
  %v3303 = vunpack.c.l.b16 %v1735
  %v3304 = vunpack.c.l.b16 %v1736
  %v3305 = vunpack.c.l.b16 %v1737
  %v3306 = vunpack.c.l.b16 %v1738
  %v3307 = vunpack.c.l.b16 %v1739
  %v3308 = vunpack.c.l.b16 %v1740
  %v3309 = vunpack.c.l.b16 %v1741
  %v3310 = vunpack.c.l.b16 %v1742
  %v3311 = vunpack.c.l.b16 %v1743
  %v3312 = vunpack.c.l.b16 %v1744
  %v3313 = vunpack.c.l.b16 %v1745
  %v3314 = vunpack.c.l.b16 %v1746
  %v3315 = vunpack.c.l.b16 %v1747
  %v3316 = vunpack.c.l.b16 %v1748
  %v3317 = vunpack.c.l.b16 %v1749
  %v3318 = vunpack.c.l.b16 %v1750
  %v3319 = vunpack.c.l.b16 %v1751
  %v3320 = vunpack.c.l.b16 %v1752
  %v3321 = vunpack.c.l.b16 %v1753
  %v3322 = vunpack.c.l.b16 %v1754
  %v3323 = vunpack.c.l.b16 %v1755
  %v3324 = vunpack.c.l.b16 %v1756
  %v3325 = vunpack.c.l.b16 %v1757
  %v3326 = vunpack.c.l.b16 %v1758
  %v3327 = vunpack.c.l.b16 %v1759
  %v3328 = vunpack.c.l.b16 %v1760
  %v3329 = vunpack.c.l.b16 %v1761
  %v3330 = vunpack.c.l.b16 %v1762
  %v3331 = vunpack.c.l.b16 %v1763
  %v3332 = vunpack.c.l.b16 %v1764
  %v3333 = vunpack.c.l.b16 %v1765
  %v3334 = vunpack.c.l.b16 %v1766
  %v3335 = vunpack.c.l.b16 %v1767
  %v3336 = vunpack.c.l.b16 %v1768
  %v3337 = vunpack.c.l.b16 %v1769
  %v3338 = vunpack.c.l.b16 %v1770
  %v3339 = vunpack.c.l.b16 %v1771
  %v3340 = vunpack.c.l.b16 %v1772
  %v3341 = vunpack.c.l.b16 %v1773
  %v3342 = vunpack.c.l.b16 %v1774
  %v3343 = vunpack.c.l.b16 %v1775
  %v3344 = vunpack.c.l.b16 %v1776
  %v3345 = vunpack.c.l.b16 %v1777
  %v3346 = vunpack.c.l.b16 %v1778
  %v3347 = vunpack.c.l.b16 %v1779
  %v3348 = vunpack.c.l.b16 %v1780
  %v3349 = vunpack.c.l.b16 %v1781
  %v3350 = vunpack.c.l.b16 %v1782
  %v3351 = vunpack.c.l.b16 %v1783
  %v3352 = vunpack.c.l.b16 %v1784
  %v3353 = vunpack.c.l.b16 %v1785
  %v3354 = vunpack.c.l.b16 %v1786
  %v3355 = vunpack.c.l.b16 %v1787
  %v3356 = vunpack.c.l.b16 %v1788
  %v3357 = vunpack.c.l.b16 %v1789
  %v3358 = vunpack.c.l.b16 %v1790
  %v3359 = vunpack.c.l.b16 %v1791
  %v3360 = vunpack.c.l.b16 %v1792
  %v3361 = vunpack.c.l.b16 %v1793
  %v3362 = vunpack.c.l.b16 %v1794
  %v3363 = vunpack.c.l.b16 %v1795
  %v3364 = vunpack.c.l.b16 %v1796
  %v3365 = vunpack.c.l.b16 %v1797
  %v3366 = vunpack.c.l.b16 %v1798
  %v3367 = vunpack.c.l.b16 %v1799
  %v3368 = vunpack.c.l.b16 %v1800
  %v3369 = vunpack.c.l.b16 %v1801
  %v3370 = vunpack.c.l.b16 %v1802
  %v3371 = vunpack.c.l.b16 %v1803
  %v3372 = vunpack.c.l.b16 %v1804
  %v3373 = vunpack.c.l.b16 %v1805
  %v3374 = vunpack.c.l.b16 %v1806
  %v3375 = vunpack.c.l.b16 %v1807
  %v3376 = vunpack.c.l.b16 %v1808
  %v3377 = vunpack.c.l.b16 %v1809
  %v3378 = vunpack.c.l.b16 %v1810
  %v3379 = vunpack.c.l.b16 %v1811
  %v3380 = vunpack.c.l.b16 %v1812
  %v3381 = vunpack.c.l.b16 %v1813
  %v3382 = vunpack.c.l.b16 %v1814
  %v3383 = vunpack.c.l.b16 %v1815
  %v3384 = vunpack.c.l.b16 %v1816
  %v3385 = vunpack.c.l.b16 %v1817
  %v3386 = vunpack.c.l.b16 %v1818
  %v3387 = vunpack.c.l.b16 %v1819
  %v3388 = vunpack.c.l.b16 %v1820
  %v3389 = vunpack.c.l.b16 %v1821
  %v3390 = vunpack.c.l.b16 %v1822
  %v3391 = vunpack.c.l.b16 %v1823
  %v3392 = vunpack.c.l.b16 %v1824
  %v3393 = vunpack.c.l.b16 %v1825
  %v3394 = vunpack.c.l.b16 %v1826
  %v3395 = vunpack.c.l.b16 %v1827
  %v3396 = vunpack.c.l.b16 %v1828
  %v3397 = vunpack.c.l.b16 %v1829
  %v3398 = vunpack.c.l.b16 %v1830
  %v3399 = vunpack.c.l.b16 %v1831
  %v3400 = vunpack.c.l.b16 %v1832
  %v3401 = vunpack.c.l.b16 %v1833
  %v3402 = vunpack.c.l.b16 %v1834
  %v3403 = vunpack.c.l.b16 %v1835
  %v3404 = vunpack.c.l.b16 %v1836
  %v3405 = vunpack.c.l.b16 %v1837
  %v3406 = vunpack.c.l.b16 %v1838
  %v3407 = vunpack.c.l.b16 %v1839
  %v3408 = vunpack.c.l.b16 %v1840
  %v3409 = vunpack.c.l.b16 %v1841
  %v3410 = vunpack.c.l.b16 %v1842
  %v3411 = vunpack.c.l.b16 %v1843
  %v3412 = vunpack.c.l.b16 %v1844
  %v3413 = vunpack.c.l.b16 %v1845
  %v3414 = vunpack.c.l.b16 %v1846
  %v3415 = vunpack.c.l.b16 %v1847
  %v3416 = vunpack.c.l.b16 %v1848
  %v3417 = vunpack.c.l.b16 %v1849
  %v3418 = vunpack.c.l.b16 %v1850
  %v3419 = vunpack.c.l.b16 %v1851
  %v3420 = vunpack.c.l.b16 %v1852
  %v3421 = vunpack.c.l.b16 %v1853
  %v3422 = vunpack.c.l.b16 %v1854
  %v3423 = vunpack.c.l.b16 %v1855
  %v3424 = vunpack.c.l.b16 %v1856
  %v3425 = vunpack.c.l.b16 %v1857
  %v3426 = vunpack.c.l.b16 %v1858
  %v3427 = vunpack.c.l.b16 %v1859
  %v3428 = vunpack.c.l.b16 %v1860
  %v3429 = vunpack.c.l.b16 %v1861
  %v3430 = vunpack.c.l.b16 %v1862
  %v3431 = vunpack.c.l.b16 %v1863
  %v3432 = vunpack.c.l.b16 %v1864
  %v3433 = vunpack.c.l.b16 %v1865
  %v3434 = vunpack.c.l.b16 %v1866
  %v3435 = vunpack.c.l.b16 %v1867
  %v3436 = vunpack.c.l.b16 %v1868
  %v3437 = vunpack.c.l.b16 %v1869
  %v3438 = vunpack.c.l.b16 %v1870
  %v3439 = vunpack.c.l.b16 %v1871
  %v3440 = vunpack.c.l.b16 %v1872
  %v3441 = vunpack.c.l.b16 %v1873
  %v3442 = vunpack.c.l.b16 %v1874
  %v3443 = vunpack.c.l.b16 %v1875
  %v3444 = vunpack.c.l.b16 %v1876
  %v3445 = vunpack.c.l.b16 %v1877
  %v3446 = vunpack.c.l.b16 %v1878
  %v3447 = vunpack.c.l.b16 %v1879
  %v3448 = vunpack.c.l.b16 %v1880
  %v3449 = vunpack.c.l.b16 %v1881
  %v3450 = vunpack.c.l.b16 %v1882
  %v3451 = vunpack.c.l.b16 %v1883
  %v3452 = vunpack.c.l.b16 %v1884
  %v3453 = vunpack.c.l.b16 %v1885
  %v3454 = vunpack.c.l.b16 %v1886
  %v3455 = vunpack.c.l.b16 %v1887
  %v3456 = vunpack.c.l.b16 %v1888
  %v3457 = vunpack.c.l.b16 %v1889
  %v3458 = vunpack.c.l.b16 %v1890
  %v3459 = vunpack.c.l.b16 %v1891
  %v3460 = vunpack.c.l.b16 %v1892
  %v3461 = vunpack.c.l.b16 %v1893
  %v3462 = vunpack.c.l.b16 %v1894
  %v3463 = vunpack.c.l.b16 %v1895
  %v3464 = vunpack.c.l.b16 %v1896
  %v3465 = vunpack.c.l.b16 %v1897
  %v3466 = vunpack.c.l.b16 %v1898
  %v3467 = vunpack.c.l.b16 %v1899
  %v3468 = vunpack.c.l.b16 %v1900
  %v3469 = vunpack.c.l.b16 %v1901
  %v3470 = vunpack.c.l.b16 %v1902
  %v3471 = vunpack.c.l.b16 %v1903
  %v3472 = vunpack.c.l.b16 %v1904
  %v3473 = vunpack.c.l.b16 %v1905
  %v3474 = vunpack.c.l.b16 %v1906
  %v3475 = vunpack.c.l.b16 %v1907
  %v3476 = vunpack.c.l.b16 %v1908
  %v3477 = vunpack.c.l.b16 %v1909
  %v3478 = vunpack.c.l.b16 %v1910
  %v3479 = vunpack.c.l.b16 %v1911
  %v3480 = vunpack.c.l.b16 %v1912
  %v3481 = vunpack.c.l.b16 %v1913
  %v3482 = vunpack.c.l.b16 %v1914
  %v3483 = vunpack.c.l.b16 %v1915
  %v3484 = vunpack.c.l.b16 %v1916
  %v3485 = vunpack.c.l.b16 %v1917
  %v3486 = vunpack.c.l.b16 %v1918
  %v3487 = vunpack.c.l.b16 %v1919
  %v3488 = vunpack.c.l.b16 %v1920
  %v3489 = vunpack.c.l.b16 %v1921
  %v3490 = vunpack.c.l.b16 %v1922
  %v3491 = vunpack.c.l.b16 %v1923
  %v3492 = vunpack.c.l.b16 %v1924
  %v3493 = vunpack.c.l.b16 %v1925
  %v3494 = vunpack.c.l.b16 %v1926
  %v3495 = vunpack.c.l.b16 %v1927
  %v3496 = vunpack.c.l.b16 %v1928
  %v3497 = vunpack.c.l.b16 %v1929
  %v3498 = vunpack.c.l.b16 %v1930
  %v3499 = vunpack.c.l.b16 %v1931
  %v3500 = vunpack.c.l.b16 %v1932
  %v3501 = vunpack.c.l.b16 %v1933
  %v3502 = vunpack.c.l.b16 %v1934
  %v3503 = vunpack.c.l.b16 %v1935
  %v3504 = vunpack.c.l.b16 %v1936
  %v3505 = vunpack.c.l.b16 %v1937
  %v3506 = vunpack.c.l.b16 %v1938
  %v3507 = vunpack.c.l.b16 %v1939
  %v3508 = vunpack.c.l.b16 %v1940
  %v3509 = vunpack.c.l.b16 %v1941
  %v3510 = vunpack.c.l.b16 %v1942
  %v3511 = vunpack.c.l.b16 %v1943
  %v3512 = vunpack.c.l.b16 %v1944
  %v3513 = vunpack.c.l.b16 %v1945
  %v3514 = vunpack.c.l.b16 %v1946
  %v3515 = vunpack.c.l.b16 %v1947
  %v3516 = vunpack.c.l.b16 %v1948
  %v3517 = vunpack.c.l.b16 %v1949
  %v3518 = vunpack.c.l.b16 %v1950
  %v3519 = vunpack.c.l.b16 %v1951
  %v3520 = vunpack.c.l.b16 %v1952
  %v3521 = vunpack.c.l.b16 %v1953
  %v3522 = vunpack.c.l.b16 %v1954
  %v3523 = vunpack.c.l.b16 %v1955
  %v3524 = vunpack.c.l.b16 %v1956
  %v3525 = vunpack.c.l.b16 %v1957
  %v3526 = vunpack.c.l.b16 %v1958
  %v3527 = vunpack.c.l.b16 %v1959
  %v3528 = vunpack.c.l.b16 %v1960
  %v3529 = vunpack.c.l.b16 %v1961
  %v3530 = vunpack.c.l.b16 %v1962
  %v3531 = vunpack.c.l.b16 %v1963
  %v3532 = vunpack.c.l.b16 %v1964
  %v3533 = vunpack.c.l.b16 %v1965
  %v3534 = vunpack.c.l.b16 %v1966
  %v3535 = vunpack.c.l.b16 %v1967
  %v3536 = vunpack.c.l.b16 %v1968
  %v3537 = vunpack.c.l.b16 %v1969
  %v3538 = vunpack.c.l.b16 %v1970
  %v3539 = vunpack.c.l.b16 %v1971
  %v3540 = vunpack.c.l.b16 %v1972
  %v3541 = vunpack.c.l.b16 %v1973
  %v3542 = vunpack.c.l.b16 %v1974
  %v3543 = vunpack.c.l.b16 %v1975
  %v3544 = vunpack.c.l.b16 %v1976
  %v3545 = vunpack.c.l.b16 %v1977
  %v3546 = vunpack.c.l.b16 %v1978
  %v3547 = vunpack.c.l.b16 %v1979
  %v3548 = vunpack.c.l.b16 %v1980
  %v3549 = vunpack.c.l.b16 %v1981
  %v3550 = vunpack.c.l.b16 %v1982
  %v3551 = vunpack.c.l.b16 %v1983
  %v3552 = vunpack.c.l.b16 %v1984
  %v3553 = vunpack.c.l.b16 %v1985
  %v3554 = vunpack.c.l.b16 %v1986
  %v3555 = vunpack.c.l.b16 %v1987
  %v3556 = vunpack.c.l.b16 %v1988
  %v3557 = vunpack.c.l.b16 %v1989
  %v3558 = vunpack.c.l.b16 %v1990
  %v3559 = vunpack.c.l.b16 %v1991
  %v3560 = vunpack.c.l.b16 %v1992
  %v3561 = vunpack.c.l.b16 %v1993
  %v3562 = vunpack.c.l.b16 %v1994
  %v3563 = vunpack.c.l.b16 %v1995
  %v3564 = vunpack.c.l.b16 %v1996
  %v3565 = vunpack.c.l.b16 %v1997
  %v3566 = vunpack.c.l.b16 %v1998
  %v3567 = vunpack.c.l.b16 %v1999
  %v3568 = vunpack.c.l.b16 %v2000
  %v3569 = vunpack.c.l.b16 %v2001
  %v3570 = vunpack.c.l.b16 %v2002
  %v3571 = vunpack.c.l.b16 %v2003
  %v3572 = vunpack.c.l.b16 %v2004
  %v3573 = vunpack.c.l.b16 %v2005
  %v3574 = vunpack.c.l.b16 %v2006
  %v3575 = vunpack.c.l.b16 %v2007
  %v3576 = vunpack.c.l.b16 %v2008
  %v3577 = vpack.c.b16 %v2794, %v2793
  %v3578 = vpack.c.b16 %v2796, %v2795
  %v3579 = vpack.c.b16 %v2798, %v2797
  %v3580 = vpack.c.b16 %v2800, %v2799
  %v3581 = vpack.c.b16 %v2802, %v2801
  %v3582 = vpack.c.b16 %v2804, %v2803
  %v3583 = vpack.c.b16 %v2806, %v2805
  %v3584 = vpack.c.b16 %v2808, %v2807
  %v3585 = vpack.c.b16 %v2810, %v2809
  %v3586 = vpack.c.b16 %v2812, %v2811
  %v3587 = vpack.c.b16 %v2814, %v2813
  %v3588 = vpack.c.b16 %v2816, %v2815
  %v3589 = vpack.c.b16 %v2818, %v2817
  %v3590 = vpack.c.b16 %v2820, %v2819
  %v3591 = vpack.c.b16 %v2822, %v2821
  %v3592 = vpack.c.b16 %v2824, %v2823
  %v3593 = vpack.c.b16 %v2826, %v2825
  %v3594 = vpack.c.b16 %v2828, %v2827
  %v3595 = vpack.c.b16 %v2830, %v2829
  %v3596 = vpack.c.b16 %v2832, %v2831
  %v3597 = vpack.c.b16 %v2834, %v2833
  %v3598 = vpack.c.b16 %v2836, %v2835
  %v3599 = vpack.c.b16 %v2838, %v2837
  %v3600 = vpack.c.b16 %v2840, %v2839
  %v3601 = vpack.c.b16 %v2842, %v2841
  %v3602 = vpack.c.b16 %v2844, %v2843
  %v3603 = vpack.c.b16 %v2846, %v2845
  %v3604 = vpack.c.b16 %v2848, %v2847
  %v3605 = vpack.c.b16 %v2850, %v2849
  %v3606 = vpack.c.b16 %v2852, %v2851
  %v3607 = vpack.c.b16 %v2854, %v2853
  %v3608 = vpack.c.b16 %v2856, %v2855
  %v3609 = vpack.c.b16 %v2858, %v2857
  %v3610 = vpack.c.b16 %v2860, %v2859
  %v3611 = vpack.c.b16 %v2862, %v2861
  %v3612 = vpack.c.b16 %v2864, %v2863
  %v3613 = vpack.c.b16 %v2866, %v2865
  %v3614 = vpack.c.b16 %v2868, %v2867
  %v3615 = vpack.c.b16 %v2870, %v2869
  %v3616 = vpack.c.b16 %v2872, %v2871
  %v3617 = vpack.c.b16 %v2874, %v2873
  %v3618 = vpack.c.b16 %v2876, %v2875
  %v3619 = vpack.c.b16 %v2878, %v2877
  %v3620 = vpack.c.b16 %v2880, %v2879
  %v3621 = vpack.c.b16 %v2882, %v2881
  %v3622 = vpack.c.b16 %v2884, %v2883
  %v3623 = vpack.c.b16 %v2886, %v2885
  %v3624 = vpack.c.b16 %v2888, %v2887
  %v3625 = vpack.c.b16 %v2890, %v2889
  %v3626 = vpack.c.b16 %v2892, %v2891
  %v3627 = vpack.c.b16 %v2894, %v2893
  %v3628 = vpack.c.b16 %v2896, %v2895
  %v3629 = vpack.c.b16 %v2898, %v2897
  %v3630 = vpack.c.b16 %v2900, %v2899
  %v3631 = vpack.c.b16 %v2902, %v2901
  %v3632 = vpack.c.b16 %v2904, %v2903
  %v3633 = vpack.c.b16 %v2906, %v2905
  %v3634 = vpack.c.b16 %v2908, %v2907
  %v3635 = vpack.c.b16 %v2910, %v2909
  %v3636 = vpack.c.b16 %v2912, %v2911
  %v3637 = vpack.c.b16 %v2914, %v2913
  %v3638 = vpack.c.b16 %v2916, %v2915
  %v3639 = vpack.c.b16 %v2918, %v2917
  %v3640 = vpack.c.b16 %v2920, %v2919
  %v3641 = vpack.c.b16 %v2922, %v2921
  %v3642 = vpack.c.b16 %v2924, %v2923
  %v3643 = vpack.c.b16 %v2926, %v2925
  %v3644 = vpack.c.b16 %v2928, %v2927
  %v3645 = vpack.c.b16 %v2930, %v2929
  %v3646 = vpack.c.b16 %v2932, %v2931
  %v3647 = vpack.c.b16 %v2934, %v2933
  %v3648 = vpack.c.b16 %v2936, %v2935
  %v3649 = vpack.c.b16 %v2938, %v2937
  %v3650 = vpack.c.b16 %v2940, %v2939
  %v3651 = vpack.c.b16 %v2942, %v2941
  %v3652 = vpack.c.b16 %v2944, %v2943
  %v3653 = vpack.c.b16 %v2946, %v2945
  %v3654 = vpack.c.b16 %v2948, %v2947
  %v3655 = vpack.c.b16 %v2950, %v2949
  %v3656 = vpack.c.b16 %v2952, %v2951
  %v3657 = vpack.c.b16 %v2954, %v2953
  %v3658 = vpack.c.b16 %v2956, %v2955
  %v3659 = vpack.c.b16 %v2958, %v2957
  %v3660 = vpack.c.b16 %v2960, %v2959
  %v3661 = vpack.c.b16 %v2962, %v2961
  %v3662 = vpack.c.b16 %v2964, %v2963
  %v3663 = vpack.c.b16 %v2966, %v2965
  %v3664 = vpack.c.b16 %v2968, %v2967
  %v3665 = vpack.c.b16 %v2970, %v2969
  %v3666 = vpack.c.b16 %v2972, %v2971
  %v3667 = vpack.c.b16 %v2974, %v2973
  %v3668 = vpack.c.b16 %v2976, %v2975
  %v3669 = vpack.c.b16 %v2978, %v2977
  %v3670 = vpack.c.b16 %v2980, %v2979
  %v3671 = vpack.c.b16 %v2982, %v2981
  %v3672 = vpack.c.b16 %v2984, %v2983
  %v3673 = vpack.c.b16 %v2986, %v2985
  %v3674 = vpack.c.b16 %v2988, %v2987
  %v3675 = vpack.c.b16 %v2990, %v2989
  %v3676 = vpack.c.b16 %v2992, %v2991
  %v3677 = vpack.c.b16 %v2994, %v2993
  %v3678 = vpack.c.b16 %v2996, %v2995
  %v3679 = vpack.c.b16 %v2998, %v2997
  %v3680 = vpack.c.b16 %v3000, %v2999
  %v3681 = vpack.c.b16 %v3002, %v3001
  %v3682 = vpack.c.b16 %v3004, %v3003
  %v3683 = vpack.c.b16 %v3006, %v3005
  %v3684 = vpack.c.b16 %v3008, %v3007
  %v3685 = vpack.c.b16 %v3010, %v3009
  %v3686 = vpack.c.b16 %v3012, %v3011
  %v3687 = vpack.c.b16 %v3014, %v3013
  %v3688 = vpack.c.b16 %v3016, %v3015
  %v3689 = vpack.c.b16 %v3018, %v3017
  %v3690 = vpack.c.b16 %v3020, %v3019
  %v3691 = vpack.c.b16 %v3022, %v3021
  %v3692 = vpack.c.b16 %v3024, %v3023
  %v3693 = vpack.c.b16 %v3026, %v3025
  %v3694 = vpack.c.b16 %v3028, %v3027
  %v3695 = vpack.c.b16 %v3030, %v3029
  %v3696 = vpack.c.b16 %v3032, %v3031
  %v3697 = vpack.c.b16 %v3034, %v3033
  %v3698 = vpack.c.b16 %v3036, %v3035
  %v3699 = vpack.c.b16 %v3038, %v3037
  %v3700 = vpack.c.b16 %v3040, %v3039
  %v3701 = vpack.c.b16 %v3042, %v3041
  %v3702 = vpack.c.b16 %v3044, %v3043
  %v3703 = vpack.c.b16 %v3046, %v3045
  %v3704 = vpack.c.b16 %v3048, %v3047
  %v3705 = vpack.c.b16 %v3050, %v3049
  %v3706 = vpack.c.b16 %v3052, %v3051
  %v3707 = vpack.c.b16 %v3054, %v3053
  %v3708 = vpack.c.b16 %v3056, %v3055
  %v3709 = vpack.c.b16 %v3058, %v3057
  %v3710 = vpack.c.b16 %v3060, %v3059
  %v3711 = vpack.c.b16 %v3062, %v3061
  %v3712 = vpack.c.b16 %v3064, %v3063
  %v3713 = vpack.c.b16 %v3066, %v3065
  %v3714 = vpack.c.b16 %v3068, %v3067
  %v3715 = vpack.c.b16 %v3070, %v3069
  %v3716 = vpack.c.b16 %v3072, %v3071
  %v3717 = vpack.c.b16 %v3074, %v3073
  %v3718 = vpack.c.b16 %v3076, %v3075
  %v3719 = vpack.c.b16 %v3078, %v3077
  %v3720 = vpack.c.b16 %v3080, %v3079
  %v3721 = vpack.c.b16 %v3082, %v3081
  %v3722 = vpack.c.b16 %v3084, %v3083
  %v3723 = vpack.c.b16 %v3086, %v3085
  %v3724 = vpack.c.b16 %v3088, %v3087
  %v3725 = vpack.c.b16 %v3090, %v3089
  %v3726 = vpack.c.b16 %v3092, %v3091
  %v3727 = vpack.c.b16 %v3094, %v3093
  %v3728 = vpack.c.b16 %v3096, %v3095
  %v3729 = vpack.c.b16 %v3098, %v3097
  %v3730 = vpack.c.b16 %v3100, %v3099
  %v3731 = vpack.c.b16 %v3102, %v3101
  %v3732 = vpack.c.b16 %v3104, %v3103
  %v3733 = vpack.c.b16 %v3106, %v3105
  %v3734 = vpack.c.b16 %v3108, %v3107
  %v3735 = vpack.c.b16 %v3110, %v3109
  %v3736 = vpack.c.b16 %v3112, %v3111
  %v3737 = vpack.c.b16 %v3114, %v3113
  %v3738 = vpack.c.b16 %v3116, %v3115
  %v3739 = vpack.c.b16 %v3118, %v3117
  %v3740 = vpack.c.b16 %v3120, %v3119
  %v3741 = vpack.c.b16 %v3122, %v3121
  %v3742 = vpack.c.b16 %v3124, %v3123
  %v3743 = vpack.c.b16 %v3126, %v3125
  %v3744 = vpack.c.b16 %v3128, %v3127
  %v3745 = vpack.c.b16 %v3130, %v3129
  %v3746 = vpack.c.b16 %v3132, %v3131
  %v3747 = vpack.c.b16 %v3134, %v3133
  %v3748 = vpack.c.b16 %v3136, %v3135
  %v3749 = vpack.c.b16 %v3138, %v3137
  %v3750 = vpack.c.b16 %v3140, %v3139
  %v3751 = vpack.c.b16 %v3142, %v3141
  %v3752 = vpack.c.b16 %v3144, %v3143
  %v3753 = vpack.c.b16 %v3146, %v3145
  %v3754 = vpack.c.b16 %v3148, %v3147
  %v3755 = vpack.c.b16 %v3150, %v3149
  %v3756 = vpack.c.b16 %v3152, %v3151
  %v3757 = vpack.c.b16 %v3154, %v3153
  %v3758 = vpack.c.b16 %v3156, %v3155
  %v3759 = vpack.c.b16 %v3158, %v3157
  %v3760 = vpack.c.b16 %v3160, %v3159
  %v3761 = vpack.c.b16 %v3162, %v3161
  %v3762 = vpack.c.b16 %v3164, %v3163
  %v3763 = vpack.c.b16 %v3166, %v3165
  %v3764 = vpack.c.b16 %v3168, %v3167
  %v3765 = vpack.c.b16 %v3170, %v3169
  %v3766 = vpack.c.b16 %v3172, %v3171
  %v3767 = vpack.c.b16 %v3174, %v3173
  %v3768 = vpack.c.b16 %v3176, %v3175
  %v3769 = vpack.c.b16 %v3178, %v3177
  %v3770 = vpack.c.b16 %v3180, %v3179
  %v3771 = vpack.c.b16 %v3182, %v3181
  %v3772 = vpack.c.b16 %v3184, %v3183
  %v3773 = vpack.c.b16 %v3186, %v3185
  %v3774 = vpack.c.b16 %v3188, %v3187
  %v3775 = vpack.c.b16 %v3190, %v3189
  %v3776 = vpack.c.b16 %v3192, %v3191
  %v3777 = vpack.c.b16 %v3194, %v3193
  %v3778 = vpack.c.b16 %v3196, %v3195
  %v3779 = vpack.c.b16 %v3198, %v3197
  %v3780 = vpack.c.b16 %v3200, %v3199
  %v3781 = vpack.c.b16 %v3202, %v3201
  %v3782 = vpack.c.b16 %v3204, %v3203
  %v3783 = vpack.c.b16 %v3206, %v3205
  %v3784 = vpack.c.b16 %v3208, %v3207
  %v3785 = vpack.c.b16 %v3210, %v3209
  %v3786 = vpack.c.b16 %v3212, %v3211
  %v3787 = vpack.c.b16 %v3214, %v3213
  %v3788 = vpack.c.b16 %v3216, %v3215
  %v3789 = vpack.c.b16 %v3218, %v3217
  %v3790 = vpack.c.b16 %v3220, %v3219
  %v3791 = vpack.c.b16 %v3222, %v3221
  %v3792 = vpack.c.b16 %v3224, %v3223
  %v3793 = vpack.c.b16 %v3226, %v3225
  %v3794 = vpack.c.b16 %v3228, %v3227
  %v3795 = vpack.c.b16 %v3230, %v3229
  %v3796 = vpack.c.b16 %v3232, %v3231
  %v3797 = vpack.c.b16 %v3234, %v3233
  %v3798 = vpack.c.b16 %v3236, %v3235
  %v3799 = vpack.c.b16 %v3238, %v3237
  %v3800 = vpack.c.b16 %v3240, %v3239
  %v3801 = vpack.c.b16 %v3242, %v3241
  %v3802 = vpack.c.b16 %v3244, %v3243
  %v3803 = vpack.c.b16 %v3246, %v3245
  %v3804 = vpack.c.b16 %v3248, %v3247
  %v3805 = vpack.c.b16 %v3250, %v3249
  %v3806 = vpack.c.b16 %v3252, %v3251
  %v3807 = vpack.c.b16 %v3254, %v3253
  %v3808 = vpack.c.b16 %v3256, %v3255
  %v3809 = vpack.c.b16 %v3258, %v3257
  %v3810 = vpack.c.b16 %v3260, %v3259
  %v3811 = vpack.c.b16 %v3262, %v3261
  %v3812 = vpack.c.b16 %v3264, %v3263
  %v3813 = vpack.c.b16 %v3266, %v3265
  %v3814 = vpack.c.b16 %v3268, %v3267
  %v3815 = vpack.c.b16 %v3270, %v3269
  %v3816 = vpack.c.b16 %v3272, %v3271
  %v3817 = vpack.c.b16 %v3274, %v3273
  %v3818 = vpack.c.b16 %v3276, %v3275
  %v3819 = vpack.c.b16 %v3278, %v3277
  %v3820 = vpack.c.b16 %v3280, %v3279
  %v3821 = vpack.c.b16 %v3282, %v3281
  %v3822 = vpack.c.b16 %v3284, %v3283
  %v3823 = vpack.c.b16 %v3286, %v3285
  %v3824 = vpack.c.b16 %v3288, %v3287
  %v3825 = vpack.c.b16 %v3290, %v3289
  %v3826 = vpack.c.b16 %v3292, %v3291
  %v3827 = vpack.c.b16 %v3294, %v3293
  %v3828 = vpack.c.b16 %v3296, %v3295
  %v3829 = vpack.c.b16 %v3298, %v3297
  %v3830 = vpack.c.b16 %v3300, %v3299
  %v3831 = vpack.c.b16 %v3302, %v3301
  %v3832 = vpack.c.b16 %v3304, %v3303
  %v3833 = vpack.c.b16 %v3306, %v3305
  %v3834 = vpack.c.b16 %v3308, %v3307
  %v3835 = vpack.c.b16 %v3310, %v3309
  %v3836 = vpack.c.b16 %v3312, %v3311
  %v3837 = vpack.c.b16 %v3314, %v3313
  %v3838 = vpack.c.b16 %v3316, %v3315
  %v3839 = vpack.c.b16 %v3318, %v3317
  %v3840 = vpack.c.b16 %v3320, %v3319
  %v3841 = vpack.c.b16 %v3322, %v3321
  %v3842 = vpack.c.b16 %v3324, %v3323
  %v3843 = vpack.c.b16 %v3326, %v3325
  %v3844 = vpack.c.b16 %v3328, %v3327
  %v3845 = vpack.c.b16 %v3330, %v3329
  %v3846 = vpack.c.b16 %v3332, %v3331
  %v3847 = vpack.c.b16 %v3334, %v3333
  %v3848 = vpack.c.b16 %v3336, %v3335
  %v3849 = vpack.c.b16 %v3338, %v3337
  %v3850 = vpack.c.b16 %v3340, %v3339
  %v3851 = vpack.c.b16 %v3342, %v3341
  %v3852 = vpack.c.b16 %v3344, %v3343
  %v3853 = vpack.c.b16 %v3346, %v3345
  %v3854 = vpack.c.b16 %v3348, %v3347
  %v3855 = vpack.c.b16 %v3350, %v3349
  %v3856 = vpack.c.b16 %v3352, %v3351
  %v3857 = vpack.c.b16 %v3354, %v3353
  %v3858 = vpack.c.b16 %v3356, %v3355
  %v3859 = vpack.c.b16 %v3358, %v3357
  %v3860 = vpack.c.b16 %v3360, %v3359
  %v3861 = vpack.c.b16 %v3362, %v3361
  %v3862 = vpack.c.b16 %v3364, %v3363
  %v3863 = vpack.c.b16 %v3366, %v3365
  %v3864 = vpack.c.b16 %v3368, %v3367
  %v3865 = vpack.c.b16 %v3370, %v3369
  %v3866 = vpack.c.b16 %v3372, %v3371
  %v3867 = vpack.c.b16 %v3374, %v3373
  %v3868 = vpack.c.b16 %v3376, %v3375
  %v3869 = vpack.c.b16 %v3378, %v3377
  %v3870 = vpack.c.b16 %v3380, %v3379
  %v3871 = vpack.c.b16 %v3382, %v3381
  %v3872 = vpack.c.b16 %v3384, %v3383
  %v3873 = vpack.c.b16 %v3386, %v3385
  %v3874 = vpack.c.b16 %v3388, %v3387
  %v3875 = vpack.c.b16 %v3390, %v3389
  %v3876 = vpack.c.b16 %v3392, %v3391
  %v3877 = vpack.c.b16 %v3394, %v3393
  %v3878 = vpack.c.b16 %v3396, %v3395
  %v3879 = vpack.c.b16 %v3398, %v3397
  %v3880 = vpack.c.b16 %v3400, %v3399
  %v3881 = vpack.c.b16 %v3402, %v3401
  %v3882 = vpack.c.b16 %v3404, %v3403
  %v3883 = vpack.c.b16 %v3406, %v3405
  %v3884 = vpack.c.b16 %v3408, %v3407
  %v3885 = vpack.c.b16 %v3410, %v3409
  %v3886 = vpack.c.b16 %v3412, %v3411
  %v3887 = vpack.c.b16 %v3414, %v3413
  %v3888 = vpack.c.b16 %v3416, %v3415
  %v3889 = vpack.c.b16 %v3418, %v3417
  %v3890 = vpack.c.b16 %v3420, %v3419
  %v3891 = vpack.c.b16 %v3422, %v3421
  %v3892 = vpack.c.b16 %v3424, %v3423
  %v3893 = vpack.c.b16 %v3426, %v3425
  %v3894 = vpack.c.b16 %v3428, %v3427
  %v3895 = vpack.c.b16 %v3430, %v3429
  %v3896 = vpack.c.b16 %v3432, %v3431
  %v3897 = vpack.c.b16 %v3434, %v3433
  %v3898 = vpack.c.b16 %v3436, %v3435
  %v3899 = vpack.c.b16 %v3438, %v3437
  %v3900 = vpack.c.b16 %v3440, %v3439
  %v3901 = vpack.c.b16 %v3442, %v3441
  %v3902 = vpack.c.b16 %v3444, %v3443
  %v3903 = vpack.c.b16 %v3446, %v3445
  %v3904 = vpack.c.b16 %v3448, %v3447
  %v3905 = vpack.c.b16 %v3450, %v3449
  %v3906 = vpack.c.b16 %v3452, %v3451
  %v3907 = vpack.c.b16 %v3454, %v3453
  %v3908 = vpack.c.b16 %v3456, %v3455
  %v3909 = vpack.c.b16 %v3458, %v3457
  %v3910 = vpack.c.b16 %v3460, %v3459
  %v3911 = vpack.c.b16 %v3462, %v3461
  %v3912 = vpack.c.b16 %v3464, %v3463
  %v3913 = vpack.c.b16 %v3466, %v3465
  %v3914 = vpack.c.b16 %v3468, %v3467
  %v3915 = vpack.c.b16 %v3470, %v3469
  %v3916 = vpack.c.b16 %v3472, %v3471
  %v3917 = vpack.c.b16 %v3474, %v3473
  %v3918 = vpack.c.b16 %v3476, %v3475
  %v3919 = vpack.c.b16 %v3478, %v3477
  %v3920 = vpack.c.b16 %v3480, %v3479
  %v3921 = vpack.c.b16 %v3482, %v3481
  %v3922 = vpack.c.b16 %v3484, %v3483
  %v3923 = vpack.c.b16 %v3486, %v3485
  %v3924 = vpack.c.b16 %v3488, %v3487
  %v3925 = vpack.c.b16 %v3490, %v3489
  %v3926 = vpack.c.b16 %v3492, %v3491
  %v3927 = vpack.c.b16 %v3494, %v3493
  %v3928 = vpack.c.b16 %v3496, %v3495
  %v3929 = vpack.c.b16 %v3498, %v3497
  %v3930 = vpack.c.b16 %v3500, %v3499
  %v3931 = vpack.c.b16 %v3502, %v3501
  %v3932 = vpack.c.b16 %v3504, %v3503
  %v3933 = vpack.c.b16 %v3506, %v3505
  %v3934 = vpack.c.b16 %v3508, %v3507
  %v3935 = vpack.c.b16 %v3510, %v3509
  %v3936 = vpack.c.b16 %v3512, %v3511
  %v3937 = vpack.c.b16 %v3514, %v3513
  %v3938 = vpack.c.b16 %v3516, %v3515
  %v3939 = vpack.c.b16 %v3518, %v3517
  %v3940 = vpack.c.b16 %v3520, %v3519
  %v3941 = vpack.c.b16 %v3522, %v3521
  %v3942 = vpack.c.b16 %v3524, %v3523
  %v3943 = vpack.c.b16 %v3526, %v3525
  %v3944 = vpack.c.b16 %v3528, %v3527
  %v3945 = vpack.c.b16 %v3530, %v3529
  %v3946 = vpack.c.b16 %v3532, %v3531
  %v3947 = vpack.c.b16 %v3534, %v3533
  %v3948 = vpack.c.b16 %v3536, %v3535
  %v3949 = vpack.c.b16 %v3538, %v3537
  %v3950 = vpack.c.b16 %v3540, %v3539
  %v3951 = vpack.c.b16 %v3542, %v3541
  %v3952 = vpack.c.b16 %v3544, %v3543
  %v3953 = vpack.c.b16 %v3546, %v3545
  %v3954 = vpack.c.b16 %v3548, %v3547
  %v3955 = vpack.c.b16 %v3550, %v3549
  %v3956 = vpack.c.b16 %v3552, %v3551
  %v3957 = vpack.c.b16 %v3554, %v3553
  %v3958 = vpack.c.b16 %v3556, %v3555
  %v3959 = vpack.c.b16 %v3558, %v3557
  %v3960 = vpack.c.b16 %v3560, %v3559
  %v3961 = vpack.c.b16 %v3562, %v3561
  %v3962 = vpack.c.b16 %v3564, %v3563
  %v3963 = vpack.c.b16 %v3566, %v3565
  %v3964 = vpack.c.b16 %v3568, %v3567
  %v3965 = vpack.c.b16 %v3570, %v3569
  %v3966 = vpack.c.b16 %v3572, %v3571
  %v3967 = vpack.c.b16 %v3574, %v3573
  %v3968 = vpack.c.b16 %v3576, %v3575
  %4361 = vmatprep.subr.bf16.mxu0 0
  %4362 = vmatpush1.bf16.msra.mxu0 %v3584
  %4363 = vmatprep.subr.bf16.mxu0 0
  %4364 = vmatpush1.bf16.msra.mxu0 %v3583
  %4365 = vmatprep.subr.bf16.mxu0 0
  %4366 = vmatpush1.bf16.msra.mxu0 %v3582
  %4367 = vmatprep.subr.bf16.mxu0 0
  %4368 = vmatpush1.bf16.msra.mxu0 %v3581
  %4369 = vmatprep.subr.bf16.mxu0 0
  %4370 = vmatpush1.bf16.msra.mxu0 %v3580
  %4371 = vmatprep.subr.bf16.mxu0 0
  %4372 = vmatpush1.bf16.msra.mxu0 %v3579
  %4373 = vmatprep.subr.bf16.mxu0 0
  %4374 = vmatpush1.bf16.msra.mxu0 %v3578
  %4375 = vmatprep.subr.bf16.mxu0 0
  %4376 = vmatpush1.bf16.msra.mxu0 %v3577
  %4377 = vmatprep.subr.bf16.mxu0 0
  %4378 = vmatpush2.bf16.msra.mxu0 %v3592
  %4379 = vmatprep.subr.bf16.mxu0 0
  %4380 = vmatpush2.bf16.msra.mxu0 %v3591
  %4381 = vmatprep.subr.bf16.mxu0 0
  %4382 = vmatpush2.bf16.msra.mxu0 %v3590
  %4383 = vmatprep.subr.bf16.mxu0 0
  %4384 = vmatpush2.bf16.msra.mxu0 %v3589
  %4385 = vmatprep.subr.bf16.mxu0 0
  %4386 = vmatpush2.bf16.msra.mxu0 %v3588
  %4387 = vmatprep.subr.bf16.mxu0 0
  %4388 = vmatpush2.bf16.msra.mxu0 %v3587
  %4389 = vmatprep.subr.bf16.mxu0 0
  %4390 = vmatpush2.bf16.msra.mxu0 %v3586
  %4391 = vmatprep.subr.bf16.mxu0 0
  %4392 = vmatpush2.bf16.msra.mxu0 %v3585
  %4393 = vmatprep.mubr.bf16.mxu0 %v1177
  %4394 = vmatmul.mubr.bf16.gmra.mxu0 %v1176
  %v4395 = vpop.f32.mrf.mxu0
  %v4396 = vadd.f32 0.0, %v4395
  %v4397 = vpop.f32.mrf.mxu0
  %v4398 = vpop.f32.mrf.mxu0
  %v4399 = vadd.f32 0.0, %v4398
  %v4400 = vpop.f32.mrf.mxu0
  %4401 = vdwg.mxu0
  %4402 = vmatprep.subr.bf16.mxu0 0
  %4403 = vmatpush1.bf16.msra.mxu0 %v3600
  %4404 = vmatprep.subr.bf16.mxu0 0
  %4405 = vmatpush1.bf16.msra.mxu0 %v3599
  %4406 = vmatprep.subr.bf16.mxu0 0
  %4407 = vmatpush1.bf16.msra.mxu0 %v3598
  %4408 = vmatprep.subr.bf16.mxu0 0
  %4409 = vmatpush1.bf16.msra.mxu0 %v3597
  %4410 = vmatprep.subr.bf16.mxu0 0
  %4411 = vmatpush1.bf16.msra.mxu0 %v3596
  %4412 = vmatprep.subr.bf16.mxu0 0
  %4413 = vmatpush1.bf16.msra.mxu0 %v3595
  %4414 = vmatprep.subr.bf16.mxu0 0
  %4415 = vmatpush1.bf16.msra.mxu0 %v3594
  %4416 = vmatprep.subr.bf16.mxu0 0
  %4417 = vmatpush1.bf16.msra.mxu0 %v3593
  %4418 = vmatprep.subr.bf16.mxu0 0
  %4419 = vmatpush2.bf16.msra.mxu0 %v3608
  %4420 = vmatprep.subr.bf16.mxu0 0
  %4421 = vmatpush2.bf16.msra.mxu0 %v3607
  %4422 = vmatprep.subr.bf16.mxu0 0
  %4423 = vmatpush2.bf16.msra.mxu0 %v3606
  %4424 = vmatprep.subr.bf16.mxu0 0
  %4425 = vmatpush2.bf16.msra.mxu0 %v3605
  %4426 = vmatprep.subr.bf16.mxu0 0
  %4427 = vmatpush2.bf16.msra.mxu0 %v3604
  %4428 = vmatprep.subr.bf16.mxu0 0
  %4429 = vmatpush2.bf16.msra.mxu0 %v3603
  %4430 = vmatprep.subr.bf16.mxu0 0
  %4431 = vmatpush2.bf16.msra.mxu0 %v3602
  %4432 = vmatprep.subr.bf16.mxu0 0
  %4433 = vmatpush2.bf16.msra.mxu0 %v3601
  %4434 = vmatprep.mubr.bf16.mxu0 %v1179
  %4435 = vmatmul.mubr.bf16.gmra.mxu0 %v1178
  %v4436 = vpop.f32.mrf.mxu0
  %v4437 = vadd.f32 %v4396, %v4436
  %v4438 = vpop.f32.mrf.mxu0
  %v4439 = vpop.f32.mrf.mxu0
  %v4440 = vadd.f32 %v4399, %v4439
  %v4441 = vpop.f32.mrf.mxu0
  %4442 = vdwg.mxu0
  %4443 = vmatprep.subr.bf16.mxu0 0
  %4444 = vmatpush1.bf16.msra.mxu0 %v3616
  %4445 = vmatprep.subr.bf16.mxu0 0
  %4446 = vmatpush1.bf16.msra.mxu0 %v3615
  %4447 = vmatprep.subr.bf16.mxu0 0
  %4448 = vmatpush1.bf16.msra.mxu0 %v3614
  %4449 = vmatprep.subr.bf16.mxu0 0
  %4450 = vmatpush1.bf16.msra.mxu0 %v3613
  %4451 = vmatprep.subr.bf16.mxu0 0
  %4452 = vmatpush1.bf16.msra.mxu0 %v3612
  %4453 = vmatprep.subr.bf16.mxu0 0
  %4454 = vmatpush1.bf16.msra.mxu0 %v3611
  %4455 = vmatprep.subr.bf16.mxu0 0
  %4456 = vmatpush1.bf16.msra.mxu0 %v3610
  %4457 = vmatprep.subr.bf16.mxu0 0
  %4458 = vmatpush1.bf16.msra.mxu0 %v3609
  %4459 = vmatprep.subr.bf16.mxu0 0
  %4460 = vmatpush2.bf16.msra.mxu0 %v3624
  %4461 = vmatprep.subr.bf16.mxu0 0
  %4462 = vmatpush2.bf16.msra.mxu0 %v3623
  %4463 = vmatprep.subr.bf16.mxu0 0
  %4464 = vmatpush2.bf16.msra.mxu0 %v3622
  %4465 = vmatprep.subr.bf16.mxu0 0
  %4466 = vmatpush2.bf16.msra.mxu0 %v3621
  %4467 = vmatprep.subr.bf16.mxu0 0
  %4468 = vmatpush2.bf16.msra.mxu0 %v3620
  %4469 = vmatprep.subr.bf16.mxu0 0
  %4470 = vmatpush2.bf16.msra.mxu0 %v3619
  %4471 = vmatprep.subr.bf16.mxu0 0
  %4472 = vmatpush2.bf16.msra.mxu0 %v3618
  %4473 = vmatprep.subr.bf16.mxu0 0
  %4474 = vmatpush2.bf16.msra.mxu0 %v3617
  %4475 = vmatprep.mubr.bf16.mxu0 %v1181
  %4476 = vmatmul.mubr.bf16.gmra.mxu0 %v1180
  %v4477 = vpop.f32.mrf.mxu0
  %v4478 = vadd.f32 %v4437, %v4477
  %v4479 = vpop.f32.mrf.mxu0
  %v4480 = vpop.f32.mrf.mxu0
  %v4481 = vadd.f32 %v4440, %v4480
  %v4482 = vpop.f32.mrf.mxu0
  %4483 = vdwg.mxu0
  %4484 = vmatprep.subr.bf16.mxu0 0
  %4485 = vmatpush1.bf16.msra.mxu0 %v3632
  %4486 = vmatprep.subr.bf16.mxu0 0
  %4487 = vmatpush1.bf16.msra.mxu0 %v3631
  %4488 = vmatprep.subr.bf16.mxu0 0
  %4489 = vmatpush1.bf16.msra.mxu0 %v3630
  %4490 = vmatprep.subr.bf16.mxu0 0
  %4491 = vmatpush1.bf16.msra.mxu0 %v3629
  %4492 = vmatprep.subr.bf16.mxu0 0
  %4493 = vmatpush1.bf16.msra.mxu0 %v3628
  %4494 = vmatprep.subr.bf16.mxu0 0
  %4495 = vmatpush1.bf16.msra.mxu0 %v3627
  %4496 = vmatprep.subr.bf16.mxu0 0
  %4497 = vmatpush1.bf16.msra.mxu0 %v3626
  %4498 = vmatprep.subr.bf16.mxu0 0
  %4499 = vmatpush1.bf16.msra.mxu0 %v3625
  %4500 = vmatprep.subr.bf16.mxu0 0
  %4501 = vmatpush2.bf16.msra.mxu0 %v3640
  %4502 = vmatprep.subr.bf16.mxu0 0
  %4503 = vmatpush2.bf16.msra.mxu0 %v3639
  %4504 = vmatprep.subr.bf16.mxu0 0
  %4505 = vmatpush2.bf16.msra.mxu0 %v3638
  %4506 = vmatprep.subr.bf16.mxu0 0
  %4507 = vmatpush2.bf16.msra.mxu0 %v3637
  %4508 = vmatprep.subr.bf16.mxu0 0
  %4509 = vmatpush2.bf16.msra.mxu0 %v3636
  %4510 = vmatprep.subr.bf16.mxu0 0
  %4511 = vmatpush2.bf16.msra.mxu0 %v3635
  %4512 = vmatprep.subr.bf16.mxu0 0
  %4513 = vmatpush2.bf16.msra.mxu0 %v3634
  %4514 = vmatprep.subr.bf16.mxu0 0
  %4515 = vmatpush2.bf16.msra.mxu0 %v3633
  %4516 = vmatprep.mubr.bf16.mxu0 %v1183
  %4517 = vmatmul.mubr.bf16.gmra.mxu0 %v1182
  %v4518 = vpop.f32.mrf.mxu0
  %v4519 = vadd.f32 %v4478, %v4518
  %v4520 = vpop.f32.mrf.mxu0
  %v4521 = vpop.f32.mrf.mxu0
  %v4522 = vadd.f32 %v4481, %v4521
  %v4523 = vpop.f32.mrf.mxu0
  %4524 = vdwg.mxu0
  %4525 = vmatprep.subr.bf16.mxu0 0
  %4526 = vmatpush1.bf16.msra.mxu0 %v3648
  %4527 = vmatprep.subr.bf16.mxu0 0
  %4528 = vmatpush1.bf16.msra.mxu0 %v3647
  %4529 = vmatprep.subr.bf16.mxu0 0
  %4530 = vmatpush1.bf16.msra.mxu0 %v3646
  %4531 = vmatprep.subr.bf16.mxu0 0
  %4532 = vmatpush1.bf16.msra.mxu0 %v3645
  %4533 = vmatprep.subr.bf16.mxu0 0
  %4534 = vmatpush1.bf16.msra.mxu0 %v3644
  %4535 = vmatprep.subr.bf16.mxu0 0
  %4536 = vmatpush1.bf16.msra.mxu0 %v3643
  %4537 = vmatprep.subr.bf16.mxu0 0
  %4538 = vmatpush1.bf16.msra.mxu0 %v3642
  %4539 = vmatprep.subr.bf16.mxu0 0
  %4540 = vmatpush1.bf16.msra.mxu0 %v3641
  %4541 = vmatprep.subr.bf16.mxu0 0
  %4542 = vmatpush2.bf16.msra.mxu0 %v3656
  %4543 = vmatprep.subr.bf16.mxu0 0
  %4544 = vmatpush2.bf16.msra.mxu0 %v3655
  %4545 = vmatprep.subr.bf16.mxu0 0
  %4546 = vmatpush2.bf16.msra.mxu0 %v3654
  %4547 = vmatprep.subr.bf16.mxu0 0
  %4548 = vmatpush2.bf16.msra.mxu0 %v3653
  %4549 = vmatprep.subr.bf16.mxu0 0
  %4550 = vmatpush2.bf16.msra.mxu0 %v3652
  %4551 = vmatprep.subr.bf16.mxu0 0
  %4552 = vmatpush2.bf16.msra.mxu0 %v3651
  %4553 = vmatprep.subr.bf16.mxu0 0
  %4554 = vmatpush2.bf16.msra.mxu0 %v3650
  %4555 = vmatprep.subr.bf16.mxu0 0
  %4556 = vmatpush2.bf16.msra.mxu0 %v3649
  %4557 = vmatprep.mubr.bf16.mxu0 %v1185
  %4558 = vmatmul.mubr.bf16.gmra.mxu0 %v1184
  %v4559 = vpop.f32.mrf.mxu0
  %v4560 = vadd.f32 %v4519, %v4559
  %v4561 = vpop.f32.mrf.mxu0
  %v4562 = vpop.f32.mrf.mxu0
  %v4563 = vadd.f32 %v4522, %v4562
  %v4564 = vpop.f32.mrf.mxu0
  %4565 = vdwg.mxu0
  %4566 = vmatprep.subr.bf16.mxu0 0
  %4567 = vmatpush1.bf16.msra.mxu0 %v3664
  %4568 = vmatprep.subr.bf16.mxu0 0
  %4569 = vmatpush1.bf16.msra.mxu0 %v3663
  %4570 = vmatprep.subr.bf16.mxu0 0
  %4571 = vmatpush1.bf16.msra.mxu0 %v3662
  %4572 = vmatprep.subr.bf16.mxu0 0
  %4573 = vmatpush1.bf16.msra.mxu0 %v3661
  %4574 = vmatprep.subr.bf16.mxu0 0
  %4575 = vmatpush1.bf16.msra.mxu0 %v3660
  %4576 = vmatprep.subr.bf16.mxu0 0
  %4577 = vmatpush1.bf16.msra.mxu0 %v3659
  %4578 = vmatprep.subr.bf16.mxu0 0
  %4579 = vmatpush1.bf16.msra.mxu0 %v3658
  %4580 = vmatprep.subr.bf16.mxu0 0
  %4581 = vmatpush1.bf16.msra.mxu0 %v3657
  %4582 = vmatprep.subr.bf16.mxu0 0
  %4583 = vmatpush2.bf16.msra.mxu0 %v3672
  %4584 = vmatprep.subr.bf16.mxu0 0
  %4585 = vmatpush2.bf16.msra.mxu0 %v3671
  %4586 = vmatprep.subr.bf16.mxu0 0
  %4587 = vmatpush2.bf16.msra.mxu0 %v3670
  %4588 = vmatprep.subr.bf16.mxu0 0
  %4589 = vmatpush2.bf16.msra.mxu0 %v3669
  %4590 = vmatprep.subr.bf16.mxu0 0
  %4591 = vmatpush2.bf16.msra.mxu0 %v3668
  %4592 = vmatprep.subr.bf16.mxu0 0
  %4593 = vmatpush2.bf16.msra.mxu0 %v3667
  %4594 = vmatprep.subr.bf16.mxu0 0
  %4595 = vmatpush2.bf16.msra.mxu0 %v3666
  %4596 = vmatprep.subr.bf16.mxu0 0
  %4597 = vmatpush2.bf16.msra.mxu0 %v3665
  %4598 = vmatprep.mubr.bf16.mxu0 %v1187
  %4599 = vmatmul.mubr.bf16.gmra.mxu0 %v1186
  %v4600 = vpop.f32.mrf.mxu0
  %v4601 = vadd.f32 %v4560, %v4600
  %v4602 = vpop.f32.mrf.mxu0
  %v4603 = vpop.f32.mrf.mxu0
  %v4604 = vadd.f32 %v4563, %v4603
  %v4605 = vpop.f32.mrf.mxu0
  %4606 = vdwg.mxu0
  %4607 = vmatprep.subr.bf16.mxu0 0
  %4608 = vmatpush1.bf16.msra.mxu0 %v3680
  %4609 = vmatprep.subr.bf16.mxu0 0
  %4610 = vmatpush1.bf16.msra.mxu0 %v3679
  %4611 = vmatprep.subr.bf16.mxu0 0
  %4612 = vmatpush1.bf16.msra.mxu0 %v3678
  %4613 = vmatprep.subr.bf16.mxu0 0
  %4614 = vmatpush1.bf16.msra.mxu0 %v3677
  %4615 = vmatprep.subr.bf16.mxu0 0
  %4616 = vmatpush1.bf16.msra.mxu0 %v3676
  %4617 = vmatprep.subr.bf16.mxu0 0
  %4618 = vmatpush1.bf16.msra.mxu0 %v3675
  %4619 = vmatprep.subr.bf16.mxu0 0
  %4620 = vmatpush1.bf16.msra.mxu0 %v3674
  %4621 = vmatprep.subr.bf16.mxu0 0
  %4622 = vmatpush1.bf16.msra.mxu0 %v3673
  %4623 = vmatprep.subr.bf16.mxu0 0
  %4624 = vmatpush2.bf16.msra.mxu0 %v3688
  %4625 = vmatprep.subr.bf16.mxu0 0
  %4626 = vmatpush2.bf16.msra.mxu0 %v3687
  %4627 = vmatprep.subr.bf16.mxu0 0
  %4628 = vmatpush2.bf16.msra.mxu0 %v3686
  %4629 = vmatprep.subr.bf16.mxu0 0
  %4630 = vmatpush2.bf16.msra.mxu0 %v3685
  %4631 = vmatprep.subr.bf16.mxu0 0
  %4632 = vmatpush2.bf16.msra.mxu0 %v3684
  %4633 = vmatprep.subr.bf16.mxu0 0
  %4634 = vmatpush2.bf16.msra.mxu0 %v3683
  %4635 = vmatprep.subr.bf16.mxu0 0
  %4636 = vmatpush2.bf16.msra.mxu0 %v3682
  %4637 = vmatprep.subr.bf16.mxu0 0
  %4638 = vmatpush2.bf16.msra.mxu0 %v3681
  %4639 = vmatprep.mubr.bf16.mxu0 %v1189
  %4640 = vmatmul.mubr.bf16.gmra.mxu0 %v1188
  %v4641 = vpop.f32.mrf.mxu0
  %v4642 = vadd.f32 %v4601, %v4641
  %v4643 = vpop.f32.mrf.mxu0
  %v4644 = vpop.f32.mrf.mxu0
  %v4645 = vadd.f32 %v4604, %v4644
  %v4646 = vpop.f32.mrf.mxu0
  %4647 = vdwg.mxu0
  %4648 = vmatprep.subr.bf16.mxu0 0
  %4649 = vmatpush1.bf16.msra.mxu0 %v3696
  %4650 = vmatprep.subr.bf16.mxu0 0
  %4651 = vmatpush1.bf16.msra.mxu0 %v3695
  %4652 = vmatprep.subr.bf16.mxu0 0
  %4653 = vmatpush1.bf16.msra.mxu0 %v3694
  %4654 = vmatprep.subr.bf16.mxu0 0
  %4655 = vmatpush1.bf16.msra.mxu0 %v3693
  %4656 = vmatprep.subr.bf16.mxu0 0
  %4657 = vmatpush1.bf16.msra.mxu0 %v3692
  %4658 = vmatprep.subr.bf16.mxu0 0
  %4659 = vmatpush1.bf16.msra.mxu0 %v3691
  %4660 = vmatprep.subr.bf16.mxu0 0
  %4661 = vmatpush1.bf16.msra.mxu0 %v3690
  %4662 = vmatprep.subr.bf16.mxu0 0
  %4663 = vmatpush1.bf16.msra.mxu0 %v3689
  %4664 = vmatprep.subr.bf16.mxu0 0
  %4665 = vmatpush2.bf16.msra.mxu0 %v3704
  %4666 = vmatprep.subr.bf16.mxu0 0
  %4667 = vmatpush2.bf16.msra.mxu0 %v3703
  %4668 = vmatprep.subr.bf16.mxu0 0
  %4669 = vmatpush2.bf16.msra.mxu0 %v3702
  %4670 = vmatprep.subr.bf16.mxu0 0
  %4671 = vmatpush2.bf16.msra.mxu0 %v3701
  %4672 = vmatprep.subr.bf16.mxu0 0
  %4673 = vmatpush2.bf16.msra.mxu0 %v3700
  %4674 = vmatprep.subr.bf16.mxu0 0
  %4675 = vmatpush2.bf16.msra.mxu0 %v3699
  %4676 = vmatprep.subr.bf16.mxu0 0
  %4677 = vmatpush2.bf16.msra.mxu0 %v3698
  %4678 = vmatprep.subr.bf16.mxu0 0
  %4679 = vmatpush2.bf16.msra.mxu0 %v3697
  %4680 = vmatprep.mubr.bf16.mxu0 %v1191
  %4681 = vmatmul.mubr.bf16.gmra.mxu0 %v1190
  %v4682 = vpop.f32.mrf.mxu0
  %v4683 = vadd.f32 %v4642, %v4682
  %v4684 = vpop.f32.mrf.mxu0
  %v4685 = vpop.f32.mrf.mxu0
  %v4686 = vadd.f32 %v4645, %v4685
  %v4687 = vpop.f32.mrf.mxu0
  %4688 = vdwg.mxu0
  %4689 = vmatprep.subr.bf16.mxu0 0
  %4690 = vmatpush1.bf16.msra.mxu0 %v3712
  %4691 = vmatprep.subr.bf16.mxu0 0
  %4692 = vmatpush1.bf16.msra.mxu0 %v3711
  %4693 = vmatprep.subr.bf16.mxu0 0
  %4694 = vmatpush1.bf16.msra.mxu0 %v3710
  %4695 = vmatprep.subr.bf16.mxu0 0
  %4696 = vmatpush1.bf16.msra.mxu0 %v3709
  %4697 = vmatprep.subr.bf16.mxu0 0
  %4698 = vmatpush1.bf16.msra.mxu0 %v3708
  %4699 = vmatprep.subr.bf16.mxu0 0
  %4700 = vmatpush1.bf16.msra.mxu0 %v3707
  %4701 = vmatprep.subr.bf16.mxu0 0
  %4702 = vmatpush1.bf16.msra.mxu0 %v3706
  %4703 = vmatprep.subr.bf16.mxu0 0
  %4704 = vmatpush1.bf16.msra.mxu0 %v3705
  %4705 = vmatprep.subr.bf16.mxu0 0
  %4706 = vmatpush2.bf16.msra.mxu0 %v3720
  %4707 = vmatprep.subr.bf16.mxu0 0
  %4708 = vmatpush2.bf16.msra.mxu0 %v3719
  %4709 = vmatprep.subr.bf16.mxu0 0
  %4710 = vmatpush2.bf16.msra.mxu0 %v3718
  %4711 = vmatprep.subr.bf16.mxu0 0
  %4712 = vmatpush2.bf16.msra.mxu0 %v3717
  %4713 = vmatprep.subr.bf16.mxu0 0
  %4714 = vmatpush2.bf16.msra.mxu0 %v3716
  %4715 = vmatprep.subr.bf16.mxu0 0
  %4716 = vmatpush2.bf16.msra.mxu0 %v3715
  %4717 = vmatprep.subr.bf16.mxu0 0
  %4718 = vmatpush2.bf16.msra.mxu0 %v3714
  %4719 = vmatprep.subr.bf16.mxu0 0
  %4720 = vmatpush2.bf16.msra.mxu0 %v3713
  %4721 = vmatprep.mubr.bf16.mxu0 %v1193
  %4722 = vmatmul.mubr.bf16.gmra.mxu0 %v1192
  %v4723 = vpop.f32.mrf.mxu0
  %v4724 = vadd.f32 %v4683, %v4723
  %v4725 = vpop.f32.mrf.mxu0
  %v4726 = vpop.f32.mrf.mxu0
  %v4727 = vadd.f32 %v4686, %v4726
  %v4728 = vpop.f32.mrf.mxu0
  %4729 = vdwg.mxu0
  %4730 = vmatprep.subr.bf16.mxu0 0
  %4731 = vmatpush1.bf16.msra.mxu0 %v3728
  %4732 = vmatprep.subr.bf16.mxu0 0
  %4733 = vmatpush1.bf16.msra.mxu0 %v3727
  %4734 = vmatprep.subr.bf16.mxu0 0
  %4735 = vmatpush1.bf16.msra.mxu0 %v3726
  %4736 = vmatprep.subr.bf16.mxu0 0
  %4737 = vmatpush1.bf16.msra.mxu0 %v3725
  %4738 = vmatprep.subr.bf16.mxu0 0
  %4739 = vmatpush1.bf16.msra.mxu0 %v3724
  %4740 = vmatprep.subr.bf16.mxu0 0
  %4741 = vmatpush1.bf16.msra.mxu0 %v3723
  %4742 = vmatprep.subr.bf16.mxu0 0
  %4743 = vmatpush1.bf16.msra.mxu0 %v3722
  %4744 = vmatprep.subr.bf16.mxu0 0
  %4745 = vmatpush1.bf16.msra.mxu0 %v3721
  %4746 = vmatprep.subr.bf16.mxu0 0
  %4747 = vmatpush2.bf16.msra.mxu0 %v3736
  %4748 = vmatprep.subr.bf16.mxu0 0
  %4749 = vmatpush2.bf16.msra.mxu0 %v3735
  %4750 = vmatprep.subr.bf16.mxu0 0
  %4751 = vmatpush2.bf16.msra.mxu0 %v3734
  %4752 = vmatprep.subr.bf16.mxu0 0
  %4753 = vmatpush2.bf16.msra.mxu0 %v3733
  %4754 = vmatprep.subr.bf16.mxu0 0
  %4755 = vmatpush2.bf16.msra.mxu0 %v3732
  %4756 = vmatprep.subr.bf16.mxu0 0
  %4757 = vmatpush2.bf16.msra.mxu0 %v3731
  %4758 = vmatprep.subr.bf16.mxu0 0
  %4759 = vmatpush2.bf16.msra.mxu0 %v3730
  %4760 = vmatprep.subr.bf16.mxu0 0
  %4761 = vmatpush2.bf16.msra.mxu0 %v3729
  %4762 = vmatprep.mubr.bf16.mxu0 %v1195
  %4763 = vmatmul.mubr.bf16.gmra.mxu0 %v1194
  %v4764 = vpop.f32.mrf.mxu0
  %v4765 = vadd.f32 %v4724, %v4764
  %v4766 = vpop.f32.mrf.mxu0
  %v4767 = vpop.f32.mrf.mxu0
  %v4768 = vadd.f32 %v4727, %v4767
  %v4769 = vpop.f32.mrf.mxu0
  %4770 = vdwg.mxu0
  %4771 = vmatprep.subr.bf16.mxu0 0
  %4772 = vmatpush1.bf16.msra.mxu0 %v3744
  %4773 = vmatprep.subr.bf16.mxu0 0
  %4774 = vmatpush1.bf16.msra.mxu0 %v3743
  %4775 = vmatprep.subr.bf16.mxu0 0
  %4776 = vmatpush1.bf16.msra.mxu0 %v3742
  %4777 = vmatprep.subr.bf16.mxu0 0
  %4778 = vmatpush1.bf16.msra.mxu0 %v3741
  %4779 = vmatprep.subr.bf16.mxu0 0
  %4780 = vmatpush1.bf16.msra.mxu0 %v3740
  %4781 = vmatprep.subr.bf16.mxu0 0
  %4782 = vmatpush1.bf16.msra.mxu0 %v3739
  %4783 = vmatprep.subr.bf16.mxu0 0
  %4784 = vmatpush1.bf16.msra.mxu0 %v3738
  %4785 = vmatprep.subr.bf16.mxu0 0
  %4786 = vmatpush1.bf16.msra.mxu0 %v3737
  %4787 = vmatprep.subr.bf16.mxu0 0
  %4788 = vmatpush2.bf16.msra.mxu0 %v3752
  %4789 = vmatprep.subr.bf16.mxu0 0
  %4790 = vmatpush2.bf16.msra.mxu0 %v3751
  %4791 = vmatprep.subr.bf16.mxu0 0
  %4792 = vmatpush2.bf16.msra.mxu0 %v3750
  %4793 = vmatprep.subr.bf16.mxu0 0
  %4794 = vmatpush2.bf16.msra.mxu0 %v3749
  %4795 = vmatprep.subr.bf16.mxu0 0
  %4796 = vmatpush2.bf16.msra.mxu0 %v3748
  %4797 = vmatprep.subr.bf16.mxu0 0
  %4798 = vmatpush2.bf16.msra.mxu0 %v3747
  %4799 = vmatprep.subr.bf16.mxu0 0
  %4800 = vmatpush2.bf16.msra.mxu0 %v3746
  %4801 = vmatprep.subr.bf16.mxu0 0
  %4802 = vmatpush2.bf16.msra.mxu0 %v3745
  %4803 = vmatprep.mubr.bf16.mxu0 %v1197
  %4804 = vmatmul.mubr.bf16.gmra.mxu0 %v1196
  %v4805 = vpop.f32.mrf.mxu0
  %v4806 = vadd.f32 %v4765, %v4805
  %v4807 = vpop.f32.mrf.mxu0
  %v4808 = vpop.f32.mrf.mxu0
  %v4809 = vadd.f32 %v4768, %v4808
  %v4810 = vpop.f32.mrf.mxu0
  %4811 = vdwg.mxu0
  %4812 = vmatprep.subr.bf16.mxu0 0
  %4813 = vmatpush1.bf16.msra.mxu0 %v3760
  %4814 = vmatprep.subr.bf16.mxu0 0
  %4815 = vmatpush1.bf16.msra.mxu0 %v3759
  %4816 = vmatprep.subr.bf16.mxu0 0
  %4817 = vmatpush1.bf16.msra.mxu0 %v3758
  %4818 = vmatprep.subr.bf16.mxu0 0
  %4819 = vmatpush1.bf16.msra.mxu0 %v3757
  %4820 = vmatprep.subr.bf16.mxu0 0
  %4821 = vmatpush1.bf16.msra.mxu0 %v3756
  %4822 = vmatprep.subr.bf16.mxu0 0
  %4823 = vmatpush1.bf16.msra.mxu0 %v3755
  %4824 = vmatprep.subr.bf16.mxu0 0
  %4825 = vmatpush1.bf16.msra.mxu0 %v3754
  %4826 = vmatprep.subr.bf16.mxu0 0
  %4827 = vmatpush1.bf16.msra.mxu0 %v3753
  %4828 = vmatprep.subr.bf16.mxu0 0
  %4829 = vmatpush2.bf16.msra.mxu0 %v3768
  %4830 = vmatprep.subr.bf16.mxu0 0
  %4831 = vmatpush2.bf16.msra.mxu0 %v3767
  %4832 = vmatprep.subr.bf16.mxu0 0
  %4833 = vmatpush2.bf16.msra.mxu0 %v3766
  %4834 = vmatprep.subr.bf16.mxu0 0
  %4835 = vmatpush2.bf16.msra.mxu0 %v3765
  %4836 = vmatprep.subr.bf16.mxu0 0
  %4837 = vmatpush2.bf16.msra.mxu0 %v3764
  %4838 = vmatprep.subr.bf16.mxu0 0
  %4839 = vmatpush2.bf16.msra.mxu0 %v3763
  %4840 = vmatprep.subr.bf16.mxu0 0
  %4841 = vmatpush2.bf16.msra.mxu0 %v3762
  %4842 = vmatprep.subr.bf16.mxu0 0
  %4843 = vmatpush2.bf16.msra.mxu0 %v3761
  %4844 = vmatprep.mubr.bf16.mxu0 %v1199
  %4845 = vmatmul.mubr.bf16.gmra.mxu0 %v1198
  %v4846 = vpop.f32.mrf.mxu0
  %v4847 = vadd.f32 %v4806, %v4846
  %v4848 = vpop.f32.mrf.mxu0
  %v4849 = vpop.f32.mrf.mxu0
  %v4850 = vadd.f32 %v4809, %v4849
  %v4851 = vpop.f32.mrf.mxu0
  %4852 = vdwg.mxu0
  %4853 = vmatprep.subr.bf16.mxu0 0
  %4854 = vmatpush1.bf16.msra.mxu0 %v3776
  %4855 = vmatprep.subr.bf16.mxu0 0
  %4856 = vmatpush1.bf16.msra.mxu0 %v3775
  %4857 = vmatprep.subr.bf16.mxu0 0
  %4858 = vmatpush1.bf16.msra.mxu0 %v3774
  %4859 = vmatprep.subr.bf16.mxu0 0
  %4860 = vmatpush1.bf16.msra.mxu0 %v3773
  %4861 = vmatprep.subr.bf16.mxu0 0
  %4862 = vmatpush1.bf16.msra.mxu0 %v3772
  %4863 = vmatprep.subr.bf16.mxu0 0
  %4864 = vmatpush1.bf16.msra.mxu0 %v3771
  %4865 = vmatprep.subr.bf16.mxu0 0
  %4866 = vmatpush1.bf16.msra.mxu0 %v3770
  %4867 = vmatprep.subr.bf16.mxu0 0
  %4868 = vmatpush1.bf16.msra.mxu0 %v3769
  %4869 = vmatprep.subr.bf16.mxu0 0
  %4870 = vmatpush2.bf16.msra.mxu0 %v3784
  %4871 = vmatprep.subr.bf16.mxu0 0
  %4872 = vmatpush2.bf16.msra.mxu0 %v3783
  %4873 = vmatprep.subr.bf16.mxu0 0
  %4874 = vmatpush2.bf16.msra.mxu0 %v3782
  %4875 = vmatprep.subr.bf16.mxu0 0
  %4876 = vmatpush2.bf16.msra.mxu0 %v3781
  %4877 = vmatprep.subr.bf16.mxu0 0
  %4878 = vmatpush2.bf16.msra.mxu0 %v3780
  %4879 = vmatprep.subr.bf16.mxu0 0
  %4880 = vmatpush2.bf16.msra.mxu0 %v3779
  %4881 = vmatprep.subr.bf16.mxu0 0
  %4882 = vmatpush2.bf16.msra.mxu0 %v3778
  %4883 = vmatprep.subr.bf16.mxu0 0
  %4884 = vmatpush2.bf16.msra.mxu0 %v3777
  %4885 = vmatprep.mubr.bf16.mxu0 %v1201
  %4886 = vmatmul.mubr.bf16.gmra.mxu0 %v1200
  %v4887 = vpop.f32.mrf.mxu0
  %v4888 = vadd.f32 %v4847, %v4887
  %v4889 = vpop.f32.mrf.mxu0
  %v4890 = vpop.f32.mrf.mxu0
  %v4891 = vadd.f32 %v4850, %v4890
  %v4892 = vpop.f32.mrf.mxu0
  %4893 = vdwg.mxu0
  %4894 = vmatprep.subr.bf16.mxu0 0
  %4895 = vmatpush1.bf16.msra.mxu0 %v3792
  %4896 = vmatprep.subr.bf16.mxu0 0
  %4897 = vmatpush1.bf16.msra.mxu0 %v3791
  %4898 = vmatprep.subr.bf16.mxu0 0
  %4899 = vmatpush1.bf16.msra.mxu0 %v3790
  %4900 = vmatprep.subr.bf16.mxu0 0
  %4901 = vmatpush1.bf16.msra.mxu0 %v3789
  %4902 = vmatprep.subr.bf16.mxu0 0
  %4903 = vmatpush1.bf16.msra.mxu0 %v3788
  %4904 = vmatprep.subr.bf16.mxu0 0
  %4905 = vmatpush1.bf16.msra.mxu0 %v3787
  %4906 = vmatprep.subr.bf16.mxu0 0
  %4907 = vmatpush1.bf16.msra.mxu0 %v3786
  %4908 = vmatprep.subr.bf16.mxu0 0
  %4909 = vmatpush1.bf16.msra.mxu0 %v3785
  %4910 = vmatprep.subr.bf16.mxu0 0
  %4911 = vmatpush2.bf16.msra.mxu0 %v3800
  %4912 = vmatprep.subr.bf16.mxu0 0
  %4913 = vmatpush2.bf16.msra.mxu0 %v3799
  %4914 = vmatprep.subr.bf16.mxu0 0
  %4915 = vmatpush2.bf16.msra.mxu0 %v3798
  %4916 = vmatprep.subr.bf16.mxu0 0
  %4917 = vmatpush2.bf16.msra.mxu0 %v3797
  %4918 = vmatprep.subr.bf16.mxu0 0
  %4919 = vmatpush2.bf16.msra.mxu0 %v3796
  %4920 = vmatprep.subr.bf16.mxu0 0
  %4921 = vmatpush2.bf16.msra.mxu0 %v3795
  %4922 = vmatprep.subr.bf16.mxu0 0
  %4923 = vmatpush2.bf16.msra.mxu0 %v3794
  %4924 = vmatprep.subr.bf16.mxu0 0
  %4925 = vmatpush2.bf16.msra.mxu0 %v3793
  %4926 = vmatprep.mubr.bf16.mxu0 %v1203
  %4927 = vmatmul.mubr.bf16.gmra.mxu0 %v1202
  %v4928 = vpop.f32.mrf.mxu0
  %v4929 = vadd.f32 %v4888, %v4928
  %v4930 = vpop.f32.mrf.mxu0
  %v4931 = vpop.f32.mrf.mxu0
  %v4932 = vadd.f32 %v4891, %v4931
  %v4933 = vpop.f32.mrf.mxu0
  %4934 = vdwg.mxu0
  %4935 = vmatprep.subr.bf16.mxu0 0
  %4936 = vmatpush1.bf16.msra.mxu0 %v3808
  %4937 = vmatprep.subr.bf16.mxu0 0
  %4938 = vmatpush1.bf16.msra.mxu0 %v3807
  %4939 = vmatprep.subr.bf16.mxu0 0
  %4940 = vmatpush1.bf16.msra.mxu0 %v3806
  %4941 = vmatprep.subr.bf16.mxu0 0
  %4942 = vmatpush1.bf16.msra.mxu0 %v3805
  %4943 = vmatprep.subr.bf16.mxu0 0
  %4944 = vmatpush1.bf16.msra.mxu0 %v3804
  %4945 = vmatprep.subr.bf16.mxu0 0
  %4946 = vmatpush1.bf16.msra.mxu0 %v3803
  %4947 = vmatprep.subr.bf16.mxu0 0
  %4948 = vmatpush1.bf16.msra.mxu0 %v3802
  %4949 = vmatprep.subr.bf16.mxu0 0
  %4950 = vmatpush1.bf16.msra.mxu0 %v3801
  %4951 = vmatprep.subr.bf16.mxu0 0
  %4952 = vmatpush2.bf16.msra.mxu0 %v3816
  %4953 = vmatprep.subr.bf16.mxu0 0
  %4954 = vmatpush2.bf16.msra.mxu0 %v3815
  %4955 = vmatprep.subr.bf16.mxu0 0
  %4956 = vmatpush2.bf16.msra.mxu0 %v3814
  %4957 = vmatprep.subr.bf16.mxu0 0
  %4958 = vmatpush2.bf16.msra.mxu0 %v3813
  %4959 = vmatprep.subr.bf16.mxu0 0
  %4960 = vmatpush2.bf16.msra.mxu0 %v3812
  %4961 = vmatprep.subr.bf16.mxu0 0
  %4962 = vmatpush2.bf16.msra.mxu0 %v3811
  %4963 = vmatprep.subr.bf16.mxu0 0
  %4964 = vmatpush2.bf16.msra.mxu0 %v3810
  %4965 = vmatprep.subr.bf16.mxu0 0
  %4966 = vmatpush2.bf16.msra.mxu0 %v3809
  %4967 = vmatprep.mubr.bf16.mxu0 %v1205
  %4968 = vmatmul.mubr.bf16.gmra.mxu0 %v1204
  %v4969 = vpop.f32.mrf.mxu0
  %v4970 = vadd.f32 %v4929, %v4969
  %v4971 = vpop.f32.mrf.mxu0
  %v4972 = vpop.f32.mrf.mxu0
  %v4973 = vadd.f32 %v4932, %v4972
  %v4974 = vpop.f32.mrf.mxu0
  %4975 = vdwg.mxu0
  %4976 = vmatprep.subr.bf16.mxu0 0
  %4977 = vmatpush1.bf16.msra.mxu0 %v3824
  %4978 = vmatprep.subr.bf16.mxu0 0
  %4979 = vmatpush1.bf16.msra.mxu0 %v3823
  %4980 = vmatprep.subr.bf16.mxu0 0
  %4981 = vmatpush1.bf16.msra.mxu0 %v3822
  %4982 = vmatprep.subr.bf16.mxu0 0
  %4983 = vmatpush1.bf16.msra.mxu0 %v3821
  %4984 = vmatprep.subr.bf16.mxu0 0
  %4985 = vmatpush1.bf16.msra.mxu0 %v3820
  %4986 = vmatprep.subr.bf16.mxu0 0
  %4987 = vmatpush1.bf16.msra.mxu0 %v3819
  %4988 = vmatprep.subr.bf16.mxu0 0
  %4989 = vmatpush1.bf16.msra.mxu0 %v3818
  %4990 = vmatprep.subr.bf16.mxu0 0
  %4991 = vmatpush1.bf16.msra.mxu0 %v3817
  %4992 = vmatprep.subr.bf16.mxu0 0
  %4993 = vmatpush2.bf16.msra.mxu0 %v3832
  %4994 = vmatprep.subr.bf16.mxu0 0
  %4995 = vmatpush2.bf16.msra.mxu0 %v3831
  %4996 = vmatprep.subr.bf16.mxu0 0
  %4997 = vmatpush2.bf16.msra.mxu0 %v3830
  %4998 = vmatprep.subr.bf16.mxu0 0
  %4999 = vmatpush2.bf16.msra.mxu0 %v3829
  %5000 = vmatprep.subr.bf16.mxu0 0
  %5001 = vmatpush2.bf16.msra.mxu0 %v3828
  %5002 = vmatprep.subr.bf16.mxu0 0
  %5003 = vmatpush2.bf16.msra.mxu0 %v3827
  %5004 = vmatprep.subr.bf16.mxu0 0
  %5005 = vmatpush2.bf16.msra.mxu0 %v3826
  %5006 = vmatprep.subr.bf16.mxu0 0
  %5007 = vmatpush2.bf16.msra.mxu0 %v3825
  %5008 = vmatprep.mubr.bf16.mxu0 %v1207
  %5009 = vmatmul.mubr.bf16.gmra.mxu0 %v1206
  %v5010 = vpop.f32.mrf.mxu0
  %v5011 = vadd.f32 %v4970, %v5010
  %v5012 = vpop.f32.mrf.mxu0
  %v5013 = vpop.f32.mrf.mxu0
  %v5014 = vadd.f32 %v4973, %v5013
  %v5015 = vpop.f32.mrf.mxu0
  %5016 = vdwg.mxu0
  %5017 = vmatprep.subr.bf16.mxu0 0
  %5018 = vmatpush1.bf16.msra.mxu0 %v3840
  %5019 = vmatprep.subr.bf16.mxu0 0
  %5020 = vmatpush1.bf16.msra.mxu0 %v3839
  %5021 = vmatprep.subr.bf16.mxu0 0
  %5022 = vmatpush1.bf16.msra.mxu0 %v3838
  %5023 = vmatprep.subr.bf16.mxu0 0
  %5024 = vmatpush1.bf16.msra.mxu0 %v3837
  %5025 = vmatprep.subr.bf16.mxu0 0
  %5026 = vmatpush1.bf16.msra.mxu0 %v3836
  %5027 = vmatprep.subr.bf16.mxu0 0
  %5028 = vmatpush1.bf16.msra.mxu0 %v3835
  %5029 = vmatprep.subr.bf16.mxu0 0
  %5030 = vmatpush1.bf16.msra.mxu0 %v3834
  %5031 = vmatprep.subr.bf16.mxu0 0
  %5032 = vmatpush1.bf16.msra.mxu0 %v3833
  %5033 = vmatprep.subr.bf16.mxu0 0
  %5034 = vmatpush2.bf16.msra.mxu0 %v3848
  %5035 = vmatprep.subr.bf16.mxu0 0
  %5036 = vmatpush2.bf16.msra.mxu0 %v3847
  %5037 = vmatprep.subr.bf16.mxu0 0
  %5038 = vmatpush2.bf16.msra.mxu0 %v3846
  %5039 = vmatprep.subr.bf16.mxu0 0
  %5040 = vmatpush2.bf16.msra.mxu0 %v3845
  %5041 = vmatprep.subr.bf16.mxu0 0
  %5042 = vmatpush2.bf16.msra.mxu0 %v3844
  %5043 = vmatprep.subr.bf16.mxu0 0
  %5044 = vmatpush2.bf16.msra.mxu0 %v3843
  %5045 = vmatprep.subr.bf16.mxu0 0
  %5046 = vmatpush2.bf16.msra.mxu0 %v3842
  %5047 = vmatprep.subr.bf16.mxu0 0
  %5048 = vmatpush2.bf16.msra.mxu0 %v3841
  %5049 = vmatprep.mubr.bf16.mxu0 %v1209
  %5050 = vmatmul.mubr.bf16.gmra.mxu0 %v1208
  %v5051 = vpop.f32.mrf.mxu0
  %v5052 = vadd.f32 %v5011, %v5051
  %v5053 = vpop.f32.mrf.mxu0
  %v5054 = vpop.f32.mrf.mxu0
  %v5055 = vadd.f32 %v5014, %v5054
  %v5056 = vpop.f32.mrf.mxu0
  %5057 = vdwg.mxu0
  %5058 = vmatprep.subr.bf16.mxu0 0
  %5059 = vmatpush1.bf16.msra.mxu0 %v3856
  %5060 = vmatprep.subr.bf16.mxu0 0
  %5061 = vmatpush1.bf16.msra.mxu0 %v3855
  %5062 = vmatprep.subr.bf16.mxu0 0
  %5063 = vmatpush1.bf16.msra.mxu0 %v3854
  %5064 = vmatprep.subr.bf16.mxu0 0
  %5065 = vmatpush1.bf16.msra.mxu0 %v3853
  %5066 = vmatprep.subr.bf16.mxu0 0
  %5067 = vmatpush1.bf16.msra.mxu0 %v3852
  %5068 = vmatprep.subr.bf16.mxu0 0
  %5069 = vmatpush1.bf16.msra.mxu0 %v3851
  %5070 = vmatprep.subr.bf16.mxu0 0
  %5071 = vmatpush1.bf16.msra.mxu0 %v3850
  %5072 = vmatprep.subr.bf16.mxu0 0
  %5073 = vmatpush1.bf16.msra.mxu0 %v3849
  %5074 = vmatprep.subr.bf16.mxu0 0
  %5075 = vmatpush2.bf16.msra.mxu0 %v3864
  %5076 = vmatprep.subr.bf16.mxu0 0
  %5077 = vmatpush2.bf16.msra.mxu0 %v3863
  %5078 = vmatprep.subr.bf16.mxu0 0
  %5079 = vmatpush2.bf16.msra.mxu0 %v3862
  %5080 = vmatprep.subr.bf16.mxu0 0
  %5081 = vmatpush2.bf16.msra.mxu0 %v3861
  %5082 = vmatprep.subr.bf16.mxu0 0
  %5083 = vmatpush2.bf16.msra.mxu0 %v3860
  %5084 = vmatprep.subr.bf16.mxu0 0
  %5085 = vmatpush2.bf16.msra.mxu0 %v3859
  %5086 = vmatprep.subr.bf16.mxu0 0
  %5087 = vmatpush2.bf16.msra.mxu0 %v3858
  %5088 = vmatprep.subr.bf16.mxu0 0
  %5089 = vmatpush2.bf16.msra.mxu0 %v3857
  %5090 = vmatprep.mubr.bf16.mxu0 %v1211
  %5091 = vmatmul.mubr.bf16.gmra.mxu0 %v1210
  %v5092 = vpop.f32.mrf.mxu0
  %v5093 = vadd.f32 %v5052, %v5092
  %v5094 = vpop.f32.mrf.mxu0
  %v5095 = vpop.f32.mrf.mxu0
  %v5096 = vadd.f32 %v5055, %v5095
  %v5097 = vpop.f32.mrf.mxu0
  %5098 = vdwg.mxu0
  %5099 = vmatprep.subr.bf16.mxu0 0
  %5100 = vmatpush1.bf16.msra.mxu0 %v3872
  %5101 = vmatprep.subr.bf16.mxu0 0
  %5102 = vmatpush1.bf16.msra.mxu0 %v3871
  %5103 = vmatprep.subr.bf16.mxu0 0
  %5104 = vmatpush1.bf16.msra.mxu0 %v3870
  %5105 = vmatprep.subr.bf16.mxu0 0
  %5106 = vmatpush1.bf16.msra.mxu0 %v3869
  %5107 = vmatprep.subr.bf16.mxu0 0
  %5108 = vmatpush1.bf16.msra.mxu0 %v3868
  %5109 = vmatprep.subr.bf16.mxu0 0
  %5110 = vmatpush1.bf16.msra.mxu0 %v3867
  %5111 = vmatprep.subr.bf16.mxu0 0
  %5112 = vmatpush1.bf16.msra.mxu0 %v3866
  %5113 = vmatprep.subr.bf16.mxu0 0
  %5114 = vmatpush1.bf16.msra.mxu0 %v3865
  %5115 = vmatprep.subr.bf16.mxu0 0
  %5116 = vmatpush2.bf16.msra.mxu0 %v3880
  %5117 = vmatprep.subr.bf16.mxu0 0
  %5118 = vmatpush2.bf16.msra.mxu0 %v3879
  %5119 = vmatprep.subr.bf16.mxu0 0
  %5120 = vmatpush2.bf16.msra.mxu0 %v3878
  %5121 = vmatprep.subr.bf16.mxu0 0
  %5122 = vmatpush2.bf16.msra.mxu0 %v3877
  %5123 = vmatprep.subr.bf16.mxu0 0
  %5124 = vmatpush2.bf16.msra.mxu0 %v3876
  %5125 = vmatprep.subr.bf16.mxu0 0
  %5126 = vmatpush2.bf16.msra.mxu0 %v3875
  %5127 = vmatprep.subr.bf16.mxu0 0
  %5128 = vmatpush2.bf16.msra.mxu0 %v3874
  %5129 = vmatprep.subr.bf16.mxu0 0
  %5130 = vmatpush2.bf16.msra.mxu0 %v3873
  %5131 = vmatprep.mubr.bf16.mxu0 %v1213
  %5132 = vmatmul.mubr.bf16.gmra.mxu0 %v1212
  %v5133 = vpop.f32.mrf.mxu0
  %v5134 = vadd.f32 %v5093, %v5133
  %v5135 = vpop.f32.mrf.mxu0
  %v5136 = vpop.f32.mrf.mxu0
  %v5137 = vadd.f32 %v5096, %v5136
  %v5138 = vpop.f32.mrf.mxu0
  %5139 = vdwg.mxu0
  %5140 = vmatprep.subr.bf16.mxu0 0
  %5141 = vmatpush1.bf16.msra.mxu0 %v3888
  %5142 = vmatprep.subr.bf16.mxu0 0
  %5143 = vmatpush1.bf16.msra.mxu0 %v3887
  %5144 = vmatprep.subr.bf16.mxu0 0
  %5145 = vmatpush1.bf16.msra.mxu0 %v3886
  %5146 = vmatprep.subr.bf16.mxu0 0
  %5147 = vmatpush1.bf16.msra.mxu0 %v3885
  %5148 = vmatprep.subr.bf16.mxu0 0
  %5149 = vmatpush1.bf16.msra.mxu0 %v3884
  %5150 = vmatprep.subr.bf16.mxu0 0
  %5151 = vmatpush1.bf16.msra.mxu0 %v3883
  %5152 = vmatprep.subr.bf16.mxu0 0
  %5153 = vmatpush1.bf16.msra.mxu0 %v3882
  %5154 = vmatprep.subr.bf16.mxu0 0
  %5155 = vmatpush1.bf16.msra.mxu0 %v3881
  %5156 = vmatprep.subr.bf16.mxu0 0
  %5157 = vmatpush2.bf16.msra.mxu0 %v3896
  %5158 = vmatprep.subr.bf16.mxu0 0
  %5159 = vmatpush2.bf16.msra.mxu0 %v3895
  %5160 = vmatprep.subr.bf16.mxu0 0
  %5161 = vmatpush2.bf16.msra.mxu0 %v3894
  %5162 = vmatprep.subr.bf16.mxu0 0
  %5163 = vmatpush2.bf16.msra.mxu0 %v3893
  %5164 = vmatprep.subr.bf16.mxu0 0
  %5165 = vmatpush2.bf16.msra.mxu0 %v3892
  %5166 = vmatprep.subr.bf16.mxu0 0
  %5167 = vmatpush2.bf16.msra.mxu0 %v3891
  %5168 = vmatprep.subr.bf16.mxu0 0
  %5169 = vmatpush2.bf16.msra.mxu0 %v3890
  %5170 = vmatprep.subr.bf16.mxu0 0
  %5171 = vmatpush2.bf16.msra.mxu0 %v3889
  %5172 = vmatprep.mubr.bf16.mxu0 %v1215
  %5173 = vmatmul.mubr.bf16.gmra.mxu0 %v1214
  %v5174 = vpop.f32.mrf.mxu0
  %v5175 = vadd.f32 %v5134, %v5174
  %v5176 = vpop.f32.mrf.mxu0
  %v5177 = vpop.f32.mrf.mxu0
  %v5178 = vadd.f32 %v5137, %v5177
  %v5179 = vpop.f32.mrf.mxu0
  %5180 = vdwg.mxu0
  %5181 = vmatprep.subr.bf16.mxu0 0
  %5182 = vmatpush1.bf16.msra.mxu0 %v3904
  %5183 = vmatprep.subr.bf16.mxu0 0
  %5184 = vmatpush1.bf16.msra.mxu0 %v3903
  %5185 = vmatprep.subr.bf16.mxu0 0
  %5186 = vmatpush1.bf16.msra.mxu0 %v3902
  %5187 = vmatprep.subr.bf16.mxu0 0
  %5188 = vmatpush1.bf16.msra.mxu0 %v3901
  %5189 = vmatprep.subr.bf16.mxu0 0
  %5190 = vmatpush1.bf16.msra.mxu0 %v3900
  %5191 = vmatprep.subr.bf16.mxu0 0
  %5192 = vmatpush1.bf16.msra.mxu0 %v3899
  %5193 = vmatprep.subr.bf16.mxu0 0
  %5194 = vmatpush1.bf16.msra.mxu0 %v3898
  %5195 = vmatprep.subr.bf16.mxu0 0
  %5196 = vmatpush1.bf16.msra.mxu0 %v3897
  %5197 = vmatprep.subr.bf16.mxu0 0
  %5198 = vmatpush2.bf16.msra.mxu0 %v3912
  %5199 = vmatprep.subr.bf16.mxu0 0
  %5200 = vmatpush2.bf16.msra.mxu0 %v3911
  %5201 = vmatprep.subr.bf16.mxu0 0
  %5202 = vmatpush2.bf16.msra.mxu0 %v3910
  %5203 = vmatprep.subr.bf16.mxu0 0
  %5204 = vmatpush2.bf16.msra.mxu0 %v3909
  %5205 = vmatprep.subr.bf16.mxu0 0
  %5206 = vmatpush2.bf16.msra.mxu0 %v3908
  %5207 = vmatprep.subr.bf16.mxu0 0
  %5208 = vmatpush2.bf16.msra.mxu0 %v3907
  %5209 = vmatprep.subr.bf16.mxu0 0
  %5210 = vmatpush2.bf16.msra.mxu0 %v3906
  %5211 = vmatprep.subr.bf16.mxu0 0
  %5212 = vmatpush2.bf16.msra.mxu0 %v3905
  %5213 = vmatprep.mubr.bf16.mxu0 %v1217
  %5214 = vmatmul.mubr.bf16.gmra.mxu0 %v1216
  %v5215 = vpop.f32.mrf.mxu0
  %v5216 = vadd.f32 %v5175, %v5215
  %v5217 = vpop.f32.mrf.mxu0
  %v5218 = vpop.f32.mrf.mxu0
  %v5219 = vadd.f32 %v5178, %v5218
  %v5220 = vpop.f32.mrf.mxu0
  %5221 = vdwg.mxu0
  %5222 = vmatprep.subr.bf16.mxu0 0
  %5223 = vmatpush1.bf16.msra.mxu0 %v3920
  %5224 = vmatprep.subr.bf16.mxu0 0
  %5225 = vmatpush1.bf16.msra.mxu0 %v3919
  %5226 = vmatprep.subr.bf16.mxu0 0
  %5227 = vmatpush1.bf16.msra.mxu0 %v3918
  %5228 = vmatprep.subr.bf16.mxu0 0
  %5229 = vmatpush1.bf16.msra.mxu0 %v3917
  %5230 = vmatprep.subr.bf16.mxu0 0
  %5231 = vmatpush1.bf16.msra.mxu0 %v3916
  %5232 = vmatprep.subr.bf16.mxu0 0
  %5233 = vmatpush1.bf16.msra.mxu0 %v3915
  %5234 = vmatprep.subr.bf16.mxu0 0
  %5235 = vmatpush1.bf16.msra.mxu0 %v3914
  %5236 = vmatprep.subr.bf16.mxu0 0
  %5237 = vmatpush1.bf16.msra.mxu0 %v3913
  %5238 = vmatprep.subr.bf16.mxu0 0
  %5239 = vmatpush2.bf16.msra.mxu0 %v3928
  %5240 = vmatprep.subr.bf16.mxu0 0
  %5241 = vmatpush2.bf16.msra.mxu0 %v3927
  %5242 = vmatprep.subr.bf16.mxu0 0
  %5243 = vmatpush2.bf16.msra.mxu0 %v3926
  %5244 = vmatprep.subr.bf16.mxu0 0
  %5245 = vmatpush2.bf16.msra.mxu0 %v3925
  %5246 = vmatprep.subr.bf16.mxu0 0
  %5247 = vmatpush2.bf16.msra.mxu0 %v3924
  %5248 = vmatprep.subr.bf16.mxu0 0
  %5249 = vmatpush2.bf16.msra.mxu0 %v3923
  %5250 = vmatprep.subr.bf16.mxu0 0
  %5251 = vmatpush2.bf16.msra.mxu0 %v3922
  %5252 = vmatprep.subr.bf16.mxu0 0
  %5253 = vmatpush2.bf16.msra.mxu0 %v3921
  %5254 = vmatprep.mubr.bf16.mxu0 %v1219
  %5255 = vmatmul.mubr.bf16.gmra.mxu0 %v1218
  %v5256 = vpop.f32.mrf.mxu0
  %v5257 = vadd.f32 %v5216, %v5256
  %v5258 = vpop.f32.mrf.mxu0
  %v5259 = vpop.f32.mrf.mxu0
  %v5260 = vadd.f32 %v5219, %v5259
  %v5261 = vpop.f32.mrf.mxu0
  %5262 = vdwg.mxu0
  %5263 = vmatprep.subr.bf16.mxu0 0
  %5264 = vmatpush1.bf16.msra.mxu0 %v3936
  %5265 = vmatprep.subr.bf16.mxu0 0
  %5266 = vmatpush1.bf16.msra.mxu0 %v3935
  %5267 = vmatprep.subr.bf16.mxu0 0
  %5268 = vmatpush1.bf16.msra.mxu0 %v3934
  %5269 = vmatprep.subr.bf16.mxu0 0
  %5270 = vmatpush1.bf16.msra.mxu0 %v3933
  %5271 = vmatprep.subr.bf16.mxu0 0
  %5272 = vmatpush1.bf16.msra.mxu0 %v3932
  %5273 = vmatprep.subr.bf16.mxu0 0
  %5274 = vmatpush1.bf16.msra.mxu0 %v3931
  %5275 = vmatprep.subr.bf16.mxu0 0
  %5276 = vmatpush1.bf16.msra.mxu0 %v3930
  %5277 = vmatprep.subr.bf16.mxu0 0
  %5278 = vmatpush1.bf16.msra.mxu0 %v3929
  %5279 = vmatprep.subr.bf16.mxu0 0
  %5280 = vmatpush2.bf16.msra.mxu0 %v3944
  %5281 = vmatprep.subr.bf16.mxu0 0
  %5282 = vmatpush2.bf16.msra.mxu0 %v3943
  %5283 = vmatprep.subr.bf16.mxu0 0
  %5284 = vmatpush2.bf16.msra.mxu0 %v3942
  %5285 = vmatprep.subr.bf16.mxu0 0
  %5286 = vmatpush2.bf16.msra.mxu0 %v3941
  %5287 = vmatprep.subr.bf16.mxu0 0
  %5288 = vmatpush2.bf16.msra.mxu0 %v3940
  %5289 = vmatprep.subr.bf16.mxu0 0
  %5290 = vmatpush2.bf16.msra.mxu0 %v3939
  %5291 = vmatprep.subr.bf16.mxu0 0
  %5292 = vmatpush2.bf16.msra.mxu0 %v3938
  %5293 = vmatprep.subr.bf16.mxu0 0
  %5294 = vmatpush2.bf16.msra.mxu0 %v3937
  %5295 = vmatprep.mubr.bf16.mxu0 %v1221
  %5296 = vmatmul.mubr.bf16.gmra.mxu0 %v1220
  %v5297 = vpop.f32.mrf.mxu0
  %v5298 = vadd.f32 %v5257, %v5297
  %v5299 = vpop.f32.mrf.mxu0
  %v5300 = vpop.f32.mrf.mxu0
  %v5301 = vadd.f32 %v5260, %v5300
  %v5302 = vpop.f32.mrf.mxu0
  %5303 = vdwg.mxu0
  %5304 = vmatprep.subr.bf16.mxu0 0
  %5305 = vmatpush1.bf16.msra.mxu0 %v3952
  %5306 = vmatprep.subr.bf16.mxu0 0
  %5307 = vmatpush1.bf16.msra.mxu0 %v3951
  %5308 = vmatprep.subr.bf16.mxu0 0
  %5309 = vmatpush1.bf16.msra.mxu0 %v3950
  %5310 = vmatprep.subr.bf16.mxu0 0
  %5311 = vmatpush1.bf16.msra.mxu0 %v3949
  %5312 = vmatprep.subr.bf16.mxu0 0
  %5313 = vmatpush1.bf16.msra.mxu0 %v3948
  %5314 = vmatprep.subr.bf16.mxu0 0
  %5315 = vmatpush1.bf16.msra.mxu0 %v3947
  %5316 = vmatprep.subr.bf16.mxu0 0
  %5317 = vmatpush1.bf16.msra.mxu0 %v3946
  %5318 = vmatprep.subr.bf16.mxu0 0
  %5319 = vmatpush1.bf16.msra.mxu0 %v3945
  %5320 = vmatprep.subr.bf16.mxu0 0
  %5321 = vmatpush2.bf16.msra.mxu0 %v3960
  %5322 = vmatprep.subr.bf16.mxu0 0
  %5323 = vmatpush2.bf16.msra.mxu0 %v3959
  %5324 = vmatprep.subr.bf16.mxu0 0
  %5325 = vmatpush2.bf16.msra.mxu0 %v3958
  %5326 = vmatprep.subr.bf16.mxu0 0
  %5327 = vmatpush2.bf16.msra.mxu0 %v3957
  %5328 = vmatprep.subr.bf16.mxu0 0
  %5329 = vmatpush2.bf16.msra.mxu0 %v3956
  %5330 = vmatprep.subr.bf16.mxu0 0
  %5331 = vmatpush2.bf16.msra.mxu0 %v3955
  %5332 = vmatprep.subr.bf16.mxu0 0
  %5333 = vmatpush2.bf16.msra.mxu0 %v3954
  %5334 = vmatprep.subr.bf16.mxu0 0
  %5335 = vmatpush2.bf16.msra.mxu0 %v3953
  %5336 = vmatprep.mubr.bf16.mxu0 %v1223
  %5337 = vmatmul.mubr.bf16.gmra.mxu0 %v1222
  %v5338 = vpop.f32.mrf.mxu0
  %v5339 = vadd.f32 %v5298, %v5338
  %v5340 = vpop.f32.mrf.mxu0
  %v5341 = vpop.f32.mrf.mxu0
  %v5342 = vadd.f32 %v5301, %v5341
  %v5343 = vpop.f32.mrf.mxu0
  %5344 = vdwg.mxu0
  %5345 = vmatprep.subr.bf16.mxu0 0
  %5346 = vmatpush1.bf16.msra.mxu0 %v3968
  %5347 = vmatprep.subr.bf16.mxu0 0
  %5348 = vmatpush1.bf16.msra.mxu0 %v3967
  %5349 = vmatprep.subr.bf16.mxu0 0
  %5350 = vmatpush1.bf16.msra.mxu0 %v3966
  %5351 = vmatprep.subr.bf16.mxu0 0
  %5352 = vmatpush1.bf16.msra.mxu0 %v3965
  %5353 = vmatprep.subr.bf16.mxu0 0
  %5354 = vmatpush1.bf16.msra.mxu0 %v3964
  %5355 = vmatprep.subr.bf16.mxu0 0
  %5356 = vmatpush1.bf16.msra.mxu0 %v3963
  %5357 = vmatprep.subr.bf16.mxu0 0
  %5358 = vmatpush1.bf16.msra.mxu0 %v3962
  %5359 = vmatprep.subr.bf16.mxu0 0
  %5360 = vmatpush1.bf16.msra.mxu0 %v3961
  %5361 = vmatprep.subr.bf16.mxu0 0
  %5362 = vmatpush2.bf16.msra.mxu0 0
  %5363 = vmatprep.subr.bf16.mxu0 0
  %5364 = vmatpush2.bf16.msra.mxu0 0
  %5365 = vmatprep.subr.bf16.mxu0 0
  %5366 = vmatpush2.bf16.msra.mxu0 0
  %5367 = vmatprep.subr.bf16.mxu0 0
  %5368 = vmatpush2.bf16.msra.mxu0 0
  %5369 = vmatprep.subr.bf16.mxu0 0
  %5370 = vmatpush2.bf16.msra.mxu0 0
  %5371 = vmatprep.subr.bf16.mxu0 0
  %5372 = vmatpush2.bf16.msra.mxu0 0
  %5373 = vmatprep.subr.bf16.mxu0 0
  %5374 = vmatpush2.bf16.msra.mxu0 0
  %5375 = vmatprep.subr.bf16.mxu0 0
  %5376 = vmatpush2.bf16.msra.mxu0 0
  %5377 = vmatprep.mubr.bf16.mxu0 0
  %5378 = vmatmul.mubr.bf16.gmra.mxu0 %v1224
  %v5379 = vpop.f32.mrf.mxu0
  %v5380 = vadd.f32 %v5339, %v5379
  %v5381 = vpop.f32.mrf.mxu0
  %v5382 = vpop.f32.mrf.mxu0
  %v5383 = vadd.f32 %v5342, %v5382
  %v5384 = vpop.f32.mrf.mxu0
  %5385 = vdwg.mxu0
  %5386 = vst [vmem:[%s4] sm:$0xff] %v5380
  %5387 = vst [vmem:[%s4 + $0x8] sm:$0xff] %v5383
  %s5388 = smul.u32 0, 16
  %v5389 = vlaneseq
  %v5390 = vshrl.u32 %v5389, 7
  %v5391 = vadd.s32 %v5390, 8
  %v5392 = vstv %s5388
  %v5393 = vadd.s32 %v5392, %v5390
  %v5394 = vadd.s32 %v5392, %v5391
  %vm5395 = vcmp.lt.s32.totalorder %v5393, 2
  %vm5396 = vcmp.lt.s32.totalorder %v5394, 2
  %v5397 = vsel %vm5395, %v5380, 0.0
  %v5398 = vsel %vm5396, %v5383, 0.0
  %v5399 = vadd.f32 %v5397, %v5398
  %v5400 = vrot.slane %v5399, 4
  %v5401 = vadd.f32 %v5399, %v5400
  %v5402 = vrot.slane %v5401, 2
  %v5403 = vadd.f32 %v5401, %v5402
  %v5404 = vrot.slane %v5403, 1
  %v5405 = vadd.f32 %v5403, %v5404
  %5406 = vst [vmem:[%s5] sm:$0x1] %v5405
  %v5407 = vmul.f32 %v5397, %v5397
  %v5408 = vmul.f32 %v5398, %v5398
  %v5409 = vadd.f32 %v5407, %v5408
  %v5410 = vrot.slane %v5409, 4
  %v5411 = vadd.f32 %v5409, %v5410
  %v5412 = vrot.slane %v5411, 2
  %v5413 = vadd.f32 %v5411, %v5412
  %v5414 = vrot.slane %v5413, 1
  %v5415 = vadd.f32 %v5413, %v5414
  %5416 = vst [vmem:[%s5 + $0x1] sm:$0x1] %v5415
  // Predicated region
  $region18: #{encoder_forward.6} parent=0 // pred_check
    _
  $region19: #{encoder_forward.6} parent=0 // pred_check_branch
    %5418 = sbr.rel (0) target = $region21
  $region20: #{encoder_forward.6} parent=0 // pred_region
    _
  $region21: #{encoder_forward.6} parent=0 // pred_fallthru
    _
  // Predicated region
  $region22: #{encoder_forward.6} parent=0 // pred_check
    _
  $region23: #{encoder_forward.6} parent=0 // pred_check_branch
    %5420 = sbr.rel (0) target = $region25
  $region24: #{encoder_forward.6} parent=0 // pred_region
    _
  $region25: #{encoder_forward.6} parent=0 // pred_fallthru
    _
  // Predicated region
  $region26: #{encoder_forward.6} parent=0 // pred_check
    _
  $region27: #{encoder_forward.6} parent=0 // pred_check_branch
    %5422 = sbr.rel (0) target = $region29
  $region28: #{encoder_forward.6} parent=0 // pred_region
    _
  $region29: #{encoder_forward.6} parent=0 // pred_fallthru
    _
  // Predicated region
  $region30: #{encoder_forward.6} parent=0 // pred_check
    _
  $region31: #{encoder_forward.6} parent=0 // pred_check_branch
    %5424 = sbr.rel (0) target = $region33
  $region32: #{encoder_forward.6} parent=0 // pred_region
    _
  $region33: #{encoder_forward.6} parent=0 // pred_fallthru
    _

</llo_original>
